<compile_context>
chip_gen: v5e
topology: v5e:2x2
jax: 0.10.0
libtpu: 0.0.40
codegen_flags: <defaults>
</compile_context>

<pallas_src>
import functools
import math

import jax
import jax.numpy as jnp
from jax.experimental import pallas as pl
from jax.experimental.pallas import tpu as pltpu

LANE = 128


def _gelu(x):
    # TODO(synk): PyTorch RE2 uses erf GeLU; tanh approximation differs ~1e-3.
    return jax.nn.gelu(x, approximate=True)


def _ceil_to(x, m):
    return (x + m - 1) // m * m


def _batch_tile(b):
    # Batch tile that always divides B and keeps 2-D output blocks (8,128)-legal.
    if b <= 8:
        return b
    return 8 if b % 8 == 0 else b


# --------------------------------------------------------------------------
# Encoder: fused conv stack.  n_layers x (mask -> Conv1d(k=3, pad=1) -> GeLU),
# each conv as ONE im2col matmul over 3*Cin (built with sublane rolls).
# --------------------------------------------------------------------------
def _encoder_kernel(x_ref, m_ref, *rest, n_layers):
    o_ref = rest[-1]
    x = x_ref[...]                        # (bt, L, C) f32
    mask = m_ref[...]                     # (bt, L, 1) f32
    bt, seq, _ = x.shape
    row = jax.lax.broadcasted_iota(jnp.int32, (bt, seq, 1), 1)
    for j in range(n_layers):
        w = rest[2 * j][...]              # (3*Cin, Cout) bf16
        b = rest[2 * j + 1][...]          # (1, Cout) f32
        xm = x * mask                     # zero padded tokens before every conv
        c = xm.shape[-1]
        xf = xm.reshape(bt * seq, c)
        prev = pltpu.roll(xf, shift=1, axis=0).reshape(bt, seq, c)
        nxt = pltpu.roll(xf, shift=bt * seq - 1, axis=0).reshape(bt, seq, c)
        x_prev = jnp.where(row == 0, 0.0, prev)        # x[l-1], zero at seq start
        x_next = jnp.where(row == seq - 1, 0.0, nxt)   # x[l+1], zero at seq end
        xc = jnp.concatenate([x_prev, xm, x_next], axis=-1)      # (bt, L, 3*Cin)
        y = jnp.dot(xc.reshape(bt * seq, 3 * c).astype(jnp.bfloat16), w,
                    preferred_element_type=jnp.float32) + b
        x = _gelu(y).reshape(bt, seq, -1)
    o_ref[...] = x


def encoder_stack(layers, x, mask):
    B, L, Cp = x.shape
    Hp = layers[0]['w'].shape[1]
    bt = _batch_tile(B)
    in_specs = [pl.BlockSpec((bt, L, Cp), lambda i: (i, 0, 0)),
                pl.BlockSpec((bt, L, 1), lambda i: (i, 0, 0))]
    args = [x, mask]
    for lyr in layers:
        in_specs.append(pl.BlockSpec(lyr['w'].shape, lambda i: (0, 0)))
        in_specs.append(pl.BlockSpec(lyr['b'].shape, lambda i: (0, 0)))
        args.extend([lyr['w'], lyr['b']])
    return pl.pallas_call(
        functools.partial(_encoder_kernel, n_layers=len(layers)),
        out_shape=jax.ShapeDtypeStruct((B, L, Hp), jnp.float32),
        grid=(B // bt,),
        in_specs=in_specs,
        out_specs=pl.BlockSpec((bt, L, Hp), lambda i: (i, 0, 0)),
        compiler_params=pltpu.CompilerParams(dimension_semantics=("parallel",)),
    )(*args)


# --------------------------------------------------------------------------
# Alignment with fused projection.  attn = proj(a) @ proj(b)^T * temp, masked
# softmax both ways, align_a = softmax_b(attn) @ b ; align_b = softmax_a^T @ a.
# Both score orientations are computed directly so every product is a standard
# lane-contracted MXU matmul.
# --------------------------------------------------------------------------
def _alignment_kernel(a_ref, b_ref, ma_ref, mat_ref, mb_ref, mbt_ref, w_ref, bias_ref,
                      align_a_ref, align_b_ref, *, temperature):
    bt, la, dp = a_ref.shape
    lb = b_ref.shape[1]
    a = a_ref[...]                        # (bt, La, Dp) f32
    b = b_ref[...]                        # (bt, Lb, Dp) f32
    w = w_ref[...]                        # (Dp, Hp) bf16
    bias = bias_ref[...]                  # (1, Hp) f32

    def project(x, rows):
        y = jnp.dot(x.reshape(rows, dp).astype(jnp.bfloat16), w,
                    preferred_element_type=jnp.float32) + bias
        return _gelu(y)

    ap = project(a, bt * la).reshape(bt, la, -1).astype(jnp.bfloat16)
    bp = project(b, bt * lb).reshape(bt, lb, -1).astype(jnp.bfloat16)

    neg = jnp.float32(-1e7)
    s_ab = jnp.einsum('bqh,bkh->bqk', ap, bp,
                      preferred_element_type=jnp.float32) * temperature
    s_ba = jnp.einsum('bkh,bqh->bkq', bp, ap,
                      preferred_element_type=jnp.float32) * temperature
    s_ab = jnp.where(ma_ref[...] * mbt_ref[...] > 0, s_ab, neg)
    s_ba = jnp.where(mb_ref[...] * mat_ref[...] > 0, s_ba, neg)

    def softmax_last(s):
        e = jnp.exp(s - jnp.max(s, axis=-1, keepdims=True))
        return e / jnp.sum(e, axis=-1, keepdims=True)

    attn_b = softmax_last(s_ab)           # softmax over b positions (torch dim=2)
    attn_at = softmax_last(s_ba)          # softmax over a positions, pre-transposed
    align_a_ref[...] = jnp.einsum('bqk,bkd->bqd', attn_b.astype(jnp.bfloat16),
                                  b.astype(jnp.bfloat16),
                                  preferred_element_type=jnp.float32)
    align_b_ref[...] = jnp.einsum('bkq,bqd->bkd', attn_at.astype(jnp.bfloat16),
                                  a.astype(jnp.bfloat16),
                                  preferred_element_type=jnp.float32)


def alignment(p, a, b, mask_a, mask_b):
    B, La, Dp = a.shape
    Lb = b.shape[1]
    bt = _batch_tile(B)
    mask_at = jnp.transpose(mask_a, (0, 2, 1))
    mask_bt = jnp.transpose(mask_b, (0, 2, 1))
    kernel = functools.partial(_alignment_kernel, temperature=p['temperature'])
    return pl.pallas_call(
        kernel,
        out_shape=(jax.ShapeDtypeStruct((B, La, Dp), jnp.float32),
                   jax.ShapeDtypeStruct((B, Lb, Dp), jnp.float32)),
        grid=(B // bt,),
        in_specs=[pl.BlockSpec((bt, La, Dp), lambda i: (i, 0, 0)),
                  pl.BlockSpec((bt, Lb, Dp), lambda i: (i, 0, 0)),
                  pl.BlockSpec((bt, La, 1), lambda i: (i, 0, 0)),
                  pl.BlockSpec((bt, 1, La), lambda i: (i, 0, 0)),
                  pl.BlockSpec((bt, Lb, 1), lambda i: (i, 0, 0)),
                  pl.BlockSpec((bt, 1, Lb), lambda i: (i, 0, 0)),
                  pl.BlockSpec(p['w'].shape, lambda i: (0, 0)),
                  pl.BlockSpec(p['b'].shape, lambda i: (0, 0))],
        out_specs=(pl.BlockSpec((bt, La, Dp), lambda i: (i, 0, 0)),
                   pl.BlockSpec((bt, Lb, Dp), lambda i: (i, 0, 0))),
        compiler_params=pltpu.CompilerParams(dimension_semantics=("parallel",),
                                             vmem_limit_bytes=48 * 1024 * 1024),
    )(a, b, mask_a, mask_at, mask_b, mask_bt, p['w'], p['b'])


# --------------------------------------------------------------------------
# Full fusion: three GeLU linears on [x,align] / [x,x-align] / [x,x*align],
# then GeLU linear on their concat.  Concats folded into split-weight matmuls.
# a and b share weights, so their rows are stacked into one row-tiled call.
# --------------------------------------------------------------------------
def _fusion_kernel(x_ref, al_ref, w1_ref, b1_ref, w2_ref, b2_ref, w3_ref, b3_ref,
                   wo_ref, bo_ref, o_ref, *, d_pad, h_pad):
    x = x_ref[...]
    al = al_ref[...]
    xb = x.astype(jnp.bfloat16)

    def pair(u, v, wref, bref):
        w = wref[...]                     # (2*Dp, Hp) bf16
        y = (jnp.dot(u, w[:d_pad], preferred_element_type=jnp.float32)
             + jnp.dot(v, w[d_pad:], preferred_element_type=jnp.float32)
             + bref[...])
        return _gelu(y)

    x1 = pair(xb, al.astype(jnp.bfloat16), w1_ref, b1_ref)
    x2 = pair(xb, (x - al).astype(jnp.bfloat16), w2_ref, b2_ref)
    x3 = pair(xb, (x * al).astype(jnp.bfloat16), w3_ref, b3_ref)
    wo = wo_ref[...]                      # (3*Hp, Hp) bf16
    y = (jnp.dot(x1.astype(jnp.bfloat16), wo[:h_pad],
                 preferred_element_type=jnp.float32)
         + jnp.dot(x2.astype(jnp.bfloat16), wo[h_pad:2 * h_pad],
                   preferred_element_type=jnp.float32)
         + jnp.dot(x3.astype(jnp.bfloat16), wo[2 * h_pad:],
                   preferred_element_type=jnp.float32)
         + bo_ref[...])
    o_ref[...] = _gelu(y)


def fusion_pair(p, a, align_a, b, align_b):
    B, La, Dp = a.shape
    Lb = b.shape[1]
    Hp = p['wo'].shape[1]
    ra, rb = B * La, B * Lb
    x = jnp.concatenate([a.reshape(ra, Dp), b.reshape(rb, Dp)], axis=0)
    al = jnp.concatenate([align_a.reshape(ra, Dp), align_b.reshape(rb, Dp)], axis=0)
    R = ra + rb
    TM = R if R <= 512 else 512           # row tile; cap keeps VMEM bounded (v7x)
    Rp = _ceil_to(R, TM)
    if Rp != R:
        x = jnp.pad(x, ((0, Rp - R), (0, 0)))
        al = jnp.pad(al, ((0, Rp - R), (0, 0)))
    kernel = functools.partial(_fusion_kernel, d_pad=Dp, h_pad=Hp)
    out = pl.pallas_call(
        kernel,
        out_shape=jax.ShapeDtypeStruct((Rp, Hp), jnp.float32),
        grid=(Rp // TM,),
        in_specs=[pl.BlockSpec((TM, Dp), lambda i: (i, 0)),
                  pl.BlockSpec((TM, Dp), lambda i: (i, 0)),
                  pl.BlockSpec((2 * Dp, Hp), lambda i: (0, 0)),
                  pl.BlockSpec((1, Hp), lambda i: (0, 0)),
                  pl.BlockSpec((2 * Dp, Hp), lambda i: (0, 0)),
                  pl.BlockSpec((1, Hp), lambda i: (0, 0)),
                  pl.BlockSpec((2 * Dp, Hp), lambda i: (0, 0)),
                  pl.BlockSpec((1, Hp), lambda i: (0, 0)),
                  pl.BlockSpec((3 * Hp, Hp), lambda i: (0, 0)),
                  pl.BlockSpec((1, Hp), lambda i: (0, 0))],
        out_specs=pl.BlockSpec((TM, Hp), lambda i: (i, 0)),
        compiler_params=pltpu.CompilerParams(dimension_semantics=("parallel",),
                                             vmem_limit_bytes=48 * 1024 * 1024),
    )(x, al, p['w1'], p['b1'], p['w2'], p['b2'], p['w3'], p['b3'], p['wo'], p['bo'])
    return out[:ra].reshape(B, La, Hp), out[ra:R].reshape(B, Lb, Hp)


# --------------------------------------------------------------------------
# Masked max pooling + "full" prediction head (+ final softmax), fused.
# --------------------------------------------------------------------------
def _pool_predict_kernel(a_ref, b_ref, ma_ref, mb_ref, w1_ref, b1_ref, w2_ref, b2_ref,
                         logits_ref, probs_ref, *, h_pad):
    NEG = jnp.float32(-1e30)
    # TODO(synk): an all-padding sequence propagates -1e30 (as in the torch ref).
    a = jnp.where(ma_ref[...] > 0, a_ref[...], NEG)
    b = jnp.where(mb_ref[...] > 0, b_ref[...], NEG)
    ap = jnp.max(a, axis=1)               # (bt, Hp) masked max over seq
    bp = jnp.max(b, axis=1)
    w1 = w1_ref[...]                      # (4*Hp, Hp) bf16
    h = (jnp.dot(ap.astype(jnp.bfloat16), w1[:h_pad],
                 preferred_element_type=jnp.float32)
         + jnp.dot(bp.astype(jnp.bfloat16), w1[h_pad:2 * h_pad],
                   preferred_element_type=jnp.float32)
         + jnp.dot((ap - bp).astype(jnp.bfloat16), w1[2 * h_pad:3 * h_pad],
                   preferred_element_type=jnp.float32)
         + jnp.dot((ap * bp).astype(jnp.bfloat16), w1[3 * h_pad:],
                   preferred_element_type=jnp.float32)
         + b1_ref[...])
    h = _gelu(h)
    logits = jnp.dot(h.astype(jnp.bfloat16), w2_ref[...],
                     preferred_element_type=jnp.float32) + b2_ref[...]
    logits_ref[...] = logits
    m = jnp.max(logits, axis=-1, keepdims=True)
    e = jnp.exp(logits - m)
    probs_ref[...] = e / jnp.sum(e, axis=-1, keepdims=True)


def pool_predict(p, a, b, mask_a, mask_b):
    B, La, Hp = a.shape
    Lb = b.shape[1]
    C = p['w2'].shape[1]
    bt = _batch_tile(B)
    kernel = functools.partial(_pool_predict_kernel, h_pad=Hp)
    return pl.pallas_call(
        kernel,
        out_shape=(jax.ShapeDtypeStruct((B, C), jnp.float32),
                   jax.ShapeDtypeStruct((B, C), jnp.float32)),
        grid=(B // bt,),
        in_specs=[pl.BlockSpec((bt, La, Hp), lambda i: (i, 0, 0)),
                  pl.BlockSpec((bt, Lb, Hp), lambda i: (i, 0, 0)),
                  pl.BlockSpec((bt, La, 1), lambda i: (i, 0, 0)),
                  pl.BlockSpec((bt, Lb, 1), lambda i: (i, 0, 0)),
                  pl.BlockSpec((4 * Hp, Hp), lambda i: (0, 0)),
                  pl.BlockSpec((1, Hp), lambda i: (0, 0)),
                  pl.BlockSpec((Hp, C), lambda i: (0, 0)),
                  pl.BlockSpec((1, C), lambda i: (0, 0))],
        out_specs=(pl.BlockSpec((bt, C), lambda i: (i, 0)),
                   pl.BlockSpec((bt, C), lambda i: (i, 0))),
        compiler_params=pltpu.CompilerParams(dimension_semantics=("parallel",)),
    )(a, b, mask_a, mask_b, p['w1'], p['b1'], p['w2'], p['b2'])


# --------------------------------------------------------------------------
# Plain-JAX glue: augmented residual, full forward, parameter prep (padding
# every feature dim to a lane-dense multiple of 128, weights -> bf16).
# --------------------------------------------------------------------------
def aug_residual(x, res, i):
    if i == 1:
        return jnp.concatenate([x, res], axis=-1)          # res is the embedding
    hp = x.shape[-1]
    mixed = (res[:, :, :hp] + x) * math.sqrt(0.5)
    return jnp.concatenate([mixed, res[:, :, hp:]], axis=-1)


def _pad_seq(tok):
    L = tok.shape[1]
    Lp = _ceil_to(L, 8)
    return tok if Lp == L else jnp.pad(tok, ((0, 0), (0, Lp - L)))


def re2_forward(params, a_tok, b_tok):
    a_tok = _pad_seq(a_tok)
    b_tok = _pad_seq(b_tok)
    mask_a = (a_tok != 0).astype(jnp.float32)[:, :, None]   # (B, La, 1)
    mask_b = (b_tok != 0).astype(jnp.float32)[:, :, None]
    emb = params['embedding']
    a = emb[a_tok]
    b = emb[b_tok]
    res_a, res_b = a, b
    for i, blk in enumerate(params['blocks']):
        if i > 0:
            a = aug_residual(a, res_a, i)
            b = aug_residual(b, res_b, i)
            res_a, res_b = a, b
        a_enc = encoder_stack(blk['encoder'], a, mask_a)
        b_enc = encoder_stack(blk['encoder'], b, mask_b)
        a = jnp.concatenate([a, a_enc], axis=-1)
        b = jnp.concatenate([b, b_enc], axis=-1)
        align_a, align_b = alignment(blk['alignment'], a, b, mask_a, mask_b)
        a, b = fusion_pair(blk['fusion'], a, align_a, b, align_b)
    return pool_predict(params['prediction'], a, b, mask_a, mask_b)


# ----- padding helpers -----------------------------------------------------
def _pad_rows(w, segs):
    """Place contiguous row-segments of w at zero-padded offsets."""
    parts, off = [], 0
    for real, padded in segs:
        seg = w[off:off + real]
        if padded > real:
            seg = jnp.concatenate(
                [seg, jnp.zeros((padded - real, w.shape[1]), w.dtype)], axis=0)
        parts.append(seg)
        off += real
    assert off == w.shape[0]
    return parts[0] if len(parts) == 1 else jnp.concatenate(parts, axis=0)


def _pad_cols(w, n):
    if w.shape[1] == n:
        return w
    return jnp.concatenate([w, jnp.zeros((w.shape[0], n - w.shape[1]), w.dtype)], 1)


def prepare_params(raw, E, H):
    """Pad every feature dim to a multiple of 128, cast matmul weights to bf16,
    and pre-build im2col conv weights (3*Cin, Cout)."""
    Ep, Hp = _ceil_to(E, LANE), _ceil_to(H, LANE)
    out = {'embedding': _pad_cols(raw['embedding'], Ep), 'blocks': []}
    for i, blk in enumerate(raw['blocks']):
        enc_in_segs = [(E, Ep)] if i == 0 else [(H, Hp), (E, Ep)]
        enc_layers = []
        for j, lyr in enumerate(blk['encoder']):
            segs = enc_in_segs if j == 0 else [(H, Hp)]
            taps = [_pad_rows(lyr['w'][t], segs) for t in range(3)]
            w = _pad_cols(jnp.concatenate(taps, axis=0), Hp).astype(jnp.bfloat16)
            enc_layers.append({'w': w, 'b': _pad_cols(lyr['b'], Hp)})
        cat_segs = [(E, Ep), (H, Hp)] if i == 0 else [(H, Hp), (E, Ep), (H, Hp)]
        al = blk['alignment']
        align = {'w': _pad_cols(_pad_rows(al['w'], cat_segs), Hp).astype(jnp.bfloat16),
                 'b': _pad_cols(al['b'], Hp),
                 'temperature': float(al['temperature'])}
        fu = blk['fusion']
        fus_segs = cat_segs + cat_segs

        def fw(w):
            return _pad_cols(_pad_rows(w, fus_segs), Hp).astype(jnp.bfloat16)

        fusion = {'w1': fw(fu['w1']), 'b1': _pad_cols(fu['b1'], Hp),
                  'w2': fw(fu['w2']), 'b2': _pad_cols(fu['b2'], Hp),
                  'w3': fw(fu['w3']), 'b3': _pad_cols(fu['b3'], Hp),
                  'wo': _pad_cols(_pad_rows(fu['wo'], [(H, Hp)] * 3),
                                  Hp).astype(jnp.bfloat16),
                  'bo': _pad_cols(fu['bo'], Hp)}
        out['blocks'].append({'encoder': enc_layers, 'alignment': align,
                              'fusion': fusion})
    pr = raw['prediction']
    out['prediction'] = {
        'w1': _pad_cols(_pad_rows(pr['w1'], [(H, Hp)] * 4), Hp).astype(jnp.bfloat16),
        'b1': _pad_cols(pr['b1'], Hp),
        'w2': _pad_rows(pr['w2'], [(H, Hp)]).astype(jnp.bfloat16),
        'b2': pr['b2']}
    return out


def init_params(key, vocab, E, H, n_blocks, enc_layers, n_classes):
    keys = iter(jax.random.split(key, 256))

    def dense(shape, scale=0.08):
        return scale * jax.random.normal(next(keys), shape, dtype=jnp.float32)

    params = {'embedding': dense((vocab, E), 0.5), 'blocks': []}
    for i in range(n_blocks):
        enc_in = E if i == 0 else E + H
        convs = [{'w': dense((3, enc_in if j == 0 else H, H)),
                  'b': jnp.zeros((1, H), jnp.float32)} for j in range(enc_layers)]
        al_in = (E + H) if i == 0 else (E + 2 * H)
        align = {'w': dense((al_in, H)), 'b': jnp.zeros((1, H), jnp.float32),
                 'temperature': 1.0 / math.sqrt(H)}
        fus = {'w1': dense((2 * al_in, H)), 'b1': jnp.zeros((1, H), jnp.float32),
               'w2': dense((2 * al_in, H)), 'b2': jnp.zeros((1, H), jnp.float32),
               'w3': dense((2 * al_in, H)), 'b3': jnp.zeros((1, H), jnp.float32),
               'wo': dense((3 * H, H)), 'bo': jnp.zeros((1, H), jnp.float32)}
        params['blocks'].append({'encoder': convs, 'alignment': align, 'fusion': fus})
    params['prediction'] = {'w1': dense((4 * H, H)), 'b1': jnp.zeros((1, H), jnp.float32),
                            'w2': dense((H, n_classes)),
                            'b2': jnp.zeros((1, n_classes), jnp.float32)}
    return params


if __name__ == "__main__":
    B, L, E, H = 2, 8, 32, 32
    n_blocks, enc_layers, n_classes, vocab = 2, 2, 2, 64

    key = jax.random.PRNGKey(0)
    kp, ka, kb = jax.random.split(key, 3)
    raw_params = init_params(kp, vocab, E, H, n_blocks, enc_layers, n_classes)
    params = prepare_params(raw_params, E, H)

    a_tok = jax.random.randint(ka, (B, L), 1, vocab)
    b_tok = jax.random.randint(kb, (B, L), 1, vocab)
    a_tok = a_tok.at[:, L - 2:].set(0)     # trailing padding (token id 0)
    b_tok = b_tok.at[0, L - 3:].set(0)

    fwd = jax.jit(functools.partial(re2_forward, params))
    logits, probs = fwd(a_tok, b_tok)
    jax.block_until_ready((logits, probs))
    assert logits.shape == (B, n_classes) and probs.shape == (B, n_classes)
    assert bool(jnp.all(jnp.isfinite(probs)))
    print("KERNEL_OK")
</pallas_src>

<mosaic_0001>
module attributes {stable_mosaic.version = 11 : i64} {
  func.func @_encoder_kernel(%arg0: i32, %arg1: memref<2x8x128xf32, #tpu.memory_space<vmem>>, %arg2: memref<2x8x1xf32, #tpu.memory_space<vmem>>, %arg3: memref<384x128xbf16, #tpu.memory_space<vmem>>, %arg4: memref<1x128xf32, #tpu.memory_space<vmem>>, %arg5: memref<384x128xbf16, #tpu.memory_space<vmem>>, %arg6: memref<1x128xf32, #tpu.memory_space<vmem>>, %arg7: memref<2x8x128xf32, #tpu.memory_space<vmem>>) attributes {dimension_semantics = [#tpu.dimension_semantics<parallel>], iteration_bounds = array<i64: 1>, scalar_prefetch = 0 : i64, scratch_operands = 0 : i64, tpu.core_type = #tpu.core_type<tc>, window_params = [{transform_indices = @transform_0, window_bounds = array<i64: 2, 8, 128>}, {transform_indices = @transform_1, window_bounds = array<i64: 2, 8, 1>}, {pipeline_mode = #tpu.pipeline_mode<synchronous>, transform_indices = @transform_2, window_bounds = array<i64: 384, 128>}, {pipeline_mode = #tpu.pipeline_mode<synchronous>, transform_indices = @transform_3, window_bounds = array<i64: 1, 128>}, {pipeline_mode = #tpu.pipeline_mode<synchronous>, transform_indices = @transform_4, window_bounds = array<i64: 384, 128>}, {pipeline_mode = #tpu.pipeline_mode<synchronous>, transform_indices = @transform_5, window_bounds = array<i64: 1, 128>}, {transform_indices = @transform_6, window_bounds = array<i64: 2, 8, 128>}]} {
    %c0 = arith.constant 0 : index
    %c0_0 = arith.constant 0 : index
    %c0_1 = arith.constant 0 : index
    %0 = vector.load %arg1[%c0, %c0_0, %c0_1] : memref<2x8x128xf32, #tpu.memory_space<vmem>>, vector<2x8x128xf32>
    %c0_2 = arith.constant 0 : index
    %c0_3 = arith.constant 0 : index
    %c0_4 = arith.constant 0 : index
    %1 = vector.load %arg2[%c0_2, %c0_3, %c0_4] : memref<2x8x1xf32, #tpu.memory_space<vmem>>, vector<2x8x1xf32>
    %2 = tpu.iota {dimensions = array<i32: 1>} : vector<2x8x1xi32>
    %c0_5 = arith.constant 0 : index
    %c0_6 = arith.constant 0 : index
    %3 = vector.load %arg3[%c0_5, %c0_6] : memref<384x128xbf16, #tpu.memory_space<vmem>>, vector<384x128xbf16>
    %c0_7 = arith.constant 0 : index
    %c0_8 = arith.constant 0 : index
    %4 = vector.load %arg4[%c0_7, %c0_8] : memref<1x128xf32, #tpu.memory_space<vmem>>, vector<1x128xf32>
    %5 = vector.broadcast %1 : vector<2x8x1xf32> to vector<2x8x128xf32>
    %6 = arith.mulf %0, %5 : vector<2x8x128xf32>
    %7 = vector.shape_cast %6 : vector<2x8x128xf32> to vector<16x128xf32>
    %c1_i32 = arith.constant 1 : i32
    %8 = tpu.dynamic_rotate %7 by %c1_i32 dim 0 : vector<16x128xf32>, i32 -> vector<16x128xf32>
    %9 = vector.shape_cast %8 : vector<16x128xf32> to vector<2x8x128xf32>
    %c15_i32 = arith.constant 15 : i32
    %10 = tpu.dynamic_rotate %7 by %c15_i32 dim 0 : vector<16x128xf32>, i32 -> vector<16x128xf32>
    %11 = vector.shape_cast %10 : vector<16x128xf32> to vector<2x8x128xf32>
    %c0_i32 = arith.constant 0 : i32
    %12 = vector.broadcast %c0_i32 : i32 to vector<2x8x1xi32>
    %13 = arith.cmpi eq, %2, %12 : vector<2x8x1xi32>
    %cst = arith.constant 0.000000e+00 : f32
    %14 = vector.shape_cast %13 : vector<2x8x1xi1> to vector<2x8x1xi1>
    %15 = vector.broadcast %14 : vector<2x8x1xi1> to vector<2x8x128xi1>
    %16 = vector.broadcast %cst : f32 to vector<2x8x128xf32>
    %17 = arith.select %15, %16, %9 : vector<2x8x128xi1>, vector<2x8x128xf32>
    %c7_i32 = arith.constant 7 : i32
    %18 = vector.broadcast %c7_i32 : i32 to vector<2x8x1xi32>
    %19 = arith.cmpi eq, %2, %18 : vector<2x8x1xi32>
    %cst_9 = arith.constant 0.000000e+00 : f32
    %20 = vector.shape_cast %19 : vector<2x8x1xi1> to vector<2x8x1xi1>
    %21 = vector.broadcast %20 : vector<2x8x1xi1> to vector<2x8x128xi1>
    %22 = vector.broadcast %cst_9 : f32 to vector<2x8x128xf32>
    %23 = arith.select %21, %22, %11 : vector<2x8x128xi1>, vector<2x8x128xf32>
    %24 = tpu.concatenate %17, %6, %23 in 2 : vector<2x8x128xf32>, vector<2x8x128xf32>, vector<2x8x128xf32> -> vector<2x8x384xf32>
    %25 = vector.shape_cast %24 : vector<2x8x384xf32> to vector<16x384xf32>
    %26 = arith.truncf %25 : vector<16x384xf32> to vector<16x384xbf16>
    %cst_10 = arith.constant dense<0.000000e+00> : vector<16x128xf32>
    %27 = tpu.matmul %26, %3, %cst_10 {dimension_numbers = #tpu.dot_dimension_numbers<[1], [0], [0], [1], [0, 0, 1, 1], [], []>} : vector<16x384xbf16>, vector<384x128xbf16>, vector<16x128xf32> -> vector<16x128xf32>
    %28 = vector.broadcast %4 : vector<1x128xf32> to vector<16x128xf32>
    %29 = arith.addf %27, %28 : vector<16x128xf32>
    %30 = arith.mulf %29, %29 : vector<16x128xf32>
    %31 = arith.mulf %29, %30 : vector<16x128xf32>
    %cst_11 = arith.constant 4.471500e-02 : f32
    %32 = vector.broadcast %cst_11 : f32 to vector<16x128xf32>
    %33 = arith.mulf %32, %31 : vector<16x128xf32>
    %34 = arith.addf %29, %33 : vector<16x128xf32>
    %cst_12 = arith.constant 0.797884583 : f32
    %35 = vector.broadcast %cst_12 : f32 to vector<16x128xf32>
    %36 = arith.mulf %35, %34 : vector<16x128xf32>
    %37 = math.tanh %36 : vector<16x128xf32>
    %cst_13 = arith.constant 1.000000e+00 : f32
    %38 = vector.broadcast %cst_13 : f32 to vector<16x128xf32>
    %39 = arith.addf %38, %37 : vector<16x128xf32>
    %cst_14 = arith.constant 5.000000e-01 : f32
    %40 = vector.broadcast %cst_14 : f32 to vector<16x128xf32>
    %41 = arith.mulf %40, %39 : vector<16x128xf32>
    %42 = arith.mulf %29, %41 : vector<16x128xf32>
    %43 = vector.shape_cast %42 : vector<16x128xf32> to vector<2x8x128xf32>
    %c0_15 = arith.constant 0 : index
    %c0_16 = arith.constant 0 : index
    %44 = vector.load %arg5[%c0_15, %c0_16] : memref<384x128xbf16, #tpu.memory_space<vmem>>, vector<384x128xbf16>
    %c0_17 = arith.constant 0 : index
    %c0_18 = arith.constant 0 : index
    %45 = vector.load %arg6[%c0_17, %c0_18] : memref<1x128xf32, #tpu.memory_space<vmem>>, vector<1x128xf32>
    %46 = vector.broadcast %1 : vector<2x8x1xf32> to vector<2x8x128xf32>
    %47 = arith.mulf %43, %46 : vector<2x8x128xf32>
    %48 = vector.shape_cast %47 : vector<2x8x128xf32> to vector<16x128xf32>
    %c1_i32_19 = arith.constant 1 : i32
    %49 = tpu.dynamic_rotate %48 by %c1_i32_19 dim 0 : vector<16x128xf32>, i32 -> vector<16x128xf32>
    %50 = vector.shape_cast %49 : vector<16x128xf32> to vector<2x8x128xf32>
    %c15_i32_20 = arith.constant 15 : i32
    %51 = tpu.dynamic_rotate %48 by %c15_i32_20 dim 0 : vector<16x128xf32>, i32 -> vector<16x128xf32>
    %52 = vector.shape_cast %51 : vector<16x128xf32> to vector<2x8x128xf32>
    %c0_i32_21 = arith.constant 0 : i32
    %53 = vector.broadcast %c0_i32_21 : i32 to vector<2x8x1xi32>
    %54 = arith.cmpi eq, %2, %53 : vector<2x8x1xi32>
    %cst_22 = arith.constant 0.000000e+00 : f32
    %55 = vector.shape_cast %54 : vector<2x8x1xi1> to vector<2x8x1xi1>
    %56 = vector.broadcast %55 : vector<2x8x1xi1> to vector<2x8x128xi1>
    %57 = vector.broadcast %cst_22 : f32 to vector<2x8x128xf32>
    %58 = arith.select %56, %57, %50 : vector<2x8x128xi1>, vector<2x8x128xf32>
    %c7_i32_23 = arith.constant 7 : i32
    %59 = vector.broadcast %c7_i32_23 : i32 to vector<2x8x1xi32>
    %60 = arith.cmpi eq, %2, %59 : vector<2x8x1xi32>
    %cst_24 = arith.constant 0.000000e+00 : f32
    %61 = vector.shape_cast %60 : vector<2x8x1xi1> to vector<2x8x1xi1>
    %62 = vector.broadcast %61 : vector<2x8x1xi1> to vector<2x8x128xi1>
    %63 = vector.broadcast %cst_24 : f32 to vector<2x8x128xf32>
    %64 = arith.select %62, %63, %52 : vector<2x8x128xi1>, vector<2x8x128xf32>
    %65 = tpu.concatenate %58, %47, %64 in 2 : vector<2x8x128xf32>, vector<2x8x128xf32>, vector<2x8x128xf32> -> vector<2x8x384xf32>
    %66 = vector.shape_cast %65 : vector<2x8x384xf32> to vector<16x384xf32>
    %67 = arith.truncf %66 : vector<16x384xf32> to vector<16x384xbf16>
    %cst_25 = arith.constant dense<0.000000e+00> : vector<16x128xf32>
    %68 = tpu.matmul %67, %44, %cst_25 {dimension_numbers = #tpu.dot_dimension_numbers<[1], [0], [0], [1], [0, 0, 1, 1], [], []>} : vector<16x384xbf16>, vector<384x128xbf16>, vector<16x128xf32> -> vector<16x128xf32>
    %69 = vector.broadcast %45 : vector<1x128xf32> to vector<16x128xf32>
    %70 = arith.addf %68, %69 : vector<16x128xf32>
    %71 = arith.mulf %70, %70 : vector<16x128xf32>
    %72 = arith.mulf %70, %71 : vector<16x128xf32>
    %cst_26 = arith.constant 4.471500e-02 : f32
    %73 = vector.broadcast %cst_26 : f32 to vector<16x128xf32>
    %74 = arith.mulf %73, %72 : vector<16x128xf32>
    %75 = arith.addf %70, %74 : vector<16x128xf32>
    %cst_27 = arith.constant 0.797884583 : f32
    %76 = vector.broadcast %cst_27 : f32 to vector<16x128xf32>
    %77 = arith.mulf %76, %75 : vector<16x128xf32>
    %78 = math.tanh %77 : vector<16x128xf32>
    %cst_28 = arith.constant 1.000000e+00 : f32
    %79 = vector.broadcast %cst_28 : f32 to vector<16x128xf32>
    %80 = arith.addf %79, %78 : vector<16x128xf32>
    %cst_29 = arith.constant 5.000000e-01 : f32
    %81 = vector.broadcast %cst_29 : f32 to vector<16x128xf32>
    %82 = arith.mulf %81, %80 : vector<16x128xf32>
    %83 = arith.mulf %70, %82 : vector<16x128xf32>
    %84 = vector.shape_cast %83 : vector<16x128xf32> to vector<2x8x128xf32>
    %c0_30 = arith.constant 0 : index
    %c0_31 = arith.constant 0 : index
    %c0_32 = arith.constant 0 : index
    %85 = vector.load %arg7[%c0_30, %c0_31, %c0_32] : memref<2x8x128xf32, #tpu.memory_space<vmem>>, vector<2x8x128xf32>
    tpu.vector_store %arg7[%c0_30, %c0_31, %c0_32], %84 {strides = array<i32>} : memref<2x8x128xf32, #tpu.memory_space<vmem>>, vector<2x8x128xf32>,
    return
  }
  func.func @transform_0(%arg0: i32) -> (i32, i32, i32) {
    %c0_i32 = arith.constant 0 : i32
    %c0_i32_0 = arith.constant 0 : i32
    %c0_i32_1 = arith.constant 0 : i32
    return %arg0, %c0_i32, %c0_i32_0 : i32, i32, i32
  }
  func.func @transform_1(%arg0: i32) -> (i32, i32, i32) {
    %c0_i32 = arith.constant 0 : i32
    %c0_i32_0 = arith.constant 0 : i32
    %c0_i32_1 = arith.constant 0 : i32
    return %arg0, %c0_i32, %c0_i32_0 : i32, i32, i32
  }
  func.func @transform_2(%arg0: i32) -> (i32, i32) {
    %c0_i32 = arith.constant 0 : i32
    %c0_i32_0 = arith.constant 0 : i32
    %c0_i32_1 = arith.constant 0 : i32
    return %c0_i32, %c0_i32_0 : i32, i32
  }
  func.func @transform_3(%arg0: i32) -> (i32, i32) {
    %c0_i32 = arith.constant 0 : i32
    %c0_i32_0 = arith.constant 0 : i32
    %c0_i32_1 = arith.constant 0 : i32
    return %c0_i32, %c0_i32_0 : i32, i32
  }
  func.func @transform_4(%arg0: i32) -> (i32, i32) {
    %c0_i32 = arith.constant 0 : i32
    %c0_i32_0 = arith.constant 0 : i32
    %c0_i32_1 = arith.constant 0 : i32
    return %c0_i32, %c0_i32_0 : i32, i32
  }
  func.func @transform_5(%arg0: i32) -> (i32, i32) {
    %c0_i32 = arith.constant 0 : i32
    %c0_i32_0 = arith.constant 0 : i32
    %c0_i32_1 = arith.constant 0 : i32
    return %c0_i32, %c0_i32_0 : i32, i32
  }
  func.func @transform_6(%arg0: i32) -> (i32, i32, i32) {
    %c0_i32 = arith.constant 0 : i32
    %c0_i32_0 = arith.constant 0 : i32
    %c0_i32_1 = arith.constant 0 : i32
    return %arg0, %c0_i32, %c0_i32_0 : i32, i32, i32
  }
}

module attributes {stable_mosaic.version = 11 : i64} {
  func.func @_alignment_kernel(%arg0: i32, %arg1: memref<2x8x256xf32, #tpu.memory_space<vmem>>, %arg2: memref<2x8x256xf32, #tpu.memory_space<vmem>>, %arg3: memref<2x8x1xf32, #tpu.memory_space<vmem>>, %arg4: memref<2x1x8xf32, #tpu.memory_space<vmem>>, %arg5: memref<2x8x1xf32, #tpu.memory_space<vmem>>, %arg6: memref<2x1x8xf32, #tpu.memory_space<vmem>>, %arg7: memref<256x128xbf16, #tpu.memory_space<vmem>>, %arg8: memref<1x128xf32, #tpu.memory_space<vmem>>, %arg9: memref<2x8x256xf32, #tpu.memory_space<vmem>>, %arg10: memref<2x8x256xf32, #tpu.memory_space<vmem>>) attributes {dimension_semantics = [#tpu.dimension_semantics<parallel>], iteration_bounds = array<i64: 1>, scalar_prefetch = 0 : i64, scratch_operands = 0 : i64, tpu.core_type = #tpu.core_type<tc>, window_params = [{transform_indices = @transform_0, window_bounds = array<i64: 2, 8, 256>}, {transform_indices = @transform_1, window_bounds = array<i64: 2, 8, 256>}, {transform_indices = @transform_2, window_bounds = array<i64: 2, 8, 1>}, {transform_indices = @transform_3, window_bounds = array<i64: 2, 1, 8>}, {transform_indices = @transform_4, window_bounds = array<i64: 2, 8, 1>}, {transform_indices = @transform_5, window_bounds = array<i64: 2, 1, 8>}, {pipeline_mode = #tpu.pipeline_mode<synchronous>, transform_indices = @transform_6, window_bounds = array<i64: 256, 128>}, {pipeline_mode = #tpu.pipeline_mode<synchronous>, transform_indices = @transform_7, window_bounds = array<i64: 1, 128>}, {transform_indices = @transform_8, window_bounds = array<i64: 2, 8, 256>}, {transform_indices = @transform_9, window_bounds = array<i64: 2, 8, 256>}]} {
    %c0 = arith.constant 0 : index
    %c0_0 = arith.constant 0 : index
    %c0_1 = arith.constant 0 : index
    %0 = vector.load %arg1[%c0, %c0_0, %c0_1] : memref<2x8x256xf32, #tpu.memory_space<vmem>>, vector<2x8x256xf32>
    %c0_2 = arith.constant 0 : index
    %c0_3 = arith.constant 0 : index
    %c0_4 = arith.constant 0 : index
    %1 = vector.load %arg2[%c0_2, %c0_3, %c0_4] : memref<2x8x256xf32, #tpu.memory_space<vmem>>, vector<2x8x256xf32>
    %c0_5 = arith.constant 0 : index
    %c0_6 = arith.constant 0 : index
    %2 = vector.load %arg7[%c0_5, %c0_6] : memref<256x128xbf16, #tpu.memory_space<vmem>>, vector<256x128xbf16>
    %c0_7 = arith.constant 0 : index
    %c0_8 = arith.constant 0 : index
    %3 = vector.load %arg8[%c0_7, %c0_8] : memref<1x128xf32, #tpu.memory_space<vmem>>, vector<1x128xf32>
    %4 = vector.shape_cast %0 : vector<2x8x256xf32> to vector<16x256xf32>
    %5 = arith.truncf %4 : vector<16x256xf32> to vector<16x256xbf16>
    %cst = arith.constant dense<0.000000e+00> : vector<16x128xf32>
    %6 = tpu.matmul %5, %2, %cst {dimension_numbers = #tpu.dot_dimension_numbers<[1], [0], [0], [1], [0, 0, 1, 1], [], []>} : vector<16x256xbf16>, vector<256x128xbf16>, vector<16x128xf32> -> vector<16x128xf32>
    %7 = vector.broadcast %3 : vector<1x128xf32> to vector<16x128xf32>
    %8 = arith.addf %6, %7 : vector<16x128xf32>
    %9 = arith.mulf %8, %8 : vector<16x128xf32>
    %10 = arith.mulf %8, %9 : vector<16x128xf32>
    %cst_9 = arith.constant 4.471500e-02 : f32
    %11 = vector.broadcast %cst_9 : f32 to vector<16x128xf32>
    %12 = arith.mulf %11, %10 : vector<16x128xf32>
    %13 = arith.addf %8, %12 : vector<16x128xf32>
    %cst_10 = arith.constant 0.797884583 : f32
    %14 = vector.broadcast %cst_10 : f32 to vector<16x128xf32>
    %15 = arith.mulf %14, %13 : vector<16x128xf32>
    %16 = math.tanh %15 : vector<16x128xf32>
    %cst_11 = arith.constant 1.000000e+00 : f32
    %17 = vector.broadcast %cst_11 : f32 to vector<16x128xf32>
    %18 = arith.addf %17, %16 : vector<16x128xf32>
    %cst_12 = arith.constant 5.000000e-01 : f32
    %19 = vector.broadcast %cst_12 : f32 to vector<16x128xf32>
    %20 = arith.mulf %19, %18 : vector<16x128xf32>
    %21 = arith.mulf %8, %20 : vector<16x128xf32>
    %22 = vector.shape_cast %21 : vector<16x128xf32> to vector<2x8x128xf32>
    %23 = arith.truncf %22 : vector<2x8x128xf32> to vector<2x8x128xbf16>
    %24 = vector.shape_cast %1 : vector<2x8x256xf32> to vector<16x256xf32>
    %25 = arith.truncf %24 : vector<16x256xf32> to vector<16x256xbf16>
    %cst_13 = arith.constant dense<0.000000e+00> : vector<16x128xf32>
    %26 = tpu.matmul %25, %2, %cst_13 {dimension_numbers = #tpu.dot_dimension_numbers<[1], [0], [0], [1], [0, 0, 1, 1], [], []>} : vector<16x256xbf16>, vector<256x128xbf16>, vector<16x128xf32> -> vector<16x128xf32>
    %27 = vector.broadcast %3 : vector<1x128xf32> to vector<16x128xf32>
    %28 = arith.addf %26, %27 : vector<16x128xf32>
    %29 = arith.mulf %28, %28 : vector<16x128xf32>
    %30 = arith.mulf %28, %29 : vector<16x128xf32>
    %cst_14 = arith.constant 4.471500e-02 : f32
    %31 = vector.broadcast %cst_14 : f32 to vector<16x128xf32>
    %32 = arith.mulf %31, %30 : vector<16x128xf32>
    %33 = arith.addf %28, %32 : vector<16x128xf32>
    %cst_15 = arith.constant 0.797884583 : f32
    %34 = vector.broadcast %cst_15 : f32 to vector<16x128xf32>
    %35 = arith.mulf %34, %33 : vector<16x128xf32>
    %36 = math.tanh %35 : vector<16x128xf32>
    %cst_16 = arith.constant 1.000000e+00 : f32
    %37 = vector.broadcast %cst_16 : f32 to vector<16x128xf32>
    %38 = arith.addf %37, %36 : vector<16x128xf32>
    %cst_17 = arith.constant 5.000000e-01 : f32
    %39 = vector.broadcast %cst_17 : f32 to vector<16x128xf32>
    %40 = arith.mulf %39, %38 : vector<16x128xf32>
    %41 = arith.mulf %28, %40 : vector<16x128xf32>
    %42 = vector.shape_cast %41 : vector<16x128xf32> to vector<2x8x128xf32>
    %43 = arith.truncf %42 : vector<2x8x128xf32> to vector<2x8x128xbf16>
    "tpu.trace_start"() <{level = 10 : i32, message = "bqh,bkh->bqk"}> : () -> ()
    %cst_18 = arith.constant dense<0.000000e+00> : vector<2x8x8xf32>
    %44 = tpu.matmul %23, %43, %cst_18 {dimension_numbers = #tpu.dot_dimension_numbers<[2], [2], [1], [1], [0, 0, 0, 1, 1, 1], [0], [0]>} : vector<2x8x128xbf16>, vector<2x8x128xbf16>, vector<2x8x8xf32> -> vector<2x8x8xf32>
    "tpu.trace_stop"() : () -> ()
    %cst_19 = arith.constant 0.176776692 : f32
    %45 = vector.broadcast %cst_19 : f32 to vector<2x8x8xf32>
    %46 = arith.mulf %44, %45 : vector<2x8x8xf32>
    "tpu.trace_start"() <{level = 10 : i32, message = "bkh,bqh->bkq"}> : () -> ()
    %cst_20 = arith.constant dense<0.000000e+00> : vector<2x8x8xf32>
    %47 = tpu.matmul %43, %23, %cst_20 {dimension_numbers = #tpu.dot_dimension_numbers<[2], [2], [1], [1], [0, 0, 0, 1, 1, 1], [0], [0]>} : vector<2x8x128xbf16>, vector<2x8x128xbf16>, vector<2x8x8xf32> -> vector<2x8x8xf32>
    "tpu.trace_stop"() : () -> ()
    %cst_21 = arith.constant 0.176776692 : f32
    %48 = vector.broadcast %cst_21 : f32 to vector<2x8x8xf32>
    %49 = arith.mulf %47, %48 : vector<2x8x8xf32>
    %c0_22 = arith.constant 0 : index
    %c0_23 = arith.constant 0 : index
    %c0_24 = arith.constant 0 : index
    %50 = vector.load %arg3[%c0_22, %c0_23, %c0_24] : memref<2x8x1xf32, #tpu.memory_space<vmem>>, vector<2x8x1xf32>
    %c0_25 = arith.constant 0 : index
    %c0_26 = arith.constant 0 : index
    %c0_27 = arith.constant 0 : index
    %51 = vector.load %arg6[%c0_25, %c0_26, %c0_27] : memref<2x1x8xf32, #tpu.memory_space<vmem>>, vector<2x1x8xf32>
    %52 = vector.broadcast %50 : vector<2x8x1xf32> to vector<2x8x8xf32>
    %53 = vector.broadcast %51 : vector<2x1x8xf32> to vector<2x8x8xf32>
    %54 = arith.mulf %52, %53 : vector<2x8x8xf32>
    %cst_28 = arith.constant 0.000000e+00 : f32
    %55 = vector.broadcast %cst_28 : f32 to vector<2x8x8xf32>
    %56 = arith.cmpf ogt, %54, %55 : vector<2x8x8xf32>
    %cst_29 = arith.constant -1.000000e+07 : f32
    %57 = vector.broadcast %cst_29 : f32 to vector<2x8x8xf32>
    %58 = arith.select %56, %46, %57 : vector<2x8x8xi1>, vector<2x8x8xf32>
    %c0_30 = arith.constant 0 : index
    %c0_31 = arith.constant 0 : index
    %c0_32 = arith.constant 0 : index
    %59 = vector.load %arg5[%c0_30, %c0_31, %c0_32] : memref<2x8x1xf32, #tpu.memory_space<vmem>>, vector<2x8x1xf32>
    %c0_33 = arith.constant 0 : index
    %c0_34 = arith.constant 0 : index
    %c0_35 = arith.constant 0 : index
    %60 = vector.load %arg4[%c0_33, %c0_34, %c0_35] : memref<2x1x8xf32, #tpu.memory_space<vmem>>, vector<2x1x8xf32>
    %61 = vector.broadcast %59 : vector<2x8x1xf32> to vector<2x8x8xf32>
    %62 = vector.broadcast %60 : vector<2x1x8xf32> to vector<2x8x8xf32>
    %63 = arith.mulf %61, %62 : vector<2x8x8xf32>
    %cst_36 = arith.constant 0.000000e+00 : f32
    %64 = vector.broadcast %cst_36 : f32 to vector<2x8x8xf32>
    %65 = arith.cmpf ogt, %63, %64 : vector<2x8x8xf32>
    %cst_37 = arith.constant -1.000000e+07 : f32
    %66 = vector.broadcast %cst_37 : f32 to vector<2x8x8xf32>
    %67 = arith.select %65, %49, %66 : vector<2x8x8xi1>, vector<2x8x8xf32>
    %cst_38 = arith.constant dense<0xFF800000> : vector<2x8xf32>
    %68 = vector.multi_reduction <maximumf>, %58, %cst_38 [2] : vector<2x8x8xf32> to vector<2x8xf32>
    %69 = vector.shape_cast %68 : vector<2x8xf32> to vector<2x8x1xf32>
    %70 = vector.broadcast %69 : vector<2x8x1xf32> to vector<2x8x8xf32>
    %71 = arith.subf %58, %70 : vector<2x8x8xf32>
    %72 = math.exp %71 : vector<2x8x8xf32>
    %cst_39 = arith.constant dense<0.000000e+00> : vector<2x8xf32>
    %73 = vector.multi_reduction <add>, %72, %cst_39 [2] : vector<2x8x8xf32> to vector<2x8xf32>
    %74 = vector.shape_cast %73 : vector<2x8xf32> to vector<2x8x1xf32>
    %75 = vector.broadcast %74 : vector<2x8x1xf32> to vector<2x8x8xf32>
    %76 = arith.divf %72, %75 : vector<2x8x8xf32>
    %cst_40 = arith.constant dense<0xFF800000> : vector<2x8xf32>
    %77 = vector.multi_reduction <maximumf>, %67, %cst_40 [2] : vector<2x8x8xf32> to vector<2x8xf32>
    %78 = vector.shape_cast %77 : vector<2x8xf32> to vector<2x8x1xf32>
    %79 = vector.broadcast %78 : vector<2x8x1xf32> to vector<2x8x8xf32>
    %80 = arith.subf %67, %79 : vector<2x8x8xf32>
    %81 = math.exp %80 : vector<2x8x8xf32>
    %cst_41 = arith.constant dense<0.000000e+00> : vector<2x8xf32>
    %82 = vector.multi_reduction <add>, %81, %cst_41 [2] : vector<2x8x8xf32> to vector<2x8xf32>
    %83 = vector.shape_cast %82 : vector<2x8xf32> to vector<2x8x1xf32>
    %84 = vector.broadcast %83 : vector<2x8x1xf32> to vector<2x8x8xf32>
    %85 = arith.divf %81, %84 : vector<2x8x8xf32>
    %86 = arith.truncf %76 : vector<2x8x8xf32> to vector<2x8x8xbf16>
    %87 = arith.truncf %1 : vector<2x8x256xf32> to vector<2x8x256xbf16>
    "tpu.trace_start"() <{level = 10 : i32, message = "bqk,bkd->bqd"}> : () -> ()
    %cst_42 = arith.constant dense<0.000000e+00> : vector<2x8x256xf32>
    %88 = tpu.matmul %86, %87, %cst_42 {dimension_numbers = #tpu.dot_dimension_numbers<[2], [1], [1], [2], [0, 0, 0, 1, 1, 2], [0], [0]>} : vector<2x8x8xbf16>, vector<2x8x256xbf16>, vector<2x8x256xf32> -> vector<2x8x256xf32>
    "tpu.trace_stop"() : () -> ()
    %c0_43 = arith.constant 0 : index
    %c0_44 = arith.constant 0 : index
    %c0_45 = arith.constant 0 : index
    %89 = vector.load %arg9[%c0_43, %c0_44, %c0_45] : memref<2x8x256xf32, #tpu.memory_space<vmem>>, vector<2x8x256xf32>
    tpu.vector_store %arg9[%c0_43, %c0_44, %c0_45], %88 {strides = array<i32>} : memref<2x8x256xf32, #tpu.memory_space<vmem>>, vector<2x8x256xf32>,
    %90 = arith.truncf %85 : vector<2x8x8xf32> to vector<2x8x8xbf16>
    %91 = arith.truncf %0 : vector<2x8x256xf32> to vector<2x8x256xbf16>
    "tpu.trace_start"() <{level = 10 : i32, message = "bkq,bqd->bkd"}> : () -> ()
    %cst_46 = arith.constant dense<0.000000e+00> : vector<2x8x256xf32>
    %92 = tpu.matmul %90, %91, %cst_46 {dimension_numbers = #tpu.dot_dimension_numbers<[2], [1], [1], [2], [0, 0, 0, 1, 1, 2], [0], [0]>} : vector<2x8x8xbf16>, vector<2x8x256xbf16>, vector<2x8x256xf32> -> vector<2x8x256xf32>
    "tpu.trace_stop"() : () -> ()
    %c0_47 = arith.constant 0 : index
    %c0_48 = arith.constant 0 : index
    %c0_49 = arith.constant 0 : index
    %93 = vector.load %arg10[%c0_47, %c0_48, %c0_49] : memref<2x8x256xf32, #tpu.memory_space<vmem>>, vector<2x8x256xf32>
    tpu.vector_store %arg10[%c0_47, %c0_48, %c0_49], %92 {strides = array<i32>} : memref<2x8x256xf32, #tpu.memory_space<vmem>>, vector<2x8x256xf32>,
    return
  }
  func.func @transform_0(%arg0: i32) -> (i32, i32, i32) {
    %c0_i32 = arith.constant 0 : i32
    %c0_i32_0 = arith.constant 0 : i32
    %c0_i32_1 = arith.constant 0 : i32
    return %arg0, %c0_i32, %c0_i32_0 : i32, i32, i32
  }
  func.func @transform_1(%arg0: i32) -> (i32, i32, i32) {
    %c0_i32 = arith.constant 0 : i32
    %c0_i32_0 = arith.constant 0 : i32
    %c0_i32_1 = arith.constant 0 : i32
    return %arg0, %c0_i32, %c0_i32_0 : i32, i32, i32
  }
  func.func @transform_2(%arg0: i32) -> (i32, i32, i32) {
    %c0_i32 = arith.constant 0 : i32
    %c0_i32_0 = arith.constant 0 : i32
    %c0_i32_1 = arith.constant 0 : i32
    return %arg0, %c0_i32, %c0_i32_0 : i32, i32, i32
  }
  func.func @transform_3(%arg0: i32) -> (i32, i32, i32) {
    %c0_i32 = arith.constant 0 : i32
    %c0_i32_0 = arith.constant 0 : i32
    %c0_i32_1 = arith.constant 0 : i32
    return %arg0, %c0_i32, %c0_i32_0 : i32, i32, i32
  }
  func.func @transform_4(%arg0: i32) -> (i32, i32, i32) {
    %c0_i32 = arith.constant 0 : i32
    %c0_i32_0 = arith.constant 0 : i32
    %c0_i32_1 = arith.constant 0 : i32
    return %arg0, %c0_i32, %c0_i32_0 : i32, i32, i32
  }
  func.func @transform_5(%arg0: i32) -> (i32, i32, i32) {
    %c0_i32 = arith.constant 0 : i32
    %c0_i32_0 = arith.constant 0 : i32
    %c0_i32_1 = arith.constant 0 : i32
    return %arg0, %c0_i32, %c0_i32_0 : i32, i32, i32
  }
  func.func @transform_6(%arg0: i32) -> (i32, i32) {
    %c0_i32 = arith.constant 0 : i32
    %c0_i32_0 = arith.constant 0 : i32
    %c0_i32_1 = arith.constant 0 : i32
    return %c0_i32, %c0_i32_0 : i32, i32
  }
  func.func @transform_7(%arg0: i32) -> (i32, i32) {
    %c0_i32 = arith.constant 0 : i32
    %c0_i32_0 = arith.constant 0 : i32
    %c0_i32_1 = arith.constant 0 : i32
    return %c0_i32, %c0_i32_0 : i32, i32
  }
  func.func @transform_8(%arg0: i32) -> (i32, i32, i32) {
    %c0_i32 = arith.constant 0 : i32
    %c0_i32_0 = arith.constant 0 : i32
    %c0_i32_1 = arith.constant 0 : i32
    return %arg0, %c0_i32, %c0_i32_0 : i32, i32, i32
  }
  func.func @transform_9(%arg0: i32) -> (i32, i32, i32) {
    %c0_i32 = arith.constant 0 : i32
    %c0_i32_0 = arith.constant 0 : i32
    %c0_i32_1 = arith.constant 0 : i32
    return %arg0, %c0_i32, %c0_i32_0 : i32, i32, i32
  }
}

module attributes {stable_mosaic.version = 11 : i64} {
  func.func @_fusion_kernel(%arg0: i32, %arg1: memref<32x256xf32, #tpu.memory_space<vmem>>, %arg2: memref<32x256xf32, #tpu.memory_space<vmem>>, %arg3: memref<512x128xbf16, #tpu.memory_space<vmem>>, %arg4: memref<1x128xf32, #tpu.memory_space<vmem>>, %arg5: memref<512x128xbf16, #tpu.memory_space<vmem>>, %arg6: memref<1x128xf32, #tpu.memory_space<vmem>>, %arg7: memref<512x128xbf16, #tpu.memory_space<vmem>>, %arg8: memref<1x128xf32, #tpu.memory_space<vmem>>, %arg9: memref<384x128xbf16, #tpu.memory_space<vmem>>, %arg10: memref<1x128xf32, #tpu.memory_space<vmem>>, %arg11: memref<32x128xf32, #tpu.memory_space<vmem>>) attributes {dimension_semantics = [#tpu.dimension_semantics<parallel>], iteration_bounds = array<i64: 1>, scalar_prefetch = 0 : i64, scratch_operands = 0 : i64, tpu.core_type = #tpu.core_type<tc>, window_params = [{transform_indices = @transform_0, window_bounds = array<i64: 32, 256>}, {transform_indices = @transform_1, window_bounds = array<i64: 32, 256>}, {pipeline_mode = #tpu.pipeline_mode<synchronous>, transform_indices = @transform_2, window_bounds = array<i64: 512, 128>}, {pipeline_mode = #tpu.pipeline_mode<synchronous>, transform_indices = @transform_3, window_bounds = array<i64: 1, 128>}, {pipeline_mode = #tpu.pipeline_mode<synchronous>, transform_indices = @transform_4, window_bounds = array<i64: 512, 128>}, {pipeline_mode = #tpu.pipeline_mode<synchronous>, transform_indices = @transform_5, window_bounds = array<i64: 1, 128>}, {pipeline_mode = #tpu.pipeline_mode<synchronous>, transform_indices = @transform_6, window_bounds = array<i64: 512, 128>}, {pipeline_mode = #tpu.pipeline_mode<synchronous>, transform_indices = @transform_7, window_bounds = array<i64: 1, 128>}, {pipeline_mode = #tpu.pipeline_mode<synchronous>, transform_indices = @transform_8, window_bounds = array<i64: 384, 128>}, {pipeline_mode = #tpu.pipeline_mode<synchronous>, transform_indices = @transform_9, window_bounds = array<i64: 1, 128>}, {transform_indices = @transform_10, window_bounds = array<i64: 32, 128>}]} {
    %c0 = arith.constant 0 : index
    %c0_0 = arith.constant 0 : index
    %0 = vector.load %arg1[%c0, %c0_0] : memref<32x256xf32, #tpu.memory_space<vmem>>, vector<32x256xf32>
    %c0_1 = arith.constant 0 : index
    %c0_2 = arith.constant 0 : index
    %1 = vector.load %arg2[%c0_1, %c0_2] : memref<32x256xf32, #tpu.memory_space<vmem>>, vector<32x256xf32>
    %2 = arith.truncf %0 : vector<32x256xf32> to vector<32x256xbf16>
    %3 = arith.truncf %1 : vector<32x256xf32> to vector<32x256xbf16>
    %c0_3 = arith.constant 0 : index
    %c0_4 = arith.constant 0 : index
    %4 = vector.load %arg3[%c0_3, %c0_4] : memref<512x128xbf16, #tpu.memory_space<vmem>>, vector<512x128xbf16>
    %5 = vector.extract_strided_slice %4 {offsets = [0, 0], sizes = [256, 128], strides = [1, 1]} : vector<512x128xbf16> to vector<256x128xbf16>
    %cst = arith.constant dense<0.000000e+00> : vector<32x128xf32>
    %6 = tpu.matmul %2, %5, %cst {dimension_numbers = #tpu.dot_dimension_numbers<[1], [0], [0], [1], [0, 0, 1, 1], [], []>} : vector<32x256xbf16>, vector<256x128xbf16>, vector<32x128xf32> -> vector<32x128xf32>
    %7 = vector.extract_strided_slice %4 {offsets = [256, 0], sizes = [256, 128], strides = [1, 1]} : vector<512x128xbf16> to vector<256x128xbf16>
    %cst_5 = arith.constant dense<0.000000e+00> : vector<32x128xf32>
    %8 = tpu.matmul %3, %7, %cst_5 {dimension_numbers = #tpu.dot_dimension_numbers<[1], [0], [0], [1], [0, 0, 1, 1], [], []>} : vector<32x256xbf16>, vector<256x128xbf16>, vector<32x128xf32> -> vector<32x128xf32>
    %9 = arith.addf %6, %8 : vector<32x128xf32>
    %c0_6 = arith.constant 0 : index
    %c0_7 = arith.constant 0 : index
    %10 = vector.load %arg4[%c0_6, %c0_7] : memref<1x128xf32, #tpu.memory_space<vmem>>, vector<1x128xf32>
    %11 = vector.broadcast %10 : vector<1x128xf32> to vector<32x128xf32>
    %12 = arith.addf %9, %11 : vector<32x128xf32>
    %13 = arith.mulf %12, %12 : vector<32x128xf32>
    %14 = arith.mulf %12, %13 : vector<32x128xf32>
    %cst_8 = arith.constant 4.471500e-02 : f32
    %15 = vector.broadcast %cst_8 : f32 to vector<32x128xf32>
    %16 = arith.mulf %15, %14 : vector<32x128xf32>
    %17 = arith.addf %12, %16 : vector<32x128xf32>
    %cst_9 = arith.constant 0.797884583 : f32
    %18 = vector.broadcast %cst_9 : f32 to vector<32x128xf32>
    %19 = arith.mulf %18, %17 : vector<32x128xf32>
    %20 = math.tanh %19 : vector<32x128xf32>
    %cst_10 = arith.constant 1.000000e+00 : f32
    %21 = vector.broadcast %cst_10 : f32 to vector<32x128xf32>
    %22 = arith.addf %21, %20 : vector<32x128xf32>
    %cst_11 = arith.constant 5.000000e-01 : f32
    %23 = vector.broadcast %cst_11 : f32 to vector<32x128xf32>
    %24 = arith.mulf %23, %22 : vector<32x128xf32>
    %25 = arith.mulf %12, %24 : vector<32x128xf32>
    %26 = arith.subf %0, %1 : vector<32x256xf32>
    %27 = arith.truncf %26 : vector<32x256xf32> to vector<32x256xbf16>
    %c0_12 = arith.constant 0 : index
    %c0_13 = arith.constant 0 : index
    %28 = vector.load %arg5[%c0_12, %c0_13] : memref<512x128xbf16, #tpu.memory_space<vmem>>, vector<512x128xbf16>
    %29 = vector.extract_strided_slice %28 {offsets = [0, 0], sizes = [256, 128], strides = [1, 1]} : vector<512x128xbf16> to vector<256x128xbf16>
    %cst_14 = arith.constant dense<0.000000e+00> : vector<32x128xf32>
    %30 = tpu.matmul %2, %29, %cst_14 {dimension_numbers = #tpu.dot_dimension_numbers<[1], [0], [0], [1], [0, 0, 1, 1], [], []>} : vector<32x256xbf16>, vector<256x128xbf16>, vector<32x128xf32> -> vector<32x128xf32>
    %31 = vector.extract_strided_slice %28 {offsets = [256, 0], sizes = [256, 128], strides = [1, 1]} : vector<512x128xbf16> to vector<256x128xbf16>
    %cst_15 = arith.constant dense<0.000000e+00> : vector<32x128xf32>
    %32 = tpu.matmul %27, %31, %cst_15 {dimension_numbers = #tpu.dot_dimension_numbers<[1], [0], [0], [1], [0, 0, 1, 1], [], []>} : vector<32x256xbf16>, vector<256x128xbf16>, vector<32x128xf32> -> vector<32x128xf32>
    %33 = arith.addf %30, %32 : vector<32x128xf32>
    %c0_16 = arith.constant 0 : index
    %c0_17 = arith.constant 0 : index
    %34 = vector.load %arg6[%c0_16, %c0_17] : memref<1x128xf32, #tpu.memory_space<vmem>>, vector<1x128xf32>
    %35 = vector.broadcast %34 : vector<1x128xf32> to vector<32x128xf32>
    %36 = arith.addf %33, %35 : vector<32x128xf32>
    %37 = arith.mulf %36, %36 : vector<32x128xf32>
    %38 = arith.mulf %36, %37 : vector<32x128xf32>
    %cst_18 = arith.constant 4.471500e-02 : f32
    %39 = vector.broadcast %cst_18 : f32 to vector<32x128xf32>
    %40 = arith.mulf %39, %38 : vector<32x128xf32>
    %41 = arith.addf %36, %40 : vector<32x128xf32>
    %cst_19 = arith.constant 0.797884583 : f32
    %42 = vector.broadcast %cst_19 : f32 to vector<32x128xf32>
    %43 = arith.mulf %42, %41 : vector<32x128xf32>
    %44 = math.tanh %43 : vector<32x128xf32>
    %cst_20 = arith.constant 1.000000e+00 : f32
    %45 = vector.broadcast %cst_20 : f32 to vector<32x128xf32>
    %46 = arith.addf %45, %44 : vector<32x128xf32>
    %cst_21 = arith.constant 5.000000e-01 : f32
    %47 = vector.broadcast %cst_21 : f32 to vector<32x128xf32>
    %48 = arith.mulf %47, %46 : vector<32x128xf32>
    %49 = arith.mulf %36, %48 : vector<32x128xf32>
    %50 = arith.mulf %0, %1 : vector<32x256xf32>
    %51 = arith.truncf %50 : vector<32x256xf32> to vector<32x256xbf16>
    %c0_22 = arith.constant 0 : index
    %c0_23 = arith.constant 0 : index
    %52 = vector.load %arg7[%c0_22, %c0_23] : memref<512x128xbf16, #tpu.memory_space<vmem>>, vector<512x128xbf16>
    %53 = vector.extract_strided_slice %52 {offsets = [0, 0], sizes = [256, 128], strides = [1, 1]} : vector<512x128xbf16> to vector<256x128xbf16>
    %cst_24 = arith.constant dense<0.000000e+00> : vector<32x128xf32>
    %54 = tpu.matmul %2, %53, %cst_24 {dimension_numbers = #tpu.dot_dimension_numbers<[1], [0], [0], [1], [0, 0, 1, 1], [], []>} : vector<32x256xbf16>, vector<256x128xbf16>, vector<32x128xf32> -> vector<32x128xf32>
    %55 = vector.extract_strided_slice %52 {offsets = [256, 0], sizes = [256, 128], strides = [1, 1]} : vector<512x128xbf16> to vector<256x128xbf16>
    %cst_25 = arith.constant dense<0.000000e+00> : vector<32x128xf32>
    %56 = tpu.matmul %51, %55, %cst_25 {dimension_numbers = #tpu.dot_dimension_numbers<[1], [0], [0], [1], [0, 0, 1, 1], [], []>} : vector<32x256xbf16>, vector<256x128xbf16>, vector<32x128xf32> -> vector<32x128xf32>
    %57 = arith.addf %54, %56 : vector<32x128xf32>
    %c0_26 = arith.constant 0 : index
    %c0_27 = arith.constant 0 : index
    %58 = vector.load %arg8[%c0_26, %c0_27] : memref<1x128xf32, #tpu.memory_space<vmem>>, vector<1x128xf32>
    %59 = vector.broadcast %58 : vector<1x128xf32> to vector<32x128xf32>
    %60 = arith.addf %57, %59 : vector<32x128xf32>
    %61 = arith.mulf %60, %60 : vector<32x128xf32>
    %62 = arith.mulf %60, %61 : vector<32x128xf32>
    %cst_28 = arith.constant 4.471500e-02 : f32
    %63 = vector.broadcast %cst_28 : f32 to vector<32x128xf32>
    %64 = arith.mulf %63, %62 : vector<32x128xf32>
    %65 = arith.addf %60, %64 : vector<32x128xf32>
    %cst_29 = arith.constant 0.797884583 : f32
    %66 = vector.broadcast %cst_29 : f32 to vector<32x128xf32>
    %67 = arith.mulf %66, %65 : vector<32x128xf32>
    %68 = math.tanh %67 : vector<32x128xf32>
    %cst_30 = arith.constant 1.000000e+00 : f32
    %69 = vector.broadcast %cst_30 : f32 to vector<32x128xf32>
    %70 = arith.addf %69, %68 : vector<32x128xf32>
    %cst_31 = arith.constant 5.000000e-01 : f32
    %71 = vector.broadcast %cst_31 : f32 to vector<32x128xf32>
    %72 = arith.mulf %71, %70 : vector<32x128xf32>
    %73 = arith.mulf %60, %72 : vector<32x128xf32>
    %c0_32 = arith.constant 0 : index
    %c0_33 = arith.constant 0 : index
    %74 = vector.load %arg9[%c0_32, %c0_33] : memref<384x128xbf16, #tpu.memory_space<vmem>>, vector<384x128xbf16>
    %75 = arith.truncf %25 : vector<32x128xf32> to vector<32x128xbf16>
    %76 = vector.extract_strided_slice %74 {offsets = [0, 0], sizes = [128, 128], strides = [1, 1]} : vector<384x128xbf16> to vector<128x128xbf16>
    %cst_34 = arith.constant dense<0.000000e+00> : vector<32x128xf32>
    %77 = tpu.matmul %75, %76, %cst_34 {dimension_numbers = #tpu.dot_dimension_numbers<[1], [0], [0], [1], [0, 0, 1, 1], [], []>} : vector<32x128xbf16>, vector<128x128xbf16>, vector<32x128xf32> -> vector<32x128xf32>
    %78 = arith.truncf %49 : vector<32x128xf32> to vector<32x128xbf16>
    %79 = vector.extract_strided_slice %74 {offsets = [128, 0], sizes = [128, 128], strides = [1, 1]} : vector<384x128xbf16> to vector<128x128xbf16>
    %cst_35 = arith.constant dense<0.000000e+00> : vector<32x128xf32>
    %80 = tpu.matmul %78, %79, %cst_35 {dimension_numbers = #tpu.dot_dimension_numbers<[1], [0], [0], [1], [0, 0, 1, 1], [], []>} : vector<32x128xbf16>, vector<128x128xbf16>, vector<32x128xf32> -> vector<32x128xf32>
    %81 = arith.addf %77, %80 : vector<32x128xf32>
    %82 = arith.truncf %73 : vector<32x128xf32> to vector<32x128xbf16>
    %83 = vector.extract_strided_slice %74 {offsets = [256, 0], sizes = [128, 128], strides = [1, 1]} : vector<384x128xbf16> to vector<128x128xbf16>
    %cst_36 = arith.constant dense<0.000000e+00> : vector<32x128xf32>
    %84 = tpu.matmul %82, %83, %cst_36 {dimension_numbers = #tpu.dot_dimension_numbers<[1], [0], [0], [1], [0, 0, 1, 1], [], []>} : vector<32x128xbf16>, vector<128x128xbf16>, vector<32x128xf32> -> vector<32x128xf32>
    %85 = arith.addf %81, %84 : vector<32x128xf32>
    %c0_37 = arith.constant 0 : index
    %c0_38 = arith.constant 0 : index
    %86 = vector.load %arg10[%c0_37, %c0_38] : memref<1x128xf32, #tpu.memory_space<vmem>>, vector<1x128xf32>
    %87 = vector.broadcast %86 : vector<1x128xf32> to vector<32x128xf32>
    %88 = arith.addf %85, %87 : vector<32x128xf32>
    %89 = arith.mulf %88, %88 : vector<32x128xf32>
    %90 = arith.mulf %88, %89 : vector<32x128xf32>
    %cst_39 = arith.constant 4.471500e-02 : f32
    %91 = vector.broadcast %cst_39 : f32 to vector<32x128xf32>
    %92 = arith.mulf %91, %90 : vector<32x128xf32>
    %93 = arith.addf %88, %92 : vector<32x128xf32>
    %cst_40 = arith.constant 0.797884583 : f32
    %94 = vector.broadcast %cst_40 : f32 to vector<32x128xf32>
    %95 = arith.mulf %94, %93 : vector<32x128xf32>
    %96 = math.tanh %95 : vector<32x128xf32>
    %cst_41 = arith.constant 1.000000e+00 : f32
    %97 = vector.broadcast %cst_41 : f32 to vector<32x128xf32>
    %98 = arith.addf %97, %96 : vector<32x128xf32>
    %cst_42 = arith.constant 5.000000e-01 : f32
    %99 = vector.broadcast %cst_42 : f32 to vector<32x128xf32>
    %100 = arith.mulf %99, %98 : vector<32x128xf32>
    %101 = arith.mulf %88, %100 : vector<32x128xf32>
    %c0_43 = arith.constant 0 : index
    %c0_44 = arith.constant 0 : index
    %102 = vector.load %arg11[%c0_43, %c0_44] : memref<32x128xf32, #tpu.memory_space<vmem>>, vector<32x128xf32>
    tpu.vector_store %arg11[%c0_43, %c0_44], %101 {strides = array<i32>} : memref<32x128xf32, #tpu.memory_space<vmem>>, vector<32x128xf32>,
    return
  }
  func.func @transform_0(%arg0: i32) -> (i32, i32) {
    %c0_i32 = arith.constant 0 : i32
    %c0_i32_0 = arith.constant 0 : i32
    return %arg0, %c0_i32 : i32, i32
  }
  func.func @transform_1(%arg0: i32) -> (i32, i32) {
    %c0_i32 = arith.constant 0 : i32
    %c0_i32_0 = arith.constant 0 : i32
    return %arg0, %c0_i32 : i32, i32
  }
  func.func @transform_2(%arg0: i32) -> (i32, i32) {
    %c0_i32 = arith.constant 0 : i32
    %c0_i32_0 = arith.constant 0 : i32
    %c0_i32_1 = arith.constant 0 : i32
    return %c0_i32, %c0_i32_0 : i32, i32
  }
  func.func @transform_3(%arg0: i32) -> (i32, i32) {
    %c0_i32 = arith.constant 0 : i32
    %c0_i32_0 = arith.constant 0 : i32
    %c0_i32_1 = arith.constant 0 : i32
    return %c0_i32, %c0_i32_0 : i32, i32
  }
  func.func @transform_4(%arg0: i32) -> (i32, i32) {
    %c0_i32 = arith.constant 0 : i32
    %c0_i32_0 = arith.constant 0 : i32
    %c0_i32_1 = arith.constant 0 : i32
    return %c0_i32, %c0_i32_0 : i32, i32
  }
  func.func @transform_5(%arg0: i32) -> (i32, i32) {
    %c0_i32 = arith.constant 0 : i32
    %c0_i32_0 = arith.constant 0 : i32
    %c0_i32_1 = arith.constant 0 : i32
    return %c0_i32, %c0_i32_0 : i32, i32
  }
  func.func @transform_6(%arg0: i32) -> (i32, i32) {
    %c0_i32 = arith.constant 0 : i32
    %c0_i32_0 = arith.constant 0 : i32
    %c0_i32_1 = arith.constant 0 : i32
    return %c0_i32, %c0_i32_0 : i32, i32
  }
  func.func @transform_7(%arg0: i32) -> (i32, i32) {
    %c0_i32 = arith.constant 0 : i32
    %c0_i32_0 = arith.constant 0 : i32
    %c0_i32_1 = arith.constant 0 : i32
    return %c0_i32, %c0_i32_0 : i32, i32
  }
  func.func @transform_8(%arg0: i32) -> (i32, i32) {
    %c0_i32 = arith.constant 0 : i32
    %c0_i32_0 = arith.constant 0 : i32
    %c0_i32_1 = arith.constant 0 : i32
    return %c0_i32, %c0_i32_0 : i32, i32
  }
  func.func @transform_9(%arg0: i32) -> (i32, i32) {
    %c0_i32 = arith.constant 0 : i32
    %c0_i32_0 = arith.constant 0 : i32
    %c0_i32_1 = arith.constant 0 : i32
    return %c0_i32, %c0_i32_0 : i32, i32
  }
  func.func @transform_10(%arg0: i32) -> (i32, i32) {
    %c0_i32 = arith.constant 0 : i32
    %c0_i32_0 = arith.constant 0 : i32
    return %arg0, %c0_i32 : i32, i32
  }
}

module attributes {stable_mosaic.version = 11 : i64} {
  func.func @_encoder_kernel(%arg0: i32, %arg1: memref<2x8x256xf32, #tpu.memory_space<vmem>>, %arg2: memref<2x8x1xf32, #tpu.memory_space<vmem>>, %arg3: memref<768x128xbf16, #tpu.memory_space<vmem>>, %arg4: memref<1x128xf32, #tpu.memory_space<vmem>>, %arg5: memref<384x128xbf16, #tpu.memory_space<vmem>>, %arg6: memref<1x128xf32, #tpu.memory_space<vmem>>, %arg7: memref<2x8x128xf32, #tpu.memory_space<vmem>>) attributes {dimension_semantics = [#tpu.dimension_semantics<parallel>], iteration_bounds = array<i64: 1>, scalar_prefetch = 0 : i64, scratch_operands = 0 : i64, tpu.core_type = #tpu.core_type<tc>, window_params = [{transform_indices = @transform_0, window_bounds = array<i64: 2, 8, 256>}, {transform_indices = @transform_1, window_bounds = array<i64: 2, 8, 1>}, {pipeline_mode = #tpu.pipeline_mode<synchronous>, transform_indices = @transform_2, window_bounds = array<i64: 768, 128>}, {pipeline_mode = #tpu.pipeline_mode<synchronous>, transform_indices = @transform_3, window_bounds = array<i64: 1, 128>}, {pipeline_mode = #tpu.pipeline_mode<synchronous>, transform_indices = @transform_4, window_bounds = array<i64: 384, 128>}, {pipeline_mode = #tpu.pipeline_mode<synchronous>, transform_indices = @transform_5, window_bounds = array<i64: 1, 128>}, {transform_indices = @transform_6, window_bounds = array<i64: 2, 8, 128>}]} {
    %c0 = arith.constant 0 : index
    %c0_0 = arith.constant 0 : index
    %c0_1 = arith.constant 0 : index
    %0 = vector.load %arg1[%c0, %c0_0, %c0_1] : memref<2x8x256xf32, #tpu.memory_space<vmem>>, vector<2x8x256xf32>
    %c0_2 = arith.constant 0 : index
    %c0_3 = arith.constant 0 : index
    %c0_4 = arith.constant 0 : index
    %1 = vector.load %arg2[%c0_2, %c0_3, %c0_4] : memref<2x8x1xf32, #tpu.memory_space<vmem>>, vector<2x8x1xf32>
    %2 = tpu.iota {dimensions = array<i32: 1>} : vector<2x8x1xi32>
    %c0_5 = arith.constant 0 : index
    %c0_6 = arith.constant 0 : index
    %3 = vector.load %arg3[%c0_5, %c0_6] : memref<768x128xbf16, #tpu.memory_space<vmem>>, vector<768x128xbf16>
    %c0_7 = arith.constant 0 : index
    %c0_8 = arith.constant 0 : index
    %4 = vector.load %arg4[%c0_7, %c0_8] : memref<1x128xf32, #tpu.memory_space<vmem>>, vector<1x128xf32>
    %5 = vector.broadcast %1 : vector<2x8x1xf32> to vector<2x8x256xf32>
    %6 = arith.mulf %0, %5 : vector<2x8x256xf32>
    %7 = vector.shape_cast %6 : vector<2x8x256xf32> to vector<16x256xf32>
    %c1_i32 = arith.constant 1 : i32
    %8 = tpu.dynamic_rotate %7 by %c1_i32 dim 0 : vector<16x256xf32>, i32 -> vector<16x256xf32>
    %9 = vector.shape_cast %8 : vector<16x256xf32> to vector<2x8x256xf32>
    %c15_i32 = arith.constant 15 : i32
    %10 = tpu.dynamic_rotate %7 by %c15_i32 dim 0 : vector<16x256xf32>, i32 -> vector<16x256xf32>
    %11 = vector.shape_cast %10 : vector<16x256xf32> to vector<2x8x256xf32>
    %c0_i32 = arith.constant 0 : i32
    %12 = vector.broadcast %c0_i32 : i32 to vector<2x8x1xi32>
    %13 = arith.cmpi eq, %2, %12 : vector<2x8x1xi32>
    %cst = arith.constant 0.000000e+00 : f32
    %14 = vector.shape_cast %13 : vector<2x8x1xi1> to vector<2x8x1xi1>
    %15 = vector.broadcast %14 : vector<2x8x1xi1> to vector<2x8x256xi1>
    %16 = vector.broadcast %cst : f32 to vector<2x8x256xf32>
    %17 = arith.select %15, %16, %9 : vector<2x8x256xi1>, vector<2x8x256xf32>
    %c7_i32 = arith.constant 7 : i32
    %18 = vector.broadcast %c7_i32 : i32 to vector<2x8x1xi32>
    %19 = arith.cmpi eq, %2, %18 : vector<2x8x1xi32>
    %cst_9 = arith.constant 0.000000e+00 : f32
    %20 = vector.shape_cast %19 : vector<2x8x1xi1> to vector<2x8x1xi1>
    %21 = vector.broadcast %20 : vector<2x8x1xi1> to vector<2x8x256xi1>
    %22 = vector.broadcast %cst_9 : f32 to vector<2x8x256xf32>
    %23 = arith.select %21, %22, %11 : vector<2x8x256xi1>, vector<2x8x256xf32>
    %24 = tpu.concatenate %17, %6, %23 in 2 : vector<2x8x256xf32>, vector<2x8x256xf32>, vector<2x8x256xf32> -> vector<2x8x768xf32>
    %25 = vector.shape_cast %24 : vector<2x8x768xf32> to vector<16x768xf32>
    %26 = arith.truncf %25 : vector<16x768xf32> to vector<16x768xbf16>
    %cst_10 = arith.constant dense<0.000000e+00> : vector<16x128xf32>
    %27 = tpu.matmul %26, %3, %cst_10 {dimension_numbers = #tpu.dot_dimension_numbers<[1], [0], [0], [1], [0, 0, 1, 1], [], []>} : vector<16x768xbf16>, vector<768x128xbf16>, vector<16x128xf32> -> vector<16x128xf32>
    %28 = vector.broadcast %4 : vector<1x128xf32> to vector<16x128xf32>
    %29 = arith.addf %27, %28 : vector<16x128xf32>
    %30 = arith.mulf %29, %29 : vector<16x128xf32>
    %31 = arith.mulf %29, %30 : vector<16x128xf32>
    %cst_11 = arith.constant 4.471500e-02 : f32
    %32 = vector.broadcast %cst_11 : f32 to vector<16x128xf32>
    %33 = arith.mulf %32, %31 : vector<16x128xf32>
    %34 = arith.addf %29, %33 : vector<16x128xf32>
    %cst_12 = arith.constant 0.797884583 : f32
    %35 = vector.broadcast %cst_12 : f32 to vector<16x128xf32>
    %36 = arith.mulf %35, %34 : vector<16x128xf32>
    %37 = math.tanh %36 : vector<16x128xf32>
    %cst_13 = arith.constant 1.000000e+00 : f32
    %38 = vector.broadcast %cst_13 : f32 to vector<16x128xf32>
    %39 = arith.addf %38, %37 : vector<16x128xf32>
    %cst_14 = arith.constant 5.000000e-01 : f32
    %40 = vector.broadcast %cst_14 : f32 to vector<16x128xf32>
    %41 = arith.mulf %40, %39 : vector<16x128xf32>
    %42 = arith.mulf %29, %41 : vector<16x128xf32>
    %43 = vector.shape_cast %42 : vector<16x128xf32> to vector<2x8x128xf32>
    %c0_15 = arith.constant 0 : index
    %c0_16 = arith.constant 0 : index
    %44 = vector.load %arg5[%c0_15, %c0_16] : memref<384x128xbf16, #tpu.memory_space<vmem>>, vector<384x128xbf16>
    %c0_17 = arith.constant 0 : index
    %c0_18 = arith.constant 0 : index
    %45 = vector.load %arg6[%c0_17, %c0_18] : memref<1x128xf32, #tpu.memory_space<vmem>>, vector<1x128xf32>
    %46 = vector.broadcast %1 : vector<2x8x1xf32> to vector<2x8x128xf32>
    %47 = arith.mulf %43, %46 : vector<2x8x128xf32>
    %48 = vector.shape_cast %47 : vector<2x8x128xf32> to vector<16x128xf32>
    %c1_i32_19 = arith.constant 1 : i32
    %49 = tpu.dynamic_rotate %48 by %c1_i32_19 dim 0 : vector<16x128xf32>, i32 -> vector<16x128xf32>
    %50 = vector.shape_cast %49 : vector<16x128xf32> to vector<2x8x128xf32>
    %c15_i32_20 = arith.constant 15 : i32
    %51 = tpu.dynamic_rotate %48 by %c15_i32_20 dim 0 : vector<16x128xf32>, i32 -> vector<16x128xf32>
    %52 = vector.shape_cast %51 : vector<16x128xf32> to vector<2x8x128xf32>
    %c0_i32_21 = arith.constant 0 : i32
    %53 = vector.broadcast %c0_i32_21 : i32 to vector<2x8x1xi32>
    %54 = arith.cmpi eq, %2, %53 : vector<2x8x1xi32>
    %cst_22 = arith.constant 0.000000e+00 : f32
    %55 = vector.shape_cast %54 : vector<2x8x1xi1> to vector<2x8x1xi1>
    %56 = vector.broadcast %55 : vector<2x8x1xi1> to vector<2x8x128xi1>
    %57 = vector.broadcast %cst_22 : f32 to vector<2x8x128xf32>
    %58 = arith.select %56, %57, %50 : vector<2x8x128xi1>, vector<2x8x128xf32>
    %c7_i32_23 = arith.constant 7 : i32
    %59 = vector.broadcast %c7_i32_23 : i32 to vector<2x8x1xi32>
    %60 = arith.cmpi eq, %2, %59 : vector<2x8x1xi32>
    %cst_24 = arith.constant 0.000000e+00 : f32
    %61 = vector.shape_cast %60 : vector<2x8x1xi1> to vector<2x8x1xi1>
    %62 = vector.broadcast %61 : vector<2x8x1xi1> to vector<2x8x128xi1>
    %63 = vector.broadcast %cst_24 : f32 to vector<2x8x128xf32>
    %64 = arith.select %62, %63, %52 : vector<2x8x128xi1>, vector<2x8x128xf32>
    %65 = tpu.concatenate %58, %47, %64 in 2 : vector<2x8x128xf32>, vector<2x8x128xf32>, vector<2x8x128xf32> -> vector<2x8x384xf32>
    %66 = vector.shape_cast %65 : vector<2x8x384xf32> to vector<16x384xf32>
    %67 = arith.truncf %66 : vector<16x384xf32> to vector<16x384xbf16>
    %cst_25 = arith.constant dense<0.000000e+00> : vector<16x128xf32>
    %68 = tpu.matmul %67, %44, %cst_25 {dimension_numbers = #tpu.dot_dimension_numbers<[1], [0], [0], [1], [0, 0, 1, 1], [], []>} : vector<16x384xbf16>, vector<384x128xbf16>, vector<16x128xf32> -> vector<16x128xf32>
    %69 = vector.broadcast %45 : vector<1x128xf32> to vector<16x128xf32>
    %70 = arith.addf %68, %69 : vector<16x128xf32>
    %71 = arith.mulf %70, %70 : vector<16x128xf32>
    %72 = arith.mulf %70, %71 : vector<16x128xf32>
    %cst_26 = arith.constant 4.471500e-02 : f32
    %73 = vector.broadcast %cst_26 : f32 to vector<16x128xf32>
    %74 = arith.mulf %73, %72 : vector<16x128xf32>
    %75 = arith.addf %70, %74 : vector<16x128xf32>
    %cst_27 = arith.constant 0.797884583 : f32
    %76 = vector.broadcast %cst_27 : f32 to vector<16x128xf32>
    %77 = arith.mulf %76, %75 : vector<16x128xf32>
    %78 = math.tanh %77 : vector<16x128xf32>
    %cst_28 = arith.constant 1.000000e+00 : f32
    %79 = vector.broadcast %cst_28 : f32 to vector<16x128xf32>
    %80 = arith.addf %79, %78 : vector<16x128xf32>
    %cst_29 = arith.constant 5.000000e-01 : f32
    %81 = vector.broadcast %cst_29 : f32 to vector<16x128xf32>
    %82 = arith.mulf %81, %80 : vector<16x128xf32>
    %83 = arith.mulf %70, %82 : vector<16x128xf32>
    %84 = vector.shape_cast %83 : vector<16x128xf32> to vector<2x8x128xf32>
    %c0_30 = arith.constant 0 : index
    %c0_31 = arith.constant 0 : index
    %c0_32 = arith.constant 0 : index
    %85 = vector.load %arg7[%c0_30, %c0_31, %c0_32] : memref<2x8x128xf32, #tpu.memory_space<vmem>>, vector<2x8x128xf32>
    tpu.vector_store %arg7[%c0_30, %c0_31, %c0_32], %84 {strides = array<i32>} : memref<2x8x128xf32, #tpu.memory_space<vmem>>, vector<2x8x128xf32>,
    return
  }
  func.func @transform_0(%arg0: i32) -> (i32, i32, i32) {
    %c0_i32 = arith.constant 0 : i32
    %c0_i32_0 = arith.constant 0 : i32
    %c0_i32_1 = arith.constant 0 : i32
    return %arg0, %c0_i32, %c0_i32_0 : i32, i32, i32
  }
  func.func @transform_1(%arg0: i32) -> (i32, i32, i32) {
    %c0_i32 = arith.constant 0 : i32
    %c0_i32_0 = arith.constant 0 : i32
    %c0_i32_1 = arith.constant 0 : i32
    return %arg0, %c0_i32, %c0_i32_0 : i32, i32, i32
  }
  func.func @transform_2(%arg0: i32) -> (i32, i32) {
    %c0_i32 = arith.constant 0 : i32
    %c0_i32_0 = arith.constant 0 : i32
    %c0_i32_1 = arith.constant 0 : i32
    return %c0_i32, %c0_i32_0 : i32, i32
  }
  func.func @transform_3(%arg0: i32) -> (i32, i32) {
    %c0_i32 = arith.constant 0 : i32
    %c0_i32_0 = arith.constant 0 : i32
    %c0_i32_1 = arith.constant 0 : i32
    return %c0_i32, %c0_i32_0 : i32, i32
  }
  func.func @transform_4(%arg0: i32) -> (i32, i32) {
    %c0_i32 = arith.constant 0 : i32
    %c0_i32_0 = arith.constant 0 : i32
    %c0_i32_1 = arith.constant 0 : i32
    return %c0_i32, %c0_i32_0 : i32, i32
  }
  func.func @transform_5(%arg0: i32) -> (i32, i32) {
    %c0_i32 = arith.constant 0 : i32
    %c0_i32_0 = arith.constant 0 : i32
    %c0_i32_1 = arith.constant 0 : i32
    return %c0_i32, %c0_i32_0 : i32, i32
  }
  func.func @transform_6(%arg0: i32) -> (i32, i32, i32) {
    %c0_i32 = arith.constant 0 : i32
    %c0_i32_0 = arith.constant 0 : i32
    %c0_i32_1 = arith.constant 0 : i32
    return %arg0, %c0_i32, %c0_i32_0 : i32, i32, i32
  }
}

module attributes {stable_mosaic.version = 11 : i64} {
  func.func @_fusion_kernel(%arg0: i32, %arg1: memref<32x384xf32, #tpu.memory_space<vmem>>, %arg2: memref<32x384xf32, #tpu.memory_space<vmem>>, %arg3: memref<768x128xbf16, #tpu.memory_space<vmem>>, %arg4: memref<1x128xf32, #tpu.memory_space<vmem>>, %arg5: memref<768x128xbf16, #tpu.memory_space<vmem>>, %arg6: memref<1x128xf32, #tpu.memory_space<vmem>>, %arg7: memref<768x128xbf16, #tpu.memory_space<vmem>>, %arg8: memref<1x128xf32, #tpu.memory_space<vmem>>, %arg9: memref<384x128xbf16, #tpu.memory_space<vmem>>, %arg10: memref<1x128xf32, #tpu.memory_space<vmem>>, %arg11: memref<32x128xf32, #tpu.memory_space<vmem>>) attributes {dimension_semantics = [#tpu.dimension_semantics<parallel>], iteration_bounds = array<i64: 1>, scalar_prefetch = 0 : i64, scratch_operands = 0 : i64, tpu.core_type = #tpu.core_type<tc>, window_params = [{transform_indices = @transform_0, window_bounds = array<i64: 32, 384>}, {transform_indices = @transform_1, window_bounds = array<i64: 32, 384>}, {pipeline_mode = #tpu.pipeline_mode<synchronous>, transform_indices = @transform_2, window_bounds = array<i64: 768, 128>}, {pipeline_mode = #tpu.pipeline_mode<synchronous>, transform_indices = @transform_3, window_bounds = array<i64: 1, 128>}, {pipeline_mode = #tpu.pipeline_mode<synchronous>, transform_indices = @transform_4, window_bounds = array<i64: 768, 128>}, {pipeline_mode = #tpu.pipeline_mode<synchronous>, transform_indices = @transform_5, window_bounds = array<i64: 1, 128>}, {pipeline_mode = #tpu.pipeline_mode<synchronous>, transform_indices = @transform_6, window_bounds = array<i64: 768, 128>}, {pipeline_mode = #tpu.pipeline_mode<synchronous>, transform_indices = @transform_7, window_bounds = array<i64: 1, 128>}, {pipeline_mode = #tpu.pipeline_mode<synchronous>, transform_indices = @transform_8, window_bounds = array<i64: 384, 128>}, {pipeline_mode = #tpu.pipeline_mode<synchronous>, transform_indices = @transform_9, window_bounds = array<i64: 1, 128>}, {transform_indices = @transform_10, window_bounds = array<i64: 32, 128>}]} {
    %c0 = arith.constant 0 : index
    %c0_0 = arith.constant 0 : index
    %0 = vector.load %arg1[%c0, %c0_0] : memref<32x384xf32, #tpu.memory_space<vmem>>, vector<32x384xf32>
    %c0_1 = arith.constant 0 : index
    %c0_2 = arith.constant 0 : index
    %1 = vector.load %arg2[%c0_1, %c0_2] : memref<32x384xf32, #tpu.memory_space<vmem>>, vector<32x384xf32>
    %2 = arith.truncf %0 : vector<32x384xf32> to vector<32x384xbf16>
    %3 = arith.truncf %1 : vector<32x384xf32> to vector<32x384xbf16>
    %c0_3 = arith.constant 0 : index
    %c0_4 = arith.constant 0 : index
    %4 = vector.load %arg3[%c0_3, %c0_4] : memref<768x128xbf16, #tpu.memory_space<vmem>>, vector<768x128xbf16>
    %5 = vector.extract_strided_slice %4 {offsets = [0, 0], sizes = [384, 128], strides = [1, 1]} : vector<768x128xbf16> to vector<384x128xbf16>
    %cst = arith.constant dense<0.000000e+00> : vector<32x128xf32>
    %6 = tpu.matmul %2, %5, %cst {dimension_numbers = #tpu.dot_dimension_numbers<[1], [0], [0], [1], [0, 0, 1, 1], [], []>} : vector<32x384xbf16>, vector<384x128xbf16>, vector<32x128xf32> -> vector<32x128xf32>
    %7 = vector.extract_strided_slice %4 {offsets = [384, 0], sizes = [384, 128], strides = [1, 1]} : vector<768x128xbf16> to vector<384x128xbf16>
    %cst_5 = arith.constant dense<0.000000e+00> : vector<32x128xf32>
    %8 = tpu.matmul %3, %7, %cst_5 {dimension_numbers = #tpu.dot_dimension_numbers<[1], [0], [0], [1], [0, 0, 1, 1], [], []>} : vector<32x384xbf16>, vector<384x128xbf16>, vector<32x128xf32> -> vector<32x128xf32>
    %9 = arith.addf %6, %8 : vector<32x128xf32>
    %c0_6 = arith.constant 0 : index
    %c0_7 = arith.constant 0 : index
    %10 = vector.load %arg4[%c0_6, %c0_7] : memref<1x128xf32, #tpu.memory_space<vmem>>, vector<1x128xf32>
    %11 = vector.broadcast %10 : vector<1x128xf32> to vector<32x128xf32>
    %12 = arith.addf %9, %11 : vector<32x128xf32>
    %13 = arith.mulf %12, %12 : vector<32x128xf32>
    %14 = arith.mulf %12, %13 : vector<32x128xf32>
    %cst_8 = arith.constant 4.471500e-02 : f32
    %15 = vector.broadcast %cst_8 : f32 to vector<32x128xf32>
    %16 = arith.mulf %15, %14 : vector<32x128xf32>
    %17 = arith.addf %12, %16 : vector<32x128xf32>
    %cst_9 = arith.constant 0.797884583 : f32
    %18 = vector.broadcast %cst_9 : f32 to vector<32x128xf32>
    %19 = arith.mulf %18, %17 : vector<32x128xf32>
    %20 = math.tanh %19 : vector<32x128xf32>
    %cst_10 = arith.constant 1.000000e+00 : f32
    %21 = vector.broadcast %cst_10 : f32 to vector<32x128xf32>
    %22 = arith.addf %21, %20 : vector<32x128xf32>
    %cst_11 = arith.constant 5.000000e-01 : f32
    %23 = vector.broadcast %cst_11 : f32 to vector<32x128xf32>
    %24 = arith.mulf %23, %22 : vector<32x128xf32>
    %25 = arith.mulf %12, %24 : vector<32x128xf32>
    %26 = arith.subf %0, %1 : vector<32x384xf32>
    %27 = arith.truncf %26 : vector<32x384xf32> to vector<32x384xbf16>
    %c0_12 = arith.constant 0 : index
    %c0_13 = arith.constant 0 : index
    %28 = vector.load %arg5[%c0_12, %c0_13] : memref<768x128xbf16, #tpu.memory_space<vmem>>, vector<768x128xbf16>
    %29 = vector.extract_strided_slice %28 {offsets = [0, 0], sizes = [384, 128], strides = [1, 1]} : vector<768x128xbf16> to vector<384x128xbf16>
    %cst_14 = arith.constant dense<0.000000e+00> : vector<32x128xf32>
    %30 = tpu.matmul %2, %29, %cst_14 {dimension_numbers = #tpu.dot_dimension_numbers<[1], [0], [0], [1], [0, 0, 1, 1], [], []>} : vector<32x384xbf16>, vector<384x128xbf16>, vector<32x128xf32> -> vector<32x128xf32>
    %31 = vector.extract_strided_slice %28 {offsets = [384, 0], sizes = [384, 128], strides = [1, 1]} : vector<768x128xbf16> to vector<384x128xbf16>
    %cst_15 = arith.constant dense<0.000000e+00> : vector<32x128xf32>
    %32 = tpu.matmul %27, %31, %cst_15 {dimension_numbers = #tpu.dot_dimension_numbers<[1], [0], [0], [1], [0, 0, 1, 1], [], []>} : vector<32x384xbf16>, vector<384x128xbf16>, vector<32x128xf32> -> vector<32x128xf32>
    %33 = arith.addf %30, %32 : vector<32x128xf32>
    %c0_16 = arith.constant 0 : index
    %c0_17 = arith.constant 0 : index
    %34 = vector.load %arg6[%c0_16, %c0_17] : memref<1x128xf32, #tpu.memory_space<vmem>>, vector<1x128xf32>
    %35 = vector.broadcast %34 : vector<1x128xf32> to vector<32x128xf32>
    %36 = arith.addf %33, %35 : vector<32x128xf32>
    %37 = arith.mulf %36, %36 : vector<32x128xf32>
    %38 = arith.mulf %36, %37 : vector<32x128xf32>
    %cst_18 = arith.constant 4.471500e-02 : f32
    %39 = vector.broadcast %cst_18 : f32 to vector<32x128xf32>
    %40 = arith.mulf %39, %38 : vector<32x128xf32>
    %41 = arith.addf %36, %40 : vector<32x128xf32>
    %cst_19 = arith.constant 0.797884583 : f32
    %42 = vector.broadcast %cst_19 : f32 to vector<32x128xf32>
    %43 = arith.mulf %42, %41 : vector<32x128xf32>
    %44 = math.tanh %43 : vector<32x128xf32>
    %cst_20 = arith.constant 1.000000e+00 : f32
    %45 = vector.broadcast %cst_20 : f32 to vector<32x128xf32>
    %46 = arith.addf %45, %44 : vector<32x128xf32>
    %cst_21 = arith.constant 5.000000e-01 : f32
    %47 = vector.broadcast %cst_21 : f32 to vector<32x128xf32>
    %48 = arith.mulf %47, %46 : vector<32x128xf32>
    %49 = arith.mulf %36, %48 : vector<32x128xf32>
    %50 = arith.mulf %0, %1 : vector<32x384xf32>
    %51 = arith.truncf %50 : vector<32x384xf32> to vector<32x384xbf16>
    %c0_22 = arith.constant 0 : index
    %c0_23 = arith.constant 0 : index
    %52 = vector.load %arg7[%c0_22, %c0_23] : memref<768x128xbf16, #tpu.memory_space<vmem>>, vector<768x128xbf16>
    %53 = vector.extract_strided_slice %52 {offsets = [0, 0], sizes = [384, 128], strides = [1, 1]} : vector<768x128xbf16> to vector<384x128xbf16>
    %cst_24 = arith.constant dense<0.000000e+00> : vector<32x128xf32>
    %54 = tpu.matmul %2, %53, %cst_24 {dimension_numbers = #tpu.dot_dimension_numbers<[1], [0], [0], [1], [0, 0, 1, 1], [], []>} : vector<32x384xbf16>, vector<384x128xbf16>, vector<32x128xf32> -> vector<32x128xf32>
    %55 = vector.extract_strided_slice %52 {offsets = [384, 0], sizes = [384, 128], strides = [1, 1]} : vector<768x128xbf16> to vector<384x128xbf16>
    %cst_25 = arith.constant dense<0.000000e+00> : vector<32x128xf32>
    %56 = tpu.matmul %51, %55, %cst_25 {dimension_numbers = #tpu.dot_dimension_numbers<[1], [0], [0], [1], [0, 0, 1, 1], [], []>} : vector<32x384xbf16>, vector<384x128xbf16>, vector<32x128xf32> -> vector<32x128xf32>
    %57 = arith.addf %54, %56 : vector<32x128xf32>
    %c0_26 = arith.constant 0 : index
    %c0_27 = arith.constant 0 : index
    %58 = vector.load %arg8[%c0_26, %c0_27] : memref<1x128xf32, #tpu.memory_space<vmem>>, vector<1x128xf32>
    %59 = vector.broadcast %58 : vector<1x128xf32> to vector<32x128xf32>
    %60 = arith.addf %57, %59 : vector<32x128xf32>
    %61 = arith.mulf %60, %60 : vector<32x128xf32>
    %62 = arith.mulf %60, %61 : vector<32x128xf32>
    %cst_28 = arith.constant 4.471500e-02 : f32
    %63 = vector.broadcast %cst_28 : f32 to vector<32x128xf32>
    %64 = arith.mulf %63, %62 : vector<32x128xf32>
    %65 = arith.addf %60, %64 : vector<32x128xf32>
    %cst_29 = arith.constant 0.797884583 : f32
    %66 = vector.broadcast %cst_29 : f32 to vector<32x128xf32>
    %67 = arith.mulf %66, %65 : vector<32x128xf32>
    %68 = math.tanh %67 : vector<32x128xf32>
    %cst_30 = arith.constant 1.000000e+00 : f32
    %69 = vector.broadcast %cst_30 : f32 to vector<32x128xf32>
    %70 = arith.addf %69, %68 : vector<32x128xf32>
    %cst_31 = arith.constant 5.000000e-01 : f32
    %71 = vector.broadcast %cst_31 : f32 to vector<32x128xf32>
    %72 = arith.mulf %71, %70 : vector<32x128xf32>
    %73 = arith.mulf %60, %72 : vector<32x128xf32>
    %c0_32 = arith.constant 0 : index
    %c0_33 = arith.constant 0 : index
    %74 = vector.load %arg9[%c0_32, %c0_33] : memref<384x128xbf16, #tpu.memory_space<vmem>>, vector<384x128xbf16>
    %75 = arith.truncf %25 : vector<32x128xf32> to vector<32x128xbf16>
    %76 = vector.extract_strided_slice %74 {offsets = [0, 0], sizes = [128, 128], strides = [1, 1]} : vector<384x128xbf16> to vector<128x128xbf16>
    %cst_34 = arith.constant dense<0.000000e+00> : vector<32x128xf32>
    %77 = tpu.matmul %75, %76, %cst_34 {dimension_numbers = #tpu.dot_dimension_numbers<[1], [0], [0], [1], [0, 0, 1, 1], [], []>} : vector<32x128xbf16>, vector<128x128xbf16>, vector<32x128xf32> -> vector<32x128xf32>
    %78 = arith.truncf %49 : vector<32x128xf32> to vector<32x128xbf16>
    %79 = vector.extract_strided_slice %74 {offsets = [128, 0], sizes = [128, 128], strides = [1, 1]} : vector<384x128xbf16> to vector<128x128xbf16>
    %cst_35 = arith.constant dense<0.000000e+00> : vector<32x128xf32>
    %80 = tpu.matmul %78, %79, %cst_35 {dimension_numbers = #tpu.dot_dimension_numbers<[1], [0], [0], [1], [0, 0, 1, 1], [], []>} : vector<32x128xbf16>, vector<128x128xbf16>, vector<32x128xf32> -> vector<32x128xf32>
    %81 = arith.addf %77, %80 : vector<32x128xf32>
    %82 = arith.truncf %73 : vector<32x128xf32> to vector<32x128xbf16>
    %83 = vector.extract_strided_slice %74 {offsets = [256, 0], sizes = [128, 128], strides = [1, 1]} : vector<384x128xbf16> to vector<128x128xbf16>
    %cst_36 = arith.constant dense<0.000000e+00> : vector<32x128xf32>
    %84 = tpu.matmul %82, %83, %cst_36 {dimension_numbers = #tpu.dot_dimension_numbers<[1], [0], [0], [1], [0, 0, 1, 1], [], []>} : vector<32x128xbf16>, vector<128x128xbf16>, vector<32x128xf32> -> vector<32x128xf32>
    %85 = arith.addf %81, %84 : vector<32x128xf32>
    %c0_37 = arith.constant 0 : index
    %c0_38 = arith.constant 0 : index
    %86 = vector.load %arg10[%c0_37, %c0_38] : memref<1x128xf32, #tpu.memory_space<vmem>>, vector<1x128xf32>
    %87 = vector.broadcast %86 : vector<1x128xf32> to vector<32x128xf32>
    %88 = arith.addf %85, %87 : vector<32x128xf32>
    %89 = arith.mulf %88, %88 : vector<32x128xf32>
    %90 = arith.mulf %88, %89 : vector<32x128xf32>
    %cst_39 = arith.constant 4.471500e-02 : f32
    %91 = vector.broadcast %cst_39 : f32 to vector<32x128xf32>
    %92 = arith.mulf %91, %90 : vector<32x128xf32>
    %93 = arith.addf %88, %92 : vector<32x128xf32>
    %cst_40 = arith.constant 0.797884583 : f32
    %94 = vector.broadcast %cst_40 : f32 to vector<32x128xf32>
    %95 = arith.mulf %94, %93 : vector<32x128xf32>
    %96 = math.tanh %95 : vector<32x128xf32>
    %cst_41 = arith.constant 1.000000e+00 : f32
    %97 = vector.broadcast %cst_41 : f32 to vector<32x128xf32>
    %98 = arith.addf %97, %96 : vector<32x128xf32>
    %cst_42 = arith.constant 5.000000e-01 : f32
    %99 = vector.broadcast %cst_42 : f32 to vector<32x128xf32>
    %100 = arith.mulf %99, %98 : vector<32x128xf32>
    %101 = arith.mulf %88, %100 : vector<32x128xf32>
    %c0_43 = arith.constant 0 : index
    %c0_44 = arith.constant 0 : index
    %102 = vector.load %arg11[%c0_43, %c0_44] : memref<32x128xf32, #tpu.memory_space<vmem>>, vector<32x128xf32>
    tpu.vector_store %arg11[%c0_43, %c0_44], %101 {strides = array<i32>} : memref<32x128xf32, #tpu.memory_space<vmem>>, vector<32x128xf32>,
    return
  }
  func.func @transform_0(%arg0: i32) -> (i32, i32) {
    %c0_i32 = arith.constant 0 : i32
    %c0_i32_0 = arith.constant 0 : i32
    return %arg0, %c0_i32 : i32, i32
  }
  func.func @transform_1(%arg0: i32) -> (i32, i32) {
    %c0_i32 = arith.constant 0 : i32
    %c0_i32_0 = arith.constant 0 : i32
    return %arg0, %c0_i32 : i32, i32
  }
  func.func @transform_2(%arg0: i32) -> (i32, i32) {
    %c0_i32 = arith.constant 0 : i32
    %c0_i32_0 = arith.constant 0 : i32
    %c0_i32_1 = arith.constant 0 : i32
    return %c0_i32, %c0_i32_0 : i32, i32
  }
  func.func @transform_3(%arg0: i32) -> (i32, i32) {
    %c0_i32 = arith.constant 0 : i32
    %c0_i32_0 = arith.constant 0 : i32
    %c0_i32_1 = arith.constant 0 : i32
    return %c0_i32, %c0_i32_0 : i32, i32
  }
  func.func @transform_4(%arg0: i32) -> (i32, i32) {
    %c0_i32 = arith.constant 0 : i32
    %c0_i32_0 = arith.constant 0 : i32
    %c0_i32_1 = arith.constant 0 : i32
    return %c0_i32, %c0_i32_0 : i32, i32
  }
  func.func @transform_5(%arg0: i32) -> (i32, i32) {
    %c0_i32 = arith.constant 0 : i32
    %c0_i32_0 = arith.constant 0 : i32
    %c0_i32_1 = arith.constant 0 : i32
    return %c0_i32, %c0_i32_0 : i32, i32
  }
  func.func @transform_6(%arg0: i32) -> (i32, i32) {
    %c0_i32 = arith.constant 0 : i32
    %c0_i32_0 = arith.constant 0 : i32
    %c0_i32_1 = arith.constant 0 : i32
    return %c0_i32, %c0_i32_0 : i32, i32
  }
  func.func @transform_7(%arg0: i32) -> (i32, i32) {
    %c0_i32 = arith.constant 0 : i32
    %c0_i32_0 = arith.constant 0 : i32
    %c0_i32_1 = arith.constant 0 : i32
    return %c0_i32, %c0_i32_0 : i32, i32
  }
  func.func @transform_8(%arg0: i32) -> (i32, i32) {
    %c0_i32 = arith.constant 0 : i32
    %c0_i32_0 = arith.constant 0 : i32
    %c0_i32_1 = arith.constant 0 : i32
    return %c0_i32, %c0_i32_0 : i32, i32
  }
  func.func @transform_9(%arg0: i32) -> (i32, i32) {
    %c0_i32 = arith.constant 0 : i32
    %c0_i32_0 = arith.constant 0 : i32
    %c0_i32_1 = arith.constant 0 : i32
    return %c0_i32, %c0_i32_0 : i32, i32
  }
  func.func @transform_10(%arg0: i32) -> (i32, i32) {
    %c0_i32 = arith.constant 0 : i32
    %c0_i32_0 = arith.constant 0 : i32
    return %arg0, %c0_i32 : i32, i32
  }
}

module attributes {stable_mosaic.version = 11 : i64} {
  func.func @_alignment_kernel(%arg0: i32, %arg1: memref<2x8x384xf32, #tpu.memory_space<vmem>>, %arg2: memref<2x8x384xf32, #tpu.memory_space<vmem>>, %arg3: memref<2x8x1xf32, #tpu.memory_space<vmem>>, %arg4: memref<2x1x8xf32, #tpu.memory_space<vmem>>, %arg5: memref<2x8x1xf32, #tpu.memory_space<vmem>>, %arg6: memref<2x1x8xf32, #tpu.memory_space<vmem>>, %arg7: memref<384x128xbf16, #tpu.memory_space<vmem>>, %arg8: memref<1x128xf32, #tpu.memory_space<vmem>>, %arg9: memref<2x8x384xf32, #tpu.memory_space<vmem>>, %arg10: memref<2x8x384xf32, #tpu.memory_space<vmem>>) attributes {dimension_semantics = [#tpu.dimension_semantics<parallel>], iteration_bounds = array<i64: 1>, scalar_prefetch = 0 : i64, scratch_operands = 0 : i64, tpu.core_type = #tpu.core_type<tc>, window_params = [{transform_indices = @transform_0, window_bounds = array<i64: 2, 8, 384>}, {transform_indices = @transform_1, window_bounds = array<i64: 2, 8, 384>}, {transform_indices = @transform_2, window_bounds = array<i64: 2, 8, 1>}, {transform_indices = @transform_3, window_bounds = array<i64: 2, 1, 8>}, {transform_indices = @transform_4, window_bounds = array<i64: 2, 8, 1>}, {transform_indices = @transform_5, window_bounds = array<i64: 2, 1, 8>}, {pipeline_mode = #tpu.pipeline_mode<synchronous>, transform_indices = @transform_6, window_bounds = array<i64: 384, 128>}, {pipeline_mode = #tpu.pipeline_mode<synchronous>, transform_indices = @transform_7, window_bounds = array<i64: 1, 128>}, {transform_indices = @transform_8, window_bounds = array<i64: 2, 8, 384>}, {transform_indices = @transform_9, window_bounds = array<i64: 2, 8, 384>}]} {
    %c0 = arith.constant 0 : index
    %c0_0 = arith.constant 0 : index
    %c0_1 = arith.constant 0 : index
    %0 = vector.load %arg1[%c0, %c0_0, %c0_1] : memref<2x8x384xf32, #tpu.memory_space<vmem>>, vector<2x8x384xf32>
    %c0_2 = arith.constant 0 : index
    %c0_3 = arith.constant 0 : index
    %c0_4 = arith.constant 0 : index
    %1 = vector.load %arg2[%c0_2, %c0_3, %c0_4] : memref<2x8x384xf32, #tpu.memory_space<vmem>>, vector<2x8x384xf32>
    %c0_5 = arith.constant 0 : index
    %c0_6 = arith.constant 0 : index
    %2 = vector.load %arg7[%c0_5, %c0_6] : memref<384x128xbf16, #tpu.memory_space<vmem>>, vector<384x128xbf16>
    %c0_7 = arith.constant 0 : index
    %c0_8 = arith.constant 0 : index
    %3 = vector.load %arg8[%c0_7, %c0_8] : memref<1x128xf32, #tpu.memory_space<vmem>>, vector<1x128xf32>
    %4 = vector.shape_cast %0 : vector<2x8x384xf32> to vector<16x384xf32>
    %5 = arith.truncf %4 : vector<16x384xf32> to vector<16x384xbf16>
    %cst = arith.constant dense<0.000000e+00> : vector<16x128xf32>
    %6 = tpu.matmul %5, %2, %cst {dimension_numbers = #tpu.dot_dimension_numbers<[1], [0], [0], [1], [0, 0, 1, 1], [], []>} : vector<16x384xbf16>, vector<384x128xbf16>, vector<16x128xf32> -> vector<16x128xf32>
    %7 = vector.broadcast %3 : vector<1x128xf32> to vector<16x128xf32>
    %8 = arith.addf %6, %7 : vector<16x128xf32>
    %9 = arith.mulf %8, %8 : vector<16x128xf32>
    %10 = arith.mulf %8, %9 : vector<16x128xf32>
    %cst_9 = arith.constant 4.471500e-02 : f32
    %11 = vector.broadcast %cst_9 : f32 to vector<16x128xf32>
    %12 = arith.mulf %11, %10 : vector<16x128xf32>
    %13 = arith.addf %8, %12 : vector<16x128xf32>
    %cst_10 = arith.constant 0.797884583 : f32
    %14 = vector.broadcast %cst_10 : f32 to vector<16x128xf32>
    %15 = arith.mulf %14, %13 : vector<16x128xf32>
    %16 = math.tanh %15 : vector<16x128xf32>
    %cst_11 = arith.constant 1.000000e+00 : f32
    %17 = vector.broadcast %cst_11 : f32 to vector<16x128xf32>
    %18 = arith.addf %17, %16 : vector<16x128xf32>
    %cst_12 = arith.constant 5.000000e-01 : f32
    %19 = vector.broadcast %cst_12 : f32 to vector<16x128xf32>
    %20 = arith.mulf %19, %18 : vector<16x128xf32>
    %21 = arith.mulf %8, %20 : vector<16x128xf32>
    %22 = vector.shape_cast %21 : vector<16x128xf32> to vector<2x8x128xf32>
    %23 = arith.truncf %22 : vector<2x8x128xf32> to vector<2x8x128xbf16>
    %24 = vector.shape_cast %1 : vector<2x8x384xf32> to vector<16x384xf32>
    %25 = arith.truncf %24 : vector<16x384xf32> to vector<16x384xbf16>
    %cst_13 = arith.constant dense<0.000000e+00> : vector<16x128xf32>
    %26 = tpu.matmul %25, %2, %cst_13 {dimension_numbers = #tpu.dot_dimension_numbers<[1], [0], [0], [1], [0, 0, 1, 1], [], []>} : vector<16x384xbf16>, vector<384x128xbf16>, vector<16x128xf32> -> vector<16x128xf32>
    %27 = vector.broadcast %3 : vector<1x128xf32> to vector<16x128xf32>
    %28 = arith.addf %26, %27 : vector<16x128xf32>
    %29 = arith.mulf %28, %28 : vector<16x128xf32>
    %30 = arith.mulf %28, %29 : vector<16x128xf32>
    %cst_14 = arith.constant 4.471500e-02 : f32
    %31 = vector.broadcast %cst_14 : f32 to vector<16x128xf32>
    %32 = arith.mulf %31, %30 : vector<16x128xf32>
    %33 = arith.addf %28, %32 : vector<16x128xf32>
    %cst_15 = arith.constant 0.797884583 : f32
    %34 = vector.broadcast %cst_15 : f32 to vector<16x128xf32>
    %35 = arith.mulf %34, %33 : vector<16x128xf32>
    %36 = math.tanh %35 : vector<16x128xf32>
    %cst_16 = arith.constant 1.000000e+00 : f32
    %37 = vector.broadcast %cst_16 : f32 to vector<16x128xf32>
    %38 = arith.addf %37, %36 : vector<16x128xf32>
    %cst_17 = arith.constant 5.000000e-01 : f32
    %39 = vector.broadcast %cst_17 : f32 to vector<16x128xf32>
    %40 = arith.mulf %39, %38 : vector<16x128xf32>
    %41 = arith.mulf %28, %40 : vector<16x128xf32>
    %42 = vector.shape_cast %41 : vector<16x128xf32> to vector<2x8x128xf32>
    %43 = arith.truncf %42 : vector<2x8x128xf32> to vector<2x8x128xbf16>
    "tpu.trace_start"() <{level = 10 : i32, message = "bqh,bkh->bqk"}> : () -> ()
    %cst_18 = arith.constant dense<0.000000e+00> : vector<2x8x8xf32>
    %44 = tpu.matmul %23, %43, %cst_18 {dimension_numbers = #tpu.dot_dimension_numbers<[2], [2], [1], [1], [0, 0, 0, 1, 1, 1], [0], [0]>} : vector<2x8x128xbf16>, vector<2x8x128xbf16>, vector<2x8x8xf32> -> vector<2x8x8xf32>
    "tpu.trace_stop"() : () -> ()
    %cst_19 = arith.constant 0.176776692 : f32
    %45 = vector.broadcast %cst_19 : f32 to vector<2x8x8xf32>
    %46 = arith.mulf %44, %45 : vector<2x8x8xf32>
    "tpu.trace_start"() <{level = 10 : i32, message = "bkh,bqh->bkq"}> : () -> ()
    %cst_20 = arith.constant dense<0.000000e+00> : vector<2x8x8xf32>
    %47 = tpu.matmul %43, %23, %cst_20 {dimension_numbers = #tpu.dot_dimension_numbers<[2], [2], [1], [1], [0, 0, 0, 1, 1, 1], [0], [0]>} : vector<2x8x128xbf16>, vector<2x8x128xbf16>, vector<2x8x8xf32> -> vector<2x8x8xf32>
    "tpu.trace_stop"() : () -> ()
    %cst_21 = arith.constant 0.176776692 : f32
    %48 = vector.broadcast %cst_21 : f32 to vector<2x8x8xf32>
    %49 = arith.mulf %47, %48 : vector<2x8x8xf32>
    %c0_22 = arith.constant 0 : index
    %c0_23 = arith.constant 0 : index
    %c0_24 = arith.constant 0 : index
    %50 = vector.load %arg3[%c0_22, %c0_23, %c0_24] : memref<2x8x1xf32, #tpu.memory_space<vmem>>, vector<2x8x1xf32>
    %c0_25 = arith.constant 0 : index
    %c0_26 = arith.constant 0 : index
    %c0_27 = arith.constant 0 : index
    %51 = vector.load %arg6[%c0_25, %c0_26, %c0_27] : memref<2x1x8xf32, #tpu.memory_space<vmem>>, vector<2x1x8xf32>
    %52 = vector.broadcast %50 : vector<2x8x1xf32> to vector<2x8x8xf32>
    %53 = vector.broadcast %51 : vector<2x1x8xf32> to vector<2x8x8xf32>
    %54 = arith.mulf %52, %53 : vector<2x8x8xf32>
    %cst_28 = arith.constant 0.000000e+00 : f32
    %55 = vector.broadcast %cst_28 : f32 to vector<2x8x8xf32>
    %56 = arith.cmpf ogt, %54, %55 : vector<2x8x8xf32>
    %cst_29 = arith.constant -1.000000e+07 : f32
    %57 = vector.broadcast %cst_29 : f32 to vector<2x8x8xf32>
    %58 = arith.select %56, %46, %57 : vector<2x8x8xi1>, vector<2x8x8xf32>
    %c0_30 = arith.constant 0 : index
    %c0_31 = arith.constant 0 : index
    %c0_32 = arith.constant 0 : index
    %59 = vector.load %arg5[%c0_30, %c0_31, %c0_32] : memref<2x8x1xf32, #tpu.memory_space<vmem>>, vector<2x8x1xf32>
    %c0_33 = arith.constant 0 : index
    %c0_34 = arith.constant 0 : index
    %c0_35 = arith.constant 0 : index
    %60 = vector.load %arg4[%c0_33, %c0_34, %c0_35] : memref<2x1x8xf32, #tpu.memory_space<vmem>>, vector<2x1x8xf32>
    %61 = vector.broadcast %59 : vector<2x8x1xf32> to vector<2x8x8xf32>
    %62 = vector.broadcast %60 : vector<2x1x8xf32> to vector<2x8x8xf32>
    %63 = arith.mulf %61, %62 : vector<2x8x8xf32>
    %cst_36 = arith.constant 0.000000e+00 : f32
    %64 = vector.broadcast %cst_36 : f32 to vector<2x8x8xf32>
    %65 = arith.cmpf ogt, %63, %64 : vector<2x8x8xf32>
    %cst_37 = arith.constant -1.000000e+07 : f32
    %66 = vector.broadcast %cst_37 : f32 to vector<2x8x8xf32>
    %67 = arith.select %65, %49, %66 : vector<2x8x8xi1>, vector<2x8x8xf32>
    %cst_38 = arith.constant dense<0xFF800000> : vector<2x8xf32>
    %68 = vector.multi_reduction <maximumf>, %58, %cst_38 [2] : vector<2x8x8xf32> to vector<2x8xf32>
    %69 = vector.shape_cast %68 : vector<2x8xf32> to vector<2x8x1xf32>
    %70 = vector.broadcast %69 : vector<2x8x1xf32> to vector<2x8x8xf32>
    %71 = arith.subf %58, %70 : vector<2x8x8xf32>
    %72 = math.exp %71 : vector<2x8x8xf32>
    %cst_39 = arith.constant dense<0.000000e+00> : vector<2x8xf32>
    %73 = vector.multi_reduction <add>, %72, %cst_39 [2] : vector<2x8x8xf32> to vector<2x8xf32>
    %74 = vector.shape_cast %73 : vector<2x8xf32> to vector<2x8x1xf32>
    %75 = vector.broadcast %74 : vector<2x8x1xf32> to vector<2x8x8xf32>
    %76 = arith.divf %72, %75 : vector<2x8x8xf32>
    %cst_40 = arith.constant dense<0xFF800000> : vector<2x8xf32>
    %77 = vector.multi_reduction <maximumf>, %67, %cst_40 [2] : vector<2x8x8xf32> to vector<2x8xf32>
    %78 = vector.shape_cast %77 : vector<2x8xf32> to vector<2x8x1xf32>
    %79 = vector.broadcast %78 : vector<2x8x1xf32> to vector<2x8x8xf32>
    %80 = arith.subf %67, %79 : vector<2x8x8xf32>
    %81 = math.exp %80 : vector<2x8x8xf32>
    %cst_41 = arith.constant dense<0.000000e+00> : vector<2x8xf32>
    %82 = vector.multi_reduction <add>, %81, %cst_41 [2] : vector<2x8x8xf32> to vector<2x8xf32>
    %83 = vector.shape_cast %82 : vector<2x8xf32> to vector<2x8x1xf32>
    %84 = vector.broadcast %83 : vector<2x8x1xf32> to vector<2x8x8xf32>
    %85 = arith.divf %81, %84 : vector<2x8x8xf32>
    %86 = arith.truncf %76 : vector<2x8x8xf32> to vector<2x8x8xbf16>
    %87 = arith.truncf %1 : vector<2x8x384xf32> to vector<2x8x384xbf16>
    "tpu.trace_start"() <{level = 10 : i32, message = "bqk,bkd->bqd"}> : () -> ()
    %cst_42 = arith.constant dense<0.000000e+00> : vector<2x8x384xf32>
    %88 = tpu.matmul %86, %87, %cst_42 {dimension_numbers = #tpu.dot_dimension_numbers<[2], [1], [1], [2], [0, 0, 0, 1, 1, 2], [0], [0]>} : vector<2x8x8xbf16>, vector<2x8x384xbf16>, vector<2x8x384xf32> -> vector<2x8x384xf32>
    "tpu.trace_stop"() : () -> ()
    %c0_43 = arith.constant 0 : index
    %c0_44 = arith.constant 0 : index
    %c0_45 = arith.constant 0 : index
    %89 = vector.load %arg9[%c0_43, %c0_44, %c0_45] : memref<2x8x384xf32, #tpu.memory_space<vmem>>, vector<2x8x384xf32>
    tpu.vector_store %arg9[%c0_43, %c0_44, %c0_45], %88 {strides = array<i32>} : memref<2x8x384xf32, #tpu.memory_space<vmem>>, vector<2x8x384xf32>,
    %90 = arith.truncf %85 : vector<2x8x8xf32> to vector<2x8x8xbf16>
    %91 = arith.truncf %0 : vector<2x8x384xf32> to vector<2x8x384xbf16>
    "tpu.trace_start"() <{level = 10 : i32, message = "bkq,bqd->bkd"}> : () -> ()
    %cst_46 = arith.constant dense<0.000000e+00> : vector<2x8x384xf32>
    %92 = tpu.matmul %90, %91, %cst_46 {dimension_numbers = #tpu.dot_dimension_numbers<[2], [1], [1], [2], [0, 0, 0, 1, 1, 2], [0], [0]>} : vector<2x8x8xbf16>, vector<2x8x384xbf16>, vector<2x8x384xf32> -> vector<2x8x384xf32>
    "tpu.trace_stop"() : () -> ()
    %c0_47 = arith.constant 0 : index
    %c0_48 = arith.constant 0 : index
    %c0_49 = arith.constant 0 : index
    %93 = vector.load %arg10[%c0_47, %c0_48, %c0_49] : memref<2x8x384xf32, #tpu.memory_space<vmem>>, vector<2x8x384xf32>
    tpu.vector_store %arg10[%c0_47, %c0_48, %c0_49], %92 {strides = array<i32>} : memref<2x8x384xf32, #tpu.memory_space<vmem>>, vector<2x8x384xf32>,
    return
  }
  func.func @transform_0(%arg0: i32) -> (i32, i32, i32) {
    %c0_i32 = arith.constant 0 : i32
    %c0_i32_0 = arith.constant 0 : i32
    %c0_i32_1 = arith.constant 0 : i32
    return %arg0, %c0_i32, %c0_i32_0 : i32, i32, i32
  }
  func.func @transform_1(%arg0: i32) -> (i32, i32, i32) {
    %c0_i32 = arith.constant 0 : i32
    %c0_i32_0 = arith.constant 0 : i32
    %c0_i32_1 = arith.constant 0 : i32
    return %arg0, %c0_i32, %c0_i32_0 : i32, i32, i32
  }
  func.func @transform_2(%arg0: i32) -> (i32, i32, i32) {
    %c0_i32 = arith.constant 0 : i32
    %c0_i32_0 = arith.constant 0 : i32
    %c0_i32_1 = arith.constant 0 : i32
    return %arg0, %c0_i32, %c0_i32_0 : i32, i32, i32
  }
  func.func @transform_3(%arg0: i32) -> (i32, i32, i32) {
    %c0_i32 = arith.constant 0 : i32
    %c0_i32_0 = arith.constant 0 : i32
    %c0_i32_1 = arith.constant 0 : i32
    return %arg0, %c0_i32, %c0_i32_0 : i32, i32, i32
  }
  func.func @transform_4(%arg0: i32) -> (i32, i32, i32) {
    %c0_i32 = arith.constant 0 : i32
    %c0_i32_0 = arith.constant 0 : i32
    %c0_i32_1 = arith.constant 0 : i32
    return %arg0, %c0_i32, %c0_i32_0 : i32, i32, i32
  }
  func.func @transform_5(%arg0: i32) -> (i32, i32, i32) {
    %c0_i32 = arith.constant 0 : i32
    %c0_i32_0 = arith.constant 0 : i32
    %c0_i32_1 = arith.constant 0 : i32
    return %arg0, %c0_i32, %c0_i32_0 : i32, i32, i32
  }
  func.func @transform_6(%arg0: i32) -> (i32, i32) {
    %c0_i32 = arith.constant 0 : i32
    %c0_i32_0 = arith.constant 0 : i32
    %c0_i32_1 = arith.constant 0 : i32
    return %c0_i32, %c0_i32_0 : i32, i32
  }
  func.func @transform_7(%arg0: i32) -> (i32, i32) {
    %c0_i32 = arith.constant 0 : i32
    %c0_i32_0 = arith.constant 0 : i32
    %c0_i32_1 = arith.constant 0 : i32
    return %c0_i32, %c0_i32_0 : i32, i32
  }
  func.func @transform_8(%arg0: i32) -> (i32, i32, i32) {
    %c0_i32 = arith.constant 0 : i32
    %c0_i32_0 = arith.constant 0 : i32
    %c0_i32_1 = arith.constant 0 : i32
    return %arg0, %c0_i32, %c0_i32_0 : i32, i32, i32
  }
  func.func @transform_9(%arg0: i32) -> (i32, i32, i32) {
    %c0_i32 = arith.constant 0 : i32
    %c0_i32_0 = arith.constant 0 : i32
    %c0_i32_1 = arith.constant 0 : i32
    return %arg0, %c0_i32, %c0_i32_0 : i32, i32, i32
  }
}

module attributes {stable_mosaic.version = 11 : i64} {
  func.func @_pool_predict_kernel(%arg0: i32, %arg1: memref<2x8x128xf32, #tpu.memory_space<vmem>>, %arg2: memref<2x8x128xf32, #tpu.memory_space<vmem>>, %arg3: memref<2x8x1xf32, #tpu.memory_space<vmem>>, %arg4: memref<2x8x1xf32, #tpu.memory_space<vmem>>, %arg5: memref<512x128xbf16, #tpu.memory_space<vmem>>, %arg6: memref<1x128xf32, #tpu.memory_space<vmem>>, %arg7: memref<128x2xbf16, #tpu.memory_space<vmem>>, %arg8: memref<1x2xf32, #tpu.memory_space<vmem>>, %arg9: memref<2x2xf32, #tpu.memory_space<vmem>>, %arg10: memref<2x2xf32, #tpu.memory_space<vmem>>) attributes {dimension_semantics = [#tpu.dimension_semantics<parallel>], iteration_bounds = array<i64: 1>, scalar_prefetch = 0 : i64, scratch_operands = 0 : i64, tpu.core_type = #tpu.core_type<tc>, window_params = [{transform_indices = @transform_0, window_bounds = array<i64: 2, 8, 128>}, {transform_indices = @transform_1, window_bounds = array<i64: 2, 8, 128>}, {transform_indices = @transform_2, window_bounds = array<i64: 2, 8, 1>}, {transform_indices = @transform_3, window_bounds = array<i64: 2, 8, 1>}, {pipeline_mode = #tpu.pipeline_mode<synchronous>, transform_indices = @transform_4, window_bounds = array<i64: 512, 128>}, {pipeline_mode = #tpu.pipeline_mode<synchronous>, transform_indices = @transform_5, window_bounds = array<i64: 1, 128>}, {pipeline_mode = #tpu.pipeline_mode<synchronous>, transform_indices = @transform_6, window_bounds = array<i64: 128, 2>}, {pipeline_mode = #tpu.pipeline_mode<synchronous>, transform_indices = @transform_7, window_bounds = array<i64: 1, 2>}, {transform_indices = @transform_8, window_bounds = array<i64: 2, 2>}, {transform_indices = @transform_9, window_bounds = array<i64: 2, 2>}]} {
    %c0 = arith.constant 0 : index
    %c0_0 = arith.constant 0 : index
    %c0_1 = arith.constant 0 : index
    %0 = vector.load %arg3[%c0, %c0_0, %c0_1] : memref<2x8x1xf32, #tpu.memory_space<vmem>>, vector<2x8x1xf32>
    %cst = arith.constant 0.000000e+00 : f32
    %1 = vector.broadcast %cst : f32 to vector<2x8x1xf32>
    %2 = arith.cmpf ogt, %0, %1 : vector<2x8x1xf32>
    %c0_2 = arith.constant 0 : index
    %c0_3 = arith.constant 0 : index
    %c0_4 = arith.constant 0 : index
    %3 = vector.load %arg1[%c0_2, %c0_3, %c0_4] : memref<2x8x128xf32, #tpu.memory_space<vmem>>, vector<2x8x128xf32>
    %cst_5 = arith.constant -1.000000e+30 : f32
    %4 = vector.shape_cast %2 : vector<2x8x1xi1> to vector<2x8x1xi1>
    %5 = vector.broadcast %4 : vector<2x8x1xi1> to vector<2x8x128xi1>
    %6 = vector.broadcast %cst_5 : f32 to vector<2x8x128xf32>
    %7 = arith.select %5, %3, %6 : vector<2x8x128xi1>, vector<2x8x128xf32>
    %c0_6 = arith.constant 0 : index
    %c0_7 = arith.constant 0 : index
    %c0_8 = arith.constant 0 : index
    %8 = vector.load %arg4[%c0_6, %c0_7, %c0_8] : memref<2x8x1xf32, #tpu.memory_space<vmem>>, vector<2x8x1xf32>
    %cst_9 = arith.constant 0.000000e+00 : f32
    %9 = vector.broadcast %cst_9 : f32 to vector<2x8x1xf32>
    %10 = arith.cmpf ogt, %8, %9 : vector<2x8x1xf32>
    %c0_10 = arith.constant 0 : index
    %c0_11 = arith.constant 0 : index
    %c0_12 = arith.constant 0 : index
    %11 = vector.load %arg2[%c0_10, %c0_11, %c0_12] : memref<2x8x128xf32, #tpu.memory_space<vmem>>, vector<2x8x128xf32>
    %cst_13 = arith.constant -1.000000e+30 : f32
    %12 = vector.shape_cast %10 : vector<2x8x1xi1> to vector<2x8x1xi1>
    %13 = vector.broadcast %12 : vector<2x8x1xi1> to vector<2x8x128xi1>
    %14 = vector.broadcast %cst_13 : f32 to vector<2x8x128xf32>
    %15 = arith.select %13, %11, %14 : vector<2x8x128xi1>, vector<2x8x128xf32>
    %cst_14 = arith.constant dense<0xFF800000> : vector<2x128xf32>
    %16 = vector.multi_reduction <maximumf>, %7, %cst_14 [1] : vector<2x8x128xf32> to vector<2x128xf32>
    %cst_15 = arith.constant dense<0xFF800000> : vector<2x128xf32>
    %17 = vector.multi_reduction <maximumf>, %15, %cst_15 [1] : vector<2x8x128xf32> to vector<2x128xf32>
    %c0_16 = arith.constant 0 : index
    %c0_17 = arith.constant 0 : index
    %18 = vector.load %arg5[%c0_16, %c0_17] : memref<512x128xbf16, #tpu.memory_space<vmem>>, vector<512x128xbf16>
    %19 = arith.truncf %16 : vector<2x128xf32> to vector<2x128xbf16>
    %20 = vector.extract_strided_slice %18 {offsets = [0, 0], sizes = [128, 128], strides = [1, 1]} : vector<512x128xbf16> to vector<128x128xbf16>
    %cst_18 = arith.constant dense<0.000000e+00> : vector<2x128xf32>
    %21 = tpu.matmul %19, %20, %cst_18 {dimension_numbers = #tpu.dot_dimension_numbers<[1], [0], [0], [1], [0, 0, 1, 1], [], []>} : vector<2x128xbf16>, vector<128x128xbf16>, vector<2x128xf32> -> vector<2x128xf32>
    %22 = arith.truncf %17 : vector<2x128xf32> to vector<2x128xbf16>
    %23 = vector.extract_strided_slice %18 {offsets = [128, 0], sizes = [128, 128], strides = [1, 1]} : vector<512x128xbf16> to vector<128x128xbf16>
    %cst_19 = arith.constant dense<0.000000e+00> : vector<2x128xf32>
    %24 = tpu.matmul %22, %23, %cst_19 {dimension_numbers = #tpu.dot_dimension_numbers<[1], [0], [0], [1], [0, 0, 1, 1], [], []>} : vector<2x128xbf16>, vector<128x128xbf16>, vector<2x128xf32> -> vector<2x128xf32>
    %25 = arith.addf %21, %24 : vector<2x128xf32>
    %26 = arith.subf %16, %17 : vector<2x128xf32>
    %27 = arith.truncf %26 : vector<2x128xf32> to vector<2x128xbf16>
    %28 = vector.extract_strided_slice %18 {offsets = [256, 0], sizes = [128, 128], strides = [1, 1]} : vector<512x128xbf16> to vector<128x128xbf16>
    %cst_20 = arith.constant dense<0.000000e+00> : vector<2x128xf32>
    %29 = tpu.matmul %27, %28, %cst_20 {dimension_numbers = #tpu.dot_dimension_numbers<[1], [0], [0], [1], [0, 0, 1, 1], [], []>} : vector<2x128xbf16>, vector<128x128xbf16>, vector<2x128xf32> -> vector<2x128xf32>
    %30 = arith.addf %25, %29 : vector<2x128xf32>
    %31 = arith.mulf %16, %17 : vector<2x128xf32>
    %32 = arith.truncf %31 : vector<2x128xf32> to vector<2x128xbf16>
    %33 = vector.extract_strided_slice %18 {offsets = [384, 0], sizes = [128, 128], strides = [1, 1]} : vector<512x128xbf16> to vector<128x128xbf16>
    %cst_21 = arith.constant dense<0.000000e+00> : vector<2x128xf32>
    %34 = tpu.matmul %32, %33, %cst_21 {dimension_numbers = #tpu.dot_dimension_numbers<[1], [0], [0], [1], [0, 0, 1, 1], [], []>} : vector<2x128xbf16>, vector<128x128xbf16>, vector<2x128xf32> -> vector<2x128xf32>
    %35 = arith.addf %30, %34 : vector<2x128xf32>
    %c0_22 = arith.constant 0 : index
    %c0_23 = arith.constant 0 : index
    %36 = vector.load %arg6[%c0_22, %c0_23] : memref<1x128xf32, #tpu.memory_space<vmem>>, vector<1x128xf32>
    %37 = vector.broadcast %36 : vector<1x128xf32> to vector<2x128xf32>
    %38 = arith.addf %35, %37 : vector<2x128xf32>
    %39 = arith.mulf %38, %38 : vector<2x128xf32>
    %40 = arith.mulf %38, %39 : vector<2x128xf32>
    %cst_24 = arith.constant 4.471500e-02 : f32
    %41 = vector.broadcast %cst_24 : f32 to vector<2x128xf32>
    %42 = arith.mulf %41, %40 : vector<2x128xf32>
    %43 = arith.addf %38, %42 : vector<2x128xf32>
    %cst_25 = arith.constant 0.797884583 : f32
    %44 = vector.broadcast %cst_25 : f32 to vector<2x128xf32>
    %45 = arith.mulf %44, %43 : vector<2x128xf32>
    %46 = math.tanh %45 : vector<2x128xf32>
    %cst_26 = arith.constant 1.000000e+00 : f32
    %47 = vector.broadcast %cst_26 : f32 to vector<2x128xf32>
    %48 = arith.addf %47, %46 : vector<2x128xf32>
    %cst_27 = arith.constant 5.000000e-01 : f32
    %49 = vector.broadcast %cst_27 : f32 to vector<2x128xf32>
    %50 = arith.mulf %49, %48 : vector<2x128xf32>
    %51 = arith.mulf %38, %50 : vector<2x128xf32>
    %52 = arith.truncf %51 : vector<2x128xf32> to vector<2x128xbf16>
    %c0_28 = arith.constant 0 : index
    %c0_29 = arith.constant 0 : index
    %53 = vector.load %arg7[%c0_28, %c0_29] : memref<128x2xbf16, #tpu.memory_space<vmem>>, vector<128x2xbf16>
    %cst_30 = arith.constant dense<0.000000e+00> : vector<2x2xf32>
    %54 = tpu.matmul %52, %53, %cst_30 {dimension_numbers = #tpu.dot_dimension_numbers<[1], [0], [0], [1], [0, 0, 1, 1], [], []>} : vector<2x128xbf16>, vector<128x2xbf16>, vector<2x2xf32> -> vector<2x2xf32>
    %c0_31 = arith.constant 0 : index
    %c0_32 = arith.constant 0 : index
    %55 = vector.load %arg8[%c0_31, %c0_32] : memref<1x2xf32, #tpu.memory_space<vmem>>, vector<1x2xf32>
    %56 = vector.broadcast %55 : vector<1x2xf32> to vector<2x2xf32>
    %57 = arith.addf %54, %56 : vector<2x2xf32>
    %c0_33 = arith.constant 0 : index
    %c0_34 = arith.constant 0 : index
    %58 = vector.load %arg9[%c0_33, %c0_34] : memref<2x2xf32, #tpu.memory_space<vmem>>, vector<2x2xf32>
    tpu.vector_store %arg9[%c0_33, %c0_34], %57 {strides = array<i32>} : memref<2x2xf32, #tpu.memory_space<vmem>>, vector<2x2xf32>,
    %cst_35 = arith.constant dense<0xFF800000> : vector<2xf32>
    %59 = vector.multi_reduction <maximumf>, %57, %cst_35 [1] : vector<2x2xf32> to vector<2xf32>
    %60 = vector.shape_cast %59 : vector<2xf32> to vector<2x1xf32>
    %61 = vector.broadcast %60 : vector<2x1xf32> to vector<2x2xf32>
    %62 = arith.subf %57, %61 : vector<2x2xf32>
    %63 = math.exp %62 : vector<2x2xf32>
    %cst_36 = arith.constant dense<0.000000e+00> : vector<2xf32>
    %64 = vector.multi_reduction <add>, %63, %cst_36 [1] : vector<2x2xf32> to vector<2xf32>
    %65 = vector.shape_cast %64 : vector<2xf32> to vector<2x1xf32>
    %66 = vector.broadcast %65 : vector<2x1xf32> to vector<2x2xf32>
    %67 = arith.divf %63, %66 : vector<2x2xf32>
    %c0_37 = arith.constant 0 : index
    %c0_38 = arith.constant 0 : index
    %68 = vector.load %arg10[%c0_37, %c0_38] : memref<2x2xf32, #tpu.memory_space<vmem>>, vector<2x2xf32>
    tpu.vector_store %arg10[%c0_37, %c0_38], %67 {strides = array<i32>} : memref<2x2xf32, #tpu.memory_space<vmem>>, vector<2x2xf32>,
    return
  }
  func.func @transform_0(%arg0: i32) -> (i32, i32, i32) {
    %c0_i32 = arith.constant 0 : i32
    %c0_i32_0 = arith.constant 0 : i32
    %c0_i32_1 = arith.constant 0 : i32
    return %arg0, %c0_i32, %c0_i32_0 : i32, i32, i32
  }
  func.func @transform_1(%arg0: i32) -> (i32, i32, i32) {
    %c0_i32 = arith.constant 0 : i32
    %c0_i32_0 = arith.constant 0 : i32
    %c0_i32_1 = arith.constant 0 : i32
    return %arg0, %c0_i32, %c0_i32_0 : i32, i32, i32
  }
  func.func @transform_2(%arg0: i32) -> (i32, i32, i32) {
    %c0_i32 = arith.constant 0 : i32
    %c0_i32_0 = arith.constant 0 : i32
    %c0_i32_1 = arith.constant 0 : i32
    return %arg0, %c0_i32, %c0_i32_0 : i32, i32, i32
  }
  func.func @transform_3(%arg0: i32) -> (i32, i32, i32) {
    %c0_i32 = arith.constant 0 : i32
    %c0_i32_0 = arith.constant 0 : i32
    %c0_i32_1 = arith.constant 0 : i32
    return %arg0, %c0_i32, %c0_i32_0 : i32, i32, i32
  }
  func.func @transform_4(%arg0: i32) -> (i32, i32) {
    %c0_i32 = arith.constant 0 : i32
    %c0_i32_0 = arith.constant 0 : i32
    %c0_i32_1 = arith.constant 0 : i32
    return %c0_i32, %c0_i32_0 : i32, i32
  }
  func.func @transform_5(%arg0: i32) -> (i32, i32) {
    %c0_i32 = arith.constant 0 : i32
    %c0_i32_0 = arith.constant 0 : i32
    %c0_i32_1 = arith.constant 0 : i32
    return %c0_i32, %c0_i32_0 : i32, i32
  }
  func.func @transform_6(%arg0: i32) -> (i32, i32) {
    %c0_i32 = arith.constant 0 : i32
    %c0_i32_0 = arith.constant 0 : i32
    %c0_i32_1 = arith.constant 0 : i32
    return %c0_i32, %c0_i32_0 : i32, i32
  }
  func.func @transform_7(%arg0: i32) -> (i32, i32) {
    %c0_i32 = arith.constant 0 : i32
    %c0_i32_0 = arith.constant 0 : i32
    %c0_i32_1 = arith.constant 0 : i32
    return %c0_i32, %c0_i32_0 : i32, i32
  }
  func.func @transform_8(%arg0: i32) -> (i32, i32) {
    %c0_i32 = arith.constant 0 : i32
    %c0_i32_0 = arith.constant 0 : i32
    return %arg0, %c0_i32 : i32, i32
  }
  func.func @transform_9(%arg0: i32) -> (i32, i32) {
    %c0_i32 = arith.constant 0 : i32
    %c0_i32_0 = arith.constant 0 : i32
    return %arg0, %c0_i32 : i32, i32
  }
}

</mosaic_0001>

<llo_original>
// kernel: re2_forward.10
$region0: #{re2_forward.10}
  #allocation0 [shape = 'u32[]', space=smem, size = 0x4, offset = 0x4, fixed_abs, tag = 'smem constant byte address 0x4 - core index']
  #allocation1 [shape = 'u32[72,128]{1,0:T(1,128)}', space=vmem, size = 0x9000, scoped, tag = 'internal scratch']
  %s0 = inlined_call_operand.vmem [shape: f32[2,8,128], index: 0, kind: input, shape index: {}]
  %s1 = inlined_call_operand.vmem [shape: f32[2,8,1], index: 1, kind: input, shape index: {}]
  %s2 = inlined_call_operand.hbm [shape: bf16[384,128], index: 2, kind: input, shape index: {}]
  %s3 = inlined_call_operand.vmem [shape: f32[1,128], index: 3, kind: input, shape index: {}, may-alias: {3,5}]
  %s4 = inlined_call_operand.hbm [shape: bf16[384,128], index: 4, kind: input, shape index: {}]
  %s5 = inlined_call_operand.vmem [shape: f32[1,128], index: 5, kind: input, shape index: {}, may-alias: {3,5}]
  %s6 = inlined_call_operand.vmem [shape: f32[2,8,128], index: 6, kind: output, shape index: {}]
  %s7 = sld [smem:[#allocation0]]
  $region42: #{re2_forward.10} parent=0
    _
  %s9 = ssub.s32 1, %s7
  %s10 = scalar_select 0, %s9, %s7
  $region1: #{re2_forward.10} parent=0
    #allocation2 [shape = 'u8[98304]{0}', space=vmem, size = 0x18000, scoped, tag = 'input window, operand 2, single buffered']
    #allocation3 [shape = 's32[1]{0}', space=sflag, size = 0x4, scoped, tag = 'scoped memory for re2_forward.10']
    #allocation4 [shape = 'u8[98304]{0}', space=vmem, size = 0x18000, scoped, tag = 'input window, operand 4, single buffered']
    #allocation5 [shape = 's32[1]{0}', space=sflag, size = 0x4, scoped, tag = 'scoped memory for re2_forward.10']
    %11 = vsyncpa [#allocation3], 0
    %12 = vsyncpa [#allocation5], 0
    // Predicated region
    $region2: #{re2_forward.10} parent=1 // pred_check
      _
    $region3: #{re2_forward.10} parent=1 // pred_check_branch
      %14 = sbr.rel (0) target = $region5
    $region4: #{re2_forward.10} parent=1 // pred_region
      _
    $region5: #{re2_forward.10} parent=1 // pred_fallthru
      _
    // Predicated region
    $region6: #{re2_forward.10} parent=1 // pred_check
      _
    $region7: #{re2_forward.10} parent=1 // pred_check_branch
      %16 = sbr.rel (0) target = $region9
    $region8: #{re2_forward.10} parent=1 // pred_region
      _
    $region9: #{re2_forward.10} parent=1 // pred_fallthru
      _
    // Predicated region
    $region10: #{re2_forward.10} parent=1 // pred_check
      _
    $region11: #{re2_forward.10} parent=1 // pred_check_branch
      %18 = sbr.rel (0) target = $region13
    $region12: #{re2_forward.10} parent=1 // pred_region
      %20 = vsyncadd [#allocation3], 0
      %s21 = sshll.u32 %s2, 4
      %s22 = int_to_ptr.hbm [resolvable:$true] %s21
      %s23 = sshll.u32 [#allocation2], 4
      %s24 = int_to_ptr.vmem [resolvable:$true] %s23
      %29 = dma.hbm_to_vmem [thread:$0]  %s22, 3072, %s24, [#allocation3], 64, 64, 4
    $region13: #{re2_forward.10} parent=1 // pred_fallthru
      _
    // Predicated region
    $region14: #{re2_forward.10} parent=1 // pred_check
      _
    $region15: #{re2_forward.10} parent=1 // pred_check_branch
      %31 = sbr.rel (0) target = $region17
    $region16: #{re2_forward.10} parent=1 // pred_region
      _
    $region17: #{re2_forward.10} parent=1 // pred_fallthru
      _
    // Predicated region
    $region18: #{re2_forward.10} parent=1 // pred_check
      _
    $region19: #{re2_forward.10} parent=1 // pred_check_branch
      %33 = sbr.rel (0) target = $region21
    $region20: #{re2_forward.10} parent=1 // pred_region
      %35 = vsyncadd [#allocation5], 0
      %s36 = sshll.u32 %s4, 4
      %s37 = int_to_ptr.hbm [resolvable:$true] %s36
      %s38 = sshll.u32 [#allocation4], 4
      %s39 = int_to_ptr.vmem [resolvable:$true] %s38
      %44 = dma.hbm_to_vmem [thread:$0]  %s37, 3072, %s39, [#allocation5], 64, 64, 4
    $region21: #{re2_forward.10} parent=1 // pred_fallthru
      _
    // Predicated region
    $region22: #{re2_forward.10} parent=1 // pred_check
      _
    $region23: #{re2_forward.10} parent=1 // pred_check_branch
      %46 = sbr.rel (0) target = $region25
    $region24: #{re2_forward.10} parent=1 // pred_region
      _
    $region25: #{re2_forward.10} parent=1 // pred_fallthru
      _
    // Predicated region
    $region26: #{re2_forward.10} parent=1 // pred_check
      _
    $region27: #{re2_forward.10} parent=1 // pred_check_branch
      %48 = sbr.rel (0) target = $region29
    $region28: #{re2_forward.10} parent=1 // pred_region
      %50 = dma.done [#allocation3], 3072
    $region29: #{re2_forward.10} parent=1 // pred_fallthru
      _
    // Predicated region
    $region30: #{re2_forward.10} parent=1 // pred_check
      _
    $region31: #{re2_forward.10} parent=1 // pred_check_branch
      %52 = sbr.rel (0) target = $region33
    $region32: #{re2_forward.10} parent=1 // pred_region
      %54 = dma.done [#allocation5], 3072
    $region33: #{re2_forward.10} parent=1 // pred_fallthru
      _
    %v55 = vld [vmem:[%s0] sm:$0xff]
    %v56 = vld [vmem:[%s0 + $0x8] sm:$0xff]
    %v57 = vld [vmem:[%s1] sm:$0xff]
    %v58 = vld [vmem:[%s1 + $0x8] sm:$0xff]
    %v59 = vlaneseq
    %v60 = vshrl.u32 %v59, 7
    %v61 = vld [vmem:[#allocation2] sm:$0xf]
    %v62 = vld [vmem:[#allocation2 + $0x4] sm:$0xf]
    %v63 = vld [vmem:[#allocation2 + $0x8] sm:$0xf]
    %v64 = vld [vmem:[#allocation2 + $0xc] sm:$0xf]
    %v65 = vld [vmem:[#allocation2 + $0x10] sm:$0xf]
    %v66 = vld [vmem:[#allocation2 + $0x14] sm:$0xf]
    %v67 = vld [vmem:[#allocation2 + $0x18] sm:$0xf]
    %v68 = vld [vmem:[#allocation2 + $0x1c] sm:$0xf]
    %v69 = vld [vmem:[#allocation2 + $0x20] sm:$0xf]
    %v70 = vld [vmem:[#allocation2 + $0x24] sm:$0xf]
    %v71 = vld [vmem:[#allocation2 + $0x28] sm:$0xf]
    %v72 = vld [vmem:[#allocation2 + $0x2c] sm:$0xf]
    %v73 = vld [vmem:[#allocation2 + $0x30] sm:$0xf]
    %v74 = vld [vmem:[#allocation2 + $0x34] sm:$0xf]
    %v75 = vld [vmem:[#allocation2 + $0x38] sm:$0xf]
    %v76 = vld [vmem:[#allocation2 + $0x3c] sm:$0xf]
    %v77 = vld [vmem:[#allocation2 + $0x40] sm:$0xf]
    %v78 = vld [vmem:[#allocation2 + $0x44] sm:$0xf]
    %v79 = vld [vmem:[#allocation2 + $0x48] sm:$0xf]
    %v80 = vld [vmem:[#allocation2 + $0x4c] sm:$0xf]
    %v81 = vld [vmem:[#allocation2 + $0x50] sm:$0xf]
    %v82 = vld [vmem:[#allocation2 + $0x54] sm:$0xf]
    %v83 = vld [vmem:[#allocation2 + $0x58] sm:$0xf]
    %v84 = vld [vmem:[#allocation2 + $0x5c] sm:$0xf]
    %v85 = vld [vmem:[#allocation2 + $0x60] sm:$0xf]
    %v86 = vld [vmem:[#allocation2 + $0x64] sm:$0xf]
    %v87 = vld [vmem:[#allocation2 + $0x68] sm:$0xf]
    %v88 = vld [vmem:[#allocation2 + $0x6c] sm:$0xf]
    %v89 = vld [vmem:[#allocation2 + $0x70] sm:$0xf]
    %v90 = vld [vmem:[#allocation2 + $0x74] sm:$0xf]
    %v91 = vld [vmem:[#allocation2 + $0x78] sm:$0xf]
    %v92 = vld [vmem:[#allocation2 + $0x7c] sm:$0xf]
    %v93 = vld [vmem:[#allocation2 + $0x80] sm:$0xf]
    %v94 = vld [vmem:[#allocation2 + $0x84] sm:$0xf]
    %v95 = vld [vmem:[#allocation2 + $0x88] sm:$0xf]
    %v96 = vld [vmem:[#allocation2 + $0x8c] sm:$0xf]
    %v97 = vld [vmem:[#allocation2 + $0x90] sm:$0xf]
    %v98 = vld [vmem:[#allocation2 + $0x94] sm:$0xf]
    %v99 = vld [vmem:[#allocation2 + $0x98] sm:$0xf]
    %v100 = vld [vmem:[#allocation2 + $0x9c] sm:$0xf]
    %v101 = vld [vmem:[#allocation2 + $0xa0] sm:$0xf]
    %v102 = vld [vmem:[#allocation2 + $0xa4] sm:$0xf]
    %v103 = vld [vmem:[#allocation2 + $0xa8] sm:$0xf]
    %v104 = vld [vmem:[#allocation2 + $0xac] sm:$0xf]
    %v105 = vld [vmem:[#allocation2 + $0xb0] sm:$0xf]
    %v106 = vld [vmem:[#allocation2 + $0xb4] sm:$0xf]
    %v107 = vld [vmem:[#allocation2 + $0xb8] sm:$0xf]
    %v108 = vld [vmem:[#allocation2 + $0xbc] sm:$0xf]
    %v109 = vld [vmem:[%s3] sm:$0x1]
    %111 = vset.pattern.permute.xlu0 0
    %112 = vperm.xlu0 %111, %v57
    %v113 = vpop.permute.xlu0 %112
    %116 = vset.pattern.permute.xlu0 0
    %117 = vperm.xlu0 %116, %v58
    %v118 = vpop.permute.xlu0 %117
    %v120 = vmul.f32 %v55, %v113
    %v121 = vmul.f32 %v56, %v118
    %v122 = vrot.slane %v120, 7
    %v123 = vrot.slane %v121, 7
    %vm124 = vcmp.lt.s32.totalorder %v60, 1
    %v125 = vsel %vm124, %v122, %v123
    %v126 = vsel %vm124, %v123, %v122
    %v127 = vrot.slane %v120, 1
    %v128 = vrot.slane %v121, 1
    %vm129 = vcmp.lt.s32.totalorder %v60, 7
    %v130 = vsel %vm129, %v127, %v128
    %v131 = vsel %vm129, %v128, %v127
    %vm132 = vcmp.eq.s32.totalorder %v60, 0
    %v133 = vsel %vm132, 1, 0
    %vm134 = vcmp.eq.s32.totalorder %v133, 1
    %v135 = vsel %vm134, 0.0, %v126
    %v136 = vsel %vm134, 0.0, %v125
    %vm137 = vcmp.eq.s32.totalorder %v60, 7
    %v138 = vsel %vm137, 1, 0
    %vm139 = vcmp.eq.s32.totalorder %v138, 1
    %v140 = vsel %vm139, 0.0, %v130
    %v141 = vsel %vm139, 0.0, %v131
    %v142 = vpack.c.bf16 %v136, %v135
    %v143 = vpack.c.bf16 %v121, %v120
    %v144 = vpack.c.bf16 %v141, %v140
    %v146 = vperm.slane %v109, 0
    %v196 = vunpack.c.l.b16 %v61
    %v197 = vunpack.c.l.b16 %v62
    %v198 = vunpack.c.l.b16 %v63
    %v199 = vunpack.c.l.b16 %v64
    %v200 = vunpack.c.l.b16 %v65
    %v201 = vunpack.c.l.b16 %v66
    %v202 = vunpack.c.l.b16 %v67
    %v203 = vunpack.c.l.b16 %v68
    %v204 = vunpack.c.l.b16 %v69
    %v205 = vunpack.c.l.b16 %v70
    %v206 = vunpack.c.l.b16 %v71
    %v207 = vunpack.c.l.b16 %v72
    %v208 = vunpack.c.l.b16 %v73
    %v209 = vunpack.c.l.b16 %v74
    %v210 = vunpack.c.l.b16 %v75
    %v211 = vunpack.c.l.b16 %v76
    %v212 = vunpack.c.l.b16 %v77
    %v213 = vunpack.c.l.b16 %v78
    %v214 = vunpack.c.l.b16 %v79
    %v215 = vunpack.c.l.b16 %v80
    %v216 = vunpack.c.l.b16 %v81
    %v217 = vunpack.c.l.b16 %v82
    %v218 = vunpack.c.l.b16 %v83
    %v219 = vunpack.c.l.b16 %v84
    %v220 = vunpack.c.l.b16 %v85
    %v221 = vunpack.c.l.b16 %v86
    %v222 = vunpack.c.l.b16 %v87
    %v223 = vunpack.c.l.b16 %v88
    %v224 = vunpack.c.l.b16 %v89
    %v225 = vunpack.c.l.b16 %v90
    %v226 = vunpack.c.l.b16 %v91
    %v227 = vunpack.c.l.b16 %v92
    %v228 = vunpack.c.l.b16 %v93
    %v229 = vunpack.c.l.b16 %v94
    %v230 = vunpack.c.l.b16 %v95
    %v231 = vunpack.c.l.b16 %v96
    %v232 = vunpack.c.l.b16 %v97
    %v233 = vunpack.c.l.b16 %v98
    %v234 = vunpack.c.l.b16 %v99
    %v235 = vunpack.c.l.b16 %v100
    %v236 = vunpack.c.l.b16 %v101
    %v237 = vunpack.c.l.b16 %v102
    %v238 = vunpack.c.l.b16 %v103
    %v239 = vunpack.c.l.b16 %v104
    %v240 = vunpack.c.l.b16 %v105
    %v241 = vunpack.c.l.b16 %v106
    %v242 = vunpack.c.l.b16 %v107
    %v243 = vunpack.c.l.b16 %v108
    %v244 = vpack.c.b16 %v197, %v196
    %v245 = vpack.c.b16 %v199, %v198
    %v246 = vpack.c.b16 %v201, %v200
    %v247 = vpack.c.b16 %v203, %v202
    %v248 = vpack.c.b16 %v205, %v204
    %v249 = vpack.c.b16 %v207, %v206
    %v250 = vpack.c.b16 %v209, %v208
    %v251 = vpack.c.b16 %v211, %v210
    %v252 = vpack.c.b16 %v213, %v212
    %v253 = vpack.c.b16 %v215, %v214
    %v254 = vpack.c.b16 %v217, %v216
    %v255 = vpack.c.b16 %v219, %v218
    %v256 = vpack.c.b16 %v221, %v220
    %v257 = vpack.c.b16 %v223, %v222
    %v258 = vpack.c.b16 %v225, %v224
    %v259 = vpack.c.b16 %v227, %v226
    %v260 = vpack.c.b16 %v229, %v228
    %v261 = vpack.c.b16 %v231, %v230
    %v262 = vpack.c.b16 %v233, %v232
    %v263 = vpack.c.b16 %v235, %v234
    %v264 = vpack.c.b16 %v237, %v236
    %v265 = vpack.c.b16 %v239, %v238
    %v266 = vpack.c.b16 %v241, %v240
    %v267 = vpack.c.b16 %v243, %v242
    %292 = vmatpush.bf16.msra.mxu0 %v251
    %293 = vmatpush.bf16.msra.mxu0 %v250
    %294 = vmatpush.bf16.msra.mxu0 %v249
    %295 = vmatpush.bf16.msra.mxu0 %v248
    %296 = vmatpush.bf16.msra.mxu0 %v247
    %297 = vmatpush.bf16.msra.mxu0 %v246
    %298 = vmatpush.bf16.msra.mxu0 %v245
    %299 = vmatpush.bf16.msra.mxu0 %v244
    %300 = vmatmul.bf16.gmra.mxu0 %v142
    %v301 = vpop.f32.mrf.mxu0
    %v302 = vadd.f32 %v146, %v301
    %v303 = vpop.f32.mrf.mxu0
    %v304 = vadd.f32 %v146, %v303
    %305 = vdwg.mxu0
    %306 = vmatpush.bf16.msra.mxu0 %v259
    %307 = vmatpush.bf16.msra.mxu0 %v258
    %308 = vmatpush.bf16.msra.mxu0 %v257
    %309 = vmatpush.bf16.msra.mxu0 %v256
    %310 = vmatpush.bf16.msra.mxu0 %v255
    %311 = vmatpush.bf16.msra.mxu0 %v254
    %312 = vmatpush.bf16.msra.mxu0 %v253
    %313 = vmatpush.bf16.msra.mxu0 %v252
    %314 = vmatmul.bf16.gmra.mxu0 %v143
    %v315 = vpop.f32.mrf.mxu0
    %v316 = vadd.f32 %v302, %v315
    %v317 = vpop.f32.mrf.mxu0
    %v318 = vadd.f32 %v304, %v317
    %319 = vdwg.mxu0
    %320 = vmatpush.bf16.msra.mxu0 %v267
    %321 = vmatpush.bf16.msra.mxu0 %v266
    %322 = vmatpush.bf16.msra.mxu0 %v265
    %323 = vmatpush.bf16.msra.mxu0 %v264
    %324 = vmatpush.bf16.msra.mxu0 %v263
    %325 = vmatpush.bf16.msra.mxu0 %v262
    %326 = vmatpush.bf16.msra.mxu0 %v261
    %327 = vmatpush.bf16.msra.mxu0 %v260
    %328 = vmatmul.bf16.gmra.mxu0 %v144
    %v329 = vpop.f32.mrf.mxu0
    %v330 = vadd.f32 %v316, %v329
    %v331 = vpop.f32.mrf.mxu0
    %v332 = vadd.f32 %v318, %v331
    %333 = vdwg.mxu0
    %v334 = vmul.f32 %v330, %v330
    %v335 = vmul.f32 %v332, %v332
    %v336 = vmul.f32 %v330, %v334
    %v337 = vmul.f32 %v332, %v335
    %v338 = vmul.f32 %v336, 0.044715
    %v339 = vmul.f32 %v337, 0.044715
    %v340 = vadd.f32 %v330, %v338
    %v341 = vadd.f32 %v332, %v339
    %v342 = vmul.f32 %v340, 0.7978846
    %v343 = vmul.f32 %v341, 0.7978846
    %v344 = vtanh.pop %v342
    %v345 = vtanh.pop %v343
    %v346 = vadd.f32 %v344, 1.0
    %v347 = vadd.f32 %v345, 1.0
    %v348 = vmul.f32 %v346, 0.5
    %v349 = vmul.f32 %v347, 0.5
    %v350 = vmul.f32 %v330, %v348
    %v351 = vmul.f32 %v332, %v349
    %v352 = vld [vmem:[#allocation4] sm:$0xf]
    %v353 = vld [vmem:[#allocation4 + $0x4] sm:$0xf]
    %v354 = vld [vmem:[#allocation4 + $0x8] sm:$0xf]
    %v355 = vld [vmem:[#allocation4 + $0xc] sm:$0xf]
    %v356 = vld [vmem:[#allocation4 + $0x10] sm:$0xf]
    %v357 = vld [vmem:[#allocation4 + $0x14] sm:$0xf]
    %v358 = vld [vmem:[#allocation4 + $0x18] sm:$0xf]
    %v359 = vld [vmem:[#allocation4 + $0x1c] sm:$0xf]
    %v360 = vld [vmem:[#allocation4 + $0x20] sm:$0xf]
    %v361 = vld [vmem:[#allocation4 + $0x24] sm:$0xf]
    %v362 = vld [vmem:[#allocation4 + $0x28] sm:$0xf]
    %v363 = vld [vmem:[#allocation4 + $0x2c] sm:$0xf]
    %v364 = vld [vmem:[#allocation4 + $0x30] sm:$0xf]
    %v365 = vld [vmem:[#allocation4 + $0x34] sm:$0xf]
    %v366 = vld [vmem:[#allocation4 + $0x38] sm:$0xf]
    %v367 = vld [vmem:[#allocation4 + $0x3c] sm:$0xf]
    %v368 = vld [vmem:[#allocation4 + $0x40] sm:$0xf]
    %v369 = vld [vmem:[#allocation4 + $0x44] sm:$0xf]
    %v370 = vld [vmem:[#allocation4 + $0x48] sm:$0xf]
    %v371 = vld [vmem:[#allocation4 + $0x4c] sm:$0xf]
    %v372 = vld [vmem:[#allocation4 + $0x50] sm:$0xf]
    %v373 = vld [vmem:[#allocation4 + $0x54] sm:$0xf]
    %v374 = vld [vmem:[#allocation4 + $0x58] sm:$0xf]
    %v375 = vld [vmem:[#allocation4 + $0x5c] sm:$0xf]
    %v376 = vld [vmem:[#allocation4 + $0x60] sm:$0xf]
    %v377 = vld [vmem:[#allocation4 + $0x64] sm:$0xf]
    %v378 = vld [vmem:[#allocation4 + $0x68] sm:$0xf]
    %v379 = vld [vmem:[#allocation4 + $0x6c] sm:$0xf]
    %v380 = vld [vmem:[#allocation4 + $0x70] sm:$0xf]
    %v381 = vld [vmem:[#allocation4 + $0x74] sm:$0xf]
    %v382 = vld [vmem:[#allocation4 + $0x78] sm:$0xf]
    %v383 = vld [vmem:[#allocation4 + $0x7c] sm:$0xf]
    %v384 = vld [vmem:[#allocation4 + $0x80] sm:$0xf]
    %v385 = vld [vmem:[#allocation4 + $0x84] sm:$0xf]
    %v386 = vld [vmem:[#allocation4 + $0x88] sm:$0xf]
    %v387 = vld [vmem:[#allocation4 + $0x8c] sm:$0xf]
    %v388 = vld [vmem:[#allocation4 + $0x90] sm:$0xf]
    %v389 = vld [vmem:[#allocation4 + $0x94] sm:$0xf]
    %v390 = vld [vmem:[#allocation4 + $0x98] sm:$0xf]
    %v391 = vld [vmem:[#allocation4 + $0x9c] sm:$0xf]
    %v392 = vld [vmem:[#allocation4 + $0xa0] sm:$0xf]
    %v393 = vld [vmem:[#allocation4 + $0xa4] sm:$0xf]
    %v394 = vld [vmem:[#allocation4 + $0xa8] sm:$0xf]
    %v395 = vld [vmem:[#allocation4 + $0xac] sm:$0xf]
    %v396 = vld [vmem:[#allocation4 + $0xb0] sm:$0xf]
    %v397 = vld [vmem:[#allocation4 + $0xb4] sm:$0xf]
    %v398 = vld [vmem:[#allocation4 + $0xb8] sm:$0xf]
    %v399 = vld [vmem:[#allocation4 + $0xbc] sm:$0xf]
    %v400 = vld [vmem:[%s5] sm:$0x1]
    %v401 = vmul.f32 %v350, %v113
    %v402 = vmul.f32 %v351, %v118
    %v403 = vrot.slane %v401, 7
    %v404 = vrot.slane %v402, 7
    %v405 = vsel %vm124, %v403, %v404
    %v406 = vsel %vm124, %v404, %v403
    %v407 = vrot.slane %v401, 1
    %v408 = vrot.slane %v402, 1
    %v409 = vsel %vm129, %v407, %v408
    %v410 = vsel %vm129, %v408, %v407
    %v411 = vsel %vm134, 0.0, %v406
    %v412 = vsel %vm134, 0.0, %v405
    %v413 = vsel %vm139, 0.0, %v409
    %v414 = vsel %vm139, 0.0, %v410
    %v415 = vpack.c.bf16 %v412, %v411
    %v416 = vpack.c.bf16 %v402, %v401
    %v417 = vpack.c.bf16 %v414, %v413
    %v419 = vperm.slane %v400, 0
    %v469 = vunpack.c.l.b16 %v352
    %v470 = vunpack.c.l.b16 %v353
    %v471 = vunpack.c.l.b16 %v354
    %v472 = vunpack.c.l.b16 %v355
    %v473 = vunpack.c.l.b16 %v356
    %v474 = vunpack.c.l.b16 %v357
    %v475 = vunpack.c.l.b16 %v358
    %v476 = vunpack.c.l.b16 %v359
    %v477 = vunpack.c.l.b16 %v360
    %v478 = vunpack.c.l.b16 %v361
    %v479 = vunpack.c.l.b16 %v362
    %v480 = vunpack.c.l.b16 %v363
    %v481 = vunpack.c.l.b16 %v364
    %v482 = vunpack.c.l.b16 %v365
    %v483 = vunpack.c.l.b16 %v366
    %v484 = vunpack.c.l.b16 %v367
    %v485 = vunpack.c.l.b16 %v368
    %v486 = vunpack.c.l.b16 %v369
    %v487 = vunpack.c.l.b16 %v370
    %v488 = vunpack.c.l.b16 %v371
    %v489 = vunpack.c.l.b16 %v372
    %v490 = vunpack.c.l.b16 %v373
    %v491 = vunpack.c.l.b16 %v374
    %v492 = vunpack.c.l.b16 %v375
    %v493 = vunpack.c.l.b16 %v376
    %v494 = vunpack.c.l.b16 %v377
    %v495 = vunpack.c.l.b16 %v378
    %v496 = vunpack.c.l.b16 %v379
    %v497 = vunpack.c.l.b16 %v380
    %v498 = vunpack.c.l.b16 %v381
    %v499 = vunpack.c.l.b16 %v382
    %v500 = vunpack.c.l.b16 %v383
    %v501 = vunpack.c.l.b16 %v384
    %v502 = vunpack.c.l.b16 %v385
    %v503 = vunpack.c.l.b16 %v386
    %v504 = vunpack.c.l.b16 %v387
    %v505 = vunpack.c.l.b16 %v388
    %v506 = vunpack.c.l.b16 %v389
    %v507 = vunpack.c.l.b16 %v390
    %v508 = vunpack.c.l.b16 %v391
    %v509 = vunpack.c.l.b16 %v392
    %v510 = vunpack.c.l.b16 %v393
    %v511 = vunpack.c.l.b16 %v394
    %v512 = vunpack.c.l.b16 %v395
    %v513 = vunpack.c.l.b16 %v396
    %v514 = vunpack.c.l.b16 %v397
    %v515 = vunpack.c.l.b16 %v398
    %v516 = vunpack.c.l.b16 %v399
    %v517 = vpack.c.b16 %v470, %v469
    %v518 = vpack.c.b16 %v472, %v471
    %v519 = vpack.c.b16 %v474, %v473
    %v520 = vpack.c.b16 %v476, %v475
    %v521 = vpack.c.b16 %v478, %v477
    %v522 = vpack.c.b16 %v480, %v479
    %v523 = vpack.c.b16 %v482, %v481
    %v524 = vpack.c.b16 %v484, %v483
    %v525 = vpack.c.b16 %v486, %v485
    %v526 = vpack.c.b16 %v488, %v487
    %v527 = vpack.c.b16 %v490, %v489
    %v528 = vpack.c.b16 %v492, %v491
    %v529 = vpack.c.b16 %v494, %v493
    %v530 = vpack.c.b16 %v496, %v495
    %v531 = vpack.c.b16 %v498, %v497
    %v532 = vpack.c.b16 %v500, %v499
    %v533 = vpack.c.b16 %v502, %v501
    %v534 = vpack.c.b16 %v504, %v503
    %v535 = vpack.c.b16 %v506, %v505
    %v536 = vpack.c.b16 %v508, %v507
    %v537 = vpack.c.b16 %v510, %v509
    %v538 = vpack.c.b16 %v512, %v511
    %v539 = vpack.c.b16 %v514, %v513
    %v540 = vpack.c.b16 %v516, %v515
    %565 = vmatpush.bf16.msra.mxu0 %v524
    %566 = vmatpush.bf16.msra.mxu0 %v523
    %567 = vmatpush.bf16.msra.mxu0 %v522
    %568 = vmatpush.bf16.msra.mxu0 %v521
    %569 = vmatpush.bf16.msra.mxu0 %v520
    %570 = vmatpush.bf16.msra.mxu0 %v519
    %571 = vmatpush.bf16.msra.mxu0 %v518
    %572 = vmatpush.bf16.msra.mxu0 %v517
    %573 = vmatmul.bf16.gmra.mxu0 %v415
    %v574 = vpop.f32.mrf.mxu0
    %v575 = vadd.f32 %v419, %v574
    %v576 = vpop.f32.mrf.mxu0
    %v577 = vadd.f32 %v419, %v576
    %578 = vdwg.mxu0
    %579 = vmatpush.bf16.msra.mxu0 %v532
    %580 = vmatpush.bf16.msra.mxu0 %v531
    %581 = vmatpush.bf16.msra.mxu0 %v530
    %582 = vmatpush.bf16.msra.mxu0 %v529
    %583 = vmatpush.bf16.msra.mxu0 %v528
    %584 = vmatpush.bf16.msra.mxu0 %v527
    %585 = vmatpush.bf16.msra.mxu0 %v526
    %586 = vmatpush.bf16.msra.mxu0 %v525
    %587 = vmatmul.bf16.gmra.mxu0 %v416
    %v588 = vpop.f32.mrf.mxu0
    %v589 = vadd.f32 %v575, %v588
    %v590 = vpop.f32.mrf.mxu0
    %v591 = vadd.f32 %v577, %v590
    %592 = vdwg.mxu0
    %593 = vmatpush.bf16.msra.mxu0 %v540
    %594 = vmatpush.bf16.msra.mxu0 %v539
    %595 = vmatpush.bf16.msra.mxu0 %v538
    %596 = vmatpush.bf16.msra.mxu0 %v537
    %597 = vmatpush.bf16.msra.mxu0 %v536
    %598 = vmatpush.bf16.msra.mxu0 %v535
    %599 = vmatpush.bf16.msra.mxu0 %v534
    %600 = vmatpush.bf16.msra.mxu0 %v533
    %601 = vmatmul.bf16.gmra.mxu0 %v417
    %v602 = vpop.f32.mrf.mxu0
    %v603 = vadd.f32 %v589, %v602
    %v604 = vpop.f32.mrf.mxu0
    %v605 = vadd.f32 %v591, %v604
    %606 = vdwg.mxu0
    %v607 = vmul.f32 %v603, %v603
    %v608 = vmul.f32 %v605, %v605
    %v609 = vmul.f32 %v603, %v607
    %v610 = vmul.f32 %v605, %v608
    %v611 = vmul.f32 %v609, 0.044715
    %v612 = vmul.f32 %v610, 0.044715
    %v613 = vadd.f32 %v603, %v611
    %v614 = vadd.f32 %v605, %v612
    %v615 = vmul.f32 %v613, 0.7978846
    %v616 = vmul.f32 %v614, 0.7978846
    %v617 = vtanh.pop %v615
    %v618 = vtanh.pop %v616
    %v619 = vadd.f32 %v617, 1.0
    %v620 = vadd.f32 %v618, 1.0
    %v621 = vmul.f32 %v619, 0.5
    %v622 = vmul.f32 %v620, 0.5
    %v623 = vmul.f32 %v603, %v621
    %v624 = vmul.f32 %v605, %v622
    %625 = vst [vmem:[%s6] sm:$0xff] %v623
    %626 = vst [vmem:[%s6 + $0x8] sm:$0xff] %v624
    // Predicated region
    $region34: #{re2_forward.10} parent=1 // pred_check
      _
    $region35: #{re2_forward.10} parent=1 // pred_check_branch
      %628 = sbr.rel (0) target = $region37
    $region36: #{re2_forward.10} parent=1 // pred_region
      _
    $region37: #{re2_forward.10} parent=1 // pred_fallthru
      _
    // Predicated region
    $region38: #{re2_forward.10} parent=1 // pred_check
      _
    $region39: #{re2_forward.10} parent=1 // pred_check_branch
      %630 = sbr.rel (0) target = $region41
    $region40: #{re2_forward.10} parent=1 // pred_region
      _
    $region41: #{re2_forward.10} parent=1 // pred_fallthru
      _
    %631 = vsyncpa [#allocation3], 1
    %632 = vsyncpa [#allocation5], 1

// kernel: re2_forward.11
$region0: #{re2_forward.11}
  #allocation0 [shape = 'u32[]', space=smem, size = 0x4, offset = 0x4, fixed_abs, tag = 'smem constant byte address 0x4 - core index']
  #allocation1 [shape = 'u32[72,128]{1,0:T(1,128)}', space=vmem, size = 0x9000, scoped, tag = 'internal scratch']
  %s0 = inlined_call_operand.vmem [shape: f32[2,8,256], index: 0, kind: input, shape index: {}]
  %s1 = inlined_call_operand.vmem [shape: f32[2,8,256], index: 1, kind: input, shape index: {}]
  %s2 = inlined_call_operand.vmem [shape: f32[2,8,1], index: 2, kind: input, shape index: {}]
  %s3 = inlined_call_operand.vmem [shape: f32[2,1,8], index: 3, kind: input, shape index: {}]
  %s4 = inlined_call_operand.vmem [shape: f32[2,8,1], index: 4, kind: input, shape index: {}]
  %s5 = inlined_call_operand.vmem [shape: f32[2,1,8], index: 5, kind: input, shape index: {}]
  %s6 = inlined_call_operand.vmem [shape: bf16[256,128], index: 6, kind: input, shape index: {}]
  %s7 = inlined_call_operand.vmem [shape: f32[1,128], index: 7, kind: input, shape index: {}]
  %s8 = inlined_call_operand.vmem [shape: f32[2,8,256], index: 8, kind: output, shape index: {0}]
  %s9 = inlined_call_operand.vmem [shape: f32[2,8,256], index: 9, kind: output, shape index: {1}]
  %10 = xla_tuple %s8, %s9
  %s11 = sld [smem:[#allocation0]]
  $region50: #{re2_forward.11} parent=0
    _
  %s13 = ssub.s32 1, %s11
  %s14 = scalar_select 0, %s13, %s11
  // Predicated region
  $region2: #{re2_forward.11} parent=0 // pred_check
    _
  $region3: #{re2_forward.11} parent=0 // pred_check_branch
    %16 = sbr.rel (0) target = $region5
  $region4: #{re2_forward.11} parent=0 // pred_region
    _
  $region5: #{re2_forward.11} parent=0 // pred_fallthru
    _
  // Predicated region
  $region6: #{re2_forward.11} parent=0 // pred_check
    _
  $region7: #{re2_forward.11} parent=0 // pred_check_branch
    %18 = sbr.rel (0) target = $region9
  $region8: #{re2_forward.11} parent=0 // pred_region
    _
  $region9: #{re2_forward.11} parent=0 // pred_fallthru
    _
  // Predicated region
  $region10: #{re2_forward.11} parent=0 // pred_check
    _
  $region11: #{re2_forward.11} parent=0 // pred_check_branch
    %20 = sbr.rel (0) target = $region13
  $region12: #{re2_forward.11} parent=0 // pred_region
    _
  $region13: #{re2_forward.11} parent=0 // pred_fallthru
    _
  // Predicated region
  $region14: #{re2_forward.11} parent=0 // pred_check
    _
  $region15: #{re2_forward.11} parent=0 // pred_check_branch
    %22 = sbr.rel (0) target = $region17
  $region16: #{re2_forward.11} parent=0 // pred_region
    _
  $region17: #{re2_forward.11} parent=0 // pred_fallthru
    _
  // Predicated region
  $region18: #{re2_forward.11} parent=0 // pred_check
    _
  $region19: #{re2_forward.11} parent=0 // pred_check_branch
    %24 = sbr.rel (0) target = $region21
  $region20: #{re2_forward.11} parent=0 // pred_region
    _
  $region21: #{re2_forward.11} parent=0 // pred_fallthru
    _
  // Predicated region
  $region22: #{re2_forward.11} parent=0 // pred_check
    _
  $region23: #{re2_forward.11} parent=0 // pred_check_branch
    %26 = sbr.rel (0) target = $region25
  $region24: #{re2_forward.11} parent=0 // pred_region
    _
  $region25: #{re2_forward.11} parent=0 // pred_fallthru
    _
  // Predicated region
  $region26: #{re2_forward.11} parent=0 // pred_check
    _
  $region27: #{re2_forward.11} parent=0 // pred_check_branch
    %28 = sbr.rel (0) target = $region29
  $region28: #{re2_forward.11} parent=0 // pred_region
    _
  $region29: #{re2_forward.11} parent=0 // pred_fallthru
    _
  // Predicated region
  $region30: #{re2_forward.11} parent=0 // pred_check
    _
  $region31: #{re2_forward.11} parent=0 // pred_check_branch
    %30 = sbr.rel (0) target = $region33
  $region32: #{re2_forward.11} parent=0 // pred_region
    _
  $region33: #{re2_forward.11} parent=0 // pred_fallthru
    _
  %v32 = vld [vmem:[%s0] sm:$0xff]
  %v33 = vld [vmem:[%s0 + $0x8] sm:$0xff]
  %v34 = vld [vmem:[%s0 + $0x10] sm:$0xff]
  %v35 = vld [vmem:[%s0 + $0x18] sm:$0xff]
  %v36 = vld [vmem:[%s1] sm:$0xff]
  %v37 = vld [vmem:[%s1 + $0x8] sm:$0xff]
  %v38 = vld [vmem:[%s1 + $0x10] sm:$0xff]
  %v39 = vld [vmem:[%s1 + $0x18] sm:$0xff]
  %v40 = vld [vmem:[%s6] sm:$0xf]
  %v41 = vld [vmem:[%s6 + $0x4] sm:$0xf]
  %v42 = vld [vmem:[%s6 + $0x8] sm:$0xf]
  %v43 = vld [vmem:[%s6 + $0xc] sm:$0xf]
  %v44 = vld [vmem:[%s6 + $0x10] sm:$0xf]
  %v45 = vld [vmem:[%s6 + $0x14] sm:$0xf]
  %v46 = vld [vmem:[%s6 + $0x18] sm:$0xf]
  %v47 = vld [vmem:[%s6 + $0x1c] sm:$0xf]
  %v48 = vld [vmem:[%s6 + $0x20] sm:$0xf]
  %v49 = vld [vmem:[%s6 + $0x24] sm:$0xf]
  %v50 = vld [vmem:[%s6 + $0x28] sm:$0xf]
  %v51 = vld [vmem:[%s6 + $0x2c] sm:$0xf]
  %v52 = vld [vmem:[%s6 + $0x30] sm:$0xf]
  %v53 = vld [vmem:[%s6 + $0x34] sm:$0xf]
  %v54 = vld [vmem:[%s6 + $0x38] sm:$0xf]
  %v55 = vld [vmem:[%s6 + $0x3c] sm:$0xf]
  %v56 = vld [vmem:[%s6 + $0x40] sm:$0xf]
  %v57 = vld [vmem:[%s6 + $0x44] sm:$0xf]
  %v58 = vld [vmem:[%s6 + $0x48] sm:$0xf]
  %v59 = vld [vmem:[%s6 + $0x4c] sm:$0xf]
  %v60 = vld [vmem:[%s6 + $0x50] sm:$0xf]
  %v61 = vld [vmem:[%s6 + $0x54] sm:$0xf]
  %v62 = vld [vmem:[%s6 + $0x58] sm:$0xf]
  %v63 = vld [vmem:[%s6 + $0x5c] sm:$0xf]
  %v64 = vld [vmem:[%s6 + $0x60] sm:$0xf]
  %v65 = vld [vmem:[%s6 + $0x64] sm:$0xf]
  %v66 = vld [vmem:[%s6 + $0x68] sm:$0xf]
  %v67 = vld [vmem:[%s6 + $0x6c] sm:$0xf]
  %v68 = vld [vmem:[%s6 + $0x70] sm:$0xf]
  %v69 = vld [vmem:[%s6 + $0x74] sm:$0xf]
  %v70 = vld [vmem:[%s6 + $0x78] sm:$0xf]
  %v71 = vld [vmem:[%s6 + $0x7c] sm:$0xf]
  %v72 = vld [vmem:[%s7] sm:$0x1]
  %v73 = vpack.c.bf16 %v34, %v32
  %v74 = vpack.c.bf16 %v35, %v33
  %v76 = vperm.slane %v72, 0
  %v110 = vunpack.c.l.b16 %v40
  %v111 = vunpack.c.l.b16 %v41
  %v112 = vunpack.c.l.b16 %v42
  %v113 = vunpack.c.l.b16 %v43
  %v114 = vunpack.c.l.b16 %v44
  %v115 = vunpack.c.l.b16 %v45
  %v116 = vunpack.c.l.b16 %v46
  %v117 = vunpack.c.l.b16 %v47
  %v118 = vunpack.c.l.b16 %v48
  %v119 = vunpack.c.l.b16 %v49
  %v120 = vunpack.c.l.b16 %v50
  %v121 = vunpack.c.l.b16 %v51
  %v122 = vunpack.c.l.b16 %v52
  %v123 = vunpack.c.l.b16 %v53
  %v124 = vunpack.c.l.b16 %v54
  %v125 = vunpack.c.l.b16 %v55
  %v126 = vunpack.c.l.b16 %v56
  %v127 = vunpack.c.l.b16 %v57
  %v128 = vunpack.c.l.b16 %v58
  %v129 = vunpack.c.l.b16 %v59
  %v130 = vunpack.c.l.b16 %v60
  %v131 = vunpack.c.l.b16 %v61
  %v132 = vunpack.c.l.b16 %v62
  %v133 = vunpack.c.l.b16 %v63
  %v134 = vunpack.c.l.b16 %v64
  %v135 = vunpack.c.l.b16 %v65
  %v136 = vunpack.c.l.b16 %v66
  %v137 = vunpack.c.l.b16 %v67
  %v138 = vunpack.c.l.b16 %v68
  %v139 = vunpack.c.l.b16 %v69
  %v140 = vunpack.c.l.b16 %v70
  %v141 = vunpack.c.l.b16 %v71
  %v142 = vpack.c.b16 %v111, %v110
  %v143 = vpack.c.b16 %v113, %v112
  %v144 = vpack.c.b16 %v115, %v114
  %v145 = vpack.c.b16 %v117, %v116
  %v146 = vpack.c.b16 %v119, %v118
  %v147 = vpack.c.b16 %v121, %v120
  %v148 = vpack.c.b16 %v123, %v122
  %v149 = vpack.c.b16 %v125, %v124
  %v150 = vpack.c.b16 %v127, %v126
  %v151 = vpack.c.b16 %v129, %v128
  %v152 = vpack.c.b16 %v131, %v130
  %v153 = vpack.c.b16 %v133, %v132
  %v154 = vpack.c.b16 %v135, %v134
  %v155 = vpack.c.b16 %v137, %v136
  %v156 = vpack.c.b16 %v139, %v138
  %v157 = vpack.c.b16 %v141, %v140
  %174 = vmatpush.bf16.msra.mxu0 %v149
  %175 = vmatpush.bf16.msra.mxu0 %v148
  %176 = vmatpush.bf16.msra.mxu0 %v147
  %177 = vmatpush.bf16.msra.mxu0 %v146
  %178 = vmatpush.bf16.msra.mxu0 %v145
  %179 = vmatpush.bf16.msra.mxu0 %v144
  %180 = vmatpush.bf16.msra.mxu0 %v143
  %181 = vmatpush.bf16.msra.mxu0 %v142
  %182 = vmatmul.bf16.gmra.mxu0 %v73
  %v183 = vpop.f32.mrf.mxu0
  %v184 = vadd.f32 %v76, %v183
  %v185 = vpop.f32.mrf.mxu0
  %v186 = vadd.f32 %v76, %v185
  %187 = vdwg.mxu0
  %188 = vmatpush.bf16.msra.mxu0 %v157
  %189 = vmatpush.bf16.msra.mxu0 %v156
  %190 = vmatpush.bf16.msra.mxu0 %v155
  %191 = vmatpush.bf16.msra.mxu0 %v154
  %192 = vmatpush.bf16.msra.mxu0 %v153
  %193 = vmatpush.bf16.msra.mxu0 %v152
  %194 = vmatpush.bf16.msra.mxu0 %v151
  %195 = vmatpush.bf16.msra.mxu0 %v150
  %196 = vmatmul.bf16.gmra.mxu0 %v74
  %v197 = vpop.f32.mrf.mxu0
  %v198 = vadd.f32 %v184, %v197
  %v199 = vpop.f32.mrf.mxu0
  %v200 = vadd.f32 %v186, %v199
  %201 = vdwg.mxu0
  %v202 = vmul.f32 %v198, %v198
  %v203 = vmul.f32 %v200, %v200
  %v204 = vmul.f32 %v198, %v202
  %v205 = vmul.f32 %v200, %v203
  %v206 = vmul.f32 %v204, 0.044715
  %v207 = vmul.f32 %v205, 0.044715
  %v208 = vadd.f32 %v198, %v206
  %v209 = vadd.f32 %v200, %v207
  %v210 = vmul.f32 %v208, 0.7978846
  %v211 = vmul.f32 %v209, 0.7978846
  %v212 = vtanh.pop %v210
  %v213 = vtanh.pop %v211
  %v214 = vadd.f32 %v212, 1.0
  %v215 = vadd.f32 %v213, 1.0
  %v216 = vmul.f32 %v214, 0.5
  %v217 = vmul.f32 %v215, 0.5
  %v218 = vmul.f32 %v198, %v216
  %v219 = vmul.f32 %v200, %v217
  %v220 = vpack.c.bf16 %v218, %v218
  %v221 = vpack.c.bf16 %v219, %v219
  %v222 = vpack.c.bf16 %v38, %v36
  %v223 = vpack.c.bf16 %v39, %v37
  %224 = vmatpush.bf16.msra.mxu0 %v149
  %225 = vmatpush.bf16.msra.mxu0 %v148
  %226 = vmatpush.bf16.msra.mxu0 %v147
  %227 = vmatpush.bf16.msra.mxu0 %v146
  %228 = vmatpush.bf16.msra.mxu0 %v145
  %229 = vmatpush.bf16.msra.mxu0 %v144
  %230 = vmatpush.bf16.msra.mxu0 %v143
  %231 = vmatpush.bf16.msra.mxu0 %v142
  %232 = vmatmul.bf16.gmra.mxu0 %v222
  %v233 = vpop.f32.mrf.mxu0
  %v234 = vadd.f32 %v76, %v233
  %v235 = vpop.f32.mrf.mxu0
  %v236 = vadd.f32 %v76, %v235
  %237 = vdwg.mxu0
  %238 = vmatpush.bf16.msra.mxu0 %v157
  %239 = vmatpush.bf16.msra.mxu0 %v156
  %240 = vmatpush.bf16.msra.mxu0 %v155
  %241 = vmatpush.bf16.msra.mxu0 %v154
  %242 = vmatpush.bf16.msra.mxu0 %v153
  %243 = vmatpush.bf16.msra.mxu0 %v152
  %244 = vmatpush.bf16.msra.mxu0 %v151
  %245 = vmatpush.bf16.msra.mxu0 %v150
  %246 = vmatmul.bf16.gmra.mxu0 %v223
  %v247 = vpop.f32.mrf.mxu0
  %v248 = vadd.f32 %v234, %v247
  %v249 = vpop.f32.mrf.mxu0
  %v250 = vadd.f32 %v236, %v249
  %251 = vdwg.mxu0
  %v252 = vmul.f32 %v248, %v248
  %v253 = vmul.f32 %v250, %v250
  %v254 = vmul.f32 %v248, %v252
  %v255 = vmul.f32 %v250, %v253
  %v256 = vmul.f32 %v254, 0.044715
  %v257 = vmul.f32 %v255, 0.044715
  %v258 = vadd.f32 %v248, %v256
  %v259 = vadd.f32 %v250, %v257
  %v260 = vmul.f32 %v258, 0.7978846
  %v261 = vmul.f32 %v259, 0.7978846
  %v262 = vtanh.pop %v260
  %v263 = vtanh.pop %v261
  %v264 = vadd.f32 %v262, 1.0
  %v265 = vadd.f32 %v263, 1.0
  %v266 = vmul.f32 %v264, 0.5
  %v267 = vmul.f32 %v265, 0.5
  %v268 = vmul.f32 %v248, %v266
  %v269 = vmul.f32 %v250, %v267
  %v270 = vpack.c.bf16 %v268, %v268
  %v271 = vpack.c.bf16 %v269, %v269
  %272 = vmatpush.bf16.xpose.msra.mxu0 0
  %273 = vmatpush.bf16.xpose.msra.mxu0 0
  %274 = vmatpush.bf16.xpose.msra.mxu0 0
  %275 = vmatpush.bf16.xpose.msra.mxu0 0
  %276 = vmatpush.bf16.xpose.msra.mxu0 0
  %277 = vmatpush.bf16.xpose.msra.mxu0 0
  %278 = vmatpush.bf16.xpose.msra.mxu0 0
  %279 = vmatpush.bf16.xpose.msra.mxu0 %v270
  %280 = vmatmul.bf16.gmra.mxu0 %v220
  %v281 = vpop.f32.mrf.mxu0
  %v282 = vadd.f32 0.0, %v281
  %v283 = vpop.f32.mrf.mxu0
  %284 = vdwg.mxu0
  %285 = vmatpush.bf16.xpose.msra.mxu0 0
  %286 = vmatpush.bf16.xpose.msra.mxu0 0
  %287 = vmatpush.bf16.xpose.msra.mxu0 0
  %288 = vmatpush.bf16.xpose.msra.mxu0 0
  %289 = vmatpush.bf16.xpose.msra.mxu0 0
  %290 = vmatpush.bf16.xpose.msra.mxu0 0
  %291 = vmatpush.bf16.xpose.msra.mxu0 0
  %292 = vmatpush.bf16.xpose.msra.mxu0 %v271
  %293 = vmatmul.bf16.gmra.mxu0 %v221
  %v294 = vpop.f32.mrf.mxu0
  %v295 = vadd.f32 0.0, %v294
  %v296 = vpop.f32.mrf.mxu0
  %297 = vdwg.mxu0
  %v298 = vmul.f32 %v282, 0.17677669
  %v299 = vmul.f32 %v295, 0.17677669
  %300 = vmatpush.bf16.xpose.msra.mxu0 0
  %301 = vmatpush.bf16.xpose.msra.mxu0 0
  %302 = vmatpush.bf16.xpose.msra.mxu0 0
  %303 = vmatpush.bf16.xpose.msra.mxu0 0
  %304 = vmatpush.bf16.xpose.msra.mxu0 0
  %305 = vmatpush.bf16.xpose.msra.mxu0 0
  %306 = vmatpush.bf16.xpose.msra.mxu0 0
  %307 = vmatpush.bf16.xpose.msra.mxu0 %v220
  %308 = vmatmul.bf16.gmra.mxu0 %v270
  %v309 = vpop.f32.mrf.mxu0
  %v310 = vadd.f32 0.0, %v309
  %v311 = vpop.f32.mrf.mxu0
  %312 = vdwg.mxu0
  %313 = vmatpush.bf16.xpose.msra.mxu0 0
  %314 = vmatpush.bf16.xpose.msra.mxu0 0
  %315 = vmatpush.bf16.xpose.msra.mxu0 0
  %316 = vmatpush.bf16.xpose.msra.mxu0 0
  %317 = vmatpush.bf16.xpose.msra.mxu0 0
  %318 = vmatpush.bf16.xpose.msra.mxu0 0
  %319 = vmatpush.bf16.xpose.msra.mxu0 0
  %320 = vmatpush.bf16.xpose.msra.mxu0 %v221
  %321 = vmatmul.bf16.gmra.mxu0 %v271
  %v322 = vpop.f32.mrf.mxu0
  %v323 = vadd.f32 0.0, %v322
  %v324 = vpop.f32.mrf.mxu0
  %325 = vdwg.mxu0
  %v326 = vmul.f32 %v310, 0.17677669
  %v327 = vmul.f32 %v323, 0.17677669
  %v328 = vld [vmem:[%s2] sm:$0xff]
  %v329 = vld [vmem:[%s2 + $0x8] sm:$0xff]
  %v330 = vld [vmem:[%s5] sm:$0x1]
  %v331 = vld [vmem:[%s5 + $0x1] sm:$0x1]
  %333 = vset.pattern.permute.xlu0 0
  %334 = vperm.xlu0 %333, %v328
  %v335 = vpop.permute.xlu0 %334
  %338 = vset.pattern.permute.xlu0 0
  %339 = vperm.xlu0 %338, %v329
  %v340 = vpop.permute.xlu0 %339
  %v344 = vperm.slane %v330, 0
  %v345 = vperm.slane %v331, 0
  %v348 = vmul.f32 %v335, %v344
  %v349 = vmul.f32 %v340, %v345
  %vm350 = vcmp.gt.f32.partialorder %v348, 0.0
  %vm351 = vcmp.gt.f32.partialorder %v349, 0.0
  %v352 = vsel %vm350, %v298, -10000000.0
  %v353 = vsel %vm351, %v299, -10000000.0
  %v354 = vld [vmem:[%s4] sm:$0xff]
  %v355 = vld [vmem:[%s4 + $0x8] sm:$0xff]
  %v356 = vld [vmem:[%s3] sm:$0x1]
  %v357 = vld [vmem:[%s3 + $0x1] sm:$0x1]
  %359 = vset.pattern.permute.xlu0 0
  %360 = vperm.xlu0 %359, %v354
  %v361 = vpop.permute.xlu0 %360
  %364 = vset.pattern.permute.xlu0 0
  %365 = vperm.xlu0 %364, %v355
  %v366 = vpop.permute.xlu0 %365
  %v370 = vperm.slane %v356, 0
  %v371 = vperm.slane %v357, 0
  %v374 = vmul.f32 %v361, %v370
  %v375 = vmul.f32 %v366, %v371
  %vm376 = vcmp.gt.f32.partialorder %v374, 0.0
  %vm377 = vcmp.gt.f32.partialorder %v375, 0.0
  %v378 = vsel %vm376, %v326, -10000000.0
  %v379 = vsel %vm377, %v327, -10000000.0
  %vm380 = vcmask 64512
  %v381 = vsel %vm380, %v352, -inf
  %382 = vmax.xlane.f32.xlu0 %v381
  %v383 = vpop.xlane.xlu0 %382
  %v384 = vsel %vm380, %v353, -inf
  %385 = vmax.xlane.f32.xlu0 %v384
  %v386 = vpop.xlane.xlu0 %385
  %v387 = vsub.f32 %v352, %v383
  %v388 = vsub.f32 %v353, %v386
  %v389 = vmul.f32 %v387, 1.442695
  %v390 = vpow.pop %v389
  %v391 = vmul.f32 %v388, 1.442695
  %v392 = vpow.pop %v391
  %v393 = vsel %vm380, %v390, 0.0
  %394 = vadd.xlane.f32.xlu0 %v393
  %v395 = vpop.xlane.xlu0 %394
  %v396 = vsel %vm380, %v392, 0.0
  %397 = vadd.xlane.f32.xlu0 %v396
  %v398 = vpop.xlane.xlu0 %397
  %v399 = vrcp.pop %v395
  %v400 = vmul.f32 %v395, %v399
  %v401 = vsub.f32 1.0, %v400
  %v402 = vmul.f32 %v399, %v401
  %v403 = vadd.f32 %v399, %v402
  %vm404 = vweird.f32 %v395
  %vm405 = vweird.f32 %v399
  %vm406 = vmor %vm404, %vm405
  %v407 = vsel %vm406, %v399, %v403
  %v408 = vand.u32 2147483647, %v395
  %vm409 = vcmp.eq.f32.partialorder %v408, 8.507059e+37
  %v410 = vand.u32 %v395, 2147483648
  %v411 = vor.u32 1.1754944e-38, %v410
  %v412 = vsel %vm409, %v411, %v407
  %v413 = vmul.f32 %v390, %v412
  %v414 = vrcp.pop %v398
  %v415 = vmul.f32 %v398, %v414
  %v416 = vsub.f32 1.0, %v415
  %v417 = vmul.f32 %v414, %v416
  %v418 = vadd.f32 %v414, %v417
  %vm419 = vweird.f32 %v398
  %vm420 = vweird.f32 %v414
  %vm421 = vmor %vm419, %vm420
  %v422 = vsel %vm421, %v414, %v418
  %v423 = vand.u32 2147483647, %v398
  %vm424 = vcmp.eq.f32.partialorder %v423, 8.507059e+37
  %v425 = vand.u32 %v398, 2147483648
  %v426 = vor.u32 1.1754944e-38, %v425
  %v427 = vsel %vm424, %v426, %v422
  %v428 = vmul.f32 %v392, %v427
  %v429 = vsel %vm380, %v378, -inf
  %430 = vmax.xlane.f32.xlu0 %v429
  %v431 = vpop.xlane.xlu0 %430
  %v432 = vsel %vm380, %v379, -inf
  %433 = vmax.xlane.f32.xlu0 %v432
  %v434 = vpop.xlane.xlu0 %433
  %v435 = vsub.f32 %v378, %v431
  %v436 = vsub.f32 %v379, %v434
  %v437 = vmul.f32 %v435, 1.442695
  %v438 = vpow.pop %v437
  %v439 = vmul.f32 %v436, 1.442695
  %v440 = vpow.pop %v439
  %v441 = vsel %vm380, %v438, 0.0
  %442 = vadd.xlane.f32.xlu0 %v441
  %v443 = vpop.xlane.xlu0 %442
  %v444 = vsel %vm380, %v440, 0.0
  %445 = vadd.xlane.f32.xlu0 %v444
  %v446 = vpop.xlane.xlu0 %445
  %v447 = vrcp.pop %v443
  %v448 = vmul.f32 %v443, %v447
  %v449 = vsub.f32 1.0, %v448
  %v450 = vmul.f32 %v447, %v449
  %v451 = vadd.f32 %v447, %v450
  %vm452 = vweird.f32 %v443
  %vm453 = vweird.f32 %v447
  %vm454 = vmor %vm452, %vm453
  %v455 = vsel %vm454, %v447, %v451
  %v456 = vand.u32 2147483647, %v443
  %vm457 = vcmp.eq.f32.partialorder %v456, 8.507059e+37
  %v458 = vand.u32 %v443, 2147483648
  %v459 = vor.u32 1.1754944e-38, %v458
  %v460 = vsel %vm457, %v459, %v455
  %v461 = vmul.f32 %v438, %v460
  %v462 = vrcp.pop %v446
  %v463 = vmul.f32 %v446, %v462
  %v464 = vsub.f32 1.0, %v463
  %v465 = vmul.f32 %v462, %v464
  %v466 = vadd.f32 %v462, %v465
  %vm467 = vweird.f32 %v446
  %vm468 = vweird.f32 %v462
  %vm469 = vmor %vm467, %vm468
  %v470 = vsel %vm469, %v462, %v466
  %v471 = vand.u32 2147483647, %v446
  %vm472 = vcmp.eq.f32.partialorder %v471, 8.507059e+37
  %v473 = vand.u32 %v446, 2147483648
  %v474 = vor.u32 1.1754944e-38, %v473
  %v475 = vsel %vm472, %v474, %v470
  %v476 = vmul.f32 %v440, %v475
  %v477 = vpack.c.bf16 %v413, %v413
  %v478 = vpack.c.bf16 %v428, %v428
  %v479 = vpack.c.bf16 %v37, %v36
  %v480 = vpack.c.bf16 %v39, %v38
  %v482 = vunpack.c.l.b16 %v479
  %v483 = vunpack.c.h.b16 %v479
  %v484 = vpack.c.b16 %v482, %v482
  %v485 = vpack.c.b16 %v483, %v483
  %v487 = vsel %vm380, %v477, 0
  %vm489 = vcmask 1043456
  %v491 = vsel %vm489, %v484, 0
  %v494 = vsel %vm489, %v485, 0
  %496 = vmatpush.bf16.msra.mxu0 0
  %497 = vmatpush.bf16.msra.mxu0 0
  %498 = vmatpush.bf16.msra.mxu0 0
  %499 = vmatpush.bf16.msra.mxu0 0
  %500 = vmatpush.bf16.msra.mxu0 0
  %501 = vmatpush.bf16.msra.mxu0 0
  %502 = vmatpush.bf16.msra.mxu0 0
  %503 = vmatpush.bf16.msra.mxu0 %v491
  %504 = vmatmul.bf16.gmra.mxu0 %v487
  %v505 = vpop.f32.mrf.mxu0
  %v506 = vadd.f32 0.0, %v505
  %v507 = vpop.f32.mrf.mxu0
  %508 = vdwg.mxu0
  %509 = vmatpush.bf16.msra.mxu0 0
  %510 = vmatpush.bf16.msra.mxu0 0
  %511 = vmatpush.bf16.msra.mxu0 0
  %512 = vmatpush.bf16.msra.mxu0 0
  %513 = vmatpush.bf16.msra.mxu0 0
  %514 = vmatpush.bf16.msra.mxu0 0
  %515 = vmatpush.bf16.msra.mxu0 0
  %516 = vmatpush.bf16.msra.mxu0 %v494
  %517 = vmatmul.bf16.gmra.mxu0 %v487
  %v518 = vpop.f32.mrf.mxu0
  %v519 = vadd.f32 0.0, %v518
  %v520 = vpop.f32.mrf.mxu0
  %521 = vdwg.mxu0
  %v523 = vunpack.c.l.b16 %v480
  %v524 = vunpack.c.h.b16 %v480
  %v525 = vpack.c.b16 %v523, %v523
  %v526 = vpack.c.b16 %v524, %v524
  %v528 = vsel %vm380, %v478, 0
  %v531 = vsel %vm489, %v525, 0
  %v534 = vsel %vm489, %v526, 0
  %536 = vmatpush.bf16.msra.mxu0 0
  %537 = vmatpush.bf16.msra.mxu0 0
  %538 = vmatpush.bf16.msra.mxu0 0
  %539 = vmatpush.bf16.msra.mxu0 0
  %540 = vmatpush.bf16.msra.mxu0 0
  %541 = vmatpush.bf16.msra.mxu0 0
  %542 = vmatpush.bf16.msra.mxu0 0
  %543 = vmatpush.bf16.msra.mxu0 %v531
  %544 = vmatmul.bf16.gmra.mxu0 %v528
  %v545 = vpop.f32.mrf.mxu0
  %v546 = vadd.f32 0.0, %v545
  %v547 = vpop.f32.mrf.mxu0
  %548 = vdwg.mxu0
  %549 = vmatpush.bf16.msra.mxu0 0
  %550 = vmatpush.bf16.msra.mxu0 0
  %551 = vmatpush.bf16.msra.mxu0 0
  %552 = vmatpush.bf16.msra.mxu0 0
  %553 = vmatpush.bf16.msra.mxu0 0
  %554 = vmatpush.bf16.msra.mxu0 0
  %555 = vmatpush.bf16.msra.mxu0 0
  %556 = vmatpush.bf16.msra.mxu0 %v534
  %557 = vmatmul.bf16.gmra.mxu0 %v528
  %v558 = vpop.f32.mrf.mxu0
  %v559 = vadd.f32 0.0, %v558
  %v560 = vpop.f32.mrf.mxu0
  %561 = vdwg.mxu0
  %562 = vst [vmem:[%s8] sm:$0xff] %v506
  %563 = vst [vmem:[%s8 + $0x8] sm:$0xff] %v519
  %564 = vst [vmem:[%s8 + $0x10] sm:$0xff] %v546
  %565 = vst [vmem:[%s8 + $0x18] sm:$0xff] %v559
  %v566 = vpack.c.bf16 %v461, %v461
  %v567 = vpack.c.bf16 %v476, %v476
  %v568 = vpack.c.bf16 %v33, %v32
  %v569 = vpack.c.bf16 %v35, %v34
  %v571 = vunpack.c.l.b16 %v568
  %v572 = vunpack.c.h.b16 %v568
  %v573 = vpack.c.b16 %v571, %v571
  %v574 = vpack.c.b16 %v572, %v572
  %v576 = vsel %vm380, %v566, 0
  %v579 = vsel %vm489, %v573, 0
  %v582 = vsel %vm489, %v574, 0
  %584 = vmatpush.bf16.msra.mxu0 0
  %585 = vmatpush.bf16.msra.mxu0 0
  %586 = vmatpush.bf16.msra.mxu0 0
  %587 = vmatpush.bf16.msra.mxu0 0
  %588 = vmatpush.bf16.msra.mxu0 0
  %589 = vmatpush.bf16.msra.mxu0 0
  %590 = vmatpush.bf16.msra.mxu0 0
  %591 = vmatpush.bf16.msra.mxu0 %v579
  %592 = vmatmul.bf16.gmra.mxu0 %v576
  %v593 = vpop.f32.mrf.mxu0
  %v594 = vadd.f32 0.0, %v593
  %v595 = vpop.f32.mrf.mxu0
  %596 = vdwg.mxu0
  %597 = vmatpush.bf16.msra.mxu0 0
  %598 = vmatpush.bf16.msra.mxu0 0
  %599 = vmatpush.bf16.msra.mxu0 0
  %600 = vmatpush.bf16.msra.mxu0 0
  %601 = vmatpush.bf16.msra.mxu0 0
  %602 = vmatpush.bf16.msra.mxu0 0
  %603 = vmatpush.bf16.msra.mxu0 0
  %604 = vmatpush.bf16.msra.mxu0 %v582
  %605 = vmatmul.bf16.gmra.mxu0 %v576
  %v606 = vpop.f32.mrf.mxu0
  %v607 = vadd.f32 0.0, %v606
  %v608 = vpop.f32.mrf.mxu0
  %609 = vdwg.mxu0
  %v611 = vunpack.c.l.b16 %v569
  %v612 = vunpack.c.h.b16 %v569
  %v613 = vpack.c.b16 %v611, %v611
  %v614 = vpack.c.b16 %v612, %v612
  %v616 = vsel %vm380, %v567, 0
  %v619 = vsel %vm489, %v613, 0
  %v622 = vsel %vm489, %v614, 0
  %624 = vmatpush.bf16.msra.mxu0 0
  %625 = vmatpush.bf16.msra.mxu0 0
  %626 = vmatpush.bf16.msra.mxu0 0
  %627 = vmatpush.bf16.msra.mxu0 0
  %628 = vmatpush.bf16.msra.mxu0 0
  %629 = vmatpush.bf16.msra.mxu0 0
  %630 = vmatpush.bf16.msra.mxu0 0
  %631 = vmatpush.bf16.msra.mxu0 %v619
  %632 = vmatmul.bf16.gmra.mxu0 %v616
  %v633 = vpop.f32.mrf.mxu0
  %v634 = vadd.f32 0.0, %v633
  %v635 = vpop.f32.mrf.mxu0
  %636 = vdwg.mxu0
  %637 = vmatpush.bf16.msra.mxu0 0
  %638 = vmatpush.bf16.msra.mxu0 0
  %639 = vmatpush.bf16.msra.mxu0 0
  %640 = vmatpush.bf16.msra.mxu0 0
  %641 = vmatpush.bf16.msra.mxu0 0
  %642 = vmatpush.bf16.msra.mxu0 0
  %643 = vmatpush.bf16.msra.mxu0 0
  %644 = vmatpush.bf16.msra.mxu0 %v622
  %645 = vmatmul.bf16.gmra.mxu0 %v616
  %v646 = vpop.f32.mrf.mxu0
  %v647 = vadd.f32 0.0, %v646
  %v648 = vpop.f32.mrf.mxu0
  %649 = vdwg.mxu0
  %650 = vst [vmem:[%s9] sm:$0xff] %v594
  %651 = vst [vmem:[%s9 + $0x8] sm:$0xff] %v607
  %652 = vst [vmem:[%s9 + $0x10] sm:$0xff] %v634
  %653 = vst [vmem:[%s9 + $0x18] sm:$0xff] %v647
  // Predicated region
  $region34: #{re2_forward.11} parent=0 // pred_check
    _
  $region35: #{re2_forward.11} parent=0 // pred_check_branch
    %655 = sbr.rel (0) target = $region37
  $region36: #{re2_forward.11} parent=0 // pred_region
    _
  $region37: #{re2_forward.11} parent=0 // pred_fallthru
    _
  // Predicated region
  $region38: #{re2_forward.11} parent=0 // pred_check
    _
  $region39: #{re2_forward.11} parent=0 // pred_check_branch
    %657 = sbr.rel (0) target = $region41
  $region40: #{re2_forward.11} parent=0 // pred_region
    _
  $region41: #{re2_forward.11} parent=0 // pred_fallthru
    _
  // Predicated region
  $region42: #{re2_forward.11} parent=0 // pred_check
    _
  $region43: #{re2_forward.11} parent=0 // pred_check_branch
    %659 = sbr.rel (0) target = $region45
  $region44: #{re2_forward.11} parent=0 // pred_region
    _
  $region45: #{re2_forward.11} parent=0 // pred_fallthru
    _
  // Predicated region
  $region46: #{re2_forward.11} parent=0 // pred_check
    _
  $region47: #{re2_forward.11} parent=0 // pred_check_branch
    %661 = sbr.rel (0) target = $region49
  $region48: #{re2_forward.11} parent=0 // pred_region
    _
  $region49: #{re2_forward.11} parent=0 // pred_fallthru
    _

// kernel: re2_forward.14
$region0: #{re2_forward.14}
  #allocation0 [shape = 'u32[]', space=smem, size = 0x4, offset = 0x4, fixed_abs, tag = 'smem constant byte address 0x4 - core index']
  #allocation1 [shape = 'u32[72,128]{1,0:T(1,128)}', space=vmem, size = 0x9000, scoped, tag = 'internal scratch']
  %s0 = inlined_call_operand.vmem [shape: f32[2,8,256], index: 0, kind: input, shape index: {}]
  %s1 = inlined_call_operand.vmem [shape: f32[2,8,1], index: 1, kind: input, shape index: {}]
  %s2 = inlined_call_operand.hbm [shape: bf16[768,128], index: 2, kind: input, shape index: {}]
  %s3 = inlined_call_operand.vmem [shape: f32[1,128], index: 3, kind: input, shape index: {}, may-alias: {3,5}]
  %s4 = inlined_call_operand.hbm [shape: bf16[384,128], index: 4, kind: input, shape index: {}]
  %s5 = inlined_call_operand.vmem [shape: f32[1,128], index: 5, kind: input, shape index: {}, may-alias: {3,5}]
  %s6 = inlined_call_operand.vmem [shape: f32[2,8,128], index: 6, kind: output, shape index: {}]
  %s7 = sld [smem:[#allocation0]]
  $region42: #{re2_forward.14} parent=0
    _
  %s9 = ssub.s32 1, %s7
  %s10 = scalar_select 0, %s9, %s7
  $region1: #{re2_forward.14} parent=0
    #allocation2 [shape = 'u8[196608]{0}', space=vmem, size = 0x30000, scoped, tag = 'input window, operand 2, single buffered']
    #allocation3 [shape = 's32[1]{0}', space=sflag, size = 0x4, scoped, tag = 'scoped memory for re2_forward.14']
    #allocation4 [shape = 'u8[98304]{0}', space=vmem, size = 0x18000, scoped, tag = 'input window, operand 4, single buffered']
    #allocation5 [shape = 's32[1]{0}', space=sflag, size = 0x4, scoped, tag = 'scoped memory for re2_forward.14']
    %11 = vsyncpa [#allocation3], 0
    %12 = vsyncpa [#allocation5], 0
    // Predicated region
    $region2: #{re2_forward.14} parent=1 // pred_check
      _
    $region3: #{re2_forward.14} parent=1 // pred_check_branch
      %14 = sbr.rel (0) target = $region5
    $region4: #{re2_forward.14} parent=1 // pred_region
      _
    $region5: #{re2_forward.14} parent=1 // pred_fallthru
      _
    // Predicated region
    $region6: #{re2_forward.14} parent=1 // pred_check
      _
    $region7: #{re2_forward.14} parent=1 // pred_check_branch
      %16 = sbr.rel (0) target = $region9
    $region8: #{re2_forward.14} parent=1 // pred_region
      _
    $region9: #{re2_forward.14} parent=1 // pred_fallthru
      _
    // Predicated region
    $region10: #{re2_forward.14} parent=1 // pred_check
      _
    $region11: #{re2_forward.14} parent=1 // pred_check_branch
      %18 = sbr.rel (0) target = $region13
    $region12: #{re2_forward.14} parent=1 // pred_region
      %20 = vsyncadd [#allocation3], 0
      %s21 = sshll.u32 %s2, 4
      %s22 = int_to_ptr.hbm [resolvable:$true] %s21
      %s23 = sshll.u32 [#allocation2], 4
      %s24 = int_to_ptr.vmem [resolvable:$true] %s23
      %29 = dma.hbm_to_vmem [thread:$0]  %s22, 6144, %s24, [#allocation3], 64, 64, 4
    $region13: #{re2_forward.14} parent=1 // pred_fallthru
      _
    // Predicated region
    $region14: #{re2_forward.14} parent=1 // pred_check
      _
    $region15: #{re2_forward.14} parent=1 // pred_check_branch
      %31 = sbr.rel (0) target = $region17
    $region16: #{re2_forward.14} parent=1 // pred_region
      _
    $region17: #{re2_forward.14} parent=1 // pred_fallthru
      _
    // Predicated region
    $region18: #{re2_forward.14} parent=1 // pred_check
      _
    $region19: #{re2_forward.14} parent=1 // pred_check_branch
      %33 = sbr.rel (0) target = $region21
    $region20: #{re2_forward.14} parent=1 // pred_region
      %35 = vsyncadd [#allocation5], 0
      %s36 = sshll.u32 %s4, 4
      %s37 = int_to_ptr.hbm [resolvable:$true] %s36
      %s38 = sshll.u32 [#allocation4], 4
      %s39 = int_to_ptr.vmem [resolvable:$true] %s38
      %44 = dma.hbm_to_vmem [thread:$0]  %s37, 3072, %s39, [#allocation5], 64, 64, 4
    $region21: #{re2_forward.14} parent=1 // pred_fallthru
      _
    // Predicated region
    $region22: #{re2_forward.14} parent=1 // pred_check
      _
    $region23: #{re2_forward.14} parent=1 // pred_check_branch
      %46 = sbr.rel (0) target = $region25
    $region24: #{re2_forward.14} parent=1 // pred_region
      _
    $region25: #{re2_forward.14} parent=1 // pred_fallthru
      _
    // Predicated region
    $region26: #{re2_forward.14} parent=1 // pred_check
      _
    $region27: #{re2_forward.14} parent=1 // pred_check_branch
      %48 = sbr.rel (0) target = $region29
    $region28: #{re2_forward.14} parent=1 // pred_region
      %50 = dma.done [#allocation3], 6144
    $region29: #{re2_forward.14} parent=1 // pred_fallthru
      _
    // Predicated region
    $region30: #{re2_forward.14} parent=1 // pred_check
      _
    $region31: #{re2_forward.14} parent=1 // pred_check_branch
      %52 = sbr.rel (0) target = $region33
    $region32: #{re2_forward.14} parent=1 // pred_region
      %54 = dma.done [#allocation5], 3072
    $region33: #{re2_forward.14} parent=1 // pred_fallthru
      _
    %v55 = vld [vmem:[%s0] sm:$0xff]
    %v56 = vld [vmem:[%s0 + $0x8] sm:$0xff]
    %v57 = vld [vmem:[%s0 + $0x10] sm:$0xff]
    %v58 = vld [vmem:[%s0 + $0x18] sm:$0xff]
    %v59 = vld [vmem:[%s1] sm:$0xff]
    %v60 = vld [vmem:[%s1 + $0x8] sm:$0xff]
    %v61 = vlaneseq
    %v62 = vshrl.u32 %v61, 7
    %v63 = vld [vmem:[#allocation2] sm:$0xf]
    %v64 = vld [vmem:[#allocation2 + $0x4] sm:$0xf]
    %v65 = vld [vmem:[#allocation2 + $0x8] sm:$0xf]
    %v66 = vld [vmem:[#allocation2 + $0xc] sm:$0xf]
    %v67 = vld [vmem:[#allocation2 + $0x10] sm:$0xf]
    %v68 = vld [vmem:[#allocation2 + $0x14] sm:$0xf]
    %v69 = vld [vmem:[#allocation2 + $0x18] sm:$0xf]
    %v70 = vld [vmem:[#allocation2 + $0x1c] sm:$0xf]
    %v71 = vld [vmem:[#allocation2 + $0x20] sm:$0xf]
    %v72 = vld [vmem:[#allocation2 + $0x24] sm:$0xf]
    %v73 = vld [vmem:[#allocation2 + $0x28] sm:$0xf]
    %v74 = vld [vmem:[#allocation2 + $0x2c] sm:$0xf]
    %v75 = vld [vmem:[#allocation2 + $0x30] sm:$0xf]
    %v76 = vld [vmem:[#allocation2 + $0x34] sm:$0xf]
    %v77 = vld [vmem:[#allocation2 + $0x38] sm:$0xf]
    %v78 = vld [vmem:[#allocation2 + $0x3c] sm:$0xf]
    %v79 = vld [vmem:[#allocation2 + $0x40] sm:$0xf]
    %v80 = vld [vmem:[#allocation2 + $0x44] sm:$0xf]
    %v81 = vld [vmem:[#allocation2 + $0x48] sm:$0xf]
    %v82 = vld [vmem:[#allocation2 + $0x4c] sm:$0xf]
    %v83 = vld [vmem:[#allocation2 + $0x50] sm:$0xf]
    %v84 = vld [vmem:[#allocation2 + $0x54] sm:$0xf]
    %v85 = vld [vmem:[#allocation2 + $0x58] sm:$0xf]
    %v86 = vld [vmem:[#allocation2 + $0x5c] sm:$0xf]
    %v87 = vld [vmem:[#allocation2 + $0x60] sm:$0xf]
    %v88 = vld [vmem:[#allocation2 + $0x64] sm:$0xf]
    %v89 = vld [vmem:[#allocation2 + $0x68] sm:$0xf]
    %v90 = vld [vmem:[#allocation2 + $0x6c] sm:$0xf]
    %v91 = vld [vmem:[#allocation2 + $0x70] sm:$0xf]
    %v92 = vld [vmem:[#allocation2 + $0x74] sm:$0xf]
    %v93 = vld [vmem:[#allocation2 + $0x78] sm:$0xf]
    %v94 = vld [vmem:[#allocation2 + $0x7c] sm:$0xf]
    %v95 = vld [vmem:[#allocation2 + $0x80] sm:$0xf]
    %v96 = vld [vmem:[#allocation2 + $0x84] sm:$0xf]
    %v97 = vld [vmem:[#allocation2 + $0x88] sm:$0xf]
    %v98 = vld [vmem:[#allocation2 + $0x8c] sm:$0xf]
    %v99 = vld [vmem:[#allocation2 + $0x90] sm:$0xf]
    %v100 = vld [vmem:[#allocation2 + $0x94] sm:$0xf]
    %v101 = vld [vmem:[#allocation2 + $0x98] sm:$0xf]
    %v102 = vld [vmem:[#allocation2 + $0x9c] sm:$0xf]
    %v103 = vld [vmem:[#allocation2 + $0xa0] sm:$0xf]
    %v104 = vld [vmem:[#allocation2 + $0xa4] sm:$0xf]
    %v105 = vld [vmem:[#allocation2 + $0xa8] sm:$0xf]
    %v106 = vld [vmem:[#allocation2 + $0xac] sm:$0xf]
    %v107 = vld [vmem:[#allocation2 + $0xb0] sm:$0xf]
    %v108 = vld [vmem:[#allocation2 + $0xb4] sm:$0xf]
    %v109 = vld [vmem:[#allocation2 + $0xb8] sm:$0xf]
    %v110 = vld [vmem:[#allocation2 + $0xbc] sm:$0xf]
    %v111 = vld [vmem:[#allocation2 + $0xc0] sm:$0xf]
    %v112 = vld [vmem:[#allocation2 + $0xc4] sm:$0xf]
    %v113 = vld [vmem:[#allocation2 + $0xc8] sm:$0xf]
    %v114 = vld [vmem:[#allocation2 + $0xcc] sm:$0xf]
    %v115 = vld [vmem:[#allocation2 + $0xd0] sm:$0xf]
    %v116 = vld [vmem:[#allocation2 + $0xd4] sm:$0xf]
    %v117 = vld [vmem:[#allocation2 + $0xd8] sm:$0xf]
    %v118 = vld [vmem:[#allocation2 + $0xdc] sm:$0xf]
    %v119 = vld [vmem:[#allocation2 + $0xe0] sm:$0xf]
    %v120 = vld [vmem:[#allocation2 + $0xe4] sm:$0xf]
    %v121 = vld [vmem:[#allocation2 + $0xe8] sm:$0xf]
    %v122 = vld [vmem:[#allocation2 + $0xec] sm:$0xf]
    %v123 = vld [vmem:[#allocation2 + $0xf0] sm:$0xf]
    %v124 = vld [vmem:[#allocation2 + $0xf4] sm:$0xf]
    %v125 = vld [vmem:[#allocation2 + $0xf8] sm:$0xf]
    %v126 = vld [vmem:[#allocation2 + $0xfc] sm:$0xf]
    %v127 = vld [vmem:[#allocation2 + $0x100] sm:$0xf]
    %v128 = vld [vmem:[#allocation2 + $0x104] sm:$0xf]
    %v129 = vld [vmem:[#allocation2 + $0x108] sm:$0xf]
    %v130 = vld [vmem:[#allocation2 + $0x10c] sm:$0xf]
    %v131 = vld [vmem:[#allocation2 + $0x110] sm:$0xf]
    %v132 = vld [vmem:[#allocation2 + $0x114] sm:$0xf]
    %v133 = vld [vmem:[#allocation2 + $0x118] sm:$0xf]
    %v134 = vld [vmem:[#allocation2 + $0x11c] sm:$0xf]
    %v135 = vld [vmem:[#allocation2 + $0x120] sm:$0xf]
    %v136 = vld [vmem:[#allocation2 + $0x124] sm:$0xf]
    %v137 = vld [vmem:[#allocation2 + $0x128] sm:$0xf]
    %v138 = vld [vmem:[#allocation2 + $0x12c] sm:$0xf]
    %v139 = vld [vmem:[#allocation2 + $0x130] sm:$0xf]
    %v140 = vld [vmem:[#allocation2 + $0x134] sm:$0xf]
    %v141 = vld [vmem:[#allocation2 + $0x138] sm:$0xf]
    %v142 = vld [vmem:[#allocation2 + $0x13c] sm:$0xf]
    %v143 = vld [vmem:[#allocation2 + $0x140] sm:$0xf]
    %v144 = vld [vmem:[#allocation2 + $0x144] sm:$0xf]
    %v145 = vld [vmem:[#allocation2 + $0x148] sm:$0xf]
    %v146 = vld [vmem:[#allocation2 + $0x14c] sm:$0xf]
    %v147 = vld [vmem:[#allocation2 + $0x150] sm:$0xf]
    %v148 = vld [vmem:[#allocation2 + $0x154] sm:$0xf]
    %v149 = vld [vmem:[#allocation2 + $0x158] sm:$0xf]
    %v150 = vld [vmem:[#allocation2 + $0x15c] sm:$0xf]
    %v151 = vld [vmem:[#allocation2 + $0x160] sm:$0xf]
    %v152 = vld [vmem:[#allocation2 + $0x164] sm:$0xf]
    %v153 = vld [vmem:[#allocation2 + $0x168] sm:$0xf]
    %v154 = vld [vmem:[#allocation2 + $0x16c] sm:$0xf]
    %v155 = vld [vmem:[#allocation2 + $0x170] sm:$0xf]
    %v156 = vld [vmem:[#allocation2 + $0x174] sm:$0xf]
    %v157 = vld [vmem:[#allocation2 + $0x178] sm:$0xf]
    %v158 = vld [vmem:[#allocation2 + $0x17c] sm:$0xf]
    %v159 = vld [vmem:[%s3] sm:$0x1]
    %161 = vset.pattern.permute.xlu0 0
    %162 = vperm.xlu0 %161, %v59
    %v163 = vpop.permute.xlu0 %162
    %166 = vset.pattern.permute.xlu0 0
    %167 = vperm.xlu0 %166, %v60
    %v168 = vpop.permute.xlu0 %167
    %v170 = vmul.f32 %v55, %v163
    %v171 = vmul.f32 %v56, %v163
    %v172 = vmul.f32 %v57, %v168
    %v173 = vmul.f32 %v58, %v168
    %v174 = vrot.slane %v170, 7
    %v175 = vrot.slane %v171, 7
    %v176 = vrot.slane %v172, 7
    %v177 = vrot.slane %v173, 7
    %vm178 = vcmp.lt.s32.totalorder %v62, 1
    %v179 = vsel %vm178, %v174, %v176
    %v180 = vsel %vm178, %v175, %v177
    %v181 = vsel %vm178, %v176, %v174
    %v182 = vsel %vm178, %v177, %v175
    %v183 = vrot.slane %v170, 1
    %v184 = vrot.slane %v171, 1
    %v185 = vrot.slane %v172, 1
    %v186 = vrot.slane %v173, 1
    %vm187 = vcmp.lt.s32.totalorder %v62, 7
    %v188 = vsel %vm187, %v183, %v185
    %v189 = vsel %vm187, %v184, %v186
    %v190 = vsel %vm187, %v185, %v183
    %v191 = vsel %vm187, %v186, %v184
    %vm192 = vcmp.eq.s32.totalorder %v62, 0
    %v193 = vsel %vm192, 1, 0
    %vm194 = vcmp.eq.s32.totalorder %v193, 1
    %v195 = vsel %vm194, 0.0, %v181
    %v196 = vsel %vm194, 0.0, %v182
    %v197 = vsel %vm194, 0.0, %v179
    %v198 = vsel %vm194, 0.0, %v180
    %vm199 = vcmp.eq.s32.totalorder %v62, 7
    %v200 = vsel %vm199, 1, 0
    %vm201 = vcmp.eq.s32.totalorder %v200, 1
    %v202 = vsel %vm201, 0.0, %v188
    %v203 = vsel %vm201, 0.0, %v189
    %v204 = vsel %vm201, 0.0, %v190
    %v205 = vsel %vm201, 0.0, %v191
    %v206 = vpack.c.bf16 %v197, %v195
    %v207 = vpack.c.bf16 %v198, %v196
    %v208 = vpack.c.bf16 %v172, %v170
    %v209 = vpack.c.bf16 %v173, %v171
    %v210 = vpack.c.bf16 %v204, %v202
    %v211 = vpack.c.bf16 %v205, %v203
    %v213 = vperm.slane %v159, 0
    %v311 = vunpack.c.l.b16 %v63
    %v312 = vunpack.c.l.b16 %v64
    %v313 = vunpack.c.l.b16 %v65
    %v314 = vunpack.c.l.b16 %v66
    %v315 = vunpack.c.l.b16 %v67
    %v316 = vunpack.c.l.b16 %v68
    %v317 = vunpack.c.l.b16 %v69
    %v318 = vunpack.c.l.b16 %v70
    %v319 = vunpack.c.l.b16 %v71
    %v320 = vunpack.c.l.b16 %v72
    %v321 = vunpack.c.l.b16 %v73
    %v322 = vunpack.c.l.b16 %v74
    %v323 = vunpack.c.l.b16 %v75
    %v324 = vunpack.c.l.b16 %v76
    %v325 = vunpack.c.l.b16 %v77
    %v326 = vunpack.c.l.b16 %v78
    %v327 = vunpack.c.l.b16 %v79
    %v328 = vunpack.c.l.b16 %v80
    %v329 = vunpack.c.l.b16 %v81
    %v330 = vunpack.c.l.b16 %v82
    %v331 = vunpack.c.l.b16 %v83
    %v332 = vunpack.c.l.b16 %v84
    %v333 = vunpack.c.l.b16 %v85
    %v334 = vunpack.c.l.b16 %v86
    %v335 = vunpack.c.l.b16 %v87
    %v336 = vunpack.c.l.b16 %v88
    %v337 = vunpack.c.l.b16 %v89
    %v338 = vunpack.c.l.b16 %v90
    %v339 = vunpack.c.l.b16 %v91
    %v340 = vunpack.c.l.b16 %v92
    %v341 = vunpack.c.l.b16 %v93
    %v342 = vunpack.c.l.b16 %v94
    %v343 = vunpack.c.l.b16 %v95
    %v344 = vunpack.c.l.b16 %v96
    %v345 = vunpack.c.l.b16 %v97
    %v346 = vunpack.c.l.b16 %v98
    %v347 = vunpack.c.l.b16 %v99
    %v348 = vunpack.c.l.b16 %v100
    %v349 = vunpack.c.l.b16 %v101
    %v350 = vunpack.c.l.b16 %v102
    %v351 = vunpack.c.l.b16 %v103
    %v352 = vunpack.c.l.b16 %v104
    %v353 = vunpack.c.l.b16 %v105
    %v354 = vunpack.c.l.b16 %v106
    %v355 = vunpack.c.l.b16 %v107
    %v356 = vunpack.c.l.b16 %v108
    %v357 = vunpack.c.l.b16 %v109
    %v358 = vunpack.c.l.b16 %v110
    %v359 = vunpack.c.l.b16 %v111
    %v360 = vunpack.c.l.b16 %v112
    %v361 = vunpack.c.l.b16 %v113
    %v362 = vunpack.c.l.b16 %v114
    %v363 = vunpack.c.l.b16 %v115
    %v364 = vunpack.c.l.b16 %v116
    %v365 = vunpack.c.l.b16 %v117
    %v366 = vunpack.c.l.b16 %v118
    %v367 = vunpack.c.l.b16 %v119
    %v368 = vunpack.c.l.b16 %v120
    %v369 = vunpack.c.l.b16 %v121
    %v370 = vunpack.c.l.b16 %v122
    %v371 = vunpack.c.l.b16 %v123
    %v372 = vunpack.c.l.b16 %v124
    %v373 = vunpack.c.l.b16 %v125
    %v374 = vunpack.c.l.b16 %v126
    %v375 = vunpack.c.l.b16 %v127
    %v376 = vunpack.c.l.b16 %v128
    %v377 = vunpack.c.l.b16 %v129
    %v378 = vunpack.c.l.b16 %v130
    %v379 = vunpack.c.l.b16 %v131
    %v380 = vunpack.c.l.b16 %v132
    %v381 = vunpack.c.l.b16 %v133
    %v382 = vunpack.c.l.b16 %v134
    %v383 = vunpack.c.l.b16 %v135
    %v384 = vunpack.c.l.b16 %v136
    %v385 = vunpack.c.l.b16 %v137
    %v386 = vunpack.c.l.b16 %v138
    %v387 = vunpack.c.l.b16 %v139
    %v388 = vunpack.c.l.b16 %v140
    %v389 = vunpack.c.l.b16 %v141
    %v390 = vunpack.c.l.b16 %v142
    %v391 = vunpack.c.l.b16 %v143
    %v392 = vunpack.c.l.b16 %v144
    %v393 = vunpack.c.l.b16 %v145
    %v394 = vunpack.c.l.b16 %v146
    %v395 = vunpack.c.l.b16 %v147
    %v396 = vunpack.c.l.b16 %v148
    %v397 = vunpack.c.l.b16 %v149
    %v398 = vunpack.c.l.b16 %v150
    %v399 = vunpack.c.l.b16 %v151
    %v400 = vunpack.c.l.b16 %v152
    %v401 = vunpack.c.l.b16 %v153
    %v402 = vunpack.c.l.b16 %v154
    %v403 = vunpack.c.l.b16 %v155
    %v404 = vunpack.c.l.b16 %v156
    %v405 = vunpack.c.l.b16 %v157
    %v406 = vunpack.c.l.b16 %v158
    %v407 = vpack.c.b16 %v312, %v311
    %v408 = vpack.c.b16 %v314, %v313
    %v409 = vpack.c.b16 %v316, %v315
    %v410 = vpack.c.b16 %v318, %v317
    %v411 = vpack.c.b16 %v320, %v319
    %v412 = vpack.c.b16 %v322, %v321
    %v413 = vpack.c.b16 %v324, %v323
    %v414 = vpack.c.b16 %v326, %v325
    %v415 = vpack.c.b16 %v328, %v327
    %v416 = vpack.c.b16 %v330, %v329
    %v417 = vpack.c.b16 %v332, %v331
    %v418 = vpack.c.b16 %v334, %v333
    %v419 = vpack.c.b16 %v336, %v335
    %v420 = vpack.c.b16 %v338, %v337
    %v421 = vpack.c.b16 %v340, %v339
    %v422 = vpack.c.b16 %v342, %v341
    %v423 = vpack.c.b16 %v344, %v343
    %v424 = vpack.c.b16 %v346, %v345
    %v425 = vpack.c.b16 %v348, %v347
    %v426 = vpack.c.b16 %v350, %v349
    %v427 = vpack.c.b16 %v352, %v351
    %v428 = vpack.c.b16 %v354, %v353
    %v429 = vpack.c.b16 %v356, %v355
    %v430 = vpack.c.b16 %v358, %v357
    %v431 = vpack.c.b16 %v360, %v359
    %v432 = vpack.c.b16 %v362, %v361
    %v433 = vpack.c.b16 %v364, %v363
    %v434 = vpack.c.b16 %v366, %v365
    %v435 = vpack.c.b16 %v368, %v367
    %v436 = vpack.c.b16 %v370, %v369
    %v437 = vpack.c.b16 %v372, %v371
    %v438 = vpack.c.b16 %v374, %v373
    %v439 = vpack.c.b16 %v376, %v375
    %v440 = vpack.c.b16 %v378, %v377
    %v441 = vpack.c.b16 %v380, %v379
    %v442 = vpack.c.b16 %v382, %v381
    %v443 = vpack.c.b16 %v384, %v383
    %v444 = vpack.c.b16 %v386, %v385
    %v445 = vpack.c.b16 %v388, %v387
    %v446 = vpack.c.b16 %v390, %v389
    %v447 = vpack.c.b16 %v392, %v391
    %v448 = vpack.c.b16 %v394, %v393
    %v449 = vpack.c.b16 %v396, %v395
    %v450 = vpack.c.b16 %v398, %v397
    %v451 = vpack.c.b16 %v400, %v399
    %v452 = vpack.c.b16 %v402, %v401
    %v453 = vpack.c.b16 %v404, %v403
    %v454 = vpack.c.b16 %v406, %v405
    %503 = vmatpush.bf16.msra.mxu0 %v414
    %504 = vmatpush.bf16.msra.mxu0 %v413
    %505 = vmatpush.bf16.msra.mxu0 %v412
    %506 = vmatpush.bf16.msra.mxu0 %v411
    %507 = vmatpush.bf16.msra.mxu0 %v410
    %508 = vmatpush.bf16.msra.mxu0 %v409
    %509 = vmatpush.bf16.msra.mxu0 %v408
    %510 = vmatpush.bf16.msra.mxu0 %v407
    %511 = vmatmul.bf16.gmra.mxu0 %v206
    %v512 = vpop.f32.mrf.mxu0
    %v513 = vadd.f32 %v213, %v512
    %v514 = vpop.f32.mrf.mxu0
    %v515 = vadd.f32 %v213, %v514
    %516 = vdwg.mxu0
    %517 = vmatpush.bf16.msra.mxu0 %v422
    %518 = vmatpush.bf16.msra.mxu0 %v421
    %519 = vmatpush.bf16.msra.mxu0 %v420
    %520 = vmatpush.bf16.msra.mxu0 %v419
    %521 = vmatpush.bf16.msra.mxu0 %v418
    %522 = vmatpush.bf16.msra.mxu0 %v417
    %523 = vmatpush.bf16.msra.mxu0 %v416
    %524 = vmatpush.bf16.msra.mxu0 %v415
    %525 = vmatmul.bf16.gmra.mxu0 %v207
    %v526 = vpop.f32.mrf.mxu0
    %v527 = vadd.f32 %v513, %v526
    %v528 = vpop.f32.mrf.mxu0
    %v529 = vadd.f32 %v515, %v528
    %530 = vdwg.mxu0
    %531 = vmatpush.bf16.msra.mxu0 %v430
    %532 = vmatpush.bf16.msra.mxu0 %v429
    %533 = vmatpush.bf16.msra.mxu0 %v428
    %534 = vmatpush.bf16.msra.mxu0 %v427
    %535 = vmatpush.bf16.msra.mxu0 %v426
    %536 = vmatpush.bf16.msra.mxu0 %v425
    %537 = vmatpush.bf16.msra.mxu0 %v424
    %538 = vmatpush.bf16.msra.mxu0 %v423
    %539 = vmatmul.bf16.gmra.mxu0 %v208
    %v540 = vpop.f32.mrf.mxu0
    %v541 = vadd.f32 %v527, %v540
    %v542 = vpop.f32.mrf.mxu0
    %v543 = vadd.f32 %v529, %v542
    %544 = vdwg.mxu0
    %545 = vmatpush.bf16.msra.mxu0 %v438
    %546 = vmatpush.bf16.msra.mxu0 %v437
    %547 = vmatpush.bf16.msra.mxu0 %v436
    %548 = vmatpush.bf16.msra.mxu0 %v435
    %549 = vmatpush.bf16.msra.mxu0 %v434
    %550 = vmatpush.bf16.msra.mxu0 %v433
    %551 = vmatpush.bf16.msra.mxu0 %v432
    %552 = vmatpush.bf16.msra.mxu0 %v431
    %553 = vmatmul.bf16.gmra.mxu0 %v209
    %v554 = vpop.f32.mrf.mxu0
    %v555 = vadd.f32 %v541, %v554
    %v556 = vpop.f32.mrf.mxu0
    %v557 = vadd.f32 %v543, %v556
    %558 = vdwg.mxu0
    %559 = vmatpush.bf16.msra.mxu0 %v446
    %560 = vmatpush.bf16.msra.mxu0 %v445
    %561 = vmatpush.bf16.msra.mxu0 %v444
    %562 = vmatpush.bf16.msra.mxu0 %v443
    %563 = vmatpush.bf16.msra.mxu0 %v442
    %564 = vmatpush.bf16.msra.mxu0 %v441
    %565 = vmatpush.bf16.msra.mxu0 %v440
    %566 = vmatpush.bf16.msra.mxu0 %v439
    %567 = vmatmul.bf16.gmra.mxu0 %v210
    %v568 = vpop.f32.mrf.mxu0
    %v569 = vadd.f32 %v555, %v568
    %v570 = vpop.f32.mrf.mxu0
    %v571 = vadd.f32 %v557, %v570
    %572 = vdwg.mxu0
    %573 = vmatpush.bf16.msra.mxu0 %v454
    %574 = vmatpush.bf16.msra.mxu0 %v453
    %575 = vmatpush.bf16.msra.mxu0 %v452
    %576 = vmatpush.bf16.msra.mxu0 %v451
    %577 = vmatpush.bf16.msra.mxu0 %v450
    %578 = vmatpush.bf16.msra.mxu0 %v449
    %579 = vmatpush.bf16.msra.mxu0 %v448
    %580 = vmatpush.bf16.msra.mxu0 %v447
    %581 = vmatmul.bf16.gmra.mxu0 %v211
    %v582 = vpop.f32.mrf.mxu0
    %v583 = vadd.f32 %v569, %v582
    %v584 = vpop.f32.mrf.mxu0
    %v585 = vadd.f32 %v571, %v584
    %586 = vdwg.mxu0
    %v587 = vmul.f32 %v583, %v583
    %v588 = vmul.f32 %v585, %v585
    %v589 = vmul.f32 %v583, %v587
    %v590 = vmul.f32 %v585, %v588
    %v591 = vmul.f32 %v589, 0.044715
    %v592 = vmul.f32 %v590, 0.044715
    %v593 = vadd.f32 %v583, %v591
    %v594 = vadd.f32 %v585, %v592
    %v595 = vmul.f32 %v593, 0.7978846
    %v596 = vmul.f32 %v594, 0.7978846
    %v597 = vtanh.pop %v595
    %v598 = vtanh.pop %v596
    %v599 = vadd.f32 %v597, 1.0
    %v600 = vadd.f32 %v598, 1.0
    %v601 = vmul.f32 %v599, 0.5
    %v602 = vmul.f32 %v600, 0.5
    %v603 = vmul.f32 %v583, %v601
    %v604 = vmul.f32 %v585, %v602
    %v605 = vld [vmem:[#allocation4] sm:$0xf]
    %v606 = vld [vmem:[#allocation4 + $0x4] sm:$0xf]
    %v607 = vld [vmem:[#allocation4 + $0x8] sm:$0xf]
    %v608 = vld [vmem:[#allocation4 + $0xc] sm:$0xf]
    %v609 = vld [vmem:[#allocation4 + $0x10] sm:$0xf]
    %v610 = vld [vmem:[#allocation4 + $0x14] sm:$0xf]
    %v611 = vld [vmem:[#allocation4 + $0x18] sm:$0xf]
    %v612 = vld [vmem:[#allocation4 + $0x1c] sm:$0xf]
    %v613 = vld [vmem:[#allocation4 + $0x20] sm:$0xf]
    %v614 = vld [vmem:[#allocation4 + $0x24] sm:$0xf]
    %v615 = vld [vmem:[#allocation4 + $0x28] sm:$0xf]
    %v616 = vld [vmem:[#allocation4 + $0x2c] sm:$0xf]
    %v617 = vld [vmem:[#allocation4 + $0x30] sm:$0xf]
    %v618 = vld [vmem:[#allocation4 + $0x34] sm:$0xf]
    %v619 = vld [vmem:[#allocation4 + $0x38] sm:$0xf]
    %v620 = vld [vmem:[#allocation4 + $0x3c] sm:$0xf]
    %v621 = vld [vmem:[#allocation4 + $0x40] sm:$0xf]
    %v622 = vld [vmem:[#allocation4 + $0x44] sm:$0xf]
    %v623 = vld [vmem:[#allocation4 + $0x48] sm:$0xf]
    %v624 = vld [vmem:[#allocation4 + $0x4c] sm:$0xf]
    %v625 = vld [vmem:[#allocation4 + $0x50] sm:$0xf]
    %v626 = vld [vmem:[#allocation4 + $0x54] sm:$0xf]
    %v627 = vld [vmem:[#allocation4 + $0x58] sm:$0xf]
    %v628 = vld [vmem:[#allocation4 + $0x5c] sm:$0xf]
    %v629 = vld [vmem:[#allocation4 + $0x60] sm:$0xf]
    %v630 = vld [vmem:[#allocation4 + $0x64] sm:$0xf]
    %v631 = vld [vmem:[#allocation4 + $0x68] sm:$0xf]
    %v632 = vld [vmem:[#allocation4 + $0x6c] sm:$0xf]
    %v633 = vld [vmem:[#allocation4 + $0x70] sm:$0xf]
    %v634 = vld [vmem:[#allocation4 + $0x74] sm:$0xf]
    %v635 = vld [vmem:[#allocation4 + $0x78] sm:$0xf]
    %v636 = vld [vmem:[#allocation4 + $0x7c] sm:$0xf]
    %v637 = vld [vmem:[#allocation4 + $0x80] sm:$0xf]
    %v638 = vld [vmem:[#allocation4 + $0x84] sm:$0xf]
    %v639 = vld [vmem:[#allocation4 + $0x88] sm:$0xf]
    %v640 = vld [vmem:[#allocation4 + $0x8c] sm:$0xf]
    %v641 = vld [vmem:[#allocation4 + $0x90] sm:$0xf]
    %v642 = vld [vmem:[#allocation4 + $0x94] sm:$0xf]
    %v643 = vld [vmem:[#allocation4 + $0x98] sm:$0xf]
    %v644 = vld [vmem:[#allocation4 + $0x9c] sm:$0xf]
    %v645 = vld [vmem:[#allocation4 + $0xa0] sm:$0xf]
    %v646 = vld [vmem:[#allocation4 + $0xa4] sm:$0xf]
    %v647 = vld [vmem:[#allocation4 + $0xa8] sm:$0xf]
    %v648 = vld [vmem:[#allocation4 + $0xac] sm:$0xf]
    %v649 = vld [vmem:[#allocation4 + $0xb0] sm:$0xf]
    %v650 = vld [vmem:[#allocation4 + $0xb4] sm:$0xf]
    %v651 = vld [vmem:[#allocation4 + $0xb8] sm:$0xf]
    %v652 = vld [vmem:[#allocation4 + $0xbc] sm:$0xf]
    %v653 = vld [vmem:[%s5] sm:$0x1]
    %v654 = vmul.f32 %v603, %v163
    %v655 = vmul.f32 %v604, %v168
    %v656 = vrot.slane %v654, 7
    %v657 = vrot.slane %v655, 7
    %v658 = vsel %vm178, %v656, %v657
    %v659 = vsel %vm178, %v657, %v656
    %v660 = vrot.slane %v654, 1
    %v661 = vrot.slane %v655, 1
    %v662 = vsel %vm187, %v660, %v661
    %v663 = vsel %vm187, %v661, %v660
    %v664 = vsel %vm194, 0.0, %v659
    %v665 = vsel %vm194, 0.0, %v658
    %v666 = vsel %vm201, 0.0, %v662
    %v667 = vsel %vm201, 0.0, %v663
    %v668 = vpack.c.bf16 %v665, %v664
    %v669 = vpack.c.bf16 %v655, %v654
    %v670 = vpack.c.bf16 %v667, %v666
    %v672 = vperm.slane %v653, 0
    %v722 = vunpack.c.l.b16 %v605
    %v723 = vunpack.c.l.b16 %v606
    %v724 = vunpack.c.l.b16 %v607
    %v725 = vunpack.c.l.b16 %v608
    %v726 = vunpack.c.l.b16 %v609
    %v727 = vunpack.c.l.b16 %v610
    %v728 = vunpack.c.l.b16 %v611
    %v729 = vunpack.c.l.b16 %v612
    %v730 = vunpack.c.l.b16 %v613
    %v731 = vunpack.c.l.b16 %v614
    %v732 = vunpack.c.l.b16 %v615
    %v733 = vunpack.c.l.b16 %v616
    %v734 = vunpack.c.l.b16 %v617
    %v735 = vunpack.c.l.b16 %v618
    %v736 = vunpack.c.l.b16 %v619
    %v737 = vunpack.c.l.b16 %v620
    %v738 = vunpack.c.l.b16 %v621
    %v739 = vunpack.c.l.b16 %v622
    %v740 = vunpack.c.l.b16 %v623
    %v741 = vunpack.c.l.b16 %v624
    %v742 = vunpack.c.l.b16 %v625
    %v743 = vunpack.c.l.b16 %v626
    %v744 = vunpack.c.l.b16 %v627
    %v745 = vunpack.c.l.b16 %v628
    %v746 = vunpack.c.l.b16 %v629
    %v747 = vunpack.c.l.b16 %v630
    %v748 = vunpack.c.l.b16 %v631
    %v749 = vunpack.c.l.b16 %v632
    %v750 = vunpack.c.l.b16 %v633
    %v751 = vunpack.c.l.b16 %v634
    %v752 = vunpack.c.l.b16 %v635
    %v753 = vunpack.c.l.b16 %v636
    %v754 = vunpack.c.l.b16 %v637
    %v755 = vunpack.c.l.b16 %v638
    %v756 = vunpack.c.l.b16 %v639
    %v757 = vunpack.c.l.b16 %v640
    %v758 = vunpack.c.l.b16 %v641
    %v759 = vunpack.c.l.b16 %v642
    %v760 = vunpack.c.l.b16 %v643
    %v761 = vunpack.c.l.b16 %v644
    %v762 = vunpack.c.l.b16 %v645
    %v763 = vunpack.c.l.b16 %v646
    %v764 = vunpack.c.l.b16 %v647
    %v765 = vunpack.c.l.b16 %v648
    %v766 = vunpack.c.l.b16 %v649
    %v767 = vunpack.c.l.b16 %v650
    %v768 = vunpack.c.l.b16 %v651
    %v769 = vunpack.c.l.b16 %v652
    %v770 = vpack.c.b16 %v723, %v722
    %v771 = vpack.c.b16 %v725, %v724
    %v772 = vpack.c.b16 %v727, %v726
    %v773 = vpack.c.b16 %v729, %v728
    %v774 = vpack.c.b16 %v731, %v730
    %v775 = vpack.c.b16 %v733, %v732
    %v776 = vpack.c.b16 %v735, %v734
    %v777 = vpack.c.b16 %v737, %v736
    %v778 = vpack.c.b16 %v739, %v738
    %v779 = vpack.c.b16 %v741, %v740
    %v780 = vpack.c.b16 %v743, %v742
    %v781 = vpack.c.b16 %v745, %v744
    %v782 = vpack.c.b16 %v747, %v746
    %v783 = vpack.c.b16 %v749, %v748
    %v784 = vpack.c.b16 %v751, %v750
    %v785 = vpack.c.b16 %v753, %v752
    %v786 = vpack.c.b16 %v755, %v754
    %v787 = vpack.c.b16 %v757, %v756
    %v788 = vpack.c.b16 %v759, %v758
    %v789 = vpack.c.b16 %v761, %v760
    %v790 = vpack.c.b16 %v763, %v762
    %v791 = vpack.c.b16 %v765, %v764
    %v792 = vpack.c.b16 %v767, %v766
    %v793 = vpack.c.b16 %v769, %v768
    %818 = vmatpush.bf16.msra.mxu0 %v777
    %819 = vmatpush.bf16.msra.mxu0 %v776
    %820 = vmatpush.bf16.msra.mxu0 %v775
    %821 = vmatpush.bf16.msra.mxu0 %v774
    %822 = vmatpush.bf16.msra.mxu0 %v773
    %823 = vmatpush.bf16.msra.mxu0 %v772
    %824 = vmatpush.bf16.msra.mxu0 %v771
    %825 = vmatpush.bf16.msra.mxu0 %v770
    %826 = vmatmul.bf16.gmra.mxu0 %v668
    %v827 = vpop.f32.mrf.mxu0
    %v828 = vadd.f32 %v672, %v827
    %v829 = vpop.f32.mrf.mxu0
    %v830 = vadd.f32 %v672, %v829
    %831 = vdwg.mxu0
    %832 = vmatpush.bf16.msra.mxu0 %v785
    %833 = vmatpush.bf16.msra.mxu0 %v784
    %834 = vmatpush.bf16.msra.mxu0 %v783
    %835 = vmatpush.bf16.msra.mxu0 %v782
    %836 = vmatpush.bf16.msra.mxu0 %v781
    %837 = vmatpush.bf16.msra.mxu0 %v780
    %838 = vmatpush.bf16.msra.mxu0 %v779
    %839 = vmatpush.bf16.msra.mxu0 %v778
    %840 = vmatmul.bf16.gmra.mxu0 %v669
    %v841 = vpop.f32.mrf.mxu0
    %v842 = vadd.f32 %v828, %v841
    %v843 = vpop.f32.mrf.mxu0
    %v844 = vadd.f32 %v830, %v843
    %845 = vdwg.mxu0
    %846 = vmatpush.bf16.msra.mxu0 %v793
    %847 = vmatpush.bf16.msra.mxu0 %v792
    %848 = vmatpush.bf16.msra.mxu0 %v791
    %849 = vmatpush.bf16.msra.mxu0 %v790
    %850 = vmatpush.bf16.msra.mxu0 %v789
    %851 = vmatpush.bf16.msra.mxu0 %v788
    %852 = vmatpush.bf16.msra.mxu0 %v787
    %853 = vmatpush.bf16.msra.mxu0 %v786
    %854 = vmatmul.bf16.gmra.mxu0 %v670
    %v855 = vpop.f32.mrf.mxu0
    %v856 = vadd.f32 %v842, %v855
    %v857 = vpop.f32.mrf.mxu0
    %v858 = vadd.f32 %v844, %v857
    %859 = vdwg.mxu0
    %v860 = vmul.f32 %v856, %v856
    %v861 = vmul.f32 %v858, %v858
    %v862 = vmul.f32 %v856, %v860
    %v863 = vmul.f32 %v858, %v861
    %v864 = vmul.f32 %v862, 0.044715
    %v865 = vmul.f32 %v863, 0.044715
    %v866 = vadd.f32 %v856, %v864
    %v867 = vadd.f32 %v858, %v865
    %v868 = vmul.f32 %v866, 0.7978846
    %v869 = vmul.f32 %v867, 0.7978846
    %v870 = vtanh.pop %v868
    %v871 = vtanh.pop %v869
    %v872 = vadd.f32 %v870, 1.0
    %v873 = vadd.f32 %v871, 1.0
    %v874 = vmul.f32 %v872, 0.5
    %v875 = vmul.f32 %v873, 0.5
    %v876 = vmul.f32 %v856, %v874
    %v877 = vmul.f32 %v858, %v875
    %878 = vst [vmem:[%s6] sm:$0xff] %v876
    %879 = vst [vmem:[%s6 + $0x8] sm:$0xff] %v877
    // Predicated region
    $region34: #{re2_forward.14} parent=1 // pred_check
      _
    $region35: #{re2_forward.14} parent=1 // pred_check_branch
      %881 = sbr.rel (0) target = $region37
    $region36: #{re2_forward.14} parent=1 // pred_region
      _
    $region37: #{re2_forward.14} parent=1 // pred_fallthru
      _
    // Predicated region
    $region38: #{re2_forward.14} parent=1 // pred_check
      _
    $region39: #{re2_forward.14} parent=1 // pred_check_branch
      %883 = sbr.rel (0) target = $region41
    $region40: #{re2_forward.14} parent=1 // pred_region
      _
    $region41: #{re2_forward.14} parent=1 // pred_fallthru
      _
    %884 = vsyncpa [#allocation3], 1
    %885 = vsyncpa [#allocation5], 1

// kernel: re2_forward.12
$region0: #{re2_forward.12}
  #allocation0 [shape = 'u32[]', space=smem, size = 0x4, offset = 0x4, fixed_abs, tag = 'smem constant byte address 0x4 - core index']
  #allocation1 [shape = 'u32[72,128]{1,0:T(1,128)}', space=vmem, size = 0x9000, scoped, tag = 'internal scratch']
  %s0 = inlined_call_operand.vmem [shape: f32[32,256], index: 0, kind: input, shape index: {}]
  %s1 = inlined_call_operand.vmem [shape: f32[32,256], index: 1, kind: input, shape index: {}]
  %s2 = inlined_call_operand.hbm [shape: bf16[512,128], index: 2, kind: input, shape index: {}]
  %s3 = inlined_call_operand.vmem [shape: f32[1,128], index: 3, kind: input, shape index: {}, may-alias: {3,5,7,9}]
  %s4 = inlined_call_operand.hbm [shape: bf16[512,128], index: 4, kind: input, shape index: {}]
  %s5 = inlined_call_operand.vmem [shape: f32[1,128], index: 5, kind: input, shape index: {}, may-alias: {3,5,7,9}]
  %s6 = inlined_call_operand.hbm [shape: bf16[512,128], index: 6, kind: input, shape index: {}]
  %s7 = inlined_call_operand.vmem [shape: f32[1,128], index: 7, kind: input, shape index: {}, may-alias: {3,5,7,9}]
  %s8 = inlined_call_operand.hbm [shape: bf16[384,128], index: 8, kind: input, shape index: {}]
  %s9 = inlined_call_operand.vmem [shape: f32[1,128], index: 9, kind: input, shape index: {}, may-alias: {3,5,7,9}]
  %s10 = inlined_call_operand.vmem [shape: f32[32,128], index: 10, kind: output, shape index: {}]
  %s11 = sld [smem:[#allocation0]]
  $region66: #{re2_forward.12} parent=0
    _
  %s13 = ssub.s32 1, %s11
  %s14 = scalar_select 0, %s13, %s11
  $region1: #{re2_forward.12} parent=0
    #allocation2 [shape = 'u8[131072]{0}', space=vmem, size = 0x20000, scoped, tag = 'input window, operand 2, single buffered']
    #allocation3 [shape = 's32[1]{0}', space=sflag, size = 0x4, scoped, tag = 'scoped memory for re2_forward.12']
    #allocation4 [shape = 'u8[131072]{0}', space=vmem, size = 0x20000, scoped, tag = 'input window, operand 4, single buffered']
    #allocation5 [shape = 's32[1]{0}', space=sflag, size = 0x4, scoped, tag = 'scoped memory for re2_forward.12']
    #allocation6 [shape = 'u8[131072]{0}', space=vmem, size = 0x20000, scoped, tag = 'input window, operand 6, single buffered']
    #allocation7 [shape = 'u8[98304]{0}', space=vmem, size = 0x18000, scoped, tag = 'input window, operand 8, single buffered']
    #allocation8 [shape = 's32[1]{0}', space=sflag, size = 0x4, scoped, tag = 'scoped memory for re2_forward.12']
    %15 = vsyncpa [#allocation3], 0
    %16 = vsyncpa [#allocation5], 0
    %17 = vsyncpa [#allocation8], 0
    // Predicated region
    $region2: #{re2_forward.12} parent=1 // pred_check
      _
    $region3: #{re2_forward.12} parent=1 // pred_check_branch
      %19 = sbr.rel (0) target = $region5
    $region4: #{re2_forward.12} parent=1 // pred_region
      _
    $region5: #{re2_forward.12} parent=1 // pred_fallthru
      _
    // Predicated region
    $region6: #{re2_forward.12} parent=1 // pred_check
      _
    $region7: #{re2_forward.12} parent=1 // pred_check_branch
      %21 = sbr.rel (0) target = $region9
    $region8: #{re2_forward.12} parent=1 // pred_region
      _
    $region9: #{re2_forward.12} parent=1 // pred_fallthru
      _
    // Predicated region
    $region10: #{re2_forward.12} parent=1 // pred_check
      _
    $region11: #{re2_forward.12} parent=1 // pred_check_branch
      %23 = sbr.rel (0) target = $region13
    $region12: #{re2_forward.12} parent=1 // pred_region
      %25 = vsyncadd [#allocation3], 0
      %s26 = sshll.u32 %s2, 4
      %s27 = int_to_ptr.hbm [resolvable:$true] %s26
      %s28 = sshll.u32 [#allocation2], 4
      %s29 = int_to_ptr.vmem [resolvable:$true] %s28
      %34 = dma.hbm_to_vmem [thread:$0]  %s27, 4096, %s29, [#allocation3], 64, 64, 4
    $region13: #{re2_forward.12} parent=1 // pred_fallthru
      _
    // Predicated region
    $region14: #{re2_forward.12} parent=1 // pred_check
      _
    $region15: #{re2_forward.12} parent=1 // pred_check_branch
      %36 = sbr.rel (0) target = $region17
    $region16: #{re2_forward.12} parent=1 // pred_region
      _
    $region17: #{re2_forward.12} parent=1 // pred_fallthru
      _
    // Predicated region
    $region18: #{re2_forward.12} parent=1 // pred_check
      _
    $region19: #{re2_forward.12} parent=1 // pred_check_branch
      %38 = sbr.rel (0) target = $region21
    $region20: #{re2_forward.12} parent=1 // pred_region
      %40 = vsyncadd [#allocation5], 0
      %s41 = sshll.u32 %s4, 4
      %s42 = int_to_ptr.hbm [resolvable:$true] %s41
      %s43 = sshll.u32 [#allocation4], 4
      %s44 = int_to_ptr.vmem [resolvable:$true] %s43
      %49 = dma.hbm_to_vmem [thread:$0]  %s42, 4096, %s44, [#allocation5], 64, 64, 4
    $region21: #{re2_forward.12} parent=1 // pred_fallthru
      _
    // Predicated region
    $region22: #{re2_forward.12} parent=1 // pred_check
      _
    $region23: #{re2_forward.12} parent=1 // pred_check_branch
      %51 = sbr.rel (0) target = $region25
    $region24: #{re2_forward.12} parent=1 // pred_region
      _
    $region25: #{re2_forward.12} parent=1 // pred_fallthru
      _
    // Predicated region
    $region26: #{re2_forward.12} parent=1 // pred_check
      _
    $region27: #{re2_forward.12} parent=1 // pred_check_branch
      %53 = sbr.rel (0) target = $region29
    $region28: #{re2_forward.12} parent=1 // pred_region
      %55 = vsyncadd [#allocation5], 0
      %s56 = sshll.u32 %s6, 4
      %s57 = int_to_ptr.hbm [resolvable:$true] %s56
      %s58 = sshll.u32 [#allocation6], 4
      %s59 = int_to_ptr.vmem [resolvable:$true] %s58
      %64 = dma.hbm_to_vmem [thread:$0]  %s57, 4096, %s59, [#allocation5], 64, 64, 4
    $region29: #{re2_forward.12} parent=1 // pred_fallthru
      _
    // Predicated region
    $region30: #{re2_forward.12} parent=1 // pred_check
      _
    $region31: #{re2_forward.12} parent=1 // pred_check_branch
      %66 = sbr.rel (0) target = $region33
    $region32: #{re2_forward.12} parent=1 // pred_region
      _
    $region33: #{re2_forward.12} parent=1 // pred_fallthru
      _
    // Predicated region
    $region34: #{re2_forward.12} parent=1 // pred_check
      _
    $region35: #{re2_forward.12} parent=1 // pred_check_branch
      %68 = sbr.rel (0) target = $region37
    $region36: #{re2_forward.12} parent=1 // pred_region
      %70 = vsyncadd [#allocation8], 0
      %s71 = sshll.u32 %s8, 4
      %s72 = int_to_ptr.hbm [resolvable:$true] %s71
      %s73 = sshll.u32 [#allocation7], 4
      %s74 = int_to_ptr.vmem [resolvable:$true] %s73
      %79 = dma.hbm_to_vmem [thread:$0]  %s72, 3072, %s74, [#allocation8], 64, 64, 4
    $region37: #{re2_forward.12} parent=1 // pred_fallthru
      _
    // Predicated region
    $region38: #{re2_forward.12} parent=1 // pred_check
      _
    $region39: #{re2_forward.12} parent=1 // pred_check_branch
      %81 = sbr.rel (0) target = $region41
    $region40: #{re2_forward.12} parent=1 // pred_region
      _
    $region41: #{re2_forward.12} parent=1 // pred_fallthru
      _
    // Predicated region
    $region42: #{re2_forward.12} parent=1 // pred_check
      _
    $region43: #{re2_forward.12} parent=1 // pred_check_branch
      %83 = sbr.rel (0) target = $region45
    $region44: #{re2_forward.12} parent=1 // pred_region
      %85 = dma.done [#allocation3], 4096
    $region45: #{re2_forward.12} parent=1 // pred_fallthru
      _
    // Predicated region
    $region46: #{re2_forward.12} parent=1 // pred_check
      _
    $region47: #{re2_forward.12} parent=1 // pred_check_branch
      %87 = sbr.rel (0) target = $region49
    $region48: #{re2_forward.12} parent=1 // pred_region
      %89 = dma.done [#allocation5], 4096
    $region49: #{re2_forward.12} parent=1 // pred_fallthru
      _
    // Predicated region
    $region50: #{re2_forward.12} parent=1 // pred_check
      _
    $region51: #{re2_forward.12} parent=1 // pred_check_branch
      %91 = sbr.rel (0) target = $region53
    $region52: #{re2_forward.12} parent=1 // pred_region
      %93 = dma.done [#allocation5], 4096
    $region53: #{re2_forward.12} parent=1 // pred_fallthru
      _
    // Predicated region
    $region54: #{re2_forward.12} parent=1 // pred_check
      _
    $region55: #{re2_forward.12} parent=1 // pred_check_branch
      %95 = sbr.rel (0) target = $region57
    $region56: #{re2_forward.12} parent=1 // pred_region
      %97 = dma.done [#allocation8], 3072
    $region57: #{re2_forward.12} parent=1 // pred_fallthru
      _
    %v98 = vld [vmem:[%s0] sm:$0xff]
    %v99 = vld [vmem:[%s0 + $0x8] sm:$0xff]
    %v100 = vld [vmem:[%s0 + $0x10] sm:$0xff]
    %v101 = vld [vmem:[%s0 + $0x18] sm:$0xff]
    %v102 = vld [vmem:[%s0 + $0x20] sm:$0xff]
    %v103 = vld [vmem:[%s0 + $0x28] sm:$0xff]
    %v104 = vld [vmem:[%s0 + $0x30] sm:$0xff]
    %v105 = vld [vmem:[%s0 + $0x38] sm:$0xff]
    %v106 = vld [vmem:[%s1] sm:$0xff]
    %v107 = vld [vmem:[%s1 + $0x8] sm:$0xff]
    %v108 = vld [vmem:[%s1 + $0x10] sm:$0xff]
    %v109 = vld [vmem:[%s1 + $0x18] sm:$0xff]
    %v110 = vld [vmem:[%s1 + $0x20] sm:$0xff]
    %v111 = vld [vmem:[%s1 + $0x28] sm:$0xff]
    %v112 = vld [vmem:[%s1 + $0x30] sm:$0xff]
    %v113 = vld [vmem:[%s1 + $0x38] sm:$0xff]
    %v114 = vpack.c.bf16 %v100, %v98
    %v115 = vpack.c.bf16 %v101, %v99
    %v116 = vpack.c.bf16 %v104, %v102
    %v117 = vpack.c.bf16 %v105, %v103
    %v118 = vpack.c.bf16 %v108, %v106
    %v119 = vpack.c.bf16 %v109, %v107
    %v120 = vpack.c.bf16 %v112, %v110
    %v121 = vpack.c.bf16 %v113, %v111
    %v122 = vld [vmem:[#allocation2] sm:$0xf]
    %v123 = vld [vmem:[#allocation2 + $0x4] sm:$0xf]
    %v124 = vld [vmem:[#allocation2 + $0x8] sm:$0xf]
    %v125 = vld [vmem:[#allocation2 + $0xc] sm:$0xf]
    %v126 = vld [vmem:[#allocation2 + $0x10] sm:$0xf]
    %v127 = vld [vmem:[#allocation2 + $0x14] sm:$0xf]
    %v128 = vld [vmem:[#allocation2 + $0x18] sm:$0xf]
    %v129 = vld [vmem:[#allocation2 + $0x1c] sm:$0xf]
    %v130 = vld [vmem:[#allocation2 + $0x20] sm:$0xf]
    %v131 = vld [vmem:[#allocation2 + $0x24] sm:$0xf]
    %v132 = vld [vmem:[#allocation2 + $0x28] sm:$0xf]
    %v133 = vld [vmem:[#allocation2 + $0x2c] sm:$0xf]
    %v134 = vld [vmem:[#allocation2 + $0x30] sm:$0xf]
    %v135 = vld [vmem:[#allocation2 + $0x34] sm:$0xf]
    %v136 = vld [vmem:[#allocation2 + $0x38] sm:$0xf]
    %v137 = vld [vmem:[#allocation2 + $0x3c] sm:$0xf]
    %v138 = vld [vmem:[#allocation2 + $0x40] sm:$0xf]
    %v139 = vld [vmem:[#allocation2 + $0x44] sm:$0xf]
    %v140 = vld [vmem:[#allocation2 + $0x48] sm:$0xf]
    %v141 = vld [vmem:[#allocation2 + $0x4c] sm:$0xf]
    %v142 = vld [vmem:[#allocation2 + $0x50] sm:$0xf]
    %v143 = vld [vmem:[#allocation2 + $0x54] sm:$0xf]
    %v144 = vld [vmem:[#allocation2 + $0x58] sm:$0xf]
    %v145 = vld [vmem:[#allocation2 + $0x5c] sm:$0xf]
    %v146 = vld [vmem:[#allocation2 + $0x60] sm:$0xf]
    %v147 = vld [vmem:[#allocation2 + $0x64] sm:$0xf]
    %v148 = vld [vmem:[#allocation2 + $0x68] sm:$0xf]
    %v149 = vld [vmem:[#allocation2 + $0x6c] sm:$0xf]
    %v150 = vld [vmem:[#allocation2 + $0x70] sm:$0xf]
    %v151 = vld [vmem:[#allocation2 + $0x74] sm:$0xf]
    %v152 = vld [vmem:[#allocation2 + $0x78] sm:$0xf]
    %v153 = vld [vmem:[#allocation2 + $0x7c] sm:$0xf]
    %v154 = vld [vmem:[#allocation2 + $0x80] sm:$0xf]
    %v155 = vld [vmem:[#allocation2 + $0x84] sm:$0xf]
    %v156 = vld [vmem:[#allocation2 + $0x88] sm:$0xf]
    %v157 = vld [vmem:[#allocation2 + $0x8c] sm:$0xf]
    %v158 = vld [vmem:[#allocation2 + $0x90] sm:$0xf]
    %v159 = vld [vmem:[#allocation2 + $0x94] sm:$0xf]
    %v160 = vld [vmem:[#allocation2 + $0x98] sm:$0xf]
    %v161 = vld [vmem:[#allocation2 + $0x9c] sm:$0xf]
    %v162 = vld [vmem:[#allocation2 + $0xa0] sm:$0xf]
    %v163 = vld [vmem:[#allocation2 + $0xa4] sm:$0xf]
    %v164 = vld [vmem:[#allocation2 + $0xa8] sm:$0xf]
    %v165 = vld [vmem:[#allocation2 + $0xac] sm:$0xf]
    %v166 = vld [vmem:[#allocation2 + $0xb0] sm:$0xf]
    %v167 = vld [vmem:[#allocation2 + $0xb4] sm:$0xf]
    %v168 = vld [vmem:[#allocation2 + $0xb8] sm:$0xf]
    %v169 = vld [vmem:[#allocation2 + $0xbc] sm:$0xf]
    %v170 = vld [vmem:[#allocation2 + $0xc0] sm:$0xf]
    %v171 = vld [vmem:[#allocation2 + $0xc4] sm:$0xf]
    %v172 = vld [vmem:[#allocation2 + $0xc8] sm:$0xf]
    %v173 = vld [vmem:[#allocation2 + $0xcc] sm:$0xf]
    %v174 = vld [vmem:[#allocation2 + $0xd0] sm:$0xf]
    %v175 = vld [vmem:[#allocation2 + $0xd4] sm:$0xf]
    %v176 = vld [vmem:[#allocation2 + $0xd8] sm:$0xf]
    %v177 = vld [vmem:[#allocation2 + $0xdc] sm:$0xf]
    %v178 = vld [vmem:[#allocation2 + $0xe0] sm:$0xf]
    %v179 = vld [vmem:[#allocation2 + $0xe4] sm:$0xf]
    %v180 = vld [vmem:[#allocation2 + $0xe8] sm:$0xf]
    %v181 = vld [vmem:[#allocation2 + $0xec] sm:$0xf]
    %v182 = vld [vmem:[#allocation2 + $0xf0] sm:$0xf]
    %v183 = vld [vmem:[#allocation2 + $0xf4] sm:$0xf]
    %v184 = vld [vmem:[#allocation2 + $0xf8] sm:$0xf]
    %v185 = vld [vmem:[#allocation2 + $0xfc] sm:$0xf]
    %v218 = vunpack.c.l.b16 %v154
    %v219 = vunpack.c.l.b16 %v155
    %v220 = vunpack.c.l.b16 %v156
    %v221 = vunpack.c.l.b16 %v157
    %v222 = vunpack.c.l.b16 %v158
    %v223 = vunpack.c.l.b16 %v159
    %v224 = vunpack.c.l.b16 %v160
    %v225 = vunpack.c.l.b16 %v161
    %v226 = vunpack.c.l.b16 %v162
    %v227 = vunpack.c.l.b16 %v163
    %v228 = vunpack.c.l.b16 %v164
    %v229 = vunpack.c.l.b16 %v165
    %v230 = vunpack.c.l.b16 %v166
    %v231 = vunpack.c.l.b16 %v167
    %v232 = vunpack.c.l.b16 %v168
    %v233 = vunpack.c.l.b16 %v169
    %v234 = vunpack.c.l.b16 %v170
    %v235 = vunpack.c.l.b16 %v171
    %v236 = vunpack.c.l.b16 %v172
    %v237 = vunpack.c.l.b16 %v173
    %v238 = vunpack.c.l.b16 %v174
    %v239 = vunpack.c.l.b16 %v175
    %v240 = vunpack.c.l.b16 %v176
    %v241 = vunpack.c.l.b16 %v177
    %v242 = vunpack.c.l.b16 %v178
    %v243 = vunpack.c.l.b16 %v179
    %v244 = vunpack.c.l.b16 %v180
    %v245 = vunpack.c.l.b16 %v181
    %v246 = vunpack.c.l.b16 %v182
    %v247 = vunpack.c.l.b16 %v183
    %v248 = vunpack.c.l.b16 %v184
    %v249 = vunpack.c.l.b16 %v185
    %v250 = vpack.c.b16 %v219, %v218
    %v251 = vpack.c.b16 %v221, %v220
    %v252 = vpack.c.b16 %v223, %v222
    %v253 = vpack.c.b16 %v225, %v224
    %v254 = vpack.c.b16 %v227, %v226
    %v255 = vpack.c.b16 %v229, %v228
    %v256 = vpack.c.b16 %v231, %v230
    %v257 = vpack.c.b16 %v233, %v232
    %v258 = vpack.c.b16 %v235, %v234
    %v259 = vpack.c.b16 %v237, %v236
    %v260 = vpack.c.b16 %v239, %v238
    %v261 = vpack.c.b16 %v241, %v240
    %v262 = vpack.c.b16 %v243, %v242
    %v263 = vpack.c.b16 %v245, %v244
    %v264 = vpack.c.b16 %v247, %v246
    %v265 = vpack.c.b16 %v249, %v248
    %282 = vmatpush.bf16.msra.mxu0 %v257
    %283 = vmatpush.bf16.msra.mxu0 %v256
    %284 = vmatpush.bf16.msra.mxu0 %v255
    %285 = vmatpush.bf16.msra.mxu0 %v254
    %286 = vmatpush.bf16.msra.mxu0 %v253
    %287 = vmatpush.bf16.msra.mxu0 %v252
    %288 = vmatpush.bf16.msra.mxu0 %v251
    %289 = vmatpush.bf16.msra.mxu0 %v250
    %290 = vmatmul.bf16.gmra.mxu0 %v118
    %v291 = vpop.f32.mrf.mxu0
    %v292 = vadd.f32 0.0, %v291
    %v293 = vpop.f32.mrf.mxu0
    %v294 = vadd.f32 0.0, %v293
    %295 = vmatmul.bf16.gmra.mxu0 %v120
    %v296 = vpop.f32.mrf.mxu0
    %v297 = vadd.f32 0.0, %v296
    %v298 = vpop.f32.mrf.mxu0
    %v299 = vadd.f32 0.0, %v298
    %300 = vdwg.mxu0
    %301 = vmatpush.bf16.msra.mxu0 %v265
    %302 = vmatpush.bf16.msra.mxu0 %v264
    %303 = vmatpush.bf16.msra.mxu0 %v263
    %304 = vmatpush.bf16.msra.mxu0 %v262
    %305 = vmatpush.bf16.msra.mxu0 %v261
    %306 = vmatpush.bf16.msra.mxu0 %v260
    %307 = vmatpush.bf16.msra.mxu0 %v259
    %308 = vmatpush.bf16.msra.mxu0 %v258
    %309 = vmatmul.bf16.gmra.mxu0 %v119
    %v310 = vpop.f32.mrf.mxu0
    %v311 = vadd.f32 %v292, %v310
    %v312 = vpop.f32.mrf.mxu0
    %v313 = vadd.f32 %v294, %v312
    %314 = vmatmul.bf16.gmra.mxu0 %v121
    %v315 = vpop.f32.mrf.mxu0
    %v316 = vadd.f32 %v297, %v315
    %v317 = vpop.f32.mrf.mxu0
    %v318 = vadd.f32 %v299, %v317
    %319 = vdwg.mxu0
    %v352 = vunpack.c.l.b16 %v122
    %v353 = vunpack.c.l.b16 %v123
    %v354 = vunpack.c.l.b16 %v124
    %v355 = vunpack.c.l.b16 %v125
    %v356 = vunpack.c.l.b16 %v126
    %v357 = vunpack.c.l.b16 %v127
    %v358 = vunpack.c.l.b16 %v128
    %v359 = vunpack.c.l.b16 %v129
    %v360 = vunpack.c.l.b16 %v130
    %v361 = vunpack.c.l.b16 %v131
    %v362 = vunpack.c.l.b16 %v132
    %v363 = vunpack.c.l.b16 %v133
    %v364 = vunpack.c.l.b16 %v134
    %v365 = vunpack.c.l.b16 %v135
    %v366 = vunpack.c.l.b16 %v136
    %v367 = vunpack.c.l.b16 %v137
    %v368 = vunpack.c.l.b16 %v138
    %v369 = vunpack.c.l.b16 %v139
    %v370 = vunpack.c.l.b16 %v140
    %v371 = vunpack.c.l.b16 %v141
    %v372 = vunpack.c.l.b16 %v142
    %v373 = vunpack.c.l.b16 %v143
    %v374 = vunpack.c.l.b16 %v144
    %v375 = vunpack.c.l.b16 %v145
    %v376 = vunpack.c.l.b16 %v146
    %v377 = vunpack.c.l.b16 %v147
    %v378 = vunpack.c.l.b16 %v148
    %v379 = vunpack.c.l.b16 %v149
    %v380 = vunpack.c.l.b16 %v150
    %v381 = vunpack.c.l.b16 %v151
    %v382 = vunpack.c.l.b16 %v152
    %v383 = vunpack.c.l.b16 %v153
    %v384 = vpack.c.b16 %v353, %v352
    %v385 = vpack.c.b16 %v355, %v354
    %v386 = vpack.c.b16 %v357, %v356
    %v387 = vpack.c.b16 %v359, %v358
    %v388 = vpack.c.b16 %v361, %v360
    %v389 = vpack.c.b16 %v363, %v362
    %v390 = vpack.c.b16 %v365, %v364
    %v391 = vpack.c.b16 %v367, %v366
    %v392 = vpack.c.b16 %v369, %v368
    %v393 = vpack.c.b16 %v371, %v370
    %v394 = vpack.c.b16 %v373, %v372
    %v395 = vpack.c.b16 %v375, %v374
    %v396 = vpack.c.b16 %v377, %v376
    %v397 = vpack.c.b16 %v379, %v378
    %v398 = vpack.c.b16 %v381, %v380
    %v399 = vpack.c.b16 %v383, %v382
    %416 = vmatpush.bf16.msra.mxu0 %v391
    %417 = vmatpush.bf16.msra.mxu0 %v390
    %418 = vmatpush.bf16.msra.mxu0 %v389
    %419 = vmatpush.bf16.msra.mxu0 %v388
    %420 = vmatpush.bf16.msra.mxu0 %v387
    %421 = vmatpush.bf16.msra.mxu0 %v386
    %422 = vmatpush.bf16.msra.mxu0 %v385
    %423 = vmatpush.bf16.msra.mxu0 %v384
    %424 = vmatmul.bf16.gmra.mxu0 %v114
    %v425 = vpop.f32.mrf.mxu0
    %v426 = vadd.f32 %v311, %v425
    %v427 = vpop.f32.mrf.mxu0
    %v428 = vadd.f32 %v313, %v427
    %429 = vmatmul.bf16.gmra.mxu0 %v116
    %v430 = vpop.f32.mrf.mxu0
    %v431 = vadd.f32 %v316, %v430
    %v432 = vpop.f32.mrf.mxu0
    %v433 = vadd.f32 %v318, %v432
    %434 = vdwg.mxu0
    %435 = vmatpush.bf16.msra.mxu0 %v399
    %436 = vmatpush.bf16.msra.mxu0 %v398
    %437 = vmatpush.bf16.msra.mxu0 %v397
    %438 = vmatpush.bf16.msra.mxu0 %v396
    %439 = vmatpush.bf16.msra.mxu0 %v395
    %440 = vmatpush.bf16.msra.mxu0 %v394
    %441 = vmatpush.bf16.msra.mxu0 %v393
    %442 = vmatpush.bf16.msra.mxu0 %v392
    %443 = vmatmul.bf16.gmra.mxu0 %v115
    %v444 = vpop.f32.mrf.mxu0
    %v445 = vadd.f32 %v426, %v444
    %v446 = vpop.f32.mrf.mxu0
    %v447 = vadd.f32 %v428, %v446
    %448 = vmatmul.bf16.gmra.mxu0 %v117
    %v449 = vpop.f32.mrf.mxu0
    %v450 = vadd.f32 %v431, %v449
    %v451 = vpop.f32.mrf.mxu0
    %v452 = vadd.f32 %v433, %v451
    %453 = vdwg.mxu0
    %v454 = vld [vmem:[%s3] sm:$0x1]
    %v456 = vperm.slane %v454, 0
    %v458 = vadd.f32 %v445, %v456
    %v459 = vadd.f32 %v447, %v456
    %v460 = vadd.f32 %v450, %v456
    %v461 = vadd.f32 %v452, %v456
    %v462 = vmul.f32 %v458, %v458
    %v463 = vmul.f32 %v459, %v459
    %v464 = vmul.f32 %v460, %v460
    %v465 = vmul.f32 %v461, %v461
    %v466 = vmul.f32 %v458, %v462
    %v467 = vmul.f32 %v459, %v463
    %v468 = vmul.f32 %v460, %v464
    %v469 = vmul.f32 %v461, %v465
    %v470 = vmul.f32 %v466, 0.044715
    %v471 = vmul.f32 %v467, 0.044715
    %v472 = vmul.f32 %v468, 0.044715
    %v473 = vmul.f32 %v469, 0.044715
    %v474 = vadd.f32 %v458, %v470
    %v475 = vadd.f32 %v459, %v471
    %v476 = vadd.f32 %v460, %v472
    %v477 = vadd.f32 %v461, %v473
    %v478 = vmul.f32 %v474, 0.7978846
    %v479 = vmul.f32 %v475, 0.7978846
    %v480 = vmul.f32 %v476, 0.7978846
    %v481 = vmul.f32 %v477, 0.7978846
    %v482 = vtanh.pop %v478
    %v483 = vtanh.pop %v479
    %v484 = vtanh.pop %v480
    %v485 = vtanh.pop %v481
    %v486 = vadd.f32 %v482, 1.0
    %v487 = vadd.f32 %v483, 1.0
    %v488 = vadd.f32 %v484, 1.0
    %v489 = vadd.f32 %v485, 1.0
    %v490 = vmul.f32 %v486, 0.5
    %v491 = vmul.f32 %v487, 0.5
    %v492 = vmul.f32 %v488, 0.5
    %v493 = vmul.f32 %v489, 0.5
    %v494 = vmul.f32 %v458, %v490
    %v495 = vmul.f32 %v459, %v491
    %v496 = vmul.f32 %v460, %v492
    %v497 = vmul.f32 %v461, %v493
    %v498 = vsub.f32 %v98, %v106
    %v499 = vsub.f32 %v99, %v107
    %v500 = vsub.f32 %v100, %v108
    %v501 = vsub.f32 %v101, %v109
    %v502 = vsub.f32 %v102, %v110
    %v503 = vsub.f32 %v103, %v111
    %v504 = vsub.f32 %v104, %v112
    %v505 = vsub.f32 %v105, %v113
    %v506 = vpack.c.bf16 %v500, %v498
    %v507 = vpack.c.bf16 %v501, %v499
    %v508 = vpack.c.bf16 %v504, %v502
    %v509 = vpack.c.bf16 %v505, %v503
    %v510 = vld [vmem:[#allocation4] sm:$0xf]
    %v511 = vld [vmem:[#allocation4 + $0x4] sm:$0xf]
    %v512 = vld [vmem:[#allocation4 + $0x8] sm:$0xf]
    %v513 = vld [vmem:[#allocation4 + $0xc] sm:$0xf]
    %v514 = vld [vmem:[#allocation4 + $0x10] sm:$0xf]
    %v515 = vld [vmem:[#allocation4 + $0x14] sm:$0xf]
    %v516 = vld [vmem:[#allocation4 + $0x18] sm:$0xf]
    %v517 = vld [vmem:[#allocation4 + $0x1c] sm:$0xf]
    %v518 = vld [vmem:[#allocation4 + $0x20] sm:$0xf]
    %v519 = vld [vmem:[#allocation4 + $0x24] sm:$0xf]
    %v520 = vld [vmem:[#allocation4 + $0x28] sm:$0xf]
    %v521 = vld [vmem:[#allocation4 + $0x2c] sm:$0xf]
    %v522 = vld [vmem:[#allocation4 + $0x30] sm:$0xf]
    %v523 = vld [vmem:[#allocation4 + $0x34] sm:$0xf]
    %v524 = vld [vmem:[#allocation4 + $0x38] sm:$0xf]
    %v525 = vld [vmem:[#allocation4 + $0x3c] sm:$0xf]
    %v526 = vld [vmem:[#allocation4 + $0x40] sm:$0xf]
    %v527 = vld [vmem:[#allocation4 + $0x44] sm:$0xf]
    %v528 = vld [vmem:[#allocation4 + $0x48] sm:$0xf]
    %v529 = vld [vmem:[#allocation4 + $0x4c] sm:$0xf]
    %v530 = vld [vmem:[#allocation4 + $0x50] sm:$0xf]
    %v531 = vld [vmem:[#allocation4 + $0x54] sm:$0xf]
    %v532 = vld [vmem:[#allocation4 + $0x58] sm:$0xf]
    %v533 = vld [vmem:[#allocation4 + $0x5c] sm:$0xf]
    %v534 = vld [vmem:[#allocation4 + $0x60] sm:$0xf]
    %v535 = vld [vmem:[#allocation4 + $0x64] sm:$0xf]
    %v536 = vld [vmem:[#allocation4 + $0x68] sm:$0xf]
    %v537 = vld [vmem:[#allocation4 + $0x6c] sm:$0xf]
    %v538 = vld [vmem:[#allocation4 + $0x70] sm:$0xf]
    %v539 = vld [vmem:[#allocation4 + $0x74] sm:$0xf]
    %v540 = vld [vmem:[#allocation4 + $0x78] sm:$0xf]
    %v541 = vld [vmem:[#allocation4 + $0x7c] sm:$0xf]
    %v542 = vld [vmem:[#allocation4 + $0x80] sm:$0xf]
    %v543 = vld [vmem:[#allocation4 + $0x84] sm:$0xf]
    %v544 = vld [vmem:[#allocation4 + $0x88] sm:$0xf]
    %v545 = vld [vmem:[#allocation4 + $0x8c] sm:$0xf]
    %v546 = vld [vmem:[#allocation4 + $0x90] sm:$0xf]
    %v547 = vld [vmem:[#allocation4 + $0x94] sm:$0xf]
    %v548 = vld [vmem:[#allocation4 + $0x98] sm:$0xf]
    %v549 = vld [vmem:[#allocation4 + $0x9c] sm:$0xf]
    %v550 = vld [vmem:[#allocation4 + $0xa0] sm:$0xf]
    %v551 = vld [vmem:[#allocation4 + $0xa4] sm:$0xf]
    %v552 = vld [vmem:[#allocation4 + $0xa8] sm:$0xf]
    %v553 = vld [vmem:[#allocation4 + $0xac] sm:$0xf]
    %v554 = vld [vmem:[#allocation4 + $0xb0] sm:$0xf]
    %v555 = vld [vmem:[#allocation4 + $0xb4] sm:$0xf]
    %v556 = vld [vmem:[#allocation4 + $0xb8] sm:$0xf]
    %v557 = vld [vmem:[#allocation4 + $0xbc] sm:$0xf]
    %v558 = vld [vmem:[#allocation4 + $0xc0] sm:$0xf]
    %v559 = vld [vmem:[#allocation4 + $0xc4] sm:$0xf]
    %v560 = vld [vmem:[#allocation4 + $0xc8] sm:$0xf]
    %v561 = vld [vmem:[#allocation4 + $0xcc] sm:$0xf]
    %v562 = vld [vmem:[#allocation4 + $0xd0] sm:$0xf]
    %v563 = vld [vmem:[#allocation4 + $0xd4] sm:$0xf]
    %v564 = vld [vmem:[#allocation4 + $0xd8] sm:$0xf]
    %v565 = vld [vmem:[#allocation4 + $0xdc] sm:$0xf]
    %v566 = vld [vmem:[#allocation4 + $0xe0] sm:$0xf]
    %v567 = vld [vmem:[#allocation4 + $0xe4] sm:$0xf]
    %v568 = vld [vmem:[#allocation4 + $0xe8] sm:$0xf]
    %v569 = vld [vmem:[#allocation4 + $0xec] sm:$0xf]
    %v570 = vld [vmem:[#allocation4 + $0xf0] sm:$0xf]
    %v571 = vld [vmem:[#allocation4 + $0xf4] sm:$0xf]
    %v572 = vld [vmem:[#allocation4 + $0xf8] sm:$0xf]
    %v573 = vld [vmem:[#allocation4 + $0xfc] sm:$0xf]
    %v606 = vunpack.c.l.b16 %v542
    %v607 = vunpack.c.l.b16 %v543
    %v608 = vunpack.c.l.b16 %v544
    %v609 = vunpack.c.l.b16 %v545
    %v610 = vunpack.c.l.b16 %v546
    %v611 = vunpack.c.l.b16 %v547
    %v612 = vunpack.c.l.b16 %v548
    %v613 = vunpack.c.l.b16 %v549
    %v614 = vunpack.c.l.b16 %v550
    %v615 = vunpack.c.l.b16 %v551
    %v616 = vunpack.c.l.b16 %v552
    %v617 = vunpack.c.l.b16 %v553
    %v618 = vunpack.c.l.b16 %v554
    %v619 = vunpack.c.l.b16 %v555
    %v620 = vunpack.c.l.b16 %v556
    %v621 = vunpack.c.l.b16 %v557
    %v622 = vunpack.c.l.b16 %v558
    %v623 = vunpack.c.l.b16 %v559
    %v624 = vunpack.c.l.b16 %v560
    %v625 = vunpack.c.l.b16 %v561
    %v626 = vunpack.c.l.b16 %v562
    %v627 = vunpack.c.l.b16 %v563
    %v628 = vunpack.c.l.b16 %v564
    %v629 = vunpack.c.l.b16 %v565
    %v630 = vunpack.c.l.b16 %v566
    %v631 = vunpack.c.l.b16 %v567
    %v632 = vunpack.c.l.b16 %v568
    %v633 = vunpack.c.l.b16 %v569
    %v634 = vunpack.c.l.b16 %v570
    %v635 = vunpack.c.l.b16 %v571
    %v636 = vunpack.c.l.b16 %v572
    %v637 = vunpack.c.l.b16 %v573
    %v638 = vpack.c.b16 %v607, %v606
    %v639 = vpack.c.b16 %v609, %v608
    %v640 = vpack.c.b16 %v611, %v610
    %v641 = vpack.c.b16 %v613, %v612
    %v642 = vpack.c.b16 %v615, %v614
    %v643 = vpack.c.b16 %v617, %v616
    %v644 = vpack.c.b16 %v619, %v618
    %v645 = vpack.c.b16 %v621, %v620
    %v646 = vpack.c.b16 %v623, %v622
    %v647 = vpack.c.b16 %v625, %v624
    %v648 = vpack.c.b16 %v627, %v626
    %v649 = vpack.c.b16 %v629, %v628
    %v650 = vpack.c.b16 %v631, %v630
    %v651 = vpack.c.b16 %v633, %v632
    %v652 = vpack.c.b16 %v635, %v634
    %v653 = vpack.c.b16 %v637, %v636
    %670 = vmatpush.bf16.msra.mxu0 %v645
    %671 = vmatpush.bf16.msra.mxu0 %v644
    %672 = vmatpush.bf16.msra.mxu0 %v643
    %673 = vmatpush.bf16.msra.mxu0 %v642
    %674 = vmatpush.bf16.msra.mxu0 %v641
    %675 = vmatpush.bf16.msra.mxu0 %v640
    %676 = vmatpush.bf16.msra.mxu0 %v639
    %677 = vmatpush.bf16.msra.mxu0 %v638
    %678 = vmatmul.bf16.gmra.mxu0 %v506
    %v679 = vpop.f32.mrf.mxu0
    %v680 = vadd.f32 0.0, %v679
    %v681 = vpop.f32.mrf.mxu0
    %v682 = vadd.f32 0.0, %v681
    %683 = vmatmul.bf16.gmra.mxu0 %v508
    %v684 = vpop.f32.mrf.mxu0
    %v685 = vadd.f32 0.0, %v684
    %v686 = vpop.f32.mrf.mxu0
    %v687 = vadd.f32 0.0, %v686
    %688 = vdwg.mxu0
    %689 = vmatpush.bf16.msra.mxu0 %v653
    %690 = vmatpush.bf16.msra.mxu0 %v652
    %691 = vmatpush.bf16.msra.mxu0 %v651
    %692 = vmatpush.bf16.msra.mxu0 %v650
    %693 = vmatpush.bf16.msra.mxu0 %v649
    %694 = vmatpush.bf16.msra.mxu0 %v648
    %695 = vmatpush.bf16.msra.mxu0 %v647
    %696 = vmatpush.bf16.msra.mxu0 %v646
    %697 = vmatmul.bf16.gmra.mxu0 %v507
    %v698 = vpop.f32.mrf.mxu0
    %v699 = vadd.f32 %v680, %v698
    %v700 = vpop.f32.mrf.mxu0
    %v701 = vadd.f32 %v682, %v700
    %702 = vmatmul.bf16.gmra.mxu0 %v509
    %v703 = vpop.f32.mrf.mxu0
    %v704 = vadd.f32 %v685, %v703
    %v705 = vpop.f32.mrf.mxu0
    %v706 = vadd.f32 %v687, %v705
    %707 = vdwg.mxu0
    %v740 = vunpack.c.l.b16 %v510
    %v741 = vunpack.c.l.b16 %v511
    %v742 = vunpack.c.l.b16 %v512
    %v743 = vunpack.c.l.b16 %v513
    %v744 = vunpack.c.l.b16 %v514
    %v745 = vunpack.c.l.b16 %v515
    %v746 = vunpack.c.l.b16 %v516
    %v747 = vunpack.c.l.b16 %v517
    %v748 = vunpack.c.l.b16 %v518
    %v749 = vunpack.c.l.b16 %v519
    %v750 = vunpack.c.l.b16 %v520
    %v751 = vunpack.c.l.b16 %v521
    %v752 = vunpack.c.l.b16 %v522
    %v753 = vunpack.c.l.b16 %v523
    %v754 = vunpack.c.l.b16 %v524
    %v755 = vunpack.c.l.b16 %v525
    %v756 = vunpack.c.l.b16 %v526
    %v757 = vunpack.c.l.b16 %v527
    %v758 = vunpack.c.l.b16 %v528
    %v759 = vunpack.c.l.b16 %v529
    %v760 = vunpack.c.l.b16 %v530
    %v761 = vunpack.c.l.b16 %v531
    %v762 = vunpack.c.l.b16 %v532
    %v763 = vunpack.c.l.b16 %v533
    %v764 = vunpack.c.l.b16 %v534
    %v765 = vunpack.c.l.b16 %v535
    %v766 = vunpack.c.l.b16 %v536
    %v767 = vunpack.c.l.b16 %v537
    %v768 = vunpack.c.l.b16 %v538
    %v769 = vunpack.c.l.b16 %v539
    %v770 = vunpack.c.l.b16 %v540
    %v771 = vunpack.c.l.b16 %v541
    %v772 = vpack.c.b16 %v741, %v740
    %v773 = vpack.c.b16 %v743, %v742
    %v774 = vpack.c.b16 %v745, %v744
    %v775 = vpack.c.b16 %v747, %v746
    %v776 = vpack.c.b16 %v749, %v748
    %v777 = vpack.c.b16 %v751, %v750
    %v778 = vpack.c.b16 %v753, %v752
    %v779 = vpack.c.b16 %v755, %v754
    %v780 = vpack.c.b16 %v757, %v756
    %v781 = vpack.c.b16 %v759, %v758
    %v782 = vpack.c.b16 %v761, %v760
    %v783 = vpack.c.b16 %v763, %v762
    %v784 = vpack.c.b16 %v765, %v764
    %v785 = vpack.c.b16 %v767, %v766
    %v786 = vpack.c.b16 %v769, %v768
    %v787 = vpack.c.b16 %v771, %v770
    %804 = vmatpush.bf16.msra.mxu0 %v779
    %805 = vmatpush.bf16.msra.mxu0 %v778
    %806 = vmatpush.bf16.msra.mxu0 %v777
    %807 = vmatpush.bf16.msra.mxu0 %v776
    %808 = vmatpush.bf16.msra.mxu0 %v775
    %809 = vmatpush.bf16.msra.mxu0 %v774
    %810 = vmatpush.bf16.msra.mxu0 %v773
    %811 = vmatpush.bf16.msra.mxu0 %v772
    %812 = vmatmul.bf16.gmra.mxu0 %v114
    %v813 = vpop.f32.mrf.mxu0
    %v814 = vadd.f32 %v699, %v813
    %v815 = vpop.f32.mrf.mxu0
    %v816 = vadd.f32 %v701, %v815
    %817 = vmatmul.bf16.gmra.mxu0 %v116
    %v818 = vpop.f32.mrf.mxu0
    %v819 = vadd.f32 %v704, %v818
    %v820 = vpop.f32.mrf.mxu0
    %v821 = vadd.f32 %v706, %v820
    %822 = vdwg.mxu0
    %823 = vmatpush.bf16.msra.mxu0 %v787
    %824 = vmatpush.bf16.msra.mxu0 %v786
    %825 = vmatpush.bf16.msra.mxu0 %v785
    %826 = vmatpush.bf16.msra.mxu0 %v784
    %827 = vmatpush.bf16.msra.mxu0 %v783
    %828 = vmatpush.bf16.msra.mxu0 %v782
    %829 = vmatpush.bf16.msra.mxu0 %v781
    %830 = vmatpush.bf16.msra.mxu0 %v780
    %831 = vmatmul.bf16.gmra.mxu0 %v115
    %v832 = vpop.f32.mrf.mxu0
    %v833 = vadd.f32 %v814, %v832
    %v834 = vpop.f32.mrf.mxu0
    %v835 = vadd.f32 %v816, %v834
    %836 = vmatmul.bf16.gmra.mxu0 %v117
    %v837 = vpop.f32.mrf.mxu0
    %v838 = vadd.f32 %v819, %v837
    %v839 = vpop.f32.mrf.mxu0
    %v840 = vadd.f32 %v821, %v839
    %841 = vdwg.mxu0
    %v842 = vld [vmem:[%s5] sm:$0x1]
    %v844 = vperm.slane %v842, 0
    %v846 = vadd.f32 %v833, %v844
    %v847 = vadd.f32 %v835, %v844
    %v848 = vadd.f32 %v838, %v844
    %v849 = vadd.f32 %v840, %v844
    %v850 = vmul.f32 %v846, %v846
    %v851 = vmul.f32 %v847, %v847
    %v852 = vmul.f32 %v848, %v848
    %v853 = vmul.f32 %v849, %v849
    %v854 = vmul.f32 %v846, %v850
    %v855 = vmul.f32 %v847, %v851
    %v856 = vmul.f32 %v848, %v852
    %v857 = vmul.f32 %v849, %v853
    %v858 = vmul.f32 %v854, 0.044715
    %v859 = vmul.f32 %v855, 0.044715
    %v860 = vmul.f32 %v856, 0.044715
    %v861 = vmul.f32 %v857, 0.044715
    %v862 = vadd.f32 %v846, %v858
    %v863 = vadd.f32 %v847, %v859
    %v864 = vadd.f32 %v848, %v860
    %v865 = vadd.f32 %v849, %v861
    %v866 = vmul.f32 %v862, 0.7978846
    %v867 = vmul.f32 %v863, 0.7978846
    %v868 = vmul.f32 %v864, 0.7978846
    %v869 = vmul.f32 %v865, 0.7978846
    %v870 = vtanh.pop %v866
    %v871 = vtanh.pop %v867
    %v872 = vtanh.pop %v868
    %v873 = vtanh.pop %v869
    %v874 = vadd.f32 %v870, 1.0
    %v875 = vadd.f32 %v871, 1.0
    %v876 = vadd.f32 %v872, 1.0
    %v877 = vadd.f32 %v873, 1.0
    %v878 = vmul.f32 %v874, 0.5
    %v879 = vmul.f32 %v875, 0.5
    %v880 = vmul.f32 %v876, 0.5
    %v881 = vmul.f32 %v877, 0.5
    %v882 = vmul.f32 %v846, %v878
    %v883 = vmul.f32 %v847, %v879
    %v884 = vmul.f32 %v848, %v880
    %v885 = vmul.f32 %v849, %v881
    %v886 = vmul.f32 %v98, %v106
    %v887 = vmul.f32 %v99, %v107
    %v888 = vmul.f32 %v100, %v108
    %v889 = vmul.f32 %v101, %v109
    %v890 = vmul.f32 %v102, %v110
    %v891 = vmul.f32 %v103, %v111
    %v892 = vmul.f32 %v104, %v112
    %v893 = vmul.f32 %v105, %v113
    %v894 = vpack.c.bf16 %v888, %v886
    %v895 = vpack.c.bf16 %v889, %v887
    %v896 = vpack.c.bf16 %v892, %v890
    %v897 = vpack.c.bf16 %v893, %v891
    %v898 = vld [vmem:[#allocation6] sm:$0xf]
    %v899 = vld [vmem:[#allocation6 + $0x4] sm:$0xf]
    %v900 = vld [vmem:[#allocation6 + $0x8] sm:$0xf]
    %v901 = vld [vmem:[#allocation6 + $0xc] sm:$0xf]
    %v902 = vld [vmem:[#allocation6 + $0x10] sm:$0xf]
    %v903 = vld [vmem:[#allocation6 + $0x14] sm:$0xf]
    %v904 = vld [vmem:[#allocation6 + $0x18] sm:$0xf]
    %v905 = vld [vmem:[#allocation6 + $0x1c] sm:$0xf]
    %v906 = vld [vmem:[#allocation6 + $0x20] sm:$0xf]
    %v907 = vld [vmem:[#allocation6 + $0x24] sm:$0xf]
    %v908 = vld [vmem:[#allocation6 + $0x28] sm:$0xf]
    %v909 = vld [vmem:[#allocation6 + $0x2c] sm:$0xf]
    %v910 = vld [vmem:[#allocation6 + $0x30] sm:$0xf]
    %v911 = vld [vmem:[#allocation6 + $0x34] sm:$0xf]
    %v912 = vld [vmem:[#allocation6 + $0x38] sm:$0xf]
    %v913 = vld [vmem:[#allocation6 + $0x3c] sm:$0xf]
    %v914 = vld [vmem:[#allocation6 + $0x40] sm:$0xf]
    %v915 = vld [vmem:[#allocation6 + $0x44] sm:$0xf]
    %v916 = vld [vmem:[#allocation6 + $0x48] sm:$0xf]
    %v917 = vld [vmem:[#allocation6 + $0x4c] sm:$0xf]
    %v918 = vld [vmem:[#allocation6 + $0x50] sm:$0xf]
    %v919 = vld [vmem:[#allocation6 + $0x54] sm:$0xf]
    %v920 = vld [vmem:[#allocation6 + $0x58] sm:$0xf]
    %v921 = vld [vmem:[#allocation6 + $0x5c] sm:$0xf]
    %v922 = vld [vmem:[#allocation6 + $0x60] sm:$0xf]
    %v923 = vld [vmem:[#allocation6 + $0x64] sm:$0xf]
    %v924 = vld [vmem:[#allocation6 + $0x68] sm:$0xf]
    %v925 = vld [vmem:[#allocation6 + $0x6c] sm:$0xf]
    %v926 = vld [vmem:[#allocation6 + $0x70] sm:$0xf]
    %v927 = vld [vmem:[#allocation6 + $0x74] sm:$0xf]
    %v928 = vld [vmem:[#allocation6 + $0x78] sm:$0xf]
    %v929 = vld [vmem:[#allocation6 + $0x7c] sm:$0xf]
    %v930 = vld [vmem:[#allocation6 + $0x80] sm:$0xf]
    %v931 = vld [vmem:[#allocation6 + $0x84] sm:$0xf]
    %v932 = vld [vmem:[#allocation6 + $0x88] sm:$0xf]
    %v933 = vld [vmem:[#allocation6 + $0x8c] sm:$0xf]
    %v934 = vld [vmem:[#allocation6 + $0x90] sm:$0xf]
    %v935 = vld [vmem:[#allocation6 + $0x94] sm:$0xf]
    %v936 = vld [vmem:[#allocation6 + $0x98] sm:$0xf]
    %v937 = vld [vmem:[#allocation6 + $0x9c] sm:$0xf]
    %v938 = vld [vmem:[#allocation6 + $0xa0] sm:$0xf]
    %v939 = vld [vmem:[#allocation6 + $0xa4] sm:$0xf]
    %v940 = vld [vmem:[#allocation6 + $0xa8] sm:$0xf]
    %v941 = vld [vmem:[#allocation6 + $0xac] sm:$0xf]
    %v942 = vld [vmem:[#allocation6 + $0xb0] sm:$0xf]
    %v943 = vld [vmem:[#allocation6 + $0xb4] sm:$0xf]
    %v944 = vld [vmem:[#allocation6 + $0xb8] sm:$0xf]
    %v945 = vld [vmem:[#allocation6 + $0xbc] sm:$0xf]
    %v946 = vld [vmem:[#allocation6 + $0xc0] sm:$0xf]
    %v947 = vld [vmem:[#allocation6 + $0xc4] sm:$0xf]
    %v948 = vld [vmem:[#allocation6 + $0xc8] sm:$0xf]
    %v949 = vld [vmem:[#allocation6 + $0xcc] sm:$0xf]
    %v950 = vld [vmem:[#allocation6 + $0xd0] sm:$0xf]
    %v951 = vld [vmem:[#allocation6 + $0xd4] sm:$0xf]
    %v952 = vld [vmem:[#allocation6 + $0xd8] sm:$0xf]
    %v953 = vld [vmem:[#allocation6 + $0xdc] sm:$0xf]
    %v954 = vld [vmem:[#allocation6 + $0xe0] sm:$0xf]
    %v955 = vld [vmem:[#allocation6 + $0xe4] sm:$0xf]
    %v956 = vld [vmem:[#allocation6 + $0xe8] sm:$0xf]
    %v957 = vld [vmem:[#allocation6 + $0xec] sm:$0xf]
    %v958 = vld [vmem:[#allocation6 + $0xf0] sm:$0xf]
    %v959 = vld [vmem:[#allocation6 + $0xf4] sm:$0xf]
    %v960 = vld [vmem:[#allocation6 + $0xf8] sm:$0xf]
    %v961 = vld [vmem:[#allocation6 + $0xfc] sm:$0xf]
    %v994 = vunpack.c.l.b16 %v930
    %v995 = vunpack.c.l.b16 %v931
    %v996 = vunpack.c.l.b16 %v932
    %v997 = vunpack.c.l.b16 %v933
    %v998 = vunpack.c.l.b16 %v934
    %v999 = vunpack.c.l.b16 %v935
    %v1000 = vunpack.c.l.b16 %v936
    %v1001 = vunpack.c.l.b16 %v937
    %v1002 = vunpack.c.l.b16 %v938
    %v1003 = vunpack.c.l.b16 %v939
    %v1004 = vunpack.c.l.b16 %v940
    %v1005 = vunpack.c.l.b16 %v941
    %v1006 = vunpack.c.l.b16 %v942
    %v1007 = vunpack.c.l.b16 %v943
    %v1008 = vunpack.c.l.b16 %v944
    %v1009 = vunpack.c.l.b16 %v945
    %v1010 = vunpack.c.l.b16 %v946
    %v1011 = vunpack.c.l.b16 %v947
    %v1012 = vunpack.c.l.b16 %v948
    %v1013 = vunpack.c.l.b16 %v949
    %v1014 = vunpack.c.l.b16 %v950
    %v1015 = vunpack.c.l.b16 %v951
    %v1016 = vunpack.c.l.b16 %v952
    %v1017 = vunpack.c.l.b16 %v953
    %v1018 = vunpack.c.l.b16 %v954
    %v1019 = vunpack.c.l.b16 %v955
    %v1020 = vunpack.c.l.b16 %v956
    %v1021 = vunpack.c.l.b16 %v957
    %v1022 = vunpack.c.l.b16 %v958
    %v1023 = vunpack.c.l.b16 %v959
    %v1024 = vunpack.c.l.b16 %v960
    %v1025 = vunpack.c.l.b16 %v961
    %v1026 = vpack.c.b16 %v995, %v994
    %v1027 = vpack.c.b16 %v997, %v996
    %v1028 = vpack.c.b16 %v999, %v998
    %v1029 = vpack.c.b16 %v1001, %v1000
    %v1030 = vpack.c.b16 %v1003, %v1002
    %v1031 = vpack.c.b16 %v1005, %v1004
    %v1032 = vpack.c.b16 %v1007, %v1006
    %v1033 = vpack.c.b16 %v1009, %v1008
    %v1034 = vpack.c.b16 %v1011, %v1010
    %v1035 = vpack.c.b16 %v1013, %v1012
    %v1036 = vpack.c.b16 %v1015, %v1014
    %v1037 = vpack.c.b16 %v1017, %v1016
    %v1038 = vpack.c.b16 %v1019, %v1018
    %v1039 = vpack.c.b16 %v1021, %v1020
    %v1040 = vpack.c.b16 %v1023, %v1022
    %v1041 = vpack.c.b16 %v1025, %v1024
    %1058 = vmatpush.bf16.msra.mxu0 %v1033
    %1059 = vmatpush.bf16.msra.mxu0 %v1032
    %1060 = vmatpush.bf16.msra.mxu0 %v1031
    %1061 = vmatpush.bf16.msra.mxu0 %v1030
    %1062 = vmatpush.bf16.msra.mxu0 %v1029
    %1063 = vmatpush.bf16.msra.mxu0 %v1028
    %1064 = vmatpush.bf16.msra.mxu0 %v1027
    %1065 = vmatpush.bf16.msra.mxu0 %v1026
    %1066 = vmatmul.bf16.gmra.mxu0 %v894
    %v1067 = vpop.f32.mrf.mxu0
    %v1068 = vadd.f32 0.0, %v1067
    %v1069 = vpop.f32.mrf.mxu0
    %v1070 = vadd.f32 0.0, %v1069
    %1071 = vmatmul.bf16.gmra.mxu0 %v896
    %v1072 = vpop.f32.mrf.mxu0
    %v1073 = vadd.f32 0.0, %v1072
    %v1074 = vpop.f32.mrf.mxu0
    %v1075 = vadd.f32 0.0, %v1074
    %1076 = vdwg.mxu0
    %1077 = vmatpush.bf16.msra.mxu0 %v1041
    %1078 = vmatpush.bf16.msra.mxu0 %v1040
    %1079 = vmatpush.bf16.msra.mxu0 %v1039
    %1080 = vmatpush.bf16.msra.mxu0 %v1038
    %1081 = vmatpush.bf16.msra.mxu0 %v1037
    %1082 = vmatpush.bf16.msra.mxu0 %v1036
    %1083 = vmatpush.bf16.msra.mxu0 %v1035
    %1084 = vmatpush.bf16.msra.mxu0 %v1034
    %1085 = vmatmul.bf16.gmra.mxu0 %v895
    %v1086 = vpop.f32.mrf.mxu0
    %v1087 = vadd.f32 %v1068, %v1086
    %v1088 = vpop.f32.mrf.mxu0
    %v1089 = vadd.f32 %v1070, %v1088
    %1090 = vmatmul.bf16.gmra.mxu0 %v897
    %v1091 = vpop.f32.mrf.mxu0
    %v1092 = vadd.f32 %v1073, %v1091
    %v1093 = vpop.f32.mrf.mxu0
    %v1094 = vadd.f32 %v1075, %v1093
    %1095 = vdwg.mxu0
    %v1128 = vunpack.c.l.b16 %v898
    %v1129 = vunpack.c.l.b16 %v899
    %v1130 = vunpack.c.l.b16 %v900
    %v1131 = vunpack.c.l.b16 %v901
    %v1132 = vunpack.c.l.b16 %v902
    %v1133 = vunpack.c.l.b16 %v903
    %v1134 = vunpack.c.l.b16 %v904
    %v1135 = vunpack.c.l.b16 %v905
    %v1136 = vunpack.c.l.b16 %v906
    %v1137 = vunpack.c.l.b16 %v907
    %v1138 = vunpack.c.l.b16 %v908
    %v1139 = vunpack.c.l.b16 %v909
    %v1140 = vunpack.c.l.b16 %v910
    %v1141 = vunpack.c.l.b16 %v911
    %v1142 = vunpack.c.l.b16 %v912
    %v1143 = vunpack.c.l.b16 %v913
    %v1144 = vunpack.c.l.b16 %v914
    %v1145 = vunpack.c.l.b16 %v915
    %v1146 = vunpack.c.l.b16 %v916
    %v1147 = vunpack.c.l.b16 %v917
    %v1148 = vunpack.c.l.b16 %v918
    %v1149 = vunpack.c.l.b16 %v919
    %v1150 = vunpack.c.l.b16 %v920
    %v1151 = vunpack.c.l.b16 %v921
    %v1152 = vunpack.c.l.b16 %v922
    %v1153 = vunpack.c.l.b16 %v923
    %v1154 = vunpack.c.l.b16 %v924
    %v1155 = vunpack.c.l.b16 %v925
    %v1156 = vunpack.c.l.b16 %v926
    %v1157 = vunpack.c.l.b16 %v927
    %v1158 = vunpack.c.l.b16 %v928
    %v1159 = vunpack.c.l.b16 %v929
    %v1160 = vpack.c.b16 %v1129, %v1128
    %v1161 = vpack.c.b16 %v1131, %v1130
    %v1162 = vpack.c.b16 %v1133, %v1132
    %v1163 = vpack.c.b16 %v1135, %v1134
    %v1164 = vpack.c.b16 %v1137, %v1136
    %v1165 = vpack.c.b16 %v1139, %v1138
    %v1166 = vpack.c.b16 %v1141, %v1140
    %v1167 = vpack.c.b16 %v1143, %v1142
    %v1168 = vpack.c.b16 %v1145, %v1144
    %v1169 = vpack.c.b16 %v1147, %v1146
    %v1170 = vpack.c.b16 %v1149, %v1148
    %v1171 = vpack.c.b16 %v1151, %v1150
    %v1172 = vpack.c.b16 %v1153, %v1152
    %v1173 = vpack.c.b16 %v1155, %v1154
    %v1174 = vpack.c.b16 %v1157, %v1156
    %v1175 = vpack.c.b16 %v1159, %v1158
    %1192 = vmatpush.bf16.msra.mxu0 %v1167
    %1193 = vmatpush.bf16.msra.mxu0 %v1166
    %1194 = vmatpush.bf16.msra.mxu0 %v1165
    %1195 = vmatpush.bf16.msra.mxu0 %v1164
    %1196 = vmatpush.bf16.msra.mxu0 %v1163
    %1197 = vmatpush.bf16.msra.mxu0 %v1162
    %1198 = vmatpush.bf16.msra.mxu0 %v1161
    %1199 = vmatpush.bf16.msra.mxu0 %v1160
    %1200 = vmatmul.bf16.gmra.mxu0 %v114
    %v1201 = vpop.f32.mrf.mxu0
    %v1202 = vadd.f32 %v1087, %v1201
    %v1203 = vpop.f32.mrf.mxu0
    %v1204 = vadd.f32 %v1089, %v1203
    %1205 = vmatmul.bf16.gmra.mxu0 %v116
    %v1206 = vpop.f32.mrf.mxu0
    %v1207 = vadd.f32 %v1092, %v1206
    %v1208 = vpop.f32.mrf.mxu0
    %v1209 = vadd.f32 %v1094, %v1208
    %1210 = vdwg.mxu0
    %1211 = vmatpush.bf16.msra.mxu0 %v1175
    %1212 = vmatpush.bf16.msra.mxu0 %v1174
    %1213 = vmatpush.bf16.msra.mxu0 %v1173
    %1214 = vmatpush.bf16.msra.mxu0 %v1172
    %1215 = vmatpush.bf16.msra.mxu0 %v1171
    %1216 = vmatpush.bf16.msra.mxu0 %v1170
    %1217 = vmatpush.bf16.msra.mxu0 %v1169
    %1218 = vmatpush.bf16.msra.mxu0 %v1168
    %1219 = vmatmul.bf16.gmra.mxu0 %v115
    %v1220 = vpop.f32.mrf.mxu0
    %v1221 = vadd.f32 %v1202, %v1220
    %v1222 = vpop.f32.mrf.mxu0
    %v1223 = vadd.f32 %v1204, %v1222
    %1224 = vmatmul.bf16.gmra.mxu0 %v117
    %v1225 = vpop.f32.mrf.mxu0
    %v1226 = vadd.f32 %v1207, %v1225
    %v1227 = vpop.f32.mrf.mxu0
    %v1228 = vadd.f32 %v1209, %v1227
    %1229 = vdwg.mxu0
    %v1230 = vld [vmem:[%s7] sm:$0x1]
    %v1232 = vperm.slane %v1230, 0
    %v1234 = vadd.f32 %v1221, %v1232
    %v1235 = vadd.f32 %v1223, %v1232
    %v1236 = vadd.f32 %v1226, %v1232
    %v1237 = vadd.f32 %v1228, %v1232
    %v1238 = vmul.f32 %v1234, %v1234
    %v1239 = vmul.f32 %v1235, %v1235
    %v1240 = vmul.f32 %v1236, %v1236
    %v1241 = vmul.f32 %v1237, %v1237
    %v1242 = vmul.f32 %v1234, %v1238
    %v1243 = vmul.f32 %v1235, %v1239
    %v1244 = vmul.f32 %v1236, %v1240
    %v1245 = vmul.f32 %v1237, %v1241
    %v1246 = vmul.f32 %v1242, 0.044715
    %v1247 = vmul.f32 %v1243, 0.044715
    %v1248 = vmul.f32 %v1244, 0.044715
    %v1249 = vmul.f32 %v1245, 0.044715
    %v1250 = vadd.f32 %v1234, %v1246
    %v1251 = vadd.f32 %v1235, %v1247
    %v1252 = vadd.f32 %v1236, %v1248
    %v1253 = vadd.f32 %v1237, %v1249
    %v1254 = vmul.f32 %v1250, 0.7978846
    %v1255 = vmul.f32 %v1251, 0.7978846
    %v1256 = vmul.f32 %v1252, 0.7978846
    %v1257 = vmul.f32 %v1253, 0.7978846
    %v1258 = vtanh.pop %v1254
    %v1259 = vtanh.pop %v1255
    %v1260 = vtanh.pop %v1256
    %v1261 = vtanh.pop %v1257
    %v1262 = vadd.f32 %v1258, 1.0
    %v1263 = vadd.f32 %v1259, 1.0
    %v1264 = vadd.f32 %v1260, 1.0
    %v1265 = vadd.f32 %v1261, 1.0
    %v1266 = vmul.f32 %v1262, 0.5
    %v1267 = vmul.f32 %v1263, 0.5
    %v1268 = vmul.f32 %v1264, 0.5
    %v1269 = vmul.f32 %v1265, 0.5
    %v1270 = vmul.f32 %v1234, %v1266
    %v1271 = vmul.f32 %v1235, %v1267
    %v1272 = vmul.f32 %v1236, %v1268
    %v1273 = vmul.f32 %v1237, %v1269
    %v1274 = vld [vmem:[#allocation7] sm:$0xf]
    %v1275 = vld [vmem:[#allocation7 + $0x4] sm:$0xf]
    %v1276 = vld [vmem:[#allocation7 + $0x8] sm:$0xf]
    %v1277 = vld [vmem:[#allocation7 + $0xc] sm:$0xf]
    %v1278 = vld [vmem:[#allocation7 + $0x10] sm:$0xf]
    %v1279 = vld [vmem:[#allocation7 + $0x14] sm:$0xf]
    %v1280 = vld [vmem:[#allocation7 + $0x18] sm:$0xf]
    %v1281 = vld [vmem:[#allocation7 + $0x1c] sm:$0xf]
    %v1282 = vld [vmem:[#allocation7 + $0x20] sm:$0xf]
    %v1283 = vld [vmem:[#allocation7 + $0x24] sm:$0xf]
    %v1284 = vld [vmem:[#allocation7 + $0x28] sm:$0xf]
    %v1285 = vld [vmem:[#allocation7 + $0x2c] sm:$0xf]
    %v1286 = vld [vmem:[#allocation7 + $0x30] sm:$0xf]
    %v1287 = vld [vmem:[#allocation7 + $0x34] sm:$0xf]
    %v1288 = vld [vmem:[#allocation7 + $0x38] sm:$0xf]
    %v1289 = vld [vmem:[#allocation7 + $0x3c] sm:$0xf]
    %v1290 = vld [vmem:[#allocation7 + $0x40] sm:$0xf]
    %v1291 = vld [vmem:[#allocation7 + $0x44] sm:$0xf]
    %v1292 = vld [vmem:[#allocation7 + $0x48] sm:$0xf]
    %v1293 = vld [vmem:[#allocation7 + $0x4c] sm:$0xf]
    %v1294 = vld [vmem:[#allocation7 + $0x50] sm:$0xf]
    %v1295 = vld [vmem:[#allocation7 + $0x54] sm:$0xf]
    %v1296 = vld [vmem:[#allocation7 + $0x58] sm:$0xf]
    %v1297 = vld [vmem:[#allocation7 + $0x5c] sm:$0xf]
    %v1298 = vld [vmem:[#allocation7 + $0x60] sm:$0xf]
    %v1299 = vld [vmem:[#allocation7 + $0x64] sm:$0xf]
    %v1300 = vld [vmem:[#allocation7 + $0x68] sm:$0xf]
    %v1301 = vld [vmem:[#allocation7 + $0x6c] sm:$0xf]
    %v1302 = vld [vmem:[#allocation7 + $0x70] sm:$0xf]
    %v1303 = vld [vmem:[#allocation7 + $0x74] sm:$0xf]
    %v1304 = vld [vmem:[#allocation7 + $0x78] sm:$0xf]
    %v1305 = vld [vmem:[#allocation7 + $0x7c] sm:$0xf]
    %v1306 = vld [vmem:[#allocation7 + $0x80] sm:$0xf]
    %v1307 = vld [vmem:[#allocation7 + $0x84] sm:$0xf]
    %v1308 = vld [vmem:[#allocation7 + $0x88] sm:$0xf]
    %v1309 = vld [vmem:[#allocation7 + $0x8c] sm:$0xf]
    %v1310 = vld [vmem:[#allocation7 + $0x90] sm:$0xf]
    %v1311 = vld [vmem:[#allocation7 + $0x94] sm:$0xf]
    %v1312 = vld [vmem:[#allocation7 + $0x98] sm:$0xf]
    %v1313 = vld [vmem:[#allocation7 + $0x9c] sm:$0xf]
    %v1314 = vld [vmem:[#allocation7 + $0xa0] sm:$0xf]
    %v1315 = vld [vmem:[#allocation7 + $0xa4] sm:$0xf]
    %v1316 = vld [vmem:[#allocation7 + $0xa8] sm:$0xf]
    %v1317 = vld [vmem:[#allocation7 + $0xac] sm:$0xf]
    %v1318 = vld [vmem:[#allocation7 + $0xb0] sm:$0xf]
    %v1319 = vld [vmem:[#allocation7 + $0xb4] sm:$0xf]
    %v1320 = vld [vmem:[#allocation7 + $0xb8] sm:$0xf]
    %v1321 = vld [vmem:[#allocation7 + $0xbc] sm:$0xf]
    %v1322 = vpack.c.bf16 %v495, %v494
    %v1323 = vpack.c.bf16 %v497, %v496
    %v1324 = vpack.c.bf16 %v883, %v882
    %v1325 = vpack.c.bf16 %v885, %v884
    %v1342 = vunpack.c.l.b16 %v1290
    %v1343 = vunpack.c.l.b16 %v1291
    %v1344 = vunpack.c.l.b16 %v1292
    %v1345 = vunpack.c.l.b16 %v1293
    %v1346 = vunpack.c.l.b16 %v1294
    %v1347 = vunpack.c.l.b16 %v1295
    %v1348 = vunpack.c.l.b16 %v1296
    %v1349 = vunpack.c.l.b16 %v1297
    %v1350 = vunpack.c.l.b16 %v1298
    %v1351 = vunpack.c.l.b16 %v1299
    %v1352 = vunpack.c.l.b16 %v1300
    %v1353 = vunpack.c.l.b16 %v1301
    %v1354 = vunpack.c.l.b16 %v1302
    %v1355 = vunpack.c.l.b16 %v1303
    %v1356 = vunpack.c.l.b16 %v1304
    %v1357 = vunpack.c.l.b16 %v1305
    %v1358 = vpack.c.b16 %v1343, %v1342
    %v1359 = vpack.c.b16 %v1345, %v1344
    %v1360 = vpack.c.b16 %v1347, %v1346
    %v1361 = vpack.c.b16 %v1349, %v1348
    %v1362 = vpack.c.b16 %v1351, %v1350
    %v1363 = vpack.c.b16 %v1353, %v1352
    %v1364 = vpack.c.b16 %v1355, %v1354
    %v1365 = vpack.c.b16 %v1357, %v1356
    %1374 = vmatpush.bf16.msra.mxu0 %v1365
    %1375 = vmatpush.bf16.msra.mxu0 %v1364
    %1376 = vmatpush.bf16.msra.mxu0 %v1363
    %1377 = vmatpush.bf16.msra.mxu0 %v1362
    %1378 = vmatpush.bf16.msra.mxu0 %v1361
    %1379 = vmatpush.bf16.msra.mxu0 %v1360
    %1380 = vmatpush.bf16.msra.mxu0 %v1359
    %1381 = vmatpush.bf16.msra.mxu0 %v1358
    %1382 = vmatmul.bf16.gmra.mxu0 %v1324
    %v1383 = vpop.f32.mrf.mxu0
    %v1384 = vadd.f32 0.0, %v1383
    %v1385 = vpop.f32.mrf.mxu0
    %v1386 = vadd.f32 0.0, %v1385
    %1387 = vmatmul.bf16.gmra.mxu0 %v1325
    %v1388 = vpop.f32.mrf.mxu0
    %v1389 = vadd.f32 0.0, %v1388
    %v1390 = vpop.f32.mrf.mxu0
    %v1391 = vadd.f32 0.0, %v1390
    %1392 = vdwg.mxu0
    %v1409 = vunpack.c.l.b16 %v1274
    %v1410 = vunpack.c.l.b16 %v1275
    %v1411 = vunpack.c.l.b16 %v1276
    %v1412 = vunpack.c.l.b16 %v1277
    %v1413 = vunpack.c.l.b16 %v1278
    %v1414 = vunpack.c.l.b16 %v1279
    %v1415 = vunpack.c.l.b16 %v1280
    %v1416 = vunpack.c.l.b16 %v1281
    %v1417 = vunpack.c.l.b16 %v1282
    %v1418 = vunpack.c.l.b16 %v1283
    %v1419 = vunpack.c.l.b16 %v1284
    %v1420 = vunpack.c.l.b16 %v1285
    %v1421 = vunpack.c.l.b16 %v1286
    %v1422 = vunpack.c.l.b16 %v1287
    %v1423 = vunpack.c.l.b16 %v1288
    %v1424 = vunpack.c.l.b16 %v1289
    %v1425 = vpack.c.b16 %v1410, %v1409
    %v1426 = vpack.c.b16 %v1412, %v1411
    %v1427 = vpack.c.b16 %v1414, %v1413
    %v1428 = vpack.c.b16 %v1416, %v1415
    %v1429 = vpack.c.b16 %v1418, %v1417
    %v1430 = vpack.c.b16 %v1420, %v1419
    %v1431 = vpack.c.b16 %v1422, %v1421
    %v1432 = vpack.c.b16 %v1424, %v1423
    %1441 = vmatpush.bf16.msra.mxu0 %v1432
    %1442 = vmatpush.bf16.msra.mxu0 %v1431
    %1443 = vmatpush.bf16.msra.mxu0 %v1430
    %1444 = vmatpush.bf16.msra.mxu0 %v1429
    %1445 = vmatpush.bf16.msra.mxu0 %v1428
    %1446 = vmatpush.bf16.msra.mxu0 %v1427
    %1447 = vmatpush.bf16.msra.mxu0 %v1426
    %1448 = vmatpush.bf16.msra.mxu0 %v1425
    %1449 = vmatmul.bf16.gmra.mxu0 %v1322
    %v1450 = vpop.f32.mrf.mxu0
    %v1451 = vadd.f32 %v1384, %v1450
    %v1452 = vpop.f32.mrf.mxu0
    %v1453 = vadd.f32 %v1386, %v1452
    %1454 = vmatmul.bf16.gmra.mxu0 %v1323
    %v1455 = vpop.f32.mrf.mxu0
    %v1456 = vadd.f32 %v1389, %v1455
    %v1457 = vpop.f32.mrf.mxu0
    %v1458 = vadd.f32 %v1391, %v1457
    %1459 = vdwg.mxu0
    %v1460 = vpack.c.bf16 %v1271, %v1270
    %v1461 = vpack.c.bf16 %v1273, %v1272
    %v1478 = vunpack.c.l.b16 %v1306
    %v1479 = vunpack.c.l.b16 %v1307
    %v1480 = vunpack.c.l.b16 %v1308
    %v1481 = vunpack.c.l.b16 %v1309
    %v1482 = vunpack.c.l.b16 %v1310
    %v1483 = vunpack.c.l.b16 %v1311
    %v1484 = vunpack.c.l.b16 %v1312
    %v1485 = vunpack.c.l.b16 %v1313
    %v1486 = vunpack.c.l.b16 %v1314
    %v1487 = vunpack.c.l.b16 %v1315
    %v1488 = vunpack.c.l.b16 %v1316
    %v1489 = vunpack.c.l.b16 %v1317
    %v1490 = vunpack.c.l.b16 %v1318
    %v1491 = vunpack.c.l.b16 %v1319
    %v1492 = vunpack.c.l.b16 %v1320
    %v1493 = vunpack.c.l.b16 %v1321
    %v1494 = vpack.c.b16 %v1479, %v1478
    %v1495 = vpack.c.b16 %v1481, %v1480
    %v1496 = vpack.c.b16 %v1483, %v1482
    %v1497 = vpack.c.b16 %v1485, %v1484
    %v1498 = vpack.c.b16 %v1487, %v1486
    %v1499 = vpack.c.b16 %v1489, %v1488
    %v1500 = vpack.c.b16 %v1491, %v1490
    %v1501 = vpack.c.b16 %v1493, %v1492
    %1510 = vmatpush.bf16.msra.mxu0 %v1501
    %1511 = vmatpush.bf16.msra.mxu0 %v1500
    %1512 = vmatpush.bf16.msra.mxu0 %v1499
    %1513 = vmatpush.bf16.msra.mxu0 %v1498
    %1514 = vmatpush.bf16.msra.mxu0 %v1497
    %1515 = vmatpush.bf16.msra.mxu0 %v1496
    %1516 = vmatpush.bf16.msra.mxu0 %v1495
    %1517 = vmatpush.bf16.msra.mxu0 %v1494
    %1518 = vmatmul.bf16.gmra.mxu0 %v1460
    %v1519 = vpop.f32.mrf.mxu0
    %v1520 = vadd.f32 0.0, %v1519
    %v1521 = vpop.f32.mrf.mxu0
    %v1522 = vadd.f32 0.0, %v1521
    %1523 = vmatmul.bf16.gmra.mxu0 %v1461
    %v1524 = vpop.f32.mrf.mxu0
    %v1525 = vadd.f32 0.0, %v1524
    %v1526 = vpop.f32.mrf.mxu0
    %v1527 = vadd.f32 0.0, %v1526
    %1528 = vdwg.mxu0
    %v1529 = vadd.f32 %v1451, %v1520
    %v1530 = vadd.f32 %v1453, %v1522
    %v1531 = vadd.f32 %v1456, %v1525
    %v1532 = vadd.f32 %v1458, %v1527
    %v1533 = vld [vmem:[%s9] sm:$0x1]
    %v1535 = vperm.slane %v1533, 0
    %v1537 = vadd.f32 %v1529, %v1535
    %v1538 = vadd.f32 %v1530, %v1535
    %v1539 = vadd.f32 %v1531, %v1535
    %v1540 = vadd.f32 %v1532, %v1535
    %v1541 = vmul.f32 %v1537, %v1537
    %v1542 = vmul.f32 %v1538, %v1538
    %v1543 = vmul.f32 %v1539, %v1539
    %v1544 = vmul.f32 %v1540, %v1540
    %v1545 = vmul.f32 %v1537, %v1541
    %v1546 = vmul.f32 %v1538, %v1542
    %v1547 = vmul.f32 %v1539, %v1543
    %v1548 = vmul.f32 %v1540, %v1544
    %v1549 = vmul.f32 %v1545, 0.044715
    %v1550 = vmul.f32 %v1546, 0.044715
    %v1551 = vmul.f32 %v1547, 0.044715
    %v1552 = vmul.f32 %v1548, 0.044715
    %v1553 = vadd.f32 %v1537, %v1549
    %v1554 = vadd.f32 %v1538, %v1550
    %v1555 = vadd.f32 %v1539, %v1551
    %v1556 = vadd.f32 %v1540, %v1552
    %v1557 = vmul.f32 %v1553, 0.7978846
    %v1558 = vmul.f32 %v1554, 0.7978846
    %v1559 = vmul.f32 %v1555, 0.7978846
    %v1560 = vmul.f32 %v1556, 0.7978846
    %v1561 = vtanh.pop %v1557
    %v1562 = vtanh.pop %v1558
    %v1563 = vtanh.pop %v1559
    %v1564 = vtanh.pop %v1560
    %v1565 = vadd.f32 %v1561, 1.0
    %v1566 = vadd.f32 %v1562, 1.0
    %v1567 = vadd.f32 %v1563, 1.0
    %v1568 = vadd.f32 %v1564, 1.0
    %v1569 = vmul.f32 %v1565, 0.5
    %v1570 = vmul.f32 %v1566, 0.5
    %v1571 = vmul.f32 %v1567, 0.5
    %v1572 = vmul.f32 %v1568, 0.5
    %v1573 = vmul.f32 %v1537, %v1569
    %v1574 = vmul.f32 %v1538, %v1570
    %v1575 = vmul.f32 %v1539, %v1571
    %v1576 = vmul.f32 %v1540, %v1572
    %1577 = vst [vmem:[%s10] sm:$0xff] %v1573
    %1578 = vst [vmem:[%s10 + $0x8] sm:$0xff] %v1574
    %1579 = vst [vmem:[%s10 + $0x10] sm:$0xff] %v1575
    %1580 = vst [vmem:[%s10 + $0x18] sm:$0xff] %v1576
    // Predicated region
    $region58: #{re2_forward.12} parent=1 // pred_check
      _
    $region59: #{re2_forward.12} parent=1 // pred_check_branch
      %1582 = sbr.rel (0) target = $region61
    $region60: #{re2_forward.12} parent=1 // pred_region
      _
    $region61: #{re2_forward.12} parent=1 // pred_fallthru
      _
    // Predicated region
    $region62: #{re2_forward.12} parent=1 // pred_check
      _
    $region63: #{re2_forward.12} parent=1 // pred_check_branch
      %1584 = sbr.rel (0) target = $region65
    $region64: #{re2_forward.12} parent=1 // pred_region
      _
    $region65: #{re2_forward.12} parent=1 // pred_fallthru
      _
    %1585 = vsyncpa [#allocation3], 1
    %1586 = vsyncpa [#allocation5], 1
    %1587 = vsyncpa [#allocation8], 1

// kernel: re2_forward.15
$region0: #{re2_forward.15}
  #allocation0 [shape = 'u32[]', space=smem, size = 0x4, offset = 0x4, fixed_abs, tag = 'smem constant byte address 0x4 - core index']
  #allocation1 [shape = 'u32[72,128]{1,0:T(1,128)}', space=vmem, size = 0x9000, scoped, tag = 'internal scratch']
  %s0 = inlined_call_operand.vmem [shape: f32[2,8,384], index: 0, kind: input, shape index: {}]
  %s1 = inlined_call_operand.vmem [shape: f32[2,8,384], index: 1, kind: input, shape index: {}]
  %s2 = inlined_call_operand.vmem [shape: f32[2,8,1], index: 2, kind: input, shape index: {}]
  %s3 = inlined_call_operand.vmem [shape: f32[2,1,8], index: 3, kind: input, shape index: {}]
  %s4 = inlined_call_operand.vmem [shape: f32[2,8,1], index: 4, kind: input, shape index: {}]
  %s5 = inlined_call_operand.vmem [shape: f32[2,1,8], index: 5, kind: input, shape index: {}]
  %s6 = inlined_call_operand.hbm [shape: bf16[384,128], index: 6, kind: input, shape index: {}]
  %s7 = inlined_call_operand.vmem [shape: f32[1,128], index: 7, kind: input, shape index: {}]
  %s8 = inlined_call_operand.vmem [shape: f32[2,8,384], index: 8, kind: output, shape index: {0}]
  %s9 = inlined_call_operand.vmem [shape: f32[2,8,384], index: 9, kind: output, shape index: {1}]
  %10 = xla_tuple %s8, %s9
  %s11 = sld [smem:[#allocation0]]
  $region54: #{re2_forward.15} parent=0
    _
  %s13 = ssub.s32 1, %s11
  %s14 = scalar_select 0, %s13, %s11
  $region1: #{re2_forward.15} parent=0
    #allocation2 [shape = 'u8[98304]{0}', space=vmem, size = 0x18000, scoped, tag = 'input window, operand 6, single buffered']
    #allocation3 [shape = 's32[1]{0}', space=sflag, size = 0x4, scoped, tag = 'scoped memory for re2_forward.15']
    %15 = vsyncpa [#allocation3], 0
    // Predicated region
    $region2: #{re2_forward.15} parent=1 // pred_check
      _
    $region3: #{re2_forward.15} parent=1 // pred_check_branch
      %17 = sbr.rel (0) target = $region5
    $region4: #{re2_forward.15} parent=1 // pred_region
      _
    $region5: #{re2_forward.15} parent=1 // pred_fallthru
      _
    // Predicated region
    $region6: #{re2_forward.15} parent=1 // pred_check
      _
    $region7: #{re2_forward.15} parent=1 // pred_check_branch
      %19 = sbr.rel (0) target = $region9
    $region8: #{re2_forward.15} parent=1 // pred_region
      _
    $region9: #{re2_forward.15} parent=1 // pred_fallthru
      _
    // Predicated region
    $region10: #{re2_forward.15} parent=1 // pred_check
      _
    $region11: #{re2_forward.15} parent=1 // pred_check_branch
      %21 = sbr.rel (0) target = $region13
    $region12: #{re2_forward.15} parent=1 // pred_region
      _
    $region13: #{re2_forward.15} parent=1 // pred_fallthru
      _
    // Predicated region
    $region14: #{re2_forward.15} parent=1 // pred_check
      _
    $region15: #{re2_forward.15} parent=1 // pred_check_branch
      %23 = sbr.rel (0) target = $region17
    $region16: #{re2_forward.15} parent=1 // pred_region
      _
    $region17: #{re2_forward.15} parent=1 // pred_fallthru
      _
    // Predicated region
    $region18: #{re2_forward.15} parent=1 // pred_check
      _
    $region19: #{re2_forward.15} parent=1 // pred_check_branch
      %25 = sbr.rel (0) target = $region21
    $region20: #{re2_forward.15} parent=1 // pred_region
      _
    $region21: #{re2_forward.15} parent=1 // pred_fallthru
      _
    // Predicated region
    $region22: #{re2_forward.15} parent=1 // pred_check
      _
    $region23: #{re2_forward.15} parent=1 // pred_check_branch
      %27 = sbr.rel (0) target = $region25
    $region24: #{re2_forward.15} parent=1 // pred_region
      _
    $region25: #{re2_forward.15} parent=1 // pred_fallthru
      _
    // Predicated region
    $region26: #{re2_forward.15} parent=1 // pred_check
      _
    $region27: #{re2_forward.15} parent=1 // pred_check_branch
      %29 = sbr.rel (0) target = $region29
    $region28: #{re2_forward.15} parent=1 // pred_region
      %31 = vsyncadd [#allocation3], 0
      %s32 = sshll.u32 %s6, 4
      %s33 = int_to_ptr.hbm [resolvable:$true] %s32
      %s34 = sshll.u32 [#allocation2], 4
      %s35 = int_to_ptr.vmem [resolvable:$true] %s34
      %40 = dma.hbm_to_vmem [thread:$0]  %s33, 3072, %s35, [#allocation3], 64, 64, 4
    $region29: #{re2_forward.15} parent=1 // pred_fallthru
      _
    // Predicated region
    $region30: #{re2_forward.15} parent=1 // pred_check
      _
    $region31: #{re2_forward.15} parent=1 // pred_check_branch
      %42 = sbr.rel (0) target = $region33
    $region32: #{re2_forward.15} parent=1 // pred_region
      _
    $region33: #{re2_forward.15} parent=1 // pred_fallthru
      _
    // Predicated region
    $region34: #{re2_forward.15} parent=1 // pred_check
      _
    $region35: #{re2_forward.15} parent=1 // pred_check_branch
      %44 = sbr.rel (0) target = $region37
    $region36: #{re2_forward.15} parent=1 // pred_region
      %46 = dma.done [#allocation3], 3072
    $region37: #{re2_forward.15} parent=1 // pred_fallthru
      _
    %v48 = vld [vmem:[%s0] sm:$0xff]
    %v49 = vld [vmem:[%s0 + $0x8] sm:$0xff]
    %v50 = vld [vmem:[%s0 + $0x10] sm:$0xff]
    %v51 = vld [vmem:[%s0 + $0x18] sm:$0xff]
    %v52 = vld [vmem:[%s0 + $0x20] sm:$0xff]
    %v53 = vld [vmem:[%s0 + $0x28] sm:$0xff]
    %v54 = vld [vmem:[%s1] sm:$0xff]
    %v55 = vld [vmem:[%s1 + $0x8] sm:$0xff]
    %v56 = vld [vmem:[%s1 + $0x10] sm:$0xff]
    %v57 = vld [vmem:[%s1 + $0x18] sm:$0xff]
    %v58 = vld [vmem:[%s1 + $0x20] sm:$0xff]
    %v59 = vld [vmem:[%s1 + $0x28] sm:$0xff]
    %v60 = vld [vmem:[#allocation2] sm:$0xf]
    %v61 = vld [vmem:[#allocation2 + $0x4] sm:$0xf]
    %v62 = vld [vmem:[#allocation2 + $0x8] sm:$0xf]
    %v63 = vld [vmem:[#allocation2 + $0xc] sm:$0xf]
    %v64 = vld [vmem:[#allocation2 + $0x10] sm:$0xf]
    %v65 = vld [vmem:[#allocation2 + $0x14] sm:$0xf]
    %v66 = vld [vmem:[#allocation2 + $0x18] sm:$0xf]
    %v67 = vld [vmem:[#allocation2 + $0x1c] sm:$0xf]
    %v68 = vld [vmem:[#allocation2 + $0x20] sm:$0xf]
    %v69 = vld [vmem:[#allocation2 + $0x24] sm:$0xf]
    %v70 = vld [vmem:[#allocation2 + $0x28] sm:$0xf]
    %v71 = vld [vmem:[#allocation2 + $0x2c] sm:$0xf]
    %v72 = vld [vmem:[#allocation2 + $0x30] sm:$0xf]
    %v73 = vld [vmem:[#allocation2 + $0x34] sm:$0xf]
    %v74 = vld [vmem:[#allocation2 + $0x38] sm:$0xf]
    %v75 = vld [vmem:[#allocation2 + $0x3c] sm:$0xf]
    %v76 = vld [vmem:[#allocation2 + $0x40] sm:$0xf]
    %v77 = vld [vmem:[#allocation2 + $0x44] sm:$0xf]
    %v78 = vld [vmem:[#allocation2 + $0x48] sm:$0xf]
    %v79 = vld [vmem:[#allocation2 + $0x4c] sm:$0xf]
    %v80 = vld [vmem:[#allocation2 + $0x50] sm:$0xf]
    %v81 = vld [vmem:[#allocation2 + $0x54] sm:$0xf]
    %v82 = vld [vmem:[#allocation2 + $0x58] sm:$0xf]
    %v83 = vld [vmem:[#allocation2 + $0x5c] sm:$0xf]
    %v84 = vld [vmem:[#allocation2 + $0x60] sm:$0xf]
    %v85 = vld [vmem:[#allocation2 + $0x64] sm:$0xf]
    %v86 = vld [vmem:[#allocation2 + $0x68] sm:$0xf]
    %v87 = vld [vmem:[#allocation2 + $0x6c] sm:$0xf]
    %v88 = vld [vmem:[#allocation2 + $0x70] sm:$0xf]
    %v89 = vld [vmem:[#allocation2 + $0x74] sm:$0xf]
    %v90 = vld [vmem:[#allocation2 + $0x78] sm:$0xf]
    %v91 = vld [vmem:[#allocation2 + $0x7c] sm:$0xf]
    %v92 = vld [vmem:[#allocation2 + $0x80] sm:$0xf]
    %v93 = vld [vmem:[#allocation2 + $0x84] sm:$0xf]
    %v94 = vld [vmem:[#allocation2 + $0x88] sm:$0xf]
    %v95 = vld [vmem:[#allocation2 + $0x8c] sm:$0xf]
    %v96 = vld [vmem:[#allocation2 + $0x90] sm:$0xf]
    %v97 = vld [vmem:[#allocation2 + $0x94] sm:$0xf]
    %v98 = vld [vmem:[#allocation2 + $0x98] sm:$0xf]
    %v99 = vld [vmem:[#allocation2 + $0x9c] sm:$0xf]
    %v100 = vld [vmem:[#allocation2 + $0xa0] sm:$0xf]
    %v101 = vld [vmem:[#allocation2 + $0xa4] sm:$0xf]
    %v102 = vld [vmem:[#allocation2 + $0xa8] sm:$0xf]
    %v103 = vld [vmem:[#allocation2 + $0xac] sm:$0xf]
    %v104 = vld [vmem:[#allocation2 + $0xb0] sm:$0xf]
    %v105 = vld [vmem:[#allocation2 + $0xb4] sm:$0xf]
    %v106 = vld [vmem:[#allocation2 + $0xb8] sm:$0xf]
    %v107 = vld [vmem:[#allocation2 + $0xbc] sm:$0xf]
    %v108 = vld [vmem:[%s7] sm:$0x1]
    %v109 = vpack.c.bf16 %v51, %v48
    %v110 = vpack.c.bf16 %v52, %v49
    %v111 = vpack.c.bf16 %v53, %v50
    %v113 = vperm.slane %v108, 0
    %v163 = vunpack.c.l.b16 %v60
    %v164 = vunpack.c.l.b16 %v61
    %v165 = vunpack.c.l.b16 %v62
    %v166 = vunpack.c.l.b16 %v63
    %v167 = vunpack.c.l.b16 %v64
    %v168 = vunpack.c.l.b16 %v65
    %v169 = vunpack.c.l.b16 %v66
    %v170 = vunpack.c.l.b16 %v67
    %v171 = vunpack.c.l.b16 %v68
    %v172 = vunpack.c.l.b16 %v69
    %v173 = vunpack.c.l.b16 %v70
    %v174 = vunpack.c.l.b16 %v71
    %v175 = vunpack.c.l.b16 %v72
    %v176 = vunpack.c.l.b16 %v73
    %v177 = vunpack.c.l.b16 %v74
    %v178 = vunpack.c.l.b16 %v75
    %v179 = vunpack.c.l.b16 %v76
    %v180 = vunpack.c.l.b16 %v77
    %v181 = vunpack.c.l.b16 %v78
    %v182 = vunpack.c.l.b16 %v79
    %v183 = vunpack.c.l.b16 %v80
    %v184 = vunpack.c.l.b16 %v81
    %v185 = vunpack.c.l.b16 %v82
    %v186 = vunpack.c.l.b16 %v83
    %v187 = vunpack.c.l.b16 %v84
    %v188 = vunpack.c.l.b16 %v85
    %v189 = vunpack.c.l.b16 %v86
    %v190 = vunpack.c.l.b16 %v87
    %v191 = vunpack.c.l.b16 %v88
    %v192 = vunpack.c.l.b16 %v89
    %v193 = vunpack.c.l.b16 %v90
    %v194 = vunpack.c.l.b16 %v91
    %v195 = vunpack.c.l.b16 %v92
    %v196 = vunpack.c.l.b16 %v93
    %v197 = vunpack.c.l.b16 %v94
    %v198 = vunpack.c.l.b16 %v95
    %v199 = vunpack.c.l.b16 %v96
    %v200 = vunpack.c.l.b16 %v97
    %v201 = vunpack.c.l.b16 %v98
    %v202 = vunpack.c.l.b16 %v99
    %v203 = vunpack.c.l.b16 %v100
    %v204 = vunpack.c.l.b16 %v101
    %v205 = vunpack.c.l.b16 %v102
    %v206 = vunpack.c.l.b16 %v103
    %v207 = vunpack.c.l.b16 %v104
    %v208 = vunpack.c.l.b16 %v105
    %v209 = vunpack.c.l.b16 %v106
    %v210 = vunpack.c.l.b16 %v107
    %v211 = vpack.c.b16 %v164, %v163
    %v212 = vpack.c.b16 %v166, %v165
    %v213 = vpack.c.b16 %v168, %v167
    %v214 = vpack.c.b16 %v170, %v169
    %v215 = vpack.c.b16 %v172, %v171
    %v216 = vpack.c.b16 %v174, %v173
    %v217 = vpack.c.b16 %v176, %v175
    %v218 = vpack.c.b16 %v178, %v177
    %v219 = vpack.c.b16 %v180, %v179
    %v220 = vpack.c.b16 %v182, %v181
    %v221 = vpack.c.b16 %v184, %v183
    %v222 = vpack.c.b16 %v186, %v185
    %v223 = vpack.c.b16 %v188, %v187
    %v224 = vpack.c.b16 %v190, %v189
    %v225 = vpack.c.b16 %v192, %v191
    %v226 = vpack.c.b16 %v194, %v193
    %v227 = vpack.c.b16 %v196, %v195
    %v228 = vpack.c.b16 %v198, %v197
    %v229 = vpack.c.b16 %v200, %v199
    %v230 = vpack.c.b16 %v202, %v201
    %v231 = vpack.c.b16 %v204, %v203
    %v232 = vpack.c.b16 %v206, %v205
    %v233 = vpack.c.b16 %v208, %v207
    %v234 = vpack.c.b16 %v210, %v209
    %259 = vmatpush.bf16.msra.mxu0 %v218
    %260 = vmatpush.bf16.msra.mxu0 %v217
    %261 = vmatpush.bf16.msra.mxu0 %v216
    %262 = vmatpush.bf16.msra.mxu0 %v215
    %263 = vmatpush.bf16.msra.mxu0 %v214
    %264 = vmatpush.bf16.msra.mxu0 %v213
    %265 = vmatpush.bf16.msra.mxu0 %v212
    %266 = vmatpush.bf16.msra.mxu0 %v211
    %267 = vmatmul.bf16.gmra.mxu0 %v109
    %v268 = vpop.f32.mrf.mxu0
    %v269 = vadd.f32 %v113, %v268
    %v270 = vpop.f32.mrf.mxu0
    %v271 = vadd.f32 %v113, %v270
    %272 = vdwg.mxu0
    %273 = vmatpush.bf16.msra.mxu0 %v226
    %274 = vmatpush.bf16.msra.mxu0 %v225
    %275 = vmatpush.bf16.msra.mxu0 %v224
    %276 = vmatpush.bf16.msra.mxu0 %v223
    %277 = vmatpush.bf16.msra.mxu0 %v222
    %278 = vmatpush.bf16.msra.mxu0 %v221
    %279 = vmatpush.bf16.msra.mxu0 %v220
    %280 = vmatpush.bf16.msra.mxu0 %v219
    %281 = vmatmul.bf16.gmra.mxu0 %v110
    %v282 = vpop.f32.mrf.mxu0
    %v283 = vadd.f32 %v269, %v282
    %v284 = vpop.f32.mrf.mxu0
    %v285 = vadd.f32 %v271, %v284
    %286 = vdwg.mxu0
    %287 = vmatpush.bf16.msra.mxu0 %v234
    %288 = vmatpush.bf16.msra.mxu0 %v233
    %289 = vmatpush.bf16.msra.mxu0 %v232
    %290 = vmatpush.bf16.msra.mxu0 %v231
    %291 = vmatpush.bf16.msra.mxu0 %v230
    %292 = vmatpush.bf16.msra.mxu0 %v229
    %293 = vmatpush.bf16.msra.mxu0 %v228
    %294 = vmatpush.bf16.msra.mxu0 %v227
    %295 = vmatmul.bf16.gmra.mxu0 %v111
    %v296 = vpop.f32.mrf.mxu0
    %v297 = vadd.f32 %v283, %v296
    %v298 = vpop.f32.mrf.mxu0
    %v299 = vadd.f32 %v285, %v298
    %300 = vdwg.mxu0
    %v301 = vmul.f32 %v297, %v297
    %v302 = vmul.f32 %v299, %v299
    %v303 = vmul.f32 %v297, %v301
    %v304 = vmul.f32 %v299, %v302
    %v305 = vmul.f32 %v303, 0.044715
    %v306 = vmul.f32 %v304, 0.044715
    %v307 = vadd.f32 %v297, %v305
    %v308 = vadd.f32 %v299, %v306
    %v309 = vmul.f32 %v307, 0.7978846
    %v310 = vmul.f32 %v308, 0.7978846
    %v311 = vtanh.pop %v309
    %v312 = vtanh.pop %v310
    %v313 = vadd.f32 %v311, 1.0
    %v314 = vadd.f32 %v312, 1.0
    %v315 = vmul.f32 %v313, 0.5
    %v316 = vmul.f32 %v314, 0.5
    %v317 = vmul.f32 %v297, %v315
    %v318 = vmul.f32 %v299, %v316
    %v319 = vpack.c.bf16 %v317, %v317
    %v320 = vpack.c.bf16 %v318, %v318
    %v321 = vpack.c.bf16 %v57, %v54
    %v322 = vpack.c.bf16 %v58, %v55
    %v323 = vpack.c.bf16 %v59, %v56
    %324 = vmatpush.bf16.msra.mxu0 %v218
    %325 = vmatpush.bf16.msra.mxu0 %v217
    %326 = vmatpush.bf16.msra.mxu0 %v216
    %327 = vmatpush.bf16.msra.mxu0 %v215
    %328 = vmatpush.bf16.msra.mxu0 %v214
    %329 = vmatpush.bf16.msra.mxu0 %v213
    %330 = vmatpush.bf16.msra.mxu0 %v212
    %331 = vmatpush.bf16.msra.mxu0 %v211
    %332 = vmatmul.bf16.gmra.mxu0 %v321
    %v333 = vpop.f32.mrf.mxu0
    %v334 = vadd.f32 %v113, %v333
    %v335 = vpop.f32.mrf.mxu0
    %v336 = vadd.f32 %v113, %v335
    %337 = vdwg.mxu0
    %338 = vmatpush.bf16.msra.mxu0 %v226
    %339 = vmatpush.bf16.msra.mxu0 %v225
    %340 = vmatpush.bf16.msra.mxu0 %v224
    %341 = vmatpush.bf16.msra.mxu0 %v223
    %342 = vmatpush.bf16.msra.mxu0 %v222
    %343 = vmatpush.bf16.msra.mxu0 %v221
    %344 = vmatpush.bf16.msra.mxu0 %v220
    %345 = vmatpush.bf16.msra.mxu0 %v219
    %346 = vmatmul.bf16.gmra.mxu0 %v322
    %v347 = vpop.f32.mrf.mxu0
    %v348 = vadd.f32 %v334, %v347
    %v349 = vpop.f32.mrf.mxu0
    %v350 = vadd.f32 %v336, %v349
    %351 = vdwg.mxu0
    %352 = vmatpush.bf16.msra.mxu0 %v234
    %353 = vmatpush.bf16.msra.mxu0 %v233
    %354 = vmatpush.bf16.msra.mxu0 %v232
    %355 = vmatpush.bf16.msra.mxu0 %v231
    %356 = vmatpush.bf16.msra.mxu0 %v230
    %357 = vmatpush.bf16.msra.mxu0 %v229
    %358 = vmatpush.bf16.msra.mxu0 %v228
    %359 = vmatpush.bf16.msra.mxu0 %v227
    %360 = vmatmul.bf16.gmra.mxu0 %v323
    %v361 = vpop.f32.mrf.mxu0
    %v362 = vadd.f32 %v348, %v361
    %v363 = vpop.f32.mrf.mxu0
    %v364 = vadd.f32 %v350, %v363
    %365 = vdwg.mxu0
    %v366 = vmul.f32 %v362, %v362
    %v367 = vmul.f32 %v364, %v364
    %v368 = vmul.f32 %v362, %v366
    %v369 = vmul.f32 %v364, %v367
    %v370 = vmul.f32 %v368, 0.044715
    %v371 = vmul.f32 %v369, 0.044715
    %v372 = vadd.f32 %v362, %v370
    %v373 = vadd.f32 %v364, %v371
    %v374 = vmul.f32 %v372, 0.7978846
    %v375 = vmul.f32 %v373, 0.7978846
    %v376 = vtanh.pop %v374
    %v377 = vtanh.pop %v375
    %v378 = vadd.f32 %v376, 1.0
    %v379 = vadd.f32 %v377, 1.0
    %v380 = vmul.f32 %v378, 0.5
    %v381 = vmul.f32 %v379, 0.5
    %v382 = vmul.f32 %v362, %v380
    %v383 = vmul.f32 %v364, %v381
    %v384 = vpack.c.bf16 %v382, %v382
    %v385 = vpack.c.bf16 %v383, %v383
    %386 = vmatpush.bf16.xpose.msra.mxu0 0
    %387 = vmatpush.bf16.xpose.msra.mxu0 0
    %388 = vmatpush.bf16.xpose.msra.mxu0 0
    %389 = vmatpush.bf16.xpose.msra.mxu0 0
    %390 = vmatpush.bf16.xpose.msra.mxu0 0
    %391 = vmatpush.bf16.xpose.msra.mxu0 0
    %392 = vmatpush.bf16.xpose.msra.mxu0 0
    %393 = vmatpush.bf16.xpose.msra.mxu0 %v384
    %394 = vmatmul.bf16.gmra.mxu0 %v319
    %v395 = vpop.f32.mrf.mxu0
    %v396 = vadd.f32 0.0, %v395
    %v397 = vpop.f32.mrf.mxu0
    %398 = vdwg.mxu0
    %399 = vmatpush.bf16.xpose.msra.mxu0 0
    %400 = vmatpush.bf16.xpose.msra.mxu0 0
    %401 = vmatpush.bf16.xpose.msra.mxu0 0
    %402 = vmatpush.bf16.xpose.msra.mxu0 0
    %403 = vmatpush.bf16.xpose.msra.mxu0 0
    %404 = vmatpush.bf16.xpose.msra.mxu0 0
    %405 = vmatpush.bf16.xpose.msra.mxu0 0
    %406 = vmatpush.bf16.xpose.msra.mxu0 %v385
    %407 = vmatmul.bf16.gmra.mxu0 %v320
    %v408 = vpop.f32.mrf.mxu0
    %v409 = vadd.f32 0.0, %v408
    %v410 = vpop.f32.mrf.mxu0
    %411 = vdwg.mxu0
    %v412 = vmul.f32 %v396, 0.17677669
    %v413 = vmul.f32 %v409, 0.17677669
    %414 = vmatpush.bf16.xpose.msra.mxu0 0
    %415 = vmatpush.bf16.xpose.msra.mxu0 0
    %416 = vmatpush.bf16.xpose.msra.mxu0 0
    %417 = vmatpush.bf16.xpose.msra.mxu0 0
    %418 = vmatpush.bf16.xpose.msra.mxu0 0
    %419 = vmatpush.bf16.xpose.msra.mxu0 0
    %420 = vmatpush.bf16.xpose.msra.mxu0 0
    %421 = vmatpush.bf16.xpose.msra.mxu0 %v319
    %422 = vmatmul.bf16.gmra.mxu0 %v384
    %v423 = vpop.f32.mrf.mxu0
    %v424 = vadd.f32 0.0, %v423
    %v425 = vpop.f32.mrf.mxu0
    %426 = vdwg.mxu0
    %427 = vmatpush.bf16.xpose.msra.mxu0 0
    %428 = vmatpush.bf16.xpose.msra.mxu0 0
    %429 = vmatpush.bf16.xpose.msra.mxu0 0
    %430 = vmatpush.bf16.xpose.msra.mxu0 0
    %431 = vmatpush.bf16.xpose.msra.mxu0 0
    %432 = vmatpush.bf16.xpose.msra.mxu0 0
    %433 = vmatpush.bf16.xpose.msra.mxu0 0
    %434 = vmatpush.bf16.xpose.msra.mxu0 %v320
    %435 = vmatmul.bf16.gmra.mxu0 %v385
    %v436 = vpop.f32.mrf.mxu0
    %v437 = vadd.f32 0.0, %v436
    %v438 = vpop.f32.mrf.mxu0
    %439 = vdwg.mxu0
    %v440 = vmul.f32 %v424, 0.17677669
    %v441 = vmul.f32 %v437, 0.17677669
    %v442 = vld [vmem:[%s2] sm:$0xff]
    %v443 = vld [vmem:[%s2 + $0x8] sm:$0xff]
    %v444 = vld [vmem:[%s5] sm:$0x1]
    %v445 = vld [vmem:[%s5 + $0x1] sm:$0x1]
    %447 = vset.pattern.permute.xlu0 0
    %448 = vperm.xlu0 %447, %v442
    %v449 = vpop.permute.xlu0 %448
    %452 = vset.pattern.permute.xlu0 0
    %453 = vperm.xlu0 %452, %v443
    %v454 = vpop.permute.xlu0 %453
    %v458 = vperm.slane %v444, 0
    %v459 = vperm.slane %v445, 0
    %v462 = vmul.f32 %v449, %v458
    %v463 = vmul.f32 %v454, %v459
    %vm464 = vcmp.gt.f32.partialorder %v462, 0.0
    %vm465 = vcmp.gt.f32.partialorder %v463, 0.0
    %v466 = vsel %vm464, %v412, -10000000.0
    %v467 = vsel %vm465, %v413, -10000000.0
    %v468 = vld [vmem:[%s4] sm:$0xff]
    %v469 = vld [vmem:[%s4 + $0x8] sm:$0xff]
    %v470 = vld [vmem:[%s3] sm:$0x1]
    %v471 = vld [vmem:[%s3 + $0x1] sm:$0x1]
    %473 = vset.pattern.permute.xlu0 0
    %474 = vperm.xlu0 %473, %v468
    %v475 = vpop.permute.xlu0 %474
    %478 = vset.pattern.permute.xlu0 0
    %479 = vperm.xlu0 %478, %v469
    %v480 = vpop.permute.xlu0 %479
    %v484 = vperm.slane %v470, 0
    %v485 = vperm.slane %v471, 0
    %v488 = vmul.f32 %v475, %v484
    %v489 = vmul.f32 %v480, %v485
    %vm490 = vcmp.gt.f32.partialorder %v488, 0.0
    %vm491 = vcmp.gt.f32.partialorder %v489, 0.0
    %v492 = vsel %vm490, %v440, -10000000.0
    %v493 = vsel %vm491, %v441, -10000000.0
    %vm494 = vcmask 64512
    %v495 = vsel %vm494, %v466, -inf
    %496 = vmax.xlane.f32.xlu0 %v495
    %v497 = vpop.xlane.xlu0 %496
    %v498 = vsel %vm494, %v467, -inf
    %499 = vmax.xlane.f32.xlu0 %v498
    %v500 = vpop.xlane.xlu0 %499
    %v501 = vsub.f32 %v466, %v497
    %v502 = vsub.f32 %v467, %v500
    %v503 = vmul.f32 %v501, 1.442695
    %v504 = vpow.pop %v503
    %v505 = vmul.f32 %v502, 1.442695
    %v506 = vpow.pop %v505
    %v507 = vsel %vm494, %v504, 0.0
    %508 = vadd.xlane.f32.xlu0 %v507
    %v509 = vpop.xlane.xlu0 %508
    %v510 = vsel %vm494, %v506, 0.0
    %511 = vadd.xlane.f32.xlu0 %v510
    %v512 = vpop.xlane.xlu0 %511
    %v513 = vrcp.pop %v509
    %v514 = vmul.f32 %v509, %v513
    %v515 = vsub.f32 1.0, %v514
    %v516 = vmul.f32 %v513, %v515
    %v517 = vadd.f32 %v513, %v516
    %vm518 = vweird.f32 %v509
    %vm519 = vweird.f32 %v513
    %vm520 = vmor %vm518, %vm519
    %v521 = vsel %vm520, %v513, %v517
    %v522 = vand.u32 2147483647, %v509
    %vm523 = vcmp.eq.f32.partialorder %v522, 8.507059e+37
    %v524 = vand.u32 %v509, 2147483648
    %v525 = vor.u32 1.1754944e-38, %v524
    %v526 = vsel %vm523, %v525, %v521
    %v527 = vmul.f32 %v504, %v526
    %v528 = vrcp.pop %v512
    %v529 = vmul.f32 %v512, %v528
    %v530 = vsub.f32 1.0, %v529
    %v531 = vmul.f32 %v528, %v530
    %v532 = vadd.f32 %v528, %v531
    %vm533 = vweird.f32 %v512
    %vm534 = vweird.f32 %v528
    %vm535 = vmor %vm533, %vm534
    %v536 = vsel %vm535, %v528, %v532
    %v537 = vand.u32 2147483647, %v512
    %vm538 = vcmp.eq.f32.partialorder %v537, 8.507059e+37
    %v539 = vand.u32 %v512, 2147483648
    %v540 = vor.u32 1.1754944e-38, %v539
    %v541 = vsel %vm538, %v540, %v536
    %v542 = vmul.f32 %v506, %v541
    %v543 = vsel %vm494, %v492, -inf
    %544 = vmax.xlane.f32.xlu0 %v543
    %v545 = vpop.xlane.xlu0 %544
    %v546 = vsel %vm494, %v493, -inf
    %547 = vmax.xlane.f32.xlu0 %v546
    %v548 = vpop.xlane.xlu0 %547
    %v549 = vsub.f32 %v492, %v545
    %v550 = vsub.f32 %v493, %v548
    %v551 = vmul.f32 %v549, 1.442695
    %v552 = vpow.pop %v551
    %v553 = vmul.f32 %v550, 1.442695
    %v554 = vpow.pop %v553
    %v555 = vsel %vm494, %v552, 0.0
    %556 = vadd.xlane.f32.xlu0 %v555
    %v557 = vpop.xlane.xlu0 %556
    %v558 = vsel %vm494, %v554, 0.0
    %559 = vadd.xlane.f32.xlu0 %v558
    %v560 = vpop.xlane.xlu0 %559
    %v561 = vrcp.pop %v557
    %v562 = vmul.f32 %v557, %v561
    %v563 = vsub.f32 1.0, %v562
    %v564 = vmul.f32 %v561, %v563
    %v565 = vadd.f32 %v561, %v564
    %vm566 = vweird.f32 %v557
    %vm567 = vweird.f32 %v561
    %vm568 = vmor %vm566, %vm567
    %v569 = vsel %vm568, %v561, %v565
    %v570 = vand.u32 2147483647, %v557
    %vm571 = vcmp.eq.f32.partialorder %v570, 8.507059e+37
    %v572 = vand.u32 %v557, 2147483648
    %v573 = vor.u32 1.1754944e-38, %v572
    %v574 = vsel %vm571, %v573, %v569
    %v575 = vmul.f32 %v552, %v574
    %v576 = vrcp.pop %v560
    %v577 = vmul.f32 %v560, %v576
    %v578 = vsub.f32 1.0, %v577
    %v579 = vmul.f32 %v576, %v578
    %v580 = vadd.f32 %v576, %v579
    %vm581 = vweird.f32 %v560
    %vm582 = vweird.f32 %v576
    %vm583 = vmor %vm581, %vm582
    %v584 = vsel %vm583, %v576, %v580
    %v585 = vand.u32 2147483647, %v560
    %vm586 = vcmp.eq.f32.partialorder %v585, 8.507059e+37
    %v587 = vand.u32 %v560, 2147483648
    %v588 = vor.u32 1.1754944e-38, %v587
    %v589 = vsel %vm586, %v588, %v584
    %v590 = vmul.f32 %v554, %v589
    %v591 = vpack.c.bf16 %v527, %v527
    %v592 = vpack.c.bf16 %v542, %v542
    %v593 = vpack.c.bf16 %v55, %v54
    %v594 = vpack.c.bf16 %v56, %v56
    %v595 = vpack.c.bf16 %v58, %v57
    %v596 = vpack.c.bf16 %v59, %v59
    %v599 = vunpack.c.l.b16 %v593
    %v600 = vunpack.c.h.b16 %v593
    %v601 = vunpack.c.l.b16 %v594
    %v602 = vpack.c.b16 %v599, %v599
    %v603 = vpack.c.b16 %v600, %v600
    %v604 = vpack.c.b16 %v601, %v601
    %v606 = vsel %vm494, %v591, 0
    %vm608 = vcmask 1043456
    %v610 = vsel %vm608, %v602, 0
    %v613 = vsel %vm608, %v603, 0
    %v616 = vsel %vm608, %v604, 0
    %618 = vmatpush.bf16.msra.mxu0 0
    %619 = vmatpush.bf16.msra.mxu0 0
    %620 = vmatpush.bf16.msra.mxu0 0
    %621 = vmatpush.bf16.msra.mxu0 0
    %622 = vmatpush.bf16.msra.mxu0 0
    %623 = vmatpush.bf16.msra.mxu0 0
    %624 = vmatpush.bf16.msra.mxu0 0
    %625 = vmatpush.bf16.msra.mxu0 %v610
    %626 = vmatmul.bf16.gmra.mxu0 %v606
    %v627 = vpop.f32.mrf.mxu0
    %v628 = vadd.f32 0.0, %v627
    %v629 = vpop.f32.mrf.mxu0
    %630 = vdwg.mxu0
    %631 = vmatpush.bf16.msra.mxu0 0
    %632 = vmatpush.bf16.msra.mxu0 0
    %633 = vmatpush.bf16.msra.mxu0 0
    %634 = vmatpush.bf16.msra.mxu0 0
    %635 = vmatpush.bf16.msra.mxu0 0
    %636 = vmatpush.bf16.msra.mxu0 0
    %637 = vmatpush.bf16.msra.mxu0 0
    %638 = vmatpush.bf16.msra.mxu0 %v613
    %639 = vmatmul.bf16.gmra.mxu0 %v606
    %v640 = vpop.f32.mrf.mxu0
    %v641 = vadd.f32 0.0, %v640
    %v642 = vpop.f32.mrf.mxu0
    %643 = vdwg.mxu0
    %644 = vmatpush.bf16.msra.mxu0 0
    %645 = vmatpush.bf16.msra.mxu0 0
    %646 = vmatpush.bf16.msra.mxu0 0
    %647 = vmatpush.bf16.msra.mxu0 0
    %648 = vmatpush.bf16.msra.mxu0 0
    %649 = vmatpush.bf16.msra.mxu0 0
    %650 = vmatpush.bf16.msra.mxu0 0
    %651 = vmatpush.bf16.msra.mxu0 %v616
    %652 = vmatmul.bf16.gmra.mxu0 %v606
    %v653 = vpop.f32.mrf.mxu0
    %v654 = vadd.f32 0.0, %v653
    %v655 = vpop.f32.mrf.mxu0
    %656 = vdwg.mxu0
    %v659 = vunpack.c.l.b16 %v595
    %v660 = vunpack.c.h.b16 %v595
    %v661 = vunpack.c.l.b16 %v596
    %v662 = vpack.c.b16 %v659, %v659
    %v663 = vpack.c.b16 %v660, %v660
    %v664 = vpack.c.b16 %v661, %v661
    %v666 = vsel %vm494, %v592, 0
    %v669 = vsel %vm608, %v662, 0
    %v672 = vsel %vm608, %v663, 0
    %v675 = vsel %vm608, %v664, 0
    %677 = vmatpush.bf16.msra.mxu0 0
    %678 = vmatpush.bf16.msra.mxu0 0
    %679 = vmatpush.bf16.msra.mxu0 0
    %680 = vmatpush.bf16.msra.mxu0 0
    %681 = vmatpush.bf16.msra.mxu0 0
    %682 = vmatpush.bf16.msra.mxu0 0
    %683 = vmatpush.bf16.msra.mxu0 0
    %684 = vmatpush.bf16.msra.mxu0 %v669
    %685 = vmatmul.bf16.gmra.mxu0 %v666
    %v686 = vpop.f32.mrf.mxu0
    %v687 = vadd.f32 0.0, %v686
    %v688 = vpop.f32.mrf.mxu0
    %689 = vdwg.mxu0
    %690 = vmatpush.bf16.msra.mxu0 0
    %691 = vmatpush.bf16.msra.mxu0 0
    %692 = vmatpush.bf16.msra.mxu0 0
    %693 = vmatpush.bf16.msra.mxu0 0
    %694 = vmatpush.bf16.msra.mxu0 0
    %695 = vmatpush.bf16.msra.mxu0 0
    %696 = vmatpush.bf16.msra.mxu0 0
    %697 = vmatpush.bf16.msra.mxu0 %v672
    %698 = vmatmul.bf16.gmra.mxu0 %v666
    %v699 = vpop.f32.mrf.mxu0
    %v700 = vadd.f32 0.0, %v699
    %v701 = vpop.f32.mrf.mxu0
    %702 = vdwg.mxu0
    %703 = vmatpush.bf16.msra.mxu0 0
    %704 = vmatpush.bf16.msra.mxu0 0
    %705 = vmatpush.bf16.msra.mxu0 0
    %706 = vmatpush.bf16.msra.mxu0 0
    %707 = vmatpush.bf16.msra.mxu0 0
    %708 = vmatpush.bf16.msra.mxu0 0
    %709 = vmatpush.bf16.msra.mxu0 0
    %710 = vmatpush.bf16.msra.mxu0 %v675
    %711 = vmatmul.bf16.gmra.mxu0 %v666
    %v712 = vpop.f32.mrf.mxu0
    %v713 = vadd.f32 0.0, %v712
    %v714 = vpop.f32.mrf.mxu0
    %715 = vdwg.mxu0
    %716 = vst [vmem:[%s8] sm:$0xff] %v628
    %717 = vst [vmem:[%s8 + $0x8] sm:$0xff] %v641
    %718 = vst [vmem:[%s8 + $0x10] sm:$0xff] %v654
    %719 = vst [vmem:[%s8 + $0x18] sm:$0xff] %v687
    %720 = vst [vmem:[%s8 + $0x20] sm:$0xff] %v700
    %721 = vst [vmem:[%s8 + $0x28] sm:$0xff] %v713
    %v722 = vpack.c.bf16 %v575, %v575
    %v723 = vpack.c.bf16 %v590, %v590
    %v724 = vpack.c.bf16 %v49, %v48
    %v725 = vpack.c.bf16 %v50, %v50
    %v726 = vpack.c.bf16 %v52, %v51
    %v727 = vpack.c.bf16 %v53, %v53
    %v730 = vunpack.c.l.b16 %v724
    %v731 = vunpack.c.h.b16 %v724
    %v732 = vunpack.c.l.b16 %v725
    %v733 = vpack.c.b16 %v730, %v730
    %v734 = vpack.c.b16 %v731, %v731
    %v735 = vpack.c.b16 %v732, %v732
    %v737 = vsel %vm494, %v722, 0
    %v740 = vsel %vm608, %v733, 0
    %v743 = vsel %vm608, %v734, 0
    %v746 = vsel %vm608, %v735, 0
    %748 = vmatpush.bf16.msra.mxu0 0
    %749 = vmatpush.bf16.msra.mxu0 0
    %750 = vmatpush.bf16.msra.mxu0 0
    %751 = vmatpush.bf16.msra.mxu0 0
    %752 = vmatpush.bf16.msra.mxu0 0
    %753 = vmatpush.bf16.msra.mxu0 0
    %754 = vmatpush.bf16.msra.mxu0 0
    %755 = vmatpush.bf16.msra.mxu0 %v740
    %756 = vmatmul.bf16.gmra.mxu0 %v737
    %v757 = vpop.f32.mrf.mxu0
    %v758 = vadd.f32 0.0, %v757
    %v759 = vpop.f32.mrf.mxu0
    %760 = vdwg.mxu0
    %761 = vmatpush.bf16.msra.mxu0 0
    %762 = vmatpush.bf16.msra.mxu0 0
    %763 = vmatpush.bf16.msra.mxu0 0
    %764 = vmatpush.bf16.msra.mxu0 0
    %765 = vmatpush.bf16.msra.mxu0 0
    %766 = vmatpush.bf16.msra.mxu0 0
    %767 = vmatpush.bf16.msra.mxu0 0
    %768 = vmatpush.bf16.msra.mxu0 %v743
    %769 = vmatmul.bf16.gmra.mxu0 %v737
    %v770 = vpop.f32.mrf.mxu0
    %v771 = vadd.f32 0.0, %v770
    %v772 = vpop.f32.mrf.mxu0
    %773 = vdwg.mxu0
    %774 = vmatpush.bf16.msra.mxu0 0
    %775 = vmatpush.bf16.msra.mxu0 0
    %776 = vmatpush.bf16.msra.mxu0 0
    %777 = vmatpush.bf16.msra.mxu0 0
    %778 = vmatpush.bf16.msra.mxu0 0
    %779 = vmatpush.bf16.msra.mxu0 0
    %780 = vmatpush.bf16.msra.mxu0 0
    %781 = vmatpush.bf16.msra.mxu0 %v746
    %782 = vmatmul.bf16.gmra.mxu0 %v737
    %v783 = vpop.f32.mrf.mxu0
    %v784 = vadd.f32 0.0, %v783
    %v785 = vpop.f32.mrf.mxu0
    %786 = vdwg.mxu0
    %v789 = vunpack.c.l.b16 %v726
    %v790 = vunpack.c.h.b16 %v726
    %v791 = vunpack.c.l.b16 %v727
    %v792 = vpack.c.b16 %v789, %v789
    %v793 = vpack.c.b16 %v790, %v790
    %v794 = vpack.c.b16 %v791, %v791
    %v796 = vsel %vm494, %v723, 0
    %v799 = vsel %vm608, %v792, 0
    %v802 = vsel %vm608, %v793, 0
    %v805 = vsel %vm608, %v794, 0
    %807 = vmatpush.bf16.msra.mxu0 0
    %808 = vmatpush.bf16.msra.mxu0 0
    %809 = vmatpush.bf16.msra.mxu0 0
    %810 = vmatpush.bf16.msra.mxu0 0
    %811 = vmatpush.bf16.msra.mxu0 0
    %812 = vmatpush.bf16.msra.mxu0 0
    %813 = vmatpush.bf16.msra.mxu0 0
    %814 = vmatpush.bf16.msra.mxu0 %v799
    %815 = vmatmul.bf16.gmra.mxu0 %v796
    %v816 = vpop.f32.mrf.mxu0
    %v817 = vadd.f32 0.0, %v816
    %v818 = vpop.f32.mrf.mxu0
    %819 = vdwg.mxu0
    %820 = vmatpush.bf16.msra.mxu0 0
    %821 = vmatpush.bf16.msra.mxu0 0
    %822 = vmatpush.bf16.msra.mxu0 0
    %823 = vmatpush.bf16.msra.mxu0 0
    %824 = vmatpush.bf16.msra.mxu0 0
    %825 = vmatpush.bf16.msra.mxu0 0
    %826 = vmatpush.bf16.msra.mxu0 0
    %827 = vmatpush.bf16.msra.mxu0 %v802
    %828 = vmatmul.bf16.gmra.mxu0 %v796
    %v829 = vpop.f32.mrf.mxu0
    %v830 = vadd.f32 0.0, %v829
    %v831 = vpop.f32.mrf.mxu0
    %832 = vdwg.mxu0
    %833 = vmatpush.bf16.msra.mxu0 0
    %834 = vmatpush.bf16.msra.mxu0 0
    %835 = vmatpush.bf16.msra.mxu0 0
    %836 = vmatpush.bf16.msra.mxu0 0
    %837 = vmatpush.bf16.msra.mxu0 0
    %838 = vmatpush.bf16.msra.mxu0 0
    %839 = vmatpush.bf16.msra.mxu0 0
    %840 = vmatpush.bf16.msra.mxu0 %v805
    %841 = vmatmul.bf16.gmra.mxu0 %v796
    %v842 = vpop.f32.mrf.mxu0
    %v843 = vadd.f32 0.0, %v842
    %v844 = vpop.f32.mrf.mxu0
    %845 = vdwg.mxu0
    %846 = vst [vmem:[%s9] sm:$0xff] %v758
    %847 = vst [vmem:[%s9 + $0x8] sm:$0xff] %v771
    %848 = vst [vmem:[%s9 + $0x10] sm:$0xff] %v784
    %849 = vst [vmem:[%s9 + $0x18] sm:$0xff] %v817
    %850 = vst [vmem:[%s9 + $0x20] sm:$0xff] %v830
    %851 = vst [vmem:[%s9 + $0x28] sm:$0xff] %v843
    // Predicated region
    $region38: #{re2_forward.15} parent=1 // pred_check
      _
    $region39: #{re2_forward.15} parent=1 // pred_check_branch
      %853 = sbr.rel (0) target = $region41
    $region40: #{re2_forward.15} parent=1 // pred_region
      _
    $region41: #{re2_forward.15} parent=1 // pred_fallthru
      _
    // Predicated region
    $region42: #{re2_forward.15} parent=1 // pred_check
      _
    $region43: #{re2_forward.15} parent=1 // pred_check_branch
      %855 = sbr.rel (0) target = $region45
    $region44: #{re2_forward.15} parent=1 // pred_region
      _
    $region45: #{re2_forward.15} parent=1 // pred_fallthru
      _
    // Predicated region
    $region46: #{re2_forward.15} parent=1 // pred_check
      _
    $region47: #{re2_forward.15} parent=1 // pred_check_branch
      %857 = sbr.rel (0) target = $region49
    $region48: #{re2_forward.15} parent=1 // pred_region
      _
    $region49: #{re2_forward.15} parent=1 // pred_fallthru
      _
    // Predicated region
    $region50: #{re2_forward.15} parent=1 // pred_check
      _
    $region51: #{re2_forward.15} parent=1 // pred_check_branch
      %859 = sbr.rel (0) target = $region53
    $region52: #{re2_forward.15} parent=1 // pred_region
      _
    $region53: #{re2_forward.15} parent=1 // pred_fallthru
      _
    %860 = vsyncpa [#allocation3], 1

// kernel: re2_forward.17
$region0: #{re2_forward.17}
  #allocation0 [shape = 'u32[]', space=smem, size = 0x4, offset = 0x4, fixed_abs, tag = 'smem constant byte address 0x4 - core index']
  #allocation1 [shape = 'u32[72,128]{1,0:T(1,128)}', space=vmem, size = 0x9000, scoped, tag = 'internal scratch']
  %s0 = inlined_call_operand.vmem [shape: f32[2,8,128], index: 0, kind: input, shape index: {}]
  %s1 = inlined_call_operand.vmem [shape: f32[2,8,128], index: 1, kind: input, shape index: {}]
  %s2 = inlined_call_operand.vmem [shape: f32[2,8,1], index: 2, kind: input, shape index: {}]
  %s3 = inlined_call_operand.vmem [shape: f32[2,8,1], index: 3, kind: input, shape index: {}]
  %s4 = inlined_call_operand.vmem [shape: bf16[512,128], index: 4, kind: input, shape index: {}]
  %s5 = inlined_call_operand.vmem [shape: f32[1,128], index: 5, kind: input, shape index: {}]
  %s6 = inlined_call_operand.vmem [shape: bf16[128,2], index: 6, kind: input, shape index: {}]
  %s7 = inlined_call_operand.vmem [shape: f32[1,2], index: 7, kind: input, shape index: {}]
  %s8 = inlined_call_operand.hbm [shape: f32[2,2], index: 8, kind: output, shape index: {0}]
  %s9 = inlined_call_operand.hbm [shape: f32[2,2], index: 9, kind: output, shape index: {1}]
  %10 = xla_tuple %s8, %s9
  %s11 = sld [smem:[#allocation0]]
  $region50: #{re2_forward.17} parent=0
    _
  %s13 = ssub.s32 1, %s11
  %s14 = scalar_select 0, %s13, %s11
  $region1: #{re2_forward.17} parent=0
    #allocation2 [shape = 'u8[1024]{0}', space=vmem, size = 0x400, scoped, tag = 'output window, operand 0, single buffered']
    #allocation3 [shape = 's32[1]{0}', space=sflag, size = 0x4, scoped, tag = 'scoped memory for re2_forward.17']
    #allocation4 [shape = 'u8[1024]{0}', space=vmem, size = 0x400, scoped, tag = 'output window, operand 1, single buffered']
    #allocation5 [shape = 's32[1]{0}', space=sflag, size = 0x4, scoped, tag = 'scoped memory for re2_forward.17']
    %15 = vsyncpa [#allocation3], 0
    %16 = vsyncpa [#allocation5], 0
    // Predicated region
    $region2: #{re2_forward.17} parent=1 // pred_check
      _
    $region3: #{re2_forward.17} parent=1 // pred_check_branch
      %18 = sbr.rel (0) target = $region5
    $region4: #{re2_forward.17} parent=1 // pred_region
      _
    $region5: #{re2_forward.17} parent=1 // pred_fallthru
      _
    // Predicated region
    $region6: #{re2_forward.17} parent=1 // pred_check
      _
    $region7: #{re2_forward.17} parent=1 // pred_check_branch
      %20 = sbr.rel (0) target = $region9
    $region8: #{re2_forward.17} parent=1 // pred_region
      _
    $region9: #{re2_forward.17} parent=1 // pred_fallthru
      _
    // Predicated region
    $region10: #{re2_forward.17} parent=1 // pred_check
      _
    $region11: #{re2_forward.17} parent=1 // pred_check_branch
      %22 = sbr.rel (0) target = $region13
    $region12: #{re2_forward.17} parent=1 // pred_region
      _
    $region13: #{re2_forward.17} parent=1 // pred_fallthru
      _
    // Predicated region
    $region14: #{re2_forward.17} parent=1 // pred_check
      _
    $region15: #{re2_forward.17} parent=1 // pred_check_branch
      %24 = sbr.rel (0) target = $region17
    $region16: #{re2_forward.17} parent=1 // pred_region
      _
    $region17: #{re2_forward.17} parent=1 // pred_fallthru
      _
    // Predicated region
    $region18: #{re2_forward.17} parent=1 // pred_check
      _
    $region19: #{re2_forward.17} parent=1 // pred_check_branch
      %26 = sbr.rel (0) target = $region21
    $region20: #{re2_forward.17} parent=1 // pred_region
      _
    $region21: #{re2_forward.17} parent=1 // pred_fallthru
      _
    // Predicated region
    $region22: #{re2_forward.17} parent=1 // pred_check
      _
    $region23: #{re2_forward.17} parent=1 // pred_check_branch
      %28 = sbr.rel (0) target = $region25
    $region24: #{re2_forward.17} parent=1 // pred_region
      _
    $region25: #{re2_forward.17} parent=1 // pred_fallthru
      _
    // Predicated region
    $region26: #{re2_forward.17} parent=1 // pred_check
      _
    $region27: #{re2_forward.17} parent=1 // pred_check_branch
      %30 = sbr.rel (0) target = $region29
    $region28: #{re2_forward.17} parent=1 // pred_region
      _
    $region29: #{re2_forward.17} parent=1 // pred_fallthru
      _
    // Predicated region
    $region30: #{re2_forward.17} parent=1 // pred_check
      _
    $region31: #{re2_forward.17} parent=1 // pred_check_branch
      %32 = sbr.rel (0) target = $region33
    $region32: #{re2_forward.17} parent=1 // pred_region
      _
    $region33: #{re2_forward.17} parent=1 // pred_fallthru
      _
    %v33 = vld [vmem:[%s2] sm:$0xff]
    %v34 = vld [vmem:[%s2 + $0x8] sm:$0xff]
    %vm35 = vcmp.gt.f32.partialorder %v33, 0.0
    %vm36 = vcmp.gt.f32.partialorder %v34, 0.0
    %v37 = vld [vmem:[%s0] sm:$0xff]
    %v38 = vld [vmem:[%s0 + $0x8] sm:$0xff]
    %v39 = vsel %vm35, 1, 0
    %v40 = vsel %vm36, 1, 0
    %41 = vset.pattern.permute.xlu0 0
    %42 = vperm.xlu0 %41, %v39
    %v43 = vpop.permute.xlu0 %42
    %44 = vset.pattern.permute.xlu0 0
    %45 = vperm.xlu0 %44, %v40
    %v46 = vpop.permute.xlu0 %45
    %vm47 = vcmp.eq.s32.totalorder %v43, 1
    %vm48 = vcmp.eq.s32.totalorder %v46, 1
    %v49 = vsel %vm47, %v37, -1e+30
    %v50 = vsel %vm48, %v38, -1e+30
    %v51 = vld [vmem:[%s3] sm:$0xff]
    %v52 = vld [vmem:[%s3 + $0x8] sm:$0xff]
    %vm53 = vcmp.gt.f32.partialorder %v51, 0.0
    %vm54 = vcmp.gt.f32.partialorder %v52, 0.0
    %v55 = vld [vmem:[%s1] sm:$0xff]
    %v56 = vld [vmem:[%s1 + $0x8] sm:$0xff]
    %v57 = vsel %vm53, 1, 0
    %v58 = vsel %vm54, 1, 0
    %59 = vset.pattern.permute.xlu0 0
    %60 = vperm.xlu0 %59, %v57
    %v61 = vpop.permute.xlu0 %60
    %62 = vset.pattern.permute.xlu0 0
    %63 = vperm.xlu0 %62, %v58
    %v64 = vpop.permute.xlu0 %63
    %vm65 = vcmp.eq.s32.totalorder %v61, 1
    %vm66 = vcmp.eq.s32.totalorder %v64, 1
    %v67 = vsel %vm65, %v55, -1e+30
    %v68 = vsel %vm66, %v56, -1e+30
    %v69 = vrot.slane %v49, 4
    %v70 = vmax.f32 %v49, %v69
    %v71 = vrot.slane %v70, 2
    %v72 = vmax.f32 %v70, %v71
    %v73 = vrot.slane %v72, 1
    %v74 = vmax.f32 %v72, %v73
    %v75 = vrot.slane %v50, 4
    %v76 = vmax.f32 %v50, %v75
    %v77 = vrot.slane %v76, 2
    %v78 = vmax.f32 %v76, %v77
    %v79 = vrot.slane %v78, 1
    %v80 = vmax.f32 %v78, %v79
    %v81 = vrot.slane %v67, 4
    %v82 = vmax.f32 %v67, %v81
    %v83 = vrot.slane %v82, 2
    %v84 = vmax.f32 %v82, %v83
    %v85 = vrot.slane %v84, 1
    %v86 = vmax.f32 %v84, %v85
    %v87 = vrot.slane %v68, 4
    %v88 = vmax.f32 %v68, %v87
    %v89 = vrot.slane %v88, 2
    %v90 = vmax.f32 %v88, %v89
    %v91 = vrot.slane %v90, 1
    %v92 = vmax.f32 %v90, %v91
    %v93 = vld [vmem:[%s4] sm:$0xf]
    %v94 = vld [vmem:[%s4 + $0x4] sm:$0xf]
    %v95 = vld [vmem:[%s4 + $0x8] sm:$0xf]
    %v96 = vld [vmem:[%s4 + $0xc] sm:$0xf]
    %v97 = vld [vmem:[%s4 + $0x10] sm:$0xf]
    %v98 = vld [vmem:[%s4 + $0x14] sm:$0xf]
    %v99 = vld [vmem:[%s4 + $0x18] sm:$0xf]
    %v100 = vld [vmem:[%s4 + $0x1c] sm:$0xf]
    %v101 = vld [vmem:[%s4 + $0x20] sm:$0xf]
    %v102 = vld [vmem:[%s4 + $0x24] sm:$0xf]
    %v103 = vld [vmem:[%s4 + $0x28] sm:$0xf]
    %v104 = vld [vmem:[%s4 + $0x2c] sm:$0xf]
    %v105 = vld [vmem:[%s4 + $0x30] sm:$0xf]
    %v106 = vld [vmem:[%s4 + $0x34] sm:$0xf]
    %v107 = vld [vmem:[%s4 + $0x38] sm:$0xf]
    %v108 = vld [vmem:[%s4 + $0x3c] sm:$0xf]
    %v109 = vld [vmem:[%s4 + $0x40] sm:$0xf]
    %v110 = vld [vmem:[%s4 + $0x44] sm:$0xf]
    %v111 = vld [vmem:[%s4 + $0x48] sm:$0xf]
    %v112 = vld [vmem:[%s4 + $0x4c] sm:$0xf]
    %v113 = vld [vmem:[%s4 + $0x50] sm:$0xf]
    %v114 = vld [vmem:[%s4 + $0x54] sm:$0xf]
    %v115 = vld [vmem:[%s4 + $0x58] sm:$0xf]
    %v116 = vld [vmem:[%s4 + $0x5c] sm:$0xf]
    %v117 = vld [vmem:[%s4 + $0x60] sm:$0xf]
    %v118 = vld [vmem:[%s4 + $0x64] sm:$0xf]
    %v119 = vld [vmem:[%s4 + $0x68] sm:$0xf]
    %v120 = vld [vmem:[%s4 + $0x6c] sm:$0xf]
    %v121 = vld [vmem:[%s4 + $0x70] sm:$0xf]
    %v122 = vld [vmem:[%s4 + $0x74] sm:$0xf]
    %v123 = vld [vmem:[%s4 + $0x78] sm:$0xf]
    %v124 = vld [vmem:[%s4 + $0x7c] sm:$0xf]
    %v125 = vld [vmem:[%s4 + $0x80] sm:$0xf]
    %v126 = vld [vmem:[%s4 + $0x84] sm:$0xf]
    %v127 = vld [vmem:[%s4 + $0x88] sm:$0xf]
    %v128 = vld [vmem:[%s4 + $0x8c] sm:$0xf]
    %v129 = vld [vmem:[%s4 + $0x90] sm:$0xf]
    %v130 = vld [vmem:[%s4 + $0x94] sm:$0xf]
    %v131 = vld [vmem:[%s4 + $0x98] sm:$0xf]
    %v132 = vld [vmem:[%s4 + $0x9c] sm:$0xf]
    %v133 = vld [vmem:[%s4 + $0xa0] sm:$0xf]
    %v134 = vld [vmem:[%s4 + $0xa4] sm:$0xf]
    %v135 = vld [vmem:[%s4 + $0xa8] sm:$0xf]
    %v136 = vld [vmem:[%s4 + $0xac] sm:$0xf]
    %v137 = vld [vmem:[%s4 + $0xb0] sm:$0xf]
    %v138 = vld [vmem:[%s4 + $0xb4] sm:$0xf]
    %v139 = vld [vmem:[%s4 + $0xb8] sm:$0xf]
    %v140 = vld [vmem:[%s4 + $0xbc] sm:$0xf]
    %v141 = vld [vmem:[%s4 + $0xc0] sm:$0xf]
    %v142 = vld [vmem:[%s4 + $0xc4] sm:$0xf]
    %v143 = vld [vmem:[%s4 + $0xc8] sm:$0xf]
    %v144 = vld [vmem:[%s4 + $0xcc] sm:$0xf]
    %v145 = vld [vmem:[%s4 + $0xd0] sm:$0xf]
    %v146 = vld [vmem:[%s4 + $0xd4] sm:$0xf]
    %v147 = vld [vmem:[%s4 + $0xd8] sm:$0xf]
    %v148 = vld [vmem:[%s4 + $0xdc] sm:$0xf]
    %v149 = vld [vmem:[%s4 + $0xe0] sm:$0xf]
    %v150 = vld [vmem:[%s4 + $0xe4] sm:$0xf]
    %v151 = vld [vmem:[%s4 + $0xe8] sm:$0xf]
    %v152 = vld [vmem:[%s4 + $0xec] sm:$0xf]
    %v153 = vld [vmem:[%s4 + $0xf0] sm:$0xf]
    %v154 = vld [vmem:[%s4 + $0xf4] sm:$0xf]
    %v155 = vld [vmem:[%s4 + $0xf8] sm:$0xf]
    %v156 = vld [vmem:[%s4 + $0xfc] sm:$0xf]
    %v157 = vpack.c.bf16 %v74, %v74
    %v158 = vpack.c.bf16 %v80, %v80
    %v159 = vpack.c.bf16 %v86, %v86
    %v160 = vpack.c.bf16 %v92, %v92
    %v163 = vunpack.c.l.b16 %v159
    %v164 = vunpack.c.l.b16 %v160
    %vm165 = vcmask 1041409
    %v166 = vsel %vm165, %v164, %v163
    %v167 = vpack.c.b16 %v166, %v166
    %v185 = vunpack.c.l.b16 %v109
    %v186 = vunpack.c.l.b16 %v110
    %v187 = vunpack.c.l.b16 %v111
    %v188 = vunpack.c.l.b16 %v112
    %v189 = vunpack.c.l.b16 %v113
    %v190 = vunpack.c.l.b16 %v114
    %v191 = vunpack.c.l.b16 %v115
    %v192 = vunpack.c.l.b16 %v116
    %v193 = vunpack.c.l.b16 %v117
    %v194 = vunpack.c.l.b16 %v118
    %v195 = vunpack.c.l.b16 %v119
    %v196 = vunpack.c.l.b16 %v120
    %v197 = vunpack.c.l.b16 %v121
    %v198 = vunpack.c.l.b16 %v122
    %v199 = vunpack.c.l.b16 %v123
    %v200 = vunpack.c.l.b16 %v124
    %v201 = vpack.c.b16 %v186, %v185
    %v202 = vpack.c.b16 %v188, %v187
    %v203 = vpack.c.b16 %v190, %v189
    %v204 = vpack.c.b16 %v192, %v191
    %v205 = vpack.c.b16 %v194, %v193
    %v206 = vpack.c.b16 %v196, %v195
    %v207 = vpack.c.b16 %v198, %v197
    %v208 = vpack.c.b16 %v200, %v199
    %217 = vmatpush.bf16.msra.mxu0 %v208
    %218 = vmatpush.bf16.msra.mxu0 %v207
    %219 = vmatpush.bf16.msra.mxu0 %v206
    %220 = vmatpush.bf16.msra.mxu0 %v205
    %221 = vmatpush.bf16.msra.mxu0 %v204
    %222 = vmatpush.bf16.msra.mxu0 %v203
    %223 = vmatpush.bf16.msra.mxu0 %v202
    %224 = vmatpush.bf16.msra.mxu0 %v201
    %225 = vmatmul.bf16.gmra.mxu0 %v167
    %v226 = vpop.f32.mrf.mxu0
    %v227 = vadd.f32 0.0, %v226
    %v228 = vpop.f32.mrf.mxu0
    %229 = vdwg.mxu0
    %v232 = vunpack.c.l.b16 %v157
    %v233 = vunpack.c.l.b16 %v158
    %v234 = vsel %vm165, %v233, %v232
    %v235 = vpack.c.b16 %v234, %v234
    %v253 = vunpack.c.l.b16 %v93
    %v254 = vunpack.c.l.b16 %v94
    %v255 = vunpack.c.l.b16 %v95
    %v256 = vunpack.c.l.b16 %v96
    %v257 = vunpack.c.l.b16 %v97
    %v258 = vunpack.c.l.b16 %v98
    %v259 = vunpack.c.l.b16 %v99
    %v260 = vunpack.c.l.b16 %v100
    %v261 = vunpack.c.l.b16 %v101
    %v262 = vunpack.c.l.b16 %v102
    %v263 = vunpack.c.l.b16 %v103
    %v264 = vunpack.c.l.b16 %v104
    %v265 = vunpack.c.l.b16 %v105
    %v266 = vunpack.c.l.b16 %v106
    %v267 = vunpack.c.l.b16 %v107
    %v268 = vunpack.c.l.b16 %v108
    %v269 = vpack.c.b16 %v254, %v253
    %v270 = vpack.c.b16 %v256, %v255
    %v271 = vpack.c.b16 %v258, %v257
    %v272 = vpack.c.b16 %v260, %v259
    %v273 = vpack.c.b16 %v262, %v261
    %v274 = vpack.c.b16 %v264, %v263
    %v275 = vpack.c.b16 %v266, %v265
    %v276 = vpack.c.b16 %v268, %v267
    %285 = vmatpush.bf16.msra.mxu0 %v276
    %286 = vmatpush.bf16.msra.mxu0 %v275
    %287 = vmatpush.bf16.msra.mxu0 %v274
    %288 = vmatpush.bf16.msra.mxu0 %v273
    %289 = vmatpush.bf16.msra.mxu0 %v272
    %290 = vmatpush.bf16.msra.mxu0 %v271
    %291 = vmatpush.bf16.msra.mxu0 %v270
    %292 = vmatpush.bf16.msra.mxu0 %v269
    %293 = vmatmul.bf16.gmra.mxu0 %v235
    %v294 = vpop.f32.mrf.mxu0
    %v295 = vadd.f32 %v227, %v294
    %v296 = vpop.f32.mrf.mxu0
    %297 = vdwg.mxu0
    %v298 = vsub.f32 %v74, %v86
    %v299 = vsub.f32 %v80, %v92
    %v300 = vpack.c.bf16 %v298, %v298
    %v301 = vpack.c.bf16 %v299, %v299
    %v304 = vunpack.c.l.b16 %v300
    %v305 = vunpack.c.l.b16 %v301
    %v306 = vsel %vm165, %v305, %v304
    %v307 = vpack.c.b16 %v306, %v306
    %v325 = vunpack.c.l.b16 %v125
    %v326 = vunpack.c.l.b16 %v126
    %v327 = vunpack.c.l.b16 %v127
    %v328 = vunpack.c.l.b16 %v128
    %v329 = vunpack.c.l.b16 %v129
    %v330 = vunpack.c.l.b16 %v130
    %v331 = vunpack.c.l.b16 %v131
    %v332 = vunpack.c.l.b16 %v132
    %v333 = vunpack.c.l.b16 %v133
    %v334 = vunpack.c.l.b16 %v134
    %v335 = vunpack.c.l.b16 %v135
    %v336 = vunpack.c.l.b16 %v136
    %v337 = vunpack.c.l.b16 %v137
    %v338 = vunpack.c.l.b16 %v138
    %v339 = vunpack.c.l.b16 %v139
    %v340 = vunpack.c.l.b16 %v140
    %v341 = vpack.c.b16 %v326, %v325
    %v342 = vpack.c.b16 %v328, %v327
    %v343 = vpack.c.b16 %v330, %v329
    %v344 = vpack.c.b16 %v332, %v331
    %v345 = vpack.c.b16 %v334, %v333
    %v346 = vpack.c.b16 %v336, %v335
    %v347 = vpack.c.b16 %v338, %v337
    %v348 = vpack.c.b16 %v340, %v339
    %357 = vmatpush.bf16.msra.mxu0 %v348
    %358 = vmatpush.bf16.msra.mxu0 %v347
    %359 = vmatpush.bf16.msra.mxu0 %v346
    %360 = vmatpush.bf16.msra.mxu0 %v345
    %361 = vmatpush.bf16.msra.mxu0 %v344
    %362 = vmatpush.bf16.msra.mxu0 %v343
    %363 = vmatpush.bf16.msra.mxu0 %v342
    %364 = vmatpush.bf16.msra.mxu0 %v341
    %365 = vmatmul.bf16.gmra.mxu0 %v307
    %v366 = vpop.f32.mrf.mxu0
    %v367 = vadd.f32 0.0, %v366
    %v368 = vpop.f32.mrf.mxu0
    %369 = vdwg.mxu0
    %v370 = vadd.f32 %v295, %v367
    %v371 = vmul.f32 %v74, %v86
    %v372 = vmul.f32 %v80, %v92
    %v373 = vpack.c.bf16 %v371, %v371
    %v374 = vpack.c.bf16 %v372, %v372
    %v377 = vunpack.c.l.b16 %v373
    %v378 = vunpack.c.l.b16 %v374
    %v379 = vsel %vm165, %v378, %v377
    %v380 = vpack.c.b16 %v379, %v379
    %v398 = vunpack.c.l.b16 %v141
    %v399 = vunpack.c.l.b16 %v142
    %v400 = vunpack.c.l.b16 %v143
    %v401 = vunpack.c.l.b16 %v144
    %v402 = vunpack.c.l.b16 %v145
    %v403 = vunpack.c.l.b16 %v146
    %v404 = vunpack.c.l.b16 %v147
    %v405 = vunpack.c.l.b16 %v148
    %v406 = vunpack.c.l.b16 %v149
    %v407 = vunpack.c.l.b16 %v150
    %v408 = vunpack.c.l.b16 %v151
    %v409 = vunpack.c.l.b16 %v152
    %v410 = vunpack.c.l.b16 %v153
    %v411 = vunpack.c.l.b16 %v154
    %v412 = vunpack.c.l.b16 %v155
    %v413 = vunpack.c.l.b16 %v156
    %v414 = vpack.c.b16 %v399, %v398
    %v415 = vpack.c.b16 %v401, %v400
    %v416 = vpack.c.b16 %v403, %v402
    %v417 = vpack.c.b16 %v405, %v404
    %v418 = vpack.c.b16 %v407, %v406
    %v419 = vpack.c.b16 %v409, %v408
    %v420 = vpack.c.b16 %v411, %v410
    %v421 = vpack.c.b16 %v413, %v412
    %430 = vmatpush.bf16.msra.mxu0 %v421
    %431 = vmatpush.bf16.msra.mxu0 %v420
    %432 = vmatpush.bf16.msra.mxu0 %v419
    %433 = vmatpush.bf16.msra.mxu0 %v418
    %434 = vmatpush.bf16.msra.mxu0 %v417
    %435 = vmatpush.bf16.msra.mxu0 %v416
    %436 = vmatpush.bf16.msra.mxu0 %v415
    %437 = vmatpush.bf16.msra.mxu0 %v414
    %438 = vmatmul.bf16.gmra.mxu0 %v380
    %v439 = vpop.f32.mrf.mxu0
    %v440 = vadd.f32 0.0, %v439
    %v441 = vpop.f32.mrf.mxu0
    %442 = vdwg.mxu0
    %v443 = vadd.f32 %v370, %v440
    %v444 = vld [vmem:[%s5] sm:$0x1]
    %v446 = vperm.slane %v444, 0
    %v448 = vadd.f32 %v443, %v446
    %v449 = vmul.f32 %v448, %v448
    %v450 = vmul.f32 %v448, %v449
    %v451 = vmul.f32 %v450, 0.044715
    %v452 = vadd.f32 %v448, %v451
    %v453 = vmul.f32 %v452, 0.7978846
    %v454 = vtanh.pop %v453
    %v455 = vadd.f32 %v454, 1.0
    %v456 = vmul.f32 %v455, 0.5
    %v457 = vmul.f32 %v448, %v456
    %v458 = vpack.c.bf16 %v457, %v457
    %v459 = vld [vmem:[%s6] sm:$0xf]
    %v460 = vld [vmem:[%s6 + $0x4] sm:$0xf]
    %v461 = vld [vmem:[%s6 + $0x8] sm:$0xf]
    %v462 = vld [vmem:[%s6 + $0xc] sm:$0xf]
    %v463 = vld [vmem:[%s6 + $0x10] sm:$0xf]
    %v464 = vld [vmem:[%s6 + $0x14] sm:$0xf]
    %v465 = vld [vmem:[%s6 + $0x18] sm:$0xf]
    %v466 = vld [vmem:[%s6 + $0x1c] sm:$0xf]
    %v467 = vld [vmem:[%s6 + $0x20] sm:$0xf]
    %v468 = vld [vmem:[%s6 + $0x24] sm:$0xf]
    %v469 = vld [vmem:[%s6 + $0x28] sm:$0xf]
    %v470 = vld [vmem:[%s6 + $0x2c] sm:$0xf]
    %v471 = vld [vmem:[%s6 + $0x30] sm:$0xf]
    %v472 = vld [vmem:[%s6 + $0x34] sm:$0xf]
    %v473 = vld [vmem:[%s6 + $0x38] sm:$0xf]
    %v474 = vld [vmem:[%s6 + $0x3c] sm:$0xf]
    %v475 = vld [vmem:[%s7] sm:$0x1]
    %v477 = vperm.slane %v475, 0
    %v495 = vunpack.c.l.b16 %v459
    %v496 = vunpack.c.l.b16 %v460
    %v497 = vunpack.c.l.b16 %v461
    %v498 = vunpack.c.l.b16 %v462
    %v499 = vunpack.c.l.b16 %v463
    %v500 = vunpack.c.l.b16 %v464
    %v501 = vunpack.c.l.b16 %v465
    %v502 = vunpack.c.l.b16 %v466
    %v503 = vunpack.c.l.b16 %v467
    %v504 = vunpack.c.l.b16 %v468
    %v505 = vunpack.c.l.b16 %v469
    %v506 = vunpack.c.l.b16 %v470
    %v507 = vunpack.c.l.b16 %v471
    %v508 = vunpack.c.l.b16 %v472
    %v509 = vunpack.c.l.b16 %v473
    %v510 = vunpack.c.l.b16 %v474
    %v511 = vpack.c.b16 %v496, %v495
    %v512 = vpack.c.b16 %v498, %v497
    %v513 = vpack.c.b16 %v500, %v499
    %v514 = vpack.c.b16 %v502, %v501
    %v515 = vpack.c.b16 %v504, %v503
    %v516 = vpack.c.b16 %v506, %v505
    %v517 = vpack.c.b16 %v508, %v507
    %v518 = vpack.c.b16 %v510, %v509
    %527 = vmatpush.bf16.msra.mxu0 %v518
    %528 = vmatpush.bf16.msra.mxu0 %v517
    %529 = vmatpush.bf16.msra.mxu0 %v516
    %530 = vmatpush.bf16.msra.mxu0 %v515
    %531 = vmatpush.bf16.msra.mxu0 %v514
    %532 = vmatpush.bf16.msra.mxu0 %v513
    %533 = vmatpush.bf16.msra.mxu0 %v512
    %534 = vmatpush.bf16.msra.mxu0 %v511
    %535 = vmatmul.bf16.gmra.mxu0 %v458
    %v536 = vpop.f32.mrf.mxu0
    %v537 = vadd.f32 %v477, %v536
    %v538 = vpop.f32.mrf.mxu0
    %539 = vdwg.mxu0
    %vm540 = vcmask 9216
    %541 = vst.msk [vmem:[#allocation2] sm:$0x3] %vm540, %v537
    %v542 = vsel %vm540, %v537, -inf
    %543 = vmax.xlane.f32.xlu0 %v542
    %v544 = vpop.xlane.xlu0 %543
    %v545 = vsub.f32 %v537, %v544
    %v546 = vmul.f32 %v545, 1.442695
    %v547 = vpow.pop %v546
    %v548 = vsel %vm540, %v547, 0.0
    %549 = vadd.xlane.f32.xlu0 %v548
    %v550 = vpop.xlane.xlu0 %549
    %v551 = vrcp.pop %v550
    %v552 = vmul.f32 %v550, %v551
    %v553 = vsub.f32 1.0, %v552
    %v554 = vmul.f32 %v551, %v553
    %v555 = vadd.f32 %v551, %v554
    %vm556 = vweird.f32 %v550
    %vm557 = vweird.f32 %v551
    %vm558 = vmor %vm556, %vm557
    %v559 = vsel %vm558, %v551, %v555
    %v560 = vand.u32 2147483647, %v550
    %vm561 = vcmp.eq.f32.partialorder %v560, 8.507059e+37
    %v562 = vand.u32 %v550, 2147483648
    %v563 = vor.u32 1.1754944e-38, %v562
    %v564 = vsel %vm561, %v563, %v559
    %v565 = vmul.f32 %v547, %v564
    %566 = vst.msk [vmem:[#allocation4] sm:$0x3] %vm540, %v565
    // Predicated region
    $region34: #{re2_forward.17} parent=1 // pred_check
      _
    $region35: #{re2_forward.17} parent=1 // pred_check_branch
      %568 = sbr.rel (0) target = $region37
    $region36: #{re2_forward.17} parent=1 // pred_region
      %570 = vsyncadd [#allocation3], 0
      %s572 = sshll.u32 [#allocation2], 4
      %s573 = int_to_ptr.vmem [resolvable:$true] %s572
      %s574 = sshll.u32 %s8, 4
      %s575 = int_to_ptr.hbm [resolvable:$true] %s574
      %577 = dma.vmem_to_hbm [thread:$0]  %s573, 32, %s575, [#allocation3]
    $region37: #{re2_forward.17} parent=1 // pred_fallthru
      _
    // Predicated region
    $region38: #{re2_forward.17} parent=1 // pred_check
      _
    $region39: #{re2_forward.17} parent=1 // pred_check_branch
      %579 = sbr.rel (0) target = $region41
    $region40: #{re2_forward.17} parent=1 // pred_region
      %581 = vsyncadd [#allocation5], 0
      %s583 = sshll.u32 [#allocation4], 4
      %s584 = int_to_ptr.vmem [resolvable:$true] %s583
      %s585 = sshll.u32 %s9, 4
      %s586 = int_to_ptr.hbm [resolvable:$true] %s585
      %588 = dma.vmem_to_hbm [thread:$0]  %s584, 32, %s586, [#allocation5]
    $region41: #{re2_forward.17} parent=1 // pred_fallthru
      _
    // Predicated region
    $region42: #{re2_forward.17} parent=1 // pred_check
      _
    $region43: #{re2_forward.17} parent=1 // pred_check_branch
      %590 = sbr.rel (0) target = $region45
    $region44: #{re2_forward.17} parent=1 // pred_region
      %592 = dma.done [#allocation3], 32
    $region45: #{re2_forward.17} parent=1 // pred_fallthru
      _
    // Predicated region
    $region46: #{re2_forward.17} parent=1 // pred_check
      _
    $region47: #{re2_forward.17} parent=1 // pred_check_branch
      %594 = sbr.rel (0) target = $region49
    $region48: #{re2_forward.17} parent=1 // pred_region
      %596 = dma.done [#allocation5], 32
    $region49: #{re2_forward.17} parent=1 // pred_fallthru
      _
    %597 = vsyncpa [#allocation3], 1
    %598 = vsyncpa [#allocation5], 1

// kernel: re2_forward.16
$region0: #{re2_forward.16}
  #allocation0 [shape = 'u32[]', space=smem, size = 0x4, offset = 0x4, fixed_abs, tag = 'smem constant byte address 0x4 - core index']
  #allocation1 [shape = 'u32[72,128]{1,0:T(1,128)}', space=vmem, size = 0x9000, scoped, tag = 'internal scratch']
  %s0 = inlined_call_operand.vmem [shape: f32[32,384], index: 0, kind: input, shape index: {}]
  %s1 = inlined_call_operand.vmem [shape: f32[32,384], index: 1, kind: input, shape index: {}]
  %s2 = inlined_call_operand.vmem [shape: bf16[768,128], index: 2, kind: input, shape index: {}]
  %s3 = inlined_call_operand.vmem [shape: f32[1,128], index: 3, kind: input, shape index: {}, may-alias: {3,5,7,9}]
  %s4 = inlined_call_operand.vmem [shape: bf16[768,128], index: 4, kind: input, shape index: {}]
  %s5 = inlined_call_operand.vmem [shape: f32[1,128], index: 5, kind: input, shape index: {}, may-alias: {3,5,7,9}]
  %s6 = inlined_call_operand.vmem [shape: bf16[768,128], index: 6, kind: input, shape index: {}]
  %s7 = inlined_call_operand.vmem [shape: f32[1,128], index: 7, kind: input, shape index: {}, may-alias: {3,5,7,9}]
  %s8 = inlined_call_operand.hbm [shape: bf16[384,128], index: 8, kind: input, shape index: {}]
  %s9 = inlined_call_operand.vmem [shape: f32[1,128], index: 9, kind: input, shape index: {}, may-alias: {3,5,7,9}]
  %s10 = inlined_call_operand.vmem [shape: f32[32,128], index: 10, kind: output, shape index: {}]
  %s11 = sld [smem:[#allocation0]]
  $region54: #{re2_forward.16} parent=0
    _
  %s13 = ssub.s32 1, %s11
  %s14 = scalar_select 0, %s13, %s11
  $region1: #{re2_forward.16} parent=0
    #allocation2 [shape = 'u8[98304]{0}', space=vmem, size = 0x18000, scoped, tag = 'input window, operand 8, single buffered']
    #allocation3 [shape = 's32[1]{0}', space=sflag, size = 0x4, scoped, tag = 'scoped memory for re2_forward.16']
    %15 = vsyncpa [#allocation3], 0
    // Predicated region
    $region2: #{re2_forward.16} parent=1 // pred_check
      _
    $region3: #{re2_forward.16} parent=1 // pred_check_branch
      %17 = sbr.rel (0) target = $region5
    $region4: #{re2_forward.16} parent=1 // pred_region
      _
    $region5: #{re2_forward.16} parent=1 // pred_fallthru
      _
    // Predicated region
    $region6: #{re2_forward.16} parent=1 // pred_check
      _
    $region7: #{re2_forward.16} parent=1 // pred_check_branch
      %19 = sbr.rel (0) target = $region9
    $region8: #{re2_forward.16} parent=1 // pred_region
      _
    $region9: #{re2_forward.16} parent=1 // pred_fallthru
      _
    // Predicated region
    $region10: #{re2_forward.16} parent=1 // pred_check
      _
    $region11: #{re2_forward.16} parent=1 // pred_check_branch
      %21 = sbr.rel (0) target = $region13
    $region12: #{re2_forward.16} parent=1 // pred_region
      _
    $region13: #{re2_forward.16} parent=1 // pred_fallthru
      _
    // Predicated region
    $region14: #{re2_forward.16} parent=1 // pred_check
      _
    $region15: #{re2_forward.16} parent=1 // pred_check_branch
      %23 = sbr.rel (0) target = $region17
    $region16: #{re2_forward.16} parent=1 // pred_region
      _
    $region17: #{re2_forward.16} parent=1 // pred_fallthru
      _
    // Predicated region
    $region18: #{re2_forward.16} parent=1 // pred_check
      _
    $region19: #{re2_forward.16} parent=1 // pred_check_branch
      %25 = sbr.rel (0) target = $region21
    $region20: #{re2_forward.16} parent=1 // pred_region
      _
    $region21: #{re2_forward.16} parent=1 // pred_fallthru
      _
    // Predicated region
    $region22: #{re2_forward.16} parent=1 // pred_check
      _
    $region23: #{re2_forward.16} parent=1 // pred_check_branch
      %27 = sbr.rel (0) target = $region25
    $region24: #{re2_forward.16} parent=1 // pred_region
      _
    $region25: #{re2_forward.16} parent=1 // pred_fallthru
      _
    // Predicated region
    $region26: #{re2_forward.16} parent=1 // pred_check
      _
    $region27: #{re2_forward.16} parent=1 // pred_check_branch
      %29 = sbr.rel (0) target = $region29
    $region28: #{re2_forward.16} parent=1 // pred_region
      _
    $region29: #{re2_forward.16} parent=1 // pred_fallthru
      _
    // Predicated region
    $region30: #{re2_forward.16} parent=1 // pred_check
      _
    $region31: #{re2_forward.16} parent=1 // pred_check_branch
      %31 = sbr.rel (0) target = $region33
    $region32: #{re2_forward.16} parent=1 // pred_region
      _
    $region33: #{re2_forward.16} parent=1 // pred_fallthru
      _
    // Predicated region
    $region34: #{re2_forward.16} parent=1 // pred_check
      _
    $region35: #{re2_forward.16} parent=1 // pred_check_branch
      %33 = sbr.rel (0) target = $region37
    $region36: #{re2_forward.16} parent=1 // pred_region
      %35 = vsyncadd [#allocation3], 0
      %s36 = sshll.u32 %s8, 4
      %s37 = int_to_ptr.hbm [resolvable:$true] %s36
      %s38 = sshll.u32 [#allocation2], 4
      %s39 = int_to_ptr.vmem [resolvable:$true] %s38
      %44 = dma.hbm_to_vmem [thread:$0]  %s37, 3072, %s39, [#allocation3], 64, 64, 4
    $region37: #{re2_forward.16} parent=1 // pred_fallthru
      _
    // Predicated region
    $region38: #{re2_forward.16} parent=1 // pred_check
      _
    $region39: #{re2_forward.16} parent=1 // pred_check_branch
      %46 = sbr.rel (0) target = $region41
    $region40: #{re2_forward.16} parent=1 // pred_region
      _
    $region41: #{re2_forward.16} parent=1 // pred_fallthru
      _
    // Predicated region
    $region42: #{re2_forward.16} parent=1 // pred_check
      _
    $region43: #{re2_forward.16} parent=1 // pred_check_branch
      %48 = sbr.rel (0) target = $region45
    $region44: #{re2_forward.16} parent=1 // pred_region
      %50 = dma.done [#allocation3], 3072
    $region45: #{re2_forward.16} parent=1 // pred_fallthru
      _
    %v51 = vld [vmem:[%s0] sm:$0xff]
    %v52 = vld [vmem:[%s0 + $0x8] sm:$0xff]
    %v53 = vld [vmem:[%s0 + $0x10] sm:$0xff]
    %v54 = vld [vmem:[%s0 + $0x18] sm:$0xff]
    %v55 = vld [vmem:[%s0 + $0x20] sm:$0xff]
    %v56 = vld [vmem:[%s0 + $0x28] sm:$0xff]
    %v57 = vld [vmem:[%s0 + $0x30] sm:$0xff]
    %v58 = vld [vmem:[%s0 + $0x38] sm:$0xff]
    %v59 = vld [vmem:[%s0 + $0x40] sm:$0xff]
    %v60 = vld [vmem:[%s0 + $0x48] sm:$0xff]
    %v61 = vld [vmem:[%s0 + $0x50] sm:$0xff]
    %v62 = vld [vmem:[%s0 + $0x58] sm:$0xff]
    %v63 = vld [vmem:[%s1] sm:$0xff]
    %v64 = vld [vmem:[%s1 + $0x8] sm:$0xff]
    %v65 = vld [vmem:[%s1 + $0x10] sm:$0xff]
    %v66 = vld [vmem:[%s1 + $0x18] sm:$0xff]
    %v67 = vld [vmem:[%s1 + $0x20] sm:$0xff]
    %v68 = vld [vmem:[%s1 + $0x28] sm:$0xff]
    %v69 = vld [vmem:[%s1 + $0x30] sm:$0xff]
    %v70 = vld [vmem:[%s1 + $0x38] sm:$0xff]
    %v71 = vld [vmem:[%s1 + $0x40] sm:$0xff]
    %v72 = vld [vmem:[%s1 + $0x48] sm:$0xff]
    %v73 = vld [vmem:[%s1 + $0x50] sm:$0xff]
    %v74 = vld [vmem:[%s1 + $0x58] sm:$0xff]
    %v75 = vpack.c.bf16 %v54, %v51
    %v76 = vpack.c.bf16 %v55, %v52
    %v77 = vpack.c.bf16 %v56, %v53
    %v78 = vpack.c.bf16 %v60, %v57
    %v79 = vpack.c.bf16 %v61, %v58
    %v80 = vpack.c.bf16 %v62, %v59
    %v81 = vpack.c.bf16 %v66, %v63
    %v82 = vpack.c.bf16 %v67, %v64
    %v83 = vpack.c.bf16 %v68, %v65
    %v84 = vpack.c.bf16 %v72, %v69
    %v85 = vpack.c.bf16 %v73, %v70
    %v86 = vpack.c.bf16 %v74, %v71
    %v87 = vld [vmem:[%s2] sm:$0xf]
    %v88 = vld [vmem:[%s2 + $0x4] sm:$0xf]
    %v89 = vld [vmem:[%s2 + $0x8] sm:$0xf]
    %v90 = vld [vmem:[%s2 + $0xc] sm:$0xf]
    %v91 = vld [vmem:[%s2 + $0x10] sm:$0xf]
    %v92 = vld [vmem:[%s2 + $0x14] sm:$0xf]
    %v93 = vld [vmem:[%s2 + $0x18] sm:$0xf]
    %v94 = vld [vmem:[%s2 + $0x1c] sm:$0xf]
    %v95 = vld [vmem:[%s2 + $0x20] sm:$0xf]
    %v96 = vld [vmem:[%s2 + $0x24] sm:$0xf]
    %v97 = vld [vmem:[%s2 + $0x28] sm:$0xf]
    %v98 = vld [vmem:[%s2 + $0x2c] sm:$0xf]
    %v99 = vld [vmem:[%s2 + $0x30] sm:$0xf]
    %v100 = vld [vmem:[%s2 + $0x34] sm:$0xf]
    %v101 = vld [vmem:[%s2 + $0x38] sm:$0xf]
    %v102 = vld [vmem:[%s2 + $0x3c] sm:$0xf]
    %v103 = vld [vmem:[%s2 + $0x40] sm:$0xf]
    %v104 = vld [vmem:[%s2 + $0x44] sm:$0xf]
    %v105 = vld [vmem:[%s2 + $0x48] sm:$0xf]
    %v106 = vld [vmem:[%s2 + $0x4c] sm:$0xf]
    %v107 = vld [vmem:[%s2 + $0x50] sm:$0xf]
    %v108 = vld [vmem:[%s2 + $0x54] sm:$0xf]
    %v109 = vld [vmem:[%s2 + $0x58] sm:$0xf]
    %v110 = vld [vmem:[%s2 + $0x5c] sm:$0xf]
    %v111 = vld [vmem:[%s2 + $0x60] sm:$0xf]
    %v112 = vld [vmem:[%s2 + $0x64] sm:$0xf]
    %v113 = vld [vmem:[%s2 + $0x68] sm:$0xf]
    %v114 = vld [vmem:[%s2 + $0x6c] sm:$0xf]
    %v115 = vld [vmem:[%s2 + $0x70] sm:$0xf]
    %v116 = vld [vmem:[%s2 + $0x74] sm:$0xf]
    %v117 = vld [vmem:[%s2 + $0x78] sm:$0xf]
    %v118 = vld [vmem:[%s2 + $0x7c] sm:$0xf]
    %v119 = vld [vmem:[%s2 + $0x80] sm:$0xf]
    %v120 = vld [vmem:[%s2 + $0x84] sm:$0xf]
    %v121 = vld [vmem:[%s2 + $0x88] sm:$0xf]
    %v122 = vld [vmem:[%s2 + $0x8c] sm:$0xf]
    %v123 = vld [vmem:[%s2 + $0x90] sm:$0xf]
    %v124 = vld [vmem:[%s2 + $0x94] sm:$0xf]
    %v125 = vld [vmem:[%s2 + $0x98] sm:$0xf]
    %v126 = vld [vmem:[%s2 + $0x9c] sm:$0xf]
    %v127 = vld [vmem:[%s2 + $0xa0] sm:$0xf]
    %v128 = vld [vmem:[%s2 + $0xa4] sm:$0xf]
    %v129 = vld [vmem:[%s2 + $0xa8] sm:$0xf]
    %v130 = vld [vmem:[%s2 + $0xac] sm:$0xf]
    %v131 = vld [vmem:[%s2 + $0xb0] sm:$0xf]
    %v132 = vld [vmem:[%s2 + $0xb4] sm:$0xf]
    %v133 = vld [vmem:[%s2 + $0xb8] sm:$0xf]
    %v134 = vld [vmem:[%s2 + $0xbc] sm:$0xf]
    %v135 = vld [vmem:[%s2 + $0xc0] sm:$0xf]
    %v136 = vld [vmem:[%s2 + $0xc4] sm:$0xf]
    %v137 = vld [vmem:[%s2 + $0xc8] sm:$0xf]
    %v138 = vld [vmem:[%s2 + $0xcc] sm:$0xf]
    %v139 = vld [vmem:[%s2 + $0xd0] sm:$0xf]
    %v140 = vld [vmem:[%s2 + $0xd4] sm:$0xf]
    %v141 = vld [vmem:[%s2 + $0xd8] sm:$0xf]
    %v142 = vld [vmem:[%s2 + $0xdc] sm:$0xf]
    %v143 = vld [vmem:[%s2 + $0xe0] sm:$0xf]
    %v144 = vld [vmem:[%s2 + $0xe4] sm:$0xf]
    %v145 = vld [vmem:[%s2 + $0xe8] sm:$0xf]
    %v146 = vld [vmem:[%s2 + $0xec] sm:$0xf]
    %v147 = vld [vmem:[%s2 + $0xf0] sm:$0xf]
    %v148 = vld [vmem:[%s2 + $0xf4] sm:$0xf]
    %v149 = vld [vmem:[%s2 + $0xf8] sm:$0xf]
    %v150 = vld [vmem:[%s2 + $0xfc] sm:$0xf]
    %v151 = vld [vmem:[%s2 + $0x100] sm:$0xf]
    %v152 = vld [vmem:[%s2 + $0x104] sm:$0xf]
    %v153 = vld [vmem:[%s2 + $0x108] sm:$0xf]
    %v154 = vld [vmem:[%s2 + $0x10c] sm:$0xf]
    %v155 = vld [vmem:[%s2 + $0x110] sm:$0xf]
    %v156 = vld [vmem:[%s2 + $0x114] sm:$0xf]
    %v157 = vld [vmem:[%s2 + $0x118] sm:$0xf]
    %v158 = vld [vmem:[%s2 + $0x11c] sm:$0xf]
    %v159 = vld [vmem:[%s2 + $0x120] sm:$0xf]
    %v160 = vld [vmem:[%s2 + $0x124] sm:$0xf]
    %v161 = vld [vmem:[%s2 + $0x128] sm:$0xf]
    %v162 = vld [vmem:[%s2 + $0x12c] sm:$0xf]
    %v163 = vld [vmem:[%s2 + $0x130] sm:$0xf]
    %v164 = vld [vmem:[%s2 + $0x134] sm:$0xf]
    %v165 = vld [vmem:[%s2 + $0x138] sm:$0xf]
    %v166 = vld [vmem:[%s2 + $0x13c] sm:$0xf]
    %v167 = vld [vmem:[%s2 + $0x140] sm:$0xf]
    %v168 = vld [vmem:[%s2 + $0x144] sm:$0xf]
    %v169 = vld [vmem:[%s2 + $0x148] sm:$0xf]
    %v170 = vld [vmem:[%s2 + $0x14c] sm:$0xf]
    %v171 = vld [vmem:[%s2 + $0x150] sm:$0xf]
    %v172 = vld [vmem:[%s2 + $0x154] sm:$0xf]
    %v173 = vld [vmem:[%s2 + $0x158] sm:$0xf]
    %v174 = vld [vmem:[%s2 + $0x15c] sm:$0xf]
    %v175 = vld [vmem:[%s2 + $0x160] sm:$0xf]
    %v176 = vld [vmem:[%s2 + $0x164] sm:$0xf]
    %v177 = vld [vmem:[%s2 + $0x168] sm:$0xf]
    %v178 = vld [vmem:[%s2 + $0x16c] sm:$0xf]
    %v179 = vld [vmem:[%s2 + $0x170] sm:$0xf]
    %v180 = vld [vmem:[%s2 + $0x174] sm:$0xf]
    %v181 = vld [vmem:[%s2 + $0x178] sm:$0xf]
    %v182 = vld [vmem:[%s2 + $0x17c] sm:$0xf]
    %v231 = vunpack.c.l.b16 %v135
    %v232 = vunpack.c.l.b16 %v136
    %v233 = vunpack.c.l.b16 %v137
    %v234 = vunpack.c.l.b16 %v138
    %v235 = vunpack.c.l.b16 %v139
    %v236 = vunpack.c.l.b16 %v140
    %v237 = vunpack.c.l.b16 %v141
    %v238 = vunpack.c.l.b16 %v142
    %v239 = vunpack.c.l.b16 %v143
    %v240 = vunpack.c.l.b16 %v144
    %v241 = vunpack.c.l.b16 %v145
    %v242 = vunpack.c.l.b16 %v146
    %v243 = vunpack.c.l.b16 %v147
    %v244 = vunpack.c.l.b16 %v148
    %v245 = vunpack.c.l.b16 %v149
    %v246 = vunpack.c.l.b16 %v150
    %v247 = vunpack.c.l.b16 %v151
    %v248 = vunpack.c.l.b16 %v152
    %v249 = vunpack.c.l.b16 %v153
    %v250 = vunpack.c.l.b16 %v154
    %v251 = vunpack.c.l.b16 %v155
    %v252 = vunpack.c.l.b16 %v156
    %v253 = vunpack.c.l.b16 %v157
    %v254 = vunpack.c.l.b16 %v158
    %v255 = vunpack.c.l.b16 %v159
    %v256 = vunpack.c.l.b16 %v160
    %v257 = vunpack.c.l.b16 %v161
    %v258 = vunpack.c.l.b16 %v162
    %v259 = vunpack.c.l.b16 %v163
    %v260 = vunpack.c.l.b16 %v164
    %v261 = vunpack.c.l.b16 %v165
    %v262 = vunpack.c.l.b16 %v166
    %v263 = vunpack.c.l.b16 %v167
    %v264 = vunpack.c.l.b16 %v168
    %v265 = vunpack.c.l.b16 %v169
    %v266 = vunpack.c.l.b16 %v170
    %v267 = vunpack.c.l.b16 %v171
    %v268 = vunpack.c.l.b16 %v172
    %v269 = vunpack.c.l.b16 %v173
    %v270 = vunpack.c.l.b16 %v174
    %v271 = vunpack.c.l.b16 %v175
    %v272 = vunpack.c.l.b16 %v176
    %v273 = vunpack.c.l.b16 %v177
    %v274 = vunpack.c.l.b16 %v178
    %v275 = vunpack.c.l.b16 %v179
    %v276 = vunpack.c.l.b16 %v180
    %v277 = vunpack.c.l.b16 %v181
    %v278 = vunpack.c.l.b16 %v182
    %v279 = vpack.c.b16 %v232, %v231
    %v280 = vpack.c.b16 %v234, %v233
    %v281 = vpack.c.b16 %v236, %v235
    %v282 = vpack.c.b16 %v238, %v237
    %v283 = vpack.c.b16 %v240, %v239
    %v284 = vpack.c.b16 %v242, %v241
    %v285 = vpack.c.b16 %v244, %v243
    %v286 = vpack.c.b16 %v246, %v245
    %v287 = vpack.c.b16 %v248, %v247
    %v288 = vpack.c.b16 %v250, %v249
    %v289 = vpack.c.b16 %v252, %v251
    %v290 = vpack.c.b16 %v254, %v253
    %v291 = vpack.c.b16 %v256, %v255
    %v292 = vpack.c.b16 %v258, %v257
    %v293 = vpack.c.b16 %v260, %v259
    %v294 = vpack.c.b16 %v262, %v261
    %v295 = vpack.c.b16 %v264, %v263
    %v296 = vpack.c.b16 %v266, %v265
    %v297 = vpack.c.b16 %v268, %v267
    %v298 = vpack.c.b16 %v270, %v269
    %v299 = vpack.c.b16 %v272, %v271
    %v300 = vpack.c.b16 %v274, %v273
    %v301 = vpack.c.b16 %v276, %v275
    %v302 = vpack.c.b16 %v278, %v277
    %327 = vmatpush.bf16.msra.mxu0 %v286
    %328 = vmatpush.bf16.msra.mxu0 %v285
    %329 = vmatpush.bf16.msra.mxu0 %v284
    %330 = vmatpush.bf16.msra.mxu0 %v283
    %331 = vmatpush.bf16.msra.mxu0 %v282
    %332 = vmatpush.bf16.msra.mxu0 %v281
    %333 = vmatpush.bf16.msra.mxu0 %v280
    %334 = vmatpush.bf16.msra.mxu0 %v279
    %335 = vmatmul.bf16.gmra.mxu0 %v81
    %v336 = vpop.f32.mrf.mxu0
    %v337 = vadd.f32 0.0, %v336
    %v338 = vpop.f32.mrf.mxu0
    %v339 = vadd.f32 0.0, %v338
    %340 = vmatmul.bf16.gmra.mxu0 %v84
    %v341 = vpop.f32.mrf.mxu0
    %v342 = vadd.f32 0.0, %v341
    %v343 = vpop.f32.mrf.mxu0
    %v344 = vadd.f32 0.0, %v343
    %345 = vdwg.mxu0
    %346 = vmatpush.bf16.msra.mxu0 %v294
    %347 = vmatpush.bf16.msra.mxu0 %v293
    %348 = vmatpush.bf16.msra.mxu0 %v292
    %349 = vmatpush.bf16.msra.mxu0 %v291
    %350 = vmatpush.bf16.msra.mxu0 %v290
    %351 = vmatpush.bf16.msra.mxu0 %v289
    %352 = vmatpush.bf16.msra.mxu0 %v288
    %353 = vmatpush.bf16.msra.mxu0 %v287
    %354 = vmatmul.bf16.gmra.mxu0 %v82
    %v355 = vpop.f32.mrf.mxu0
    %v356 = vadd.f32 %v337, %v355
    %v357 = vpop.f32.mrf.mxu0
    %v358 = vadd.f32 %v339, %v357
    %359 = vmatmul.bf16.gmra.mxu0 %v85
    %v360 = vpop.f32.mrf.mxu0
    %v361 = vadd.f32 %v342, %v360
    %v362 = vpop.f32.mrf.mxu0
    %v363 = vadd.f32 %v344, %v362
    %364 = vdwg.mxu0
    %365 = vmatpush.bf16.msra.mxu0 %v302
    %366 = vmatpush.bf16.msra.mxu0 %v301
    %367 = vmatpush.bf16.msra.mxu0 %v300
    %368 = vmatpush.bf16.msra.mxu0 %v299
    %369 = vmatpush.bf16.msra.mxu0 %v298
    %370 = vmatpush.bf16.msra.mxu0 %v297
    %371 = vmatpush.bf16.msra.mxu0 %v296
    %372 = vmatpush.bf16.msra.mxu0 %v295
    %373 = vmatmul.bf16.gmra.mxu0 %v83
    %v374 = vpop.f32.mrf.mxu0
    %v375 = vadd.f32 %v356, %v374
    %v376 = vpop.f32.mrf.mxu0
    %v377 = vadd.f32 %v358, %v376
    %378 = vmatmul.bf16.gmra.mxu0 %v86
    %v379 = vpop.f32.mrf.mxu0
    %v380 = vadd.f32 %v361, %v379
    %v381 = vpop.f32.mrf.mxu0
    %v382 = vadd.f32 %v363, %v381
    %383 = vdwg.mxu0
    %v432 = vunpack.c.l.b16 %v87
    %v433 = vunpack.c.l.b16 %v88
    %v434 = vunpack.c.l.b16 %v89
    %v435 = vunpack.c.l.b16 %v90
    %v436 = vunpack.c.l.b16 %v91
    %v437 = vunpack.c.l.b16 %v92
    %v438 = vunpack.c.l.b16 %v93
    %v439 = vunpack.c.l.b16 %v94
    %v440 = vunpack.c.l.b16 %v95
    %v441 = vunpack.c.l.b16 %v96
    %v442 = vunpack.c.l.b16 %v97
    %v443 = vunpack.c.l.b16 %v98
    %v444 = vunpack.c.l.b16 %v99
    %v445 = vunpack.c.l.b16 %v100
    %v446 = vunpack.c.l.b16 %v101
    %v447 = vunpack.c.l.b16 %v102
    %v448 = vunpack.c.l.b16 %v103
    %v449 = vunpack.c.l.b16 %v104
    %v450 = vunpack.c.l.b16 %v105
    %v451 = vunpack.c.l.b16 %v106
    %v452 = vunpack.c.l.b16 %v107
    %v453 = vunpack.c.l.b16 %v108
    %v454 = vunpack.c.l.b16 %v109
    %v455 = vunpack.c.l.b16 %v110
    %v456 = vunpack.c.l.b16 %v111
    %v457 = vunpack.c.l.b16 %v112
    %v458 = vunpack.c.l.b16 %v113
    %v459 = vunpack.c.l.b16 %v114
    %v460 = vunpack.c.l.b16 %v115
    %v461 = vunpack.c.l.b16 %v116
    %v462 = vunpack.c.l.b16 %v117
    %v463 = vunpack.c.l.b16 %v118
    %v464 = vunpack.c.l.b16 %v119
    %v465 = vunpack.c.l.b16 %v120
    %v466 = vunpack.c.l.b16 %v121
    %v467 = vunpack.c.l.b16 %v122
    %v468 = vunpack.c.l.b16 %v123
    %v469 = vunpack.c.l.b16 %v124
    %v470 = vunpack.c.l.b16 %v125
    %v471 = vunpack.c.l.b16 %v126
    %v472 = vunpack.c.l.b16 %v127
    %v473 = vunpack.c.l.b16 %v128
    %v474 = vunpack.c.l.b16 %v129
    %v475 = vunpack.c.l.b16 %v130
    %v476 = vunpack.c.l.b16 %v131
    %v477 = vunpack.c.l.b16 %v132
    %v478 = vunpack.c.l.b16 %v133
    %v479 = vunpack.c.l.b16 %v134
    %v480 = vpack.c.b16 %v433, %v432
    %v481 = vpack.c.b16 %v435, %v434
    %v482 = vpack.c.b16 %v437, %v436
    %v483 = vpack.c.b16 %v439, %v438
    %v484 = vpack.c.b16 %v441, %v440
    %v485 = vpack.c.b16 %v443, %v442
    %v486 = vpack.c.b16 %v445, %v444
    %v487 = vpack.c.b16 %v447, %v446
    %v488 = vpack.c.b16 %v449, %v448
    %v489 = vpack.c.b16 %v451, %v450
    %v490 = vpack.c.b16 %v453, %v452
    %v491 = vpack.c.b16 %v455, %v454
    %v492 = vpack.c.b16 %v457, %v456
    %v493 = vpack.c.b16 %v459, %v458
    %v494 = vpack.c.b16 %v461, %v460
    %v495 = vpack.c.b16 %v463, %v462
    %v496 = vpack.c.b16 %v465, %v464
    %v497 = vpack.c.b16 %v467, %v466
    %v498 = vpack.c.b16 %v469, %v468
    %v499 = vpack.c.b16 %v471, %v470
    %v500 = vpack.c.b16 %v473, %v472
    %v501 = vpack.c.b16 %v475, %v474
    %v502 = vpack.c.b16 %v477, %v476
    %v503 = vpack.c.b16 %v479, %v478
    %528 = vmatpush.bf16.msra.mxu0 %v487
    %529 = vmatpush.bf16.msra.mxu0 %v486
    %530 = vmatpush.bf16.msra.mxu0 %v485
    %531 = vmatpush.bf16.msra.mxu0 %v484
    %532 = vmatpush.bf16.msra.mxu0 %v483
    %533 = vmatpush.bf16.msra.mxu0 %v482
    %534 = vmatpush.bf16.msra.mxu0 %v481
    %535 = vmatpush.bf16.msra.mxu0 %v480
    %536 = vmatmul.bf16.gmra.mxu0 %v75
    %v537 = vpop.f32.mrf.mxu0
    %v538 = vadd.f32 %v375, %v537
    %v539 = vpop.f32.mrf.mxu0
    %v540 = vadd.f32 %v377, %v539
    %541 = vmatmul.bf16.gmra.mxu0 %v78
    %v542 = vpop.f32.mrf.mxu0
    %v543 = vadd.f32 %v380, %v542
    %v544 = vpop.f32.mrf.mxu0
    %v545 = vadd.f32 %v382, %v544
    %546 = vdwg.mxu0
    %547 = vmatpush.bf16.msra.mxu0 %v495
    %548 = vmatpush.bf16.msra.mxu0 %v494
    %549 = vmatpush.bf16.msra.mxu0 %v493
    %550 = vmatpush.bf16.msra.mxu0 %v492
    %551 = vmatpush.bf16.msra.mxu0 %v491
    %552 = vmatpush.bf16.msra.mxu0 %v490
    %553 = vmatpush.bf16.msra.mxu0 %v489
    %554 = vmatpush.bf16.msra.mxu0 %v488
    %555 = vmatmul.bf16.gmra.mxu0 %v76
    %v556 = vpop.f32.mrf.mxu0
    %v557 = vadd.f32 %v538, %v556
    %v558 = vpop.f32.mrf.mxu0
    %v559 = vadd.f32 %v540, %v558
    %560 = vmatmul.bf16.gmra.mxu0 %v79
    %v561 = vpop.f32.mrf.mxu0
    %v562 = vadd.f32 %v543, %v561
    %v563 = vpop.f32.mrf.mxu0
    %v564 = vadd.f32 %v545, %v563
    %565 = vdwg.mxu0
    %566 = vmatpush.bf16.msra.mxu0 %v503
    %567 = vmatpush.bf16.msra.mxu0 %v502
    %568 = vmatpush.bf16.msra.mxu0 %v501
    %569 = vmatpush.bf16.msra.mxu0 %v500
    %570 = vmatpush.bf16.msra.mxu0 %v499
    %571 = vmatpush.bf16.msra.mxu0 %v498
    %572 = vmatpush.bf16.msra.mxu0 %v497
    %573 = vmatpush.bf16.msra.mxu0 %v496
    %574 = vmatmul.bf16.gmra.mxu0 %v77
    %v575 = vpop.f32.mrf.mxu0
    %v576 = vadd.f32 %v557, %v575
    %v577 = vpop.f32.mrf.mxu0
    %v578 = vadd.f32 %v559, %v577
    %579 = vmatmul.bf16.gmra.mxu0 %v80
    %v580 = vpop.f32.mrf.mxu0
    %v581 = vadd.f32 %v562, %v580
    %v582 = vpop.f32.mrf.mxu0
    %v583 = vadd.f32 %v564, %v582
    %584 = vdwg.mxu0
    %v585 = vld [vmem:[%s3] sm:$0x1]
    %v587 = vperm.slane %v585, 0
    %v589 = vadd.f32 %v576, %v587
    %v590 = vadd.f32 %v578, %v587
    %v591 = vadd.f32 %v581, %v587
    %v592 = vadd.f32 %v583, %v587
    %v593 = vmul.f32 %v589, %v589
    %v594 = vmul.f32 %v590, %v590
    %v595 = vmul.f32 %v591, %v591
    %v596 = vmul.f32 %v592, %v592
    %v597 = vmul.f32 %v589, %v593
    %v598 = vmul.f32 %v590, %v594
    %v599 = vmul.f32 %v591, %v595
    %v600 = vmul.f32 %v592, %v596
    %v601 = vmul.f32 %v597, 0.044715
    %v602 = vmul.f32 %v598, 0.044715
    %v603 = vmul.f32 %v599, 0.044715
    %v604 = vmul.f32 %v600, 0.044715
    %v605 = vadd.f32 %v589, %v601
    %v606 = vadd.f32 %v590, %v602
    %v607 = vadd.f32 %v591, %v603
    %v608 = vadd.f32 %v592, %v604
    %v609 = vmul.f32 %v605, 0.7978846
    %v610 = vmul.f32 %v606, 0.7978846
    %v611 = vmul.f32 %v607, 0.7978846
    %v612 = vmul.f32 %v608, 0.7978846
    %v613 = vtanh.pop %v609
    %v614 = vtanh.pop %v610
    %v615 = vtanh.pop %v611
    %v616 = vtanh.pop %v612
    %v617 = vadd.f32 %v613, 1.0
    %v618 = vadd.f32 %v614, 1.0
    %v619 = vadd.f32 %v615, 1.0
    %v620 = vadd.f32 %v616, 1.0
    %v621 = vmul.f32 %v617, 0.5
    %v622 = vmul.f32 %v618, 0.5
    %v623 = vmul.f32 %v619, 0.5
    %v624 = vmul.f32 %v620, 0.5
    %v625 = vmul.f32 %v589, %v621
    %v626 = vmul.f32 %v590, %v622
    %v627 = vmul.f32 %v591, %v623
    %v628 = vmul.f32 %v592, %v624
    %v629 = vsub.f32 %v51, %v63
    %v630 = vsub.f32 %v52, %v64
    %v631 = vsub.f32 %v53, %v65
    %v632 = vsub.f32 %v54, %v66
    %v633 = vsub.f32 %v55, %v67
    %v634 = vsub.f32 %v56, %v68
    %v635 = vsub.f32 %v57, %v69
    %v636 = vsub.f32 %v58, %v70
    %v637 = vsub.f32 %v59, %v71
    %v638 = vsub.f32 %v60, %v72
    %v639 = vsub.f32 %v61, %v73
    %v640 = vsub.f32 %v62, %v74
    %v641 = vpack.c.bf16 %v632, %v629
    %v642 = vpack.c.bf16 %v633, %v630
    %v643 = vpack.c.bf16 %v634, %v631
    %v644 = vpack.c.bf16 %v638, %v635
    %v645 = vpack.c.bf16 %v639, %v636
    %v646 = vpack.c.bf16 %v640, %v637
    %v647 = vld [vmem:[%s4] sm:$0xf]
    %v648 = vld [vmem:[%s4 + $0x4] sm:$0xf]
    %v649 = vld [vmem:[%s4 + $0x8] sm:$0xf]
    %v650 = vld [vmem:[%s4 + $0xc] sm:$0xf]
    %v651 = vld [vmem:[%s4 + $0x10] sm:$0xf]
    %v652 = vld [vmem:[%s4 + $0x14] sm:$0xf]
    %v653 = vld [vmem:[%s4 + $0x18] sm:$0xf]
    %v654 = vld [vmem:[%s4 + $0x1c] sm:$0xf]
    %v655 = vld [vmem:[%s4 + $0x20] sm:$0xf]
    %v656 = vld [vmem:[%s4 + $0x24] sm:$0xf]
    %v657 = vld [vmem:[%s4 + $0x28] sm:$0xf]
    %v658 = vld [vmem:[%s4 + $0x2c] sm:$0xf]
    %v659 = vld [vmem:[%s4 + $0x30] sm:$0xf]
    %v660 = vld [vmem:[%s4 + $0x34] sm:$0xf]
    %v661 = vld [vmem:[%s4 + $0x38] sm:$0xf]
    %v662 = vld [vmem:[%s4 + $0x3c] sm:$0xf]
    %v663 = vld [vmem:[%s4 + $0x40] sm:$0xf]
    %v664 = vld [vmem:[%s4 + $0x44] sm:$0xf]
    %v665 = vld [vmem:[%s4 + $0x48] sm:$0xf]
    %v666 = vld [vmem:[%s4 + $0x4c] sm:$0xf]
    %v667 = vld [vmem:[%s4 + $0x50] sm:$0xf]
    %v668 = vld [vmem:[%s4 + $0x54] sm:$0xf]
    %v669 = vld [vmem:[%s4 + $0x58] sm:$0xf]
    %v670 = vld [vmem:[%s4 + $0x5c] sm:$0xf]
    %v671 = vld [vmem:[%s4 + $0x60] sm:$0xf]
    %v672 = vld [vmem:[%s4 + $0x64] sm:$0xf]
    %v673 = vld [vmem:[%s4 + $0x68] sm:$0xf]
    %v674 = vld [vmem:[%s4 + $0x6c] sm:$0xf]
    %v675 = vld [vmem:[%s4 + $0x70] sm:$0xf]
    %v676 = vld [vmem:[%s4 + $0x74] sm:$0xf]
    %v677 = vld [vmem:[%s4 + $0x78] sm:$0xf]
    %v678 = vld [vmem:[%s4 + $0x7c] sm:$0xf]
    %v679 = vld [vmem:[%s4 + $0x80] sm:$0xf]
    %v680 = vld [vmem:[%s4 + $0x84] sm:$0xf]
    %v681 = vld [vmem:[%s4 + $0x88] sm:$0xf]
    %v682 = vld [vmem:[%s4 + $0x8c] sm:$0xf]
    %v683 = vld [vmem:[%s4 + $0x90] sm:$0xf]
    %v684 = vld [vmem:[%s4 + $0x94] sm:$0xf]
    %v685 = vld [vmem:[%s4 + $0x98] sm:$0xf]
    %v686 = vld [vmem:[%s4 + $0x9c] sm:$0xf]
    %v687 = vld [vmem:[%s4 + $0xa0] sm:$0xf]
    %v688 = vld [vmem:[%s4 + $0xa4] sm:$0xf]
    %v689 = vld [vmem:[%s4 + $0xa8] sm:$0xf]
    %v690 = vld [vmem:[%s4 + $0xac] sm:$0xf]
    %v691 = vld [vmem:[%s4 + $0xb0] sm:$0xf]
    %v692 = vld [vmem:[%s4 + $0xb4] sm:$0xf]
    %v693 = vld [vmem:[%s4 + $0xb8] sm:$0xf]
    %v694 = vld [vmem:[%s4 + $0xbc] sm:$0xf]
    %v695 = vld [vmem:[%s4 + $0xc0] sm:$0xf]
    %v696 = vld [vmem:[%s4 + $0xc4] sm:$0xf]
    %v697 = vld [vmem:[%s4 + $0xc8] sm:$0xf]
    %v698 = vld [vmem:[%s4 + $0xcc] sm:$0xf]
    %v699 = vld [vmem:[%s4 + $0xd0] sm:$0xf]
    %v700 = vld [vmem:[%s4 + $0xd4] sm:$0xf]
    %v701 = vld [vmem:[%s4 + $0xd8] sm:$0xf]
    %v702 = vld [vmem:[%s4 + $0xdc] sm:$0xf]
    %v703 = vld [vmem:[%s4 + $0xe0] sm:$0xf]
    %v704 = vld [vmem:[%s4 + $0xe4] sm:$0xf]
    %v705 = vld [vmem:[%s4 + $0xe8] sm:$0xf]
    %v706 = vld [vmem:[%s4 + $0xec] sm:$0xf]
    %v707 = vld [vmem:[%s4 + $0xf0] sm:$0xf]
    %v708 = vld [vmem:[%s4 + $0xf4] sm:$0xf]
    %v709 = vld [vmem:[%s4 + $0xf8] sm:$0xf]
    %v710 = vld [vmem:[%s4 + $0xfc] sm:$0xf]
    %v711 = vld [vmem:[%s4 + $0x100] sm:$0xf]
    %v712 = vld [vmem:[%s4 + $0x104] sm:$0xf]
    %v713 = vld [vmem:[%s4 + $0x108] sm:$0xf]
    %v714 = vld [vmem:[%s4 + $0x10c] sm:$0xf]
    %v715 = vld [vmem:[%s4 + $0x110] sm:$0xf]
    %v716 = vld [vmem:[%s4 + $0x114] sm:$0xf]
    %v717 = vld [vmem:[%s4 + $0x118] sm:$0xf]
    %v718 = vld [vmem:[%s4 + $0x11c] sm:$0xf]
    %v719 = vld [vmem:[%s4 + $0x120] sm:$0xf]
    %v720 = vld [vmem:[%s4 + $0x124] sm:$0xf]
    %v721 = vld [vmem:[%s4 + $0x128] sm:$0xf]
    %v722 = vld [vmem:[%s4 + $0x12c] sm:$0xf]
    %v723 = vld [vmem:[%s4 + $0x130] sm:$0xf]
    %v724 = vld [vmem:[%s4 + $0x134] sm:$0xf]
    %v725 = vld [vmem:[%s4 + $0x138] sm:$0xf]
    %v726 = vld [vmem:[%s4 + $0x13c] sm:$0xf]
    %v727 = vld [vmem:[%s4 + $0x140] sm:$0xf]
    %v728 = vld [vmem:[%s4 + $0x144] sm:$0xf]
    %v729 = vld [vmem:[%s4 + $0x148] sm:$0xf]
    %v730 = vld [vmem:[%s4 + $0x14c] sm:$0xf]
    %v731 = vld [vmem:[%s4 + $0x150] sm:$0xf]
    %v732 = vld [vmem:[%s4 + $0x154] sm:$0xf]
    %v733 = vld [vmem:[%s4 + $0x158] sm:$0xf]
    %v734 = vld [vmem:[%s4 + $0x15c] sm:$0xf]
    %v735 = vld [vmem:[%s4 + $0x160] sm:$0xf]
    %v736 = vld [vmem:[%s4 + $0x164] sm:$0xf]
    %v737 = vld [vmem:[%s4 + $0x168] sm:$0xf]
    %v738 = vld [vmem:[%s4 + $0x16c] sm:$0xf]
    %v739 = vld [vmem:[%s4 + $0x170] sm:$0xf]
    %v740 = vld [vmem:[%s4 + $0x174] sm:$0xf]
    %v741 = vld [vmem:[%s4 + $0x178] sm:$0xf]
    %v742 = vld [vmem:[%s4 + $0x17c] sm:$0xf]
    %v791 = vunpack.c.l.b16 %v695
    %v792 = vunpack.c.l.b16 %v696
    %v793 = vunpack.c.l.b16 %v697
    %v794 = vunpack.c.l.b16 %v698
    %v795 = vunpack.c.l.b16 %v699
    %v796 = vunpack.c.l.b16 %v700
    %v797 = vunpack.c.l.b16 %v701
    %v798 = vunpack.c.l.b16 %v702
    %v799 = vunpack.c.l.b16 %v703
    %v800 = vunpack.c.l.b16 %v704
    %v801 = vunpack.c.l.b16 %v705
    %v802 = vunpack.c.l.b16 %v706
    %v803 = vunpack.c.l.b16 %v707
    %v804 = vunpack.c.l.b16 %v708
    %v805 = vunpack.c.l.b16 %v709
    %v806 = vunpack.c.l.b16 %v710
    %v807 = vunpack.c.l.b16 %v711
    %v808 = vunpack.c.l.b16 %v712
    %v809 = vunpack.c.l.b16 %v713
    %v810 = vunpack.c.l.b16 %v714
    %v811 = vunpack.c.l.b16 %v715
    %v812 = vunpack.c.l.b16 %v716
    %v813 = vunpack.c.l.b16 %v717
    %v814 = vunpack.c.l.b16 %v718
    %v815 = vunpack.c.l.b16 %v719
    %v816 = vunpack.c.l.b16 %v720
    %v817 = vunpack.c.l.b16 %v721
    %v818 = vunpack.c.l.b16 %v722
    %v819 = vunpack.c.l.b16 %v723
    %v820 = vunpack.c.l.b16 %v724
    %v821 = vunpack.c.l.b16 %v725
    %v822 = vunpack.c.l.b16 %v726
    %v823 = vunpack.c.l.b16 %v727
    %v824 = vunpack.c.l.b16 %v728
    %v825 = vunpack.c.l.b16 %v729
    %v826 = vunpack.c.l.b16 %v730
    %v827 = vunpack.c.l.b16 %v731
    %v828 = vunpack.c.l.b16 %v732
    %v829 = vunpack.c.l.b16 %v733
    %v830 = vunpack.c.l.b16 %v734
    %v831 = vunpack.c.l.b16 %v735
    %v832 = vunpack.c.l.b16 %v736
    %v833 = vunpack.c.l.b16 %v737
    %v834 = vunpack.c.l.b16 %v738
    %v835 = vunpack.c.l.b16 %v739
    %v836 = vunpack.c.l.b16 %v740
    %v837 = vunpack.c.l.b16 %v741
    %v838 = vunpack.c.l.b16 %v742
    %v839 = vpack.c.b16 %v792, %v791
    %v840 = vpack.c.b16 %v794, %v793
    %v841 = vpack.c.b16 %v796, %v795
    %v842 = vpack.c.b16 %v798, %v797
    %v843 = vpack.c.b16 %v800, %v799
    %v844 = vpack.c.b16 %v802, %v801
    %v845 = vpack.c.b16 %v804, %v803
    %v846 = vpack.c.b16 %v806, %v805
    %v847 = vpack.c.b16 %v808, %v807
    %v848 = vpack.c.b16 %v810, %v809
    %v849 = vpack.c.b16 %v812, %v811
    %v850 = vpack.c.b16 %v814, %v813
    %v851 = vpack.c.b16 %v816, %v815
    %v852 = vpack.c.b16 %v818, %v817
    %v853 = vpack.c.b16 %v820, %v819
    %v854 = vpack.c.b16 %v822, %v821
    %v855 = vpack.c.b16 %v824, %v823
    %v856 = vpack.c.b16 %v826, %v825
    %v857 = vpack.c.b16 %v828, %v827
    %v858 = vpack.c.b16 %v830, %v829
    %v859 = vpack.c.b16 %v832, %v831
    %v860 = vpack.c.b16 %v834, %v833
    %v861 = vpack.c.b16 %v836, %v835
    %v862 = vpack.c.b16 %v838, %v837
    %887 = vmatpush.bf16.msra.mxu0 %v846
    %888 = vmatpush.bf16.msra.mxu0 %v845
    %889 = vmatpush.bf16.msra.mxu0 %v844
    %890 = vmatpush.bf16.msra.mxu0 %v843
    %891 = vmatpush.bf16.msra.mxu0 %v842
    %892 = vmatpush.bf16.msra.mxu0 %v841
    %893 = vmatpush.bf16.msra.mxu0 %v840
    %894 = vmatpush.bf16.msra.mxu0 %v839
    %895 = vmatmul.bf16.gmra.mxu0 %v641
    %v896 = vpop.f32.mrf.mxu0
    %v897 = vadd.f32 0.0, %v896
    %v898 = vpop.f32.mrf.mxu0
    %v899 = vadd.f32 0.0, %v898
    %900 = vmatmul.bf16.gmra.mxu0 %v644
    %v901 = vpop.f32.mrf.mxu0
    %v902 = vadd.f32 0.0, %v901
    %v903 = vpop.f32.mrf.mxu0
    %v904 = vadd.f32 0.0, %v903
    %905 = vdwg.mxu0
    %906 = vmatpush.bf16.msra.mxu0 %v854
    %907 = vmatpush.bf16.msra.mxu0 %v853
    %908 = vmatpush.bf16.msra.mxu0 %v852
    %909 = vmatpush.bf16.msra.mxu0 %v851
    %910 = vmatpush.bf16.msra.mxu0 %v850
    %911 = vmatpush.bf16.msra.mxu0 %v849
    %912 = vmatpush.bf16.msra.mxu0 %v848
    %913 = vmatpush.bf16.msra.mxu0 %v847
    %914 = vmatmul.bf16.gmra.mxu0 %v642
    %v915 = vpop.f32.mrf.mxu0
    %v916 = vadd.f32 %v897, %v915
    %v917 = vpop.f32.mrf.mxu0
    %v918 = vadd.f32 %v899, %v917
    %919 = vmatmul.bf16.gmra.mxu0 %v645
    %v920 = vpop.f32.mrf.mxu0
    %v921 = vadd.f32 %v902, %v920
    %v922 = vpop.f32.mrf.mxu0
    %v923 = vadd.f32 %v904, %v922
    %924 = vdwg.mxu0
    %925 = vmatpush.bf16.msra.mxu0 %v862
    %926 = vmatpush.bf16.msra.mxu0 %v861
    %927 = vmatpush.bf16.msra.mxu0 %v860
    %928 = vmatpush.bf16.msra.mxu0 %v859
    %929 = vmatpush.bf16.msra.mxu0 %v858
    %930 = vmatpush.bf16.msra.mxu0 %v857
    %931 = vmatpush.bf16.msra.mxu0 %v856
    %932 = vmatpush.bf16.msra.mxu0 %v855
    %933 = vmatmul.bf16.gmra.mxu0 %v643
    %v934 = vpop.f32.mrf.mxu0
    %v935 = vadd.f32 %v916, %v934
    %v936 = vpop.f32.mrf.mxu0
    %v937 = vadd.f32 %v918, %v936
    %938 = vmatmul.bf16.gmra.mxu0 %v646
    %v939 = vpop.f32.mrf.mxu0
    %v940 = vadd.f32 %v921, %v939
    %v941 = vpop.f32.mrf.mxu0
    %v942 = vadd.f32 %v923, %v941
    %943 = vdwg.mxu0
    %v992 = vunpack.c.l.b16 %v647
    %v993 = vunpack.c.l.b16 %v648
    %v994 = vunpack.c.l.b16 %v649
    %v995 = vunpack.c.l.b16 %v650
    %v996 = vunpack.c.l.b16 %v651
    %v997 = vunpack.c.l.b16 %v652
    %v998 = vunpack.c.l.b16 %v653
    %v999 = vunpack.c.l.b16 %v654
    %v1000 = vunpack.c.l.b16 %v655
    %v1001 = vunpack.c.l.b16 %v656
    %v1002 = vunpack.c.l.b16 %v657
    %v1003 = vunpack.c.l.b16 %v658
    %v1004 = vunpack.c.l.b16 %v659
    %v1005 = vunpack.c.l.b16 %v660
    %v1006 = vunpack.c.l.b16 %v661
    %v1007 = vunpack.c.l.b16 %v662
    %v1008 = vunpack.c.l.b16 %v663
    %v1009 = vunpack.c.l.b16 %v664
    %v1010 = vunpack.c.l.b16 %v665
    %v1011 = vunpack.c.l.b16 %v666
    %v1012 = vunpack.c.l.b16 %v667
    %v1013 = vunpack.c.l.b16 %v668
    %v1014 = vunpack.c.l.b16 %v669
    %v1015 = vunpack.c.l.b16 %v670
    %v1016 = vunpack.c.l.b16 %v671
    %v1017 = vunpack.c.l.b16 %v672
    %v1018 = vunpack.c.l.b16 %v673
    %v1019 = vunpack.c.l.b16 %v674
    %v1020 = vunpack.c.l.b16 %v675
    %v1021 = vunpack.c.l.b16 %v676
    %v1022 = vunpack.c.l.b16 %v677
    %v1023 = vunpack.c.l.b16 %v678
    %v1024 = vunpack.c.l.b16 %v679
    %v1025 = vunpack.c.l.b16 %v680
    %v1026 = vunpack.c.l.b16 %v681
    %v1027 = vunpack.c.l.b16 %v682
    %v1028 = vunpack.c.l.b16 %v683
    %v1029 = vunpack.c.l.b16 %v684
    %v1030 = vunpack.c.l.b16 %v685
    %v1031 = vunpack.c.l.b16 %v686
    %v1032 = vunpack.c.l.b16 %v687
    %v1033 = vunpack.c.l.b16 %v688
    %v1034 = vunpack.c.l.b16 %v689
    %v1035 = vunpack.c.l.b16 %v690
    %v1036 = vunpack.c.l.b16 %v691
    %v1037 = vunpack.c.l.b16 %v692
    %v1038 = vunpack.c.l.b16 %v693
    %v1039 = vunpack.c.l.b16 %v694
    %v1040 = vpack.c.b16 %v993, %v992
    %v1041 = vpack.c.b16 %v995, %v994
    %v1042 = vpack.c.b16 %v997, %v996
    %v1043 = vpack.c.b16 %v999, %v998
    %v1044 = vpack.c.b16 %v1001, %v1000
    %v1045 = vpack.c.b16 %v1003, %v1002
    %v1046 = vpack.c.b16 %v1005, %v1004
    %v1047 = vpack.c.b16 %v1007, %v1006
    %v1048 = vpack.c.b16 %v1009, %v1008
    %v1049 = vpack.c.b16 %v1011, %v1010
    %v1050 = vpack.c.b16 %v1013, %v1012
    %v1051 = vpack.c.b16 %v1015, %v1014
    %v1052 = vpack.c.b16 %v1017, %v1016
    %v1053 = vpack.c.b16 %v1019, %v1018
    %v1054 = vpack.c.b16 %v1021, %v1020
    %v1055 = vpack.c.b16 %v1023, %v1022
    %v1056 = vpack.c.b16 %v1025, %v1024
    %v1057 = vpack.c.b16 %v1027, %v1026
    %v1058 = vpack.c.b16 %v1029, %v1028
    %v1059 = vpack.c.b16 %v1031, %v1030
    %v1060 = vpack.c.b16 %v1033, %v1032
    %v1061 = vpack.c.b16 %v1035, %v1034
    %v1062 = vpack.c.b16 %v1037, %v1036
    %v1063 = vpack.c.b16 %v1039, %v1038
    %1088 = vmatpush.bf16.msra.mxu0 %v1047
    %1089 = vmatpush.bf16.msra.mxu0 %v1046
    %1090 = vmatpush.bf16.msra.mxu0 %v1045
    %1091 = vmatpush.bf16.msra.mxu0 %v1044
    %1092 = vmatpush.bf16.msra.mxu0 %v1043
    %1093 = vmatpush.bf16.msra.mxu0 %v1042
    %1094 = vmatpush.bf16.msra.mxu0 %v1041
    %1095 = vmatpush.bf16.msra.mxu0 %v1040
    %1096 = vmatmul.bf16.gmra.mxu0 %v75
    %v1097 = vpop.f32.mrf.mxu0
    %v1098 = vadd.f32 %v935, %v1097
    %v1099 = vpop.f32.mrf.mxu0
    %v1100 = vadd.f32 %v937, %v1099
    %1101 = vmatmul.bf16.gmra.mxu0 %v78
    %v1102 = vpop.f32.mrf.mxu0
    %v1103 = vadd.f32 %v940, %v1102
    %v1104 = vpop.f32.mrf.mxu0
    %v1105 = vadd.f32 %v942, %v1104
    %1106 = vdwg.mxu0
    %1107 = vmatpush.bf16.msra.mxu0 %v1055
    %1108 = vmatpush.bf16.msra.mxu0 %v1054
    %1109 = vmatpush.bf16.msra.mxu0 %v1053
    %1110 = vmatpush.bf16.msra.mxu0 %v1052
    %1111 = vmatpush.bf16.msra.mxu0 %v1051
    %1112 = vmatpush.bf16.msra.mxu0 %v1050
    %1113 = vmatpush.bf16.msra.mxu0 %v1049
    %1114 = vmatpush.bf16.msra.mxu0 %v1048
    %1115 = vmatmul.bf16.gmra.mxu0 %v76
    %v1116 = vpop.f32.mrf.mxu0
    %v1117 = vadd.f32 %v1098, %v1116
    %v1118 = vpop.f32.mrf.mxu0
    %v1119 = vadd.f32 %v1100, %v1118
    %1120 = vmatmul.bf16.gmra.mxu0 %v79
    %v1121 = vpop.f32.mrf.mxu0
    %v1122 = vadd.f32 %v1103, %v1121
    %v1123 = vpop.f32.mrf.mxu0
    %v1124 = vadd.f32 %v1105, %v1123
    %1125 = vdwg.mxu0
    %1126 = vmatpush.bf16.msra.mxu0 %v1063
    %1127 = vmatpush.bf16.msra.mxu0 %v1062
    %1128 = vmatpush.bf16.msra.mxu0 %v1061
    %1129 = vmatpush.bf16.msra.mxu0 %v1060
    %1130 = vmatpush.bf16.msra.mxu0 %v1059
    %1131 = vmatpush.bf16.msra.mxu0 %v1058
    %1132 = vmatpush.bf16.msra.mxu0 %v1057
    %1133 = vmatpush.bf16.msra.mxu0 %v1056
    %1134 = vmatmul.bf16.gmra.mxu0 %v77
    %v1135 = vpop.f32.mrf.mxu0
    %v1136 = vadd.f32 %v1117, %v1135
    %v1137 = vpop.f32.mrf.mxu0
    %v1138 = vadd.f32 %v1119, %v1137
    %1139 = vmatmul.bf16.gmra.mxu0 %v80
    %v1140 = vpop.f32.mrf.mxu0
    %v1141 = vadd.f32 %v1122, %v1140
    %v1142 = vpop.f32.mrf.mxu0
    %v1143 = vadd.f32 %v1124, %v1142
    %1144 = vdwg.mxu0
    %v1145 = vld [vmem:[%s5] sm:$0x1]
    %v1147 = vperm.slane %v1145, 0
    %v1149 = vadd.f32 %v1136, %v1147
    %v1150 = vadd.f32 %v1138, %v1147
    %v1151 = vadd.f32 %v1141, %v1147
    %v1152 = vadd.f32 %v1143, %v1147
    %v1153 = vmul.f32 %v1149, %v1149
    %v1154 = vmul.f32 %v1150, %v1150
    %v1155 = vmul.f32 %v1151, %v1151
    %v1156 = vmul.f32 %v1152, %v1152
    %v1157 = vmul.f32 %v1149, %v1153
    %v1158 = vmul.f32 %v1150, %v1154
    %v1159 = vmul.f32 %v1151, %v1155
    %v1160 = vmul.f32 %v1152, %v1156
    %v1161 = vmul.f32 %v1157, 0.044715
    %v1162 = vmul.f32 %v1158, 0.044715
    %v1163 = vmul.f32 %v1159, 0.044715
    %v1164 = vmul.f32 %v1160, 0.044715
    %v1165 = vadd.f32 %v1149, %v1161
    %v1166 = vadd.f32 %v1150, %v1162
    %v1167 = vadd.f32 %v1151, %v1163
    %v1168 = vadd.f32 %v1152, %v1164
    %v1169 = vmul.f32 %v1165, 0.7978846
    %v1170 = vmul.f32 %v1166, 0.7978846
    %v1171 = vmul.f32 %v1167, 0.7978846
    %v1172 = vmul.f32 %v1168, 0.7978846
    %v1173 = vtanh.pop %v1169
    %v1174 = vtanh.pop %v1170
    %v1175 = vtanh.pop %v1171
    %v1176 = vtanh.pop %v1172
    %v1177 = vadd.f32 %v1173, 1.0
    %v1178 = vadd.f32 %v1174, 1.0
    %v1179 = vadd.f32 %v1175, 1.0
    %v1180 = vadd.f32 %v1176, 1.0
    %v1181 = vmul.f32 %v1177, 0.5
    %v1182 = vmul.f32 %v1178, 0.5
    %v1183 = vmul.f32 %v1179, 0.5
    %v1184 = vmul.f32 %v1180, 0.5
    %v1185 = vmul.f32 %v1149, %v1181
    %v1186 = vmul.f32 %v1150, %v1182
    %v1187 = vmul.f32 %v1151, %v1183
    %v1188 = vmul.f32 %v1152, %v1184
    %v1189 = vmul.f32 %v51, %v63
    %v1190 = vmul.f32 %v52, %v64
    %v1191 = vmul.f32 %v53, %v65
    %v1192 = vmul.f32 %v54, %v66
    %v1193 = vmul.f32 %v55, %v67
    %v1194 = vmul.f32 %v56, %v68
    %v1195 = vmul.f32 %v57, %v69
    %v1196 = vmul.f32 %v58, %v70
    %v1197 = vmul.f32 %v59, %v71
    %v1198 = vmul.f32 %v60, %v72
    %v1199 = vmul.f32 %v61, %v73
    %v1200 = vmul.f32 %v62, %v74
    %v1201 = vpack.c.bf16 %v1192, %v1189
    %v1202 = vpack.c.bf16 %v1193, %v1190
    %v1203 = vpack.c.bf16 %v1194, %v1191
    %v1204 = vpack.c.bf16 %v1198, %v1195
    %v1205 = vpack.c.bf16 %v1199, %v1196
    %v1206 = vpack.c.bf16 %v1200, %v1197
    %v1207 = vld [vmem:[%s6] sm:$0xf]
    %v1208 = vld [vmem:[%s6 + $0x4] sm:$0xf]
    %v1209 = vld [vmem:[%s6 + $0x8] sm:$0xf]
    %v1210 = vld [vmem:[%s6 + $0xc] sm:$0xf]
    %v1211 = vld [vmem:[%s6 + $0x10] sm:$0xf]
    %v1212 = vld [vmem:[%s6 + $0x14] sm:$0xf]
    %v1213 = vld [vmem:[%s6 + $0x18] sm:$0xf]
    %v1214 = vld [vmem:[%s6 + $0x1c] sm:$0xf]
    %v1215 = vld [vmem:[%s6 + $0x20] sm:$0xf]
    %v1216 = vld [vmem:[%s6 + $0x24] sm:$0xf]
    %v1217 = vld [vmem:[%s6 + $0x28] sm:$0xf]
    %v1218 = vld [vmem:[%s6 + $0x2c] sm:$0xf]
    %v1219 = vld [vmem:[%s6 + $0x30] sm:$0xf]
    %v1220 = vld [vmem:[%s6 + $0x34] sm:$0xf]
    %v1221 = vld [vmem:[%s6 + $0x38] sm:$0xf]
    %v1222 = vld [vmem:[%s6 + $0x3c] sm:$0xf]
    %v1223 = vld [vmem:[%s6 + $0x40] sm:$0xf]
    %v1224 = vld [vmem:[%s6 + $0x44] sm:$0xf]
    %v1225 = vld [vmem:[%s6 + $0x48] sm:$0xf]
    %v1226 = vld [vmem:[%s6 + $0x4c] sm:$0xf]
    %v1227 = vld [vmem:[%s6 + $0x50] sm:$0xf]
    %v1228 = vld [vmem:[%s6 + $0x54] sm:$0xf]
    %v1229 = vld [vmem:[%s6 + $0x58] sm:$0xf]
    %v1230 = vld [vmem:[%s6 + $0x5c] sm:$0xf]
    %v1231 = vld [vmem:[%s6 + $0x60] sm:$0xf]
    %v1232 = vld [vmem:[%s6 + $0x64] sm:$0xf]
    %v1233 = vld [vmem:[%s6 + $0x68] sm:$0xf]
    %v1234 = vld [vmem:[%s6 + $0x6c] sm:$0xf]
    %v1235 = vld [vmem:[%s6 + $0x70] sm:$0xf]
    %v1236 = vld [vmem:[%s6 + $0x74] sm:$0xf]
    %v1237 = vld [vmem:[%s6 + $0x78] sm:$0xf]
    %v1238 = vld [vmem:[%s6 + $0x7c] sm:$0xf]
    %v1239 = vld [vmem:[%s6 + $0x80] sm:$0xf]
    %v1240 = vld [vmem:[%s6 + $0x84] sm:$0xf]
    %v1241 = vld [vmem:[%s6 + $0x88] sm:$0xf]
    %v1242 = vld [vmem:[%s6 + $0x8c] sm:$0xf]
    %v1243 = vld [vmem:[%s6 + $0x90] sm:$0xf]
    %v1244 = vld [vmem:[%s6 + $0x94] sm:$0xf]
    %v1245 = vld [vmem:[%s6 + $0x98] sm:$0xf]
    %v1246 = vld [vmem:[%s6 + $0x9c] sm:$0xf]
    %v1247 = vld [vmem:[%s6 + $0xa0] sm:$0xf]
    %v1248 = vld [vmem:[%s6 + $0xa4] sm:$0xf]
    %v1249 = vld [vmem:[%s6 + $0xa8] sm:$0xf]
    %v1250 = vld [vmem:[%s6 + $0xac] sm:$0xf]
    %v1251 = vld [vmem:[%s6 + $0xb0] sm:$0xf]
    %v1252 = vld [vmem:[%s6 + $0xb4] sm:$0xf]
    %v1253 = vld [vmem:[%s6 + $0xb8] sm:$0xf]
    %v1254 = vld [vmem:[%s6 + $0xbc] sm:$0xf]
    %v1255 = vld [vmem:[%s6 + $0xc0] sm:$0xf]
    %v1256 = vld [vmem:[%s6 + $0xc4] sm:$0xf]
    %v1257 = vld [vmem:[%s6 + $0xc8] sm:$0xf]
    %v1258 = vld [vmem:[%s6 + $0xcc] sm:$0xf]
    %v1259 = vld [vmem:[%s6 + $0xd0] sm:$0xf]
    %v1260 = vld [vmem:[%s6 + $0xd4] sm:$0xf]
    %v1261 = vld [vmem:[%s6 + $0xd8] sm:$0xf]
    %v1262 = vld [vmem:[%s6 + $0xdc] sm:$0xf]
    %v1263 = vld [vmem:[%s6 + $0xe0] sm:$0xf]
    %v1264 = vld [vmem:[%s6 + $0xe4] sm:$0xf]
    %v1265 = vld [vmem:[%s6 + $0xe8] sm:$0xf]
    %v1266 = vld [vmem:[%s6 + $0xec] sm:$0xf]
    %v1267 = vld [vmem:[%s6 + $0xf0] sm:$0xf]
    %v1268 = vld [vmem:[%s6 + $0xf4] sm:$0xf]
    %v1269 = vld [vmem:[%s6 + $0xf8] sm:$0xf]
    %v1270 = vld [vmem:[%s6 + $0xfc] sm:$0xf]
    %v1271 = vld [vmem:[%s6 + $0x100] sm:$0xf]
    %v1272 = vld [vmem:[%s6 + $0x104] sm:$0xf]
    %v1273 = vld [vmem:[%s6 + $0x108] sm:$0xf]
    %v1274 = vld [vmem:[%s6 + $0x10c] sm:$0xf]
    %v1275 = vld [vmem:[%s6 + $0x110] sm:$0xf]
    %v1276 = vld [vmem:[%s6 + $0x114] sm:$0xf]
    %v1277 = vld [vmem:[%s6 + $0x118] sm:$0xf]
    %v1278 = vld [vmem:[%s6 + $0x11c] sm:$0xf]
    %v1279 = vld [vmem:[%s6 + $0x120] sm:$0xf]
    %v1280 = vld [vmem:[%s6 + $0x124] sm:$0xf]
    %v1281 = vld [vmem:[%s6 + $0x128] sm:$0xf]
    %v1282 = vld [vmem:[%s6 + $0x12c] sm:$0xf]
    %v1283 = vld [vmem:[%s6 + $0x130] sm:$0xf]
    %v1284 = vld [vmem:[%s6 + $0x134] sm:$0xf]
    %v1285 = vld [vmem:[%s6 + $0x138] sm:$0xf]
    %v1286 = vld [vmem:[%s6 + $0x13c] sm:$0xf]
    %v1287 = vld [vmem:[%s6 + $0x140] sm:$0xf]
    %v1288 = vld [vmem:[%s6 + $0x144] sm:$0xf]
    %v1289 = vld [vmem:[%s6 + $0x148] sm:$0xf]
    %v1290 = vld [vmem:[%s6 + $0x14c] sm:$0xf]
    %v1291 = vld [vmem:[%s6 + $0x150] sm:$0xf]
    %v1292 = vld [vmem:[%s6 + $0x154] sm:$0xf]
    %v1293 = vld [vmem:[%s6 + $0x158] sm:$0xf]
    %v1294 = vld [vmem:[%s6 + $0x15c] sm:$0xf]
    %v1295 = vld [vmem:[%s6 + $0x160] sm:$0xf]
    %v1296 = vld [vmem:[%s6 + $0x164] sm:$0xf]
    %v1297 = vld [vmem:[%s6 + $0x168] sm:$0xf]
    %v1298 = vld [vmem:[%s6 + $0x16c] sm:$0xf]
    %v1299 = vld [vmem:[%s6 + $0x170] sm:$0xf]
    %v1300 = vld [vmem:[%s6 + $0x174] sm:$0xf]
    %v1301 = vld [vmem:[%s6 + $0x178] sm:$0xf]
    %v1302 = vld [vmem:[%s6 + $0x17c] sm:$0xf]
    %v1351 = vunpack.c.l.b16 %v1255
    %v1352 = vunpack.c.l.b16 %v1256
    %v1353 = vunpack.c.l.b16 %v1257
    %v1354 = vunpack.c.l.b16 %v1258
    %v1355 = vunpack.c.l.b16 %v1259
    %v1356 = vunpack.c.l.b16 %v1260
    %v1357 = vunpack.c.l.b16 %v1261
    %v1358 = vunpack.c.l.b16 %v1262
    %v1359 = vunpack.c.l.b16 %v1263
    %v1360 = vunpack.c.l.b16 %v1264
    %v1361 = vunpack.c.l.b16 %v1265
    %v1362 = vunpack.c.l.b16 %v1266
    %v1363 = vunpack.c.l.b16 %v1267
    %v1364 = vunpack.c.l.b16 %v1268
    %v1365 = vunpack.c.l.b16 %v1269
    %v1366 = vunpack.c.l.b16 %v1270
    %v1367 = vunpack.c.l.b16 %v1271
    %v1368 = vunpack.c.l.b16 %v1272
    %v1369 = vunpack.c.l.b16 %v1273
    %v1370 = vunpack.c.l.b16 %v1274
    %v1371 = vunpack.c.l.b16 %v1275
    %v1372 = vunpack.c.l.b16 %v1276
    %v1373 = vunpack.c.l.b16 %v1277
    %v1374 = vunpack.c.l.b16 %v1278
    %v1375 = vunpack.c.l.b16 %v1279
    %v1376 = vunpack.c.l.b16 %v1280
    %v1377 = vunpack.c.l.b16 %v1281
    %v1378 = vunpack.c.l.b16 %v1282
    %v1379 = vunpack.c.l.b16 %v1283
    %v1380 = vunpack.c.l.b16 %v1284
    %v1381 = vunpack.c.l.b16 %v1285
    %v1382 = vunpack.c.l.b16 %v1286
    %v1383 = vunpack.c.l.b16 %v1287
    %v1384 = vunpack.c.l.b16 %v1288
    %v1385 = vunpack.c.l.b16 %v1289
    %v1386 = vunpack.c.l.b16 %v1290
    %v1387 = vunpack.c.l.b16 %v1291
    %v1388 = vunpack.c.l.b16 %v1292
    %v1389 = vunpack.c.l.b16 %v1293
    %v1390 = vunpack.c.l.b16 %v1294
    %v1391 = vunpack.c.l.b16 %v1295
    %v1392 = vunpack.c.l.b16 %v1296
    %v1393 = vunpack.c.l.b16 %v1297
    %v1394 = vunpack.c.l.b16 %v1298
    %v1395 = vunpack.c.l.b16 %v1299
    %v1396 = vunpack.c.l.b16 %v1300
    %v1397 = vunpack.c.l.b16 %v1301
    %v1398 = vunpack.c.l.b16 %v1302
    %v1399 = vpack.c.b16 %v1352, %v1351
    %v1400 = vpack.c.b16 %v1354, %v1353
    %v1401 = vpack.c.b16 %v1356, %v1355
    %v1402 = vpack.c.b16 %v1358, %v1357
    %v1403 = vpack.c.b16 %v1360, %v1359
    %v1404 = vpack.c.b16 %v1362, %v1361
    %v1405 = vpack.c.b16 %v1364, %v1363
    %v1406 = vpack.c.b16 %v1366, %v1365
    %v1407 = vpack.c.b16 %v1368, %v1367
    %v1408 = vpack.c.b16 %v1370, %v1369
    %v1409 = vpack.c.b16 %v1372, %v1371
    %v1410 = vpack.c.b16 %v1374, %v1373
    %v1411 = vpack.c.b16 %v1376, %v1375
    %v1412 = vpack.c.b16 %v1378, %v1377
    %v1413 = vpack.c.b16 %v1380, %v1379
    %v1414 = vpack.c.b16 %v1382, %v1381
    %v1415 = vpack.c.b16 %v1384, %v1383
    %v1416 = vpack.c.b16 %v1386, %v1385
    %v1417 = vpack.c.b16 %v1388, %v1387
    %v1418 = vpack.c.b16 %v1390, %v1389
    %v1419 = vpack.c.b16 %v1392, %v1391
    %v1420 = vpack.c.b16 %v1394, %v1393
    %v1421 = vpack.c.b16 %v1396, %v1395
    %v1422 = vpack.c.b16 %v1398, %v1397
    %1447 = vmatpush.bf16.msra.mxu0 %v1406
    %1448 = vmatpush.bf16.msra.mxu0 %v1405
    %1449 = vmatpush.bf16.msra.mxu0 %v1404
    %1450 = vmatpush.bf16.msra.mxu0 %v1403
    %1451 = vmatpush.bf16.msra.mxu0 %v1402
    %1452 = vmatpush.bf16.msra.mxu0 %v1401
    %1453 = vmatpush.bf16.msra.mxu0 %v1400
    %1454 = vmatpush.bf16.msra.mxu0 %v1399
    %1455 = vmatmul.bf16.gmra.mxu0 %v1201
    %v1456 = vpop.f32.mrf.mxu0
    %v1457 = vadd.f32 0.0, %v1456
    %v1458 = vpop.f32.mrf.mxu0
    %v1459 = vadd.f32 0.0, %v1458
    %1460 = vmatmul.bf16.gmra.mxu0 %v1204
    %v1461 = vpop.f32.mrf.mxu0
    %v1462 = vadd.f32 0.0, %v1461
    %v1463 = vpop.f32.mrf.mxu0
    %v1464 = vadd.f32 0.0, %v1463
    %1465 = vdwg.mxu0
    %1466 = vmatpush.bf16.msra.mxu0 %v1414
    %1467 = vmatpush.bf16.msra.mxu0 %v1413
    %1468 = vmatpush.bf16.msra.mxu0 %v1412
    %1469 = vmatpush.bf16.msra.mxu0 %v1411
    %1470 = vmatpush.bf16.msra.mxu0 %v1410
    %1471 = vmatpush.bf16.msra.mxu0 %v1409
    %1472 = vmatpush.bf16.msra.mxu0 %v1408
    %1473 = vmatpush.bf16.msra.mxu0 %v1407
    %1474 = vmatmul.bf16.gmra.mxu0 %v1202
    %v1475 = vpop.f32.mrf.mxu0
    %v1476 = vadd.f32 %v1457, %v1475
    %v1477 = vpop.f32.mrf.mxu0
    %v1478 = vadd.f32 %v1459, %v1477
    %1479 = vmatmul.bf16.gmra.mxu0 %v1205
    %v1480 = vpop.f32.mrf.mxu0
    %v1481 = vadd.f32 %v1462, %v1480
    %v1482 = vpop.f32.mrf.mxu0
    %v1483 = vadd.f32 %v1464, %v1482
    %1484 = vdwg.mxu0
    %1485 = vmatpush.bf16.msra.mxu0 %v1422
    %1486 = vmatpush.bf16.msra.mxu0 %v1421
    %1487 = vmatpush.bf16.msra.mxu0 %v1420
    %1488 = vmatpush.bf16.msra.mxu0 %v1419
    %1489 = vmatpush.bf16.msra.mxu0 %v1418
    %1490 = vmatpush.bf16.msra.mxu0 %v1417
    %1491 = vmatpush.bf16.msra.mxu0 %v1416
    %1492 = vmatpush.bf16.msra.mxu0 %v1415
    %1493 = vmatmul.bf16.gmra.mxu0 %v1203
    %v1494 = vpop.f32.mrf.mxu0
    %v1495 = vadd.f32 %v1476, %v1494
    %v1496 = vpop.f32.mrf.mxu0
    %v1497 = vadd.f32 %v1478, %v1496
    %1498 = vmatmul.bf16.gmra.mxu0 %v1206
    %v1499 = vpop.f32.mrf.mxu0
    %v1500 = vadd.f32 %v1481, %v1499
    %v1501 = vpop.f32.mrf.mxu0
    %v1502 = vadd.f32 %v1483, %v1501
    %1503 = vdwg.mxu0
    %v1552 = vunpack.c.l.b16 %v1207
    %v1553 = vunpack.c.l.b16 %v1208
    %v1554 = vunpack.c.l.b16 %v1209
    %v1555 = vunpack.c.l.b16 %v1210
    %v1556 = vunpack.c.l.b16 %v1211
    %v1557 = vunpack.c.l.b16 %v1212
    %v1558 = vunpack.c.l.b16 %v1213
    %v1559 = vunpack.c.l.b16 %v1214
    %v1560 = vunpack.c.l.b16 %v1215
    %v1561 = vunpack.c.l.b16 %v1216
    %v1562 = vunpack.c.l.b16 %v1217
    %v1563 = vunpack.c.l.b16 %v1218
    %v1564 = vunpack.c.l.b16 %v1219
    %v1565 = vunpack.c.l.b16 %v1220
    %v1566 = vunpack.c.l.b16 %v1221
    %v1567 = vunpack.c.l.b16 %v1222
    %v1568 = vunpack.c.l.b16 %v1223
    %v1569 = vunpack.c.l.b16 %v1224
    %v1570 = vunpack.c.l.b16 %v1225
    %v1571 = vunpack.c.l.b16 %v1226
    %v1572 = vunpack.c.l.b16 %v1227
    %v1573 = vunpack.c.l.b16 %v1228
    %v1574 = vunpack.c.l.b16 %v1229
    %v1575 = vunpack.c.l.b16 %v1230
    %v1576 = vunpack.c.l.b16 %v1231
    %v1577 = vunpack.c.l.b16 %v1232
    %v1578 = vunpack.c.l.b16 %v1233
    %v1579 = vunpack.c.l.b16 %v1234
    %v1580 = vunpack.c.l.b16 %v1235
    %v1581 = vunpack.c.l.b16 %v1236
    %v1582 = vunpack.c.l.b16 %v1237
    %v1583 = vunpack.c.l.b16 %v1238
    %v1584 = vunpack.c.l.b16 %v1239
    %v1585 = vunpack.c.l.b16 %v1240
    %v1586 = vunpack.c.l.b16 %v1241
    %v1587 = vunpack.c.l.b16 %v1242
    %v1588 = vunpack.c.l.b16 %v1243
    %v1589 = vunpack.c.l.b16 %v1244
    %v1590 = vunpack.c.l.b16 %v1245
    %v1591 = vunpack.c.l.b16 %v1246
    %v1592 = vunpack.c.l.b16 %v1247
    %v1593 = vunpack.c.l.b16 %v1248
    %v1594 = vunpack.c.l.b16 %v1249
    %v1595 = vunpack.c.l.b16 %v1250
    %v1596 = vunpack.c.l.b16 %v1251
    %v1597 = vunpack.c.l.b16 %v1252
    %v1598 = vunpack.c.l.b16 %v1253
    %v1599 = vunpack.c.l.b16 %v1254
    %v1600 = vpack.c.b16 %v1553, %v1552
    %v1601 = vpack.c.b16 %v1555, %v1554
    %v1602 = vpack.c.b16 %v1557, %v1556
    %v1603 = vpack.c.b16 %v1559, %v1558
    %v1604 = vpack.c.b16 %v1561, %v1560
    %v1605 = vpack.c.b16 %v1563, %v1562
    %v1606 = vpack.c.b16 %v1565, %v1564
    %v1607 = vpack.c.b16 %v1567, %v1566
    %v1608 = vpack.c.b16 %v1569, %v1568
    %v1609 = vpack.c.b16 %v1571, %v1570
    %v1610 = vpack.c.b16 %v1573, %v1572
    %v1611 = vpack.c.b16 %v1575, %v1574
    %v1612 = vpack.c.b16 %v1577, %v1576
    %v1613 = vpack.c.b16 %v1579, %v1578
    %v1614 = vpack.c.b16 %v1581, %v1580
    %v1615 = vpack.c.b16 %v1583, %v1582
    %v1616 = vpack.c.b16 %v1585, %v1584
    %v1617 = vpack.c.b16 %v1587, %v1586
    %v1618 = vpack.c.b16 %v1589, %v1588
    %v1619 = vpack.c.b16 %v1591, %v1590
    %v1620 = vpack.c.b16 %v1593, %v1592
    %v1621 = vpack.c.b16 %v1595, %v1594
    %v1622 = vpack.c.b16 %v1597, %v1596
    %v1623 = vpack.c.b16 %v1599, %v1598
    %1648 = vmatpush.bf16.msra.mxu0 %v1607
    %1649 = vmatpush.bf16.msra.mxu0 %v1606
    %1650 = vmatpush.bf16.msra.mxu0 %v1605
    %1651 = vmatpush.bf16.msra.mxu0 %v1604
    %1652 = vmatpush.bf16.msra.mxu0 %v1603
    %1653 = vmatpush.bf16.msra.mxu0 %v1602
    %1654 = vmatpush.bf16.msra.mxu0 %v1601
    %1655 = vmatpush.bf16.msra.mxu0 %v1600
    %1656 = vmatmul.bf16.gmra.mxu0 %v75
    %v1657 = vpop.f32.mrf.mxu0
    %v1658 = vadd.f32 %v1495, %v1657
    %v1659 = vpop.f32.mrf.mxu0
    %v1660 = vadd.f32 %v1497, %v1659
    %1661 = vmatmul.bf16.gmra.mxu0 %v78
    %v1662 = vpop.f32.mrf.mxu0
    %v1663 = vadd.f32 %v1500, %v1662
    %v1664 = vpop.f32.mrf.mxu0
    %v1665 = vadd.f32 %v1502, %v1664
    %1666 = vdwg.mxu0
    %1667 = vmatpush.bf16.msra.mxu0 %v1615
    %1668 = vmatpush.bf16.msra.mxu0 %v1614
    %1669 = vmatpush.bf16.msra.mxu0 %v1613
    %1670 = vmatpush.bf16.msra.mxu0 %v1612
    %1671 = vmatpush.bf16.msra.mxu0 %v1611
    %1672 = vmatpush.bf16.msra.mxu0 %v1610
    %1673 = vmatpush.bf16.msra.mxu0 %v1609
    %1674 = vmatpush.bf16.msra.mxu0 %v1608
    %1675 = vmatmul.bf16.gmra.mxu0 %v76
    %v1676 = vpop.f32.mrf.mxu0
    %v1677 = vadd.f32 %v1658, %v1676
    %v1678 = vpop.f32.mrf.mxu0
    %v1679 = vadd.f32 %v1660, %v1678
    %1680 = vmatmul.bf16.gmra.mxu0 %v79
    %v1681 = vpop.f32.mrf.mxu0
    %v1682 = vadd.f32 %v1663, %v1681
    %v1683 = vpop.f32.mrf.mxu0
    %v1684 = vadd.f32 %v1665, %v1683
    %1685 = vdwg.mxu0
    %1686 = vmatpush.bf16.msra.mxu0 %v1623
    %1687 = vmatpush.bf16.msra.mxu0 %v1622
    %1688 = vmatpush.bf16.msra.mxu0 %v1621
    %1689 = vmatpush.bf16.msra.mxu0 %v1620
    %1690 = vmatpush.bf16.msra.mxu0 %v1619
    %1691 = vmatpush.bf16.msra.mxu0 %v1618
    %1692 = vmatpush.bf16.msra.mxu0 %v1617
    %1693 = vmatpush.bf16.msra.mxu0 %v1616
    %1694 = vmatmul.bf16.gmra.mxu0 %v77
    %v1695 = vpop.f32.mrf.mxu0
    %v1696 = vadd.f32 %v1677, %v1695
    %v1697 = vpop.f32.mrf.mxu0
    %v1698 = vadd.f32 %v1679, %v1697
    %1699 = vmatmul.bf16.gmra.mxu0 %v80
    %v1700 = vpop.f32.mrf.mxu0
    %v1701 = vadd.f32 %v1682, %v1700
    %v1702 = vpop.f32.mrf.mxu0
    %v1703 = vadd.f32 %v1684, %v1702
    %1704 = vdwg.mxu0
    %v1705 = vld [vmem:[%s7] sm:$0x1]
    %v1707 = vperm.slane %v1705, 0
    %v1709 = vadd.f32 %v1696, %v1707
    %v1710 = vadd.f32 %v1698, %v1707
    %v1711 = vadd.f32 %v1701, %v1707
    %v1712 = vadd.f32 %v1703, %v1707
    %v1713 = vmul.f32 %v1709, %v1709
    %v1714 = vmul.f32 %v1710, %v1710
    %v1715 = vmul.f32 %v1711, %v1711
    %v1716 = vmul.f32 %v1712, %v1712
    %v1717 = vmul.f32 %v1709, %v1713
    %v1718 = vmul.f32 %v1710, %v1714
    %v1719 = vmul.f32 %v1711, %v1715
    %v1720 = vmul.f32 %v1712, %v1716
    %v1721 = vmul.f32 %v1717, 0.044715
    %v1722 = vmul.f32 %v1718, 0.044715
    %v1723 = vmul.f32 %v1719, 0.044715
    %v1724 = vmul.f32 %v1720, 0.044715
    %v1725 = vadd.f32 %v1709, %v1721
    %v1726 = vadd.f32 %v1710, %v1722
    %v1727 = vadd.f32 %v1711, %v1723
    %v1728 = vadd.f32 %v1712, %v1724
    %v1729 = vmul.f32 %v1725, 0.7978846
    %v1730 = vmul.f32 %v1726, 0.7978846
    %v1731 = vmul.f32 %v1727, 0.7978846
    %v1732 = vmul.f32 %v1728, 0.7978846
    %v1733 = vtanh.pop %v1729
    %v1734 = vtanh.pop %v1730
    %v1735 = vtanh.pop %v1731
    %v1736 = vtanh.pop %v1732
    %v1737 = vadd.f32 %v1733, 1.0
    %v1738 = vadd.f32 %v1734, 1.0
    %v1739 = vadd.f32 %v1735, 1.0
    %v1740 = vadd.f32 %v1736, 1.0
    %v1741 = vmul.f32 %v1737, 0.5
    %v1742 = vmul.f32 %v1738, 0.5
    %v1743 = vmul.f32 %v1739, 0.5
    %v1744 = vmul.f32 %v1740, 0.5
    %v1745 = vmul.f32 %v1709, %v1741
    %v1746 = vmul.f32 %v1710, %v1742
    %v1747 = vmul.f32 %v1711, %v1743
    %v1748 = vmul.f32 %v1712, %v1744
    %v1749 = vld [vmem:[#allocation2] sm:$0xf]
    %v1750 = vld [vmem:[#allocation2 + $0x4] sm:$0xf]
    %v1751 = vld [vmem:[#allocation2 + $0x8] sm:$0xf]
    %v1752 = vld [vmem:[#allocation2 + $0xc] sm:$0xf]
    %v1753 = vld [vmem:[#allocation2 + $0x10] sm:$0xf]
    %v1754 = vld [vmem:[#allocation2 + $0x14] sm:$0xf]
    %v1755 = vld [vmem:[#allocation2 + $0x18] sm:$0xf]
    %v1756 = vld [vmem:[#allocation2 + $0x1c] sm:$0xf]
    %v1757 = vld [vmem:[#allocation2 + $0x20] sm:$0xf]
    %v1758 = vld [vmem:[#allocation2 + $0x24] sm:$0xf]
    %v1759 = vld [vmem:[#allocation2 + $0x28] sm:$0xf]
    %v1760 = vld [vmem:[#allocation2 + $0x2c] sm:$0xf]
    %v1761 = vld [vmem:[#allocation2 + $0x30] sm:$0xf]
    %v1762 = vld [vmem:[#allocation2 + $0x34] sm:$0xf]
    %v1763 = vld [vmem:[#allocation2 + $0x38] sm:$0xf]
    %v1764 = vld [vmem:[#allocation2 + $0x3c] sm:$0xf]
    %v1765 = vld [vmem:[#allocation2 + $0x40] sm:$0xf]
    %v1766 = vld [vmem:[#allocation2 + $0x44] sm:$0xf]
    %v1767 = vld [vmem:[#allocation2 + $0x48] sm:$0xf]
    %v1768 = vld [vmem:[#allocation2 + $0x4c] sm:$0xf]
    %v1769 = vld [vmem:[#allocation2 + $0x50] sm:$0xf]
    %v1770 = vld [vmem:[#allocation2 + $0x54] sm:$0xf]
    %v1771 = vld [vmem:[#allocation2 + $0x58] sm:$0xf]
    %v1772 = vld [vmem:[#allocation2 + $0x5c] sm:$0xf]
    %v1773 = vld [vmem:[#allocation2 + $0x60] sm:$0xf]
    %v1774 = vld [vmem:[#allocation2 + $0x64] sm:$0xf]
    %v1775 = vld [vmem:[#allocation2 + $0x68] sm:$0xf]
    %v1776 = vld [vmem:[#allocation2 + $0x6c] sm:$0xf]
    %v1777 = vld [vmem:[#allocation2 + $0x70] sm:$0xf]
    %v1778 = vld [vmem:[#allocation2 + $0x74] sm:$0xf]
    %v1779 = vld [vmem:[#allocation2 + $0x78] sm:$0xf]
    %v1780 = vld [vmem:[#allocation2 + $0x7c] sm:$0xf]
    %v1781 = vld [vmem:[#allocation2 + $0x80] sm:$0xf]
    %v1782 = vld [vmem:[#allocation2 + $0x84] sm:$0xf]
    %v1783 = vld [vmem:[#allocation2 + $0x88] sm:$0xf]
    %v1784 = vld [vmem:[#allocation2 + $0x8c] sm:$0xf]
    %v1785 = vld [vmem:[#allocation2 + $0x90] sm:$0xf]
    %v1786 = vld [vmem:[#allocation2 + $0x94] sm:$0xf]
    %v1787 = vld [vmem:[#allocation2 + $0x98] sm:$0xf]
    %v1788 = vld [vmem:[#allocation2 + $0x9c] sm:$0xf]
    %v1789 = vld [vmem:[#allocation2 + $0xa0] sm:$0xf]
    %v1790 = vld [vmem:[#allocation2 + $0xa4] sm:$0xf]
    %v1791 = vld [vmem:[#allocation2 + $0xa8] sm:$0xf]
    %v1792 = vld [vmem:[#allocation2 + $0xac] sm:$0xf]
    %v1793 = vld [vmem:[#allocation2 + $0xb0] sm:$0xf]
    %v1794 = vld [vmem:[#allocation2 + $0xb4] sm:$0xf]
    %v1795 = vld [vmem:[#allocation2 + $0xb8] sm:$0xf]
    %v1796 = vld [vmem:[#allocation2 + $0xbc] sm:$0xf]
    %v1797 = vpack.c.bf16 %v626, %v625
    %v1798 = vpack.c.bf16 %v628, %v627
    %v1799 = vpack.c.bf16 %v1186, %v1185
    %v1800 = vpack.c.bf16 %v1188, %v1187
    %v1817 = vunpack.c.l.b16 %v1765
    %v1818 = vunpack.c.l.b16 %v1766
    %v1819 = vunpack.c.l.b16 %v1767
    %v1820 = vunpack.c.l.b16 %v1768
    %v1821 = vunpack.c.l.b16 %v1769
    %v1822 = vunpack.c.l.b16 %v1770
    %v1823 = vunpack.c.l.b16 %v1771
    %v1824 = vunpack.c.l.b16 %v1772
    %v1825 = vunpack.c.l.b16 %v1773
    %v1826 = vunpack.c.l.b16 %v1774
    %v1827 = vunpack.c.l.b16 %v1775
    %v1828 = vunpack.c.l.b16 %v1776
    %v1829 = vunpack.c.l.b16 %v1777
    %v1830 = vunpack.c.l.b16 %v1778
    %v1831 = vunpack.c.l.b16 %v1779
    %v1832 = vunpack.c.l.b16 %v1780
    %v1833 = vpack.c.b16 %v1818, %v1817
    %v1834 = vpack.c.b16 %v1820, %v1819
    %v1835 = vpack.c.b16 %v1822, %v1821
    %v1836 = vpack.c.b16 %v1824, %v1823
    %v1837 = vpack.c.b16 %v1826, %v1825
    %v1838 = vpack.c.b16 %v1828, %v1827
    %v1839 = vpack.c.b16 %v1830, %v1829
    %v1840 = vpack.c.b16 %v1832, %v1831
    %1849 = vmatpush.bf16.msra.mxu0 %v1840
    %1850 = vmatpush.bf16.msra.mxu0 %v1839
    %1851 = vmatpush.bf16.msra.mxu0 %v1838
    %1852 = vmatpush.bf16.msra.mxu0 %v1837
    %1853 = vmatpush.bf16.msra.mxu0 %v1836
    %1854 = vmatpush.bf16.msra.mxu0 %v1835
    %1855 = vmatpush.bf16.msra.mxu0 %v1834
    %1856 = vmatpush.bf16.msra.mxu0 %v1833
    %1857 = vmatmul.bf16.gmra.mxu0 %v1799
    %v1858 = vpop.f32.mrf.mxu0
    %v1859 = vadd.f32 0.0, %v1858
    %v1860 = vpop.f32.mrf.mxu0
    %v1861 = vadd.f32 0.0, %v1860
    %1862 = vmatmul.bf16.gmra.mxu0 %v1800
    %v1863 = vpop.f32.mrf.mxu0
    %v1864 = vadd.f32 0.0, %v1863
    %v1865 = vpop.f32.mrf.mxu0
    %v1866 = vadd.f32 0.0, %v1865
    %1867 = vdwg.mxu0
    %v1884 = vunpack.c.l.b16 %v1749
    %v1885 = vunpack.c.l.b16 %v1750
    %v1886 = vunpack.c.l.b16 %v1751
    %v1887 = vunpack.c.l.b16 %v1752
    %v1888 = vunpack.c.l.b16 %v1753
    %v1889 = vunpack.c.l.b16 %v1754
    %v1890 = vunpack.c.l.b16 %v1755
    %v1891 = vunpack.c.l.b16 %v1756
    %v1892 = vunpack.c.l.b16 %v1757
    %v1893 = vunpack.c.l.b16 %v1758
    %v1894 = vunpack.c.l.b16 %v1759
    %v1895 = vunpack.c.l.b16 %v1760
    %v1896 = vunpack.c.l.b16 %v1761
    %v1897 = vunpack.c.l.b16 %v1762
    %v1898 = vunpack.c.l.b16 %v1763
    %v1899 = vunpack.c.l.b16 %v1764
    %v1900 = vpack.c.b16 %v1885, %v1884
    %v1901 = vpack.c.b16 %v1887, %v1886
    %v1902 = vpack.c.b16 %v1889, %v1888
    %v1903 = vpack.c.b16 %v1891, %v1890
    %v1904 = vpack.c.b16 %v1893, %v1892
    %v1905 = vpack.c.b16 %v1895, %v1894
    %v1906 = vpack.c.b16 %v1897, %v1896
    %v1907 = vpack.c.b16 %v1899, %v1898
    %1916 = vmatpush.bf16.msra.mxu0 %v1907
    %1917 = vmatpush.bf16.msra.mxu0 %v1906
    %1918 = vmatpush.bf16.msra.mxu0 %v1905
    %1919 = vmatpush.bf16.msra.mxu0 %v1904
    %1920 = vmatpush.bf16.msra.mxu0 %v1903
    %1921 = vmatpush.bf16.msra.mxu0 %v1902
    %1922 = vmatpush.bf16.msra.mxu0 %v1901
    %1923 = vmatpush.bf16.msra.mxu0 %v1900
    %1924 = vmatmul.bf16.gmra.mxu0 %v1797
    %v1925 = vpop.f32.mrf.mxu0
    %v1926 = vadd.f32 %v1859, %v1925
    %v1927 = vpop.f32.mrf.mxu0
    %v1928 = vadd.f32 %v1861, %v1927
    %1929 = vmatmul.bf16.gmra.mxu0 %v1798
    %v1930 = vpop.f32.mrf.mxu0
    %v1931 = vadd.f32 %v1864, %v1930
    %v1932 = vpop.f32.mrf.mxu0
    %v1933 = vadd.f32 %v1866, %v1932
    %1934 = vdwg.mxu0
    %v1935 = vpack.c.bf16 %v1746, %v1745
    %v1936 = vpack.c.bf16 %v1748, %v1747
    %v1953 = vunpack.c.l.b16 %v1781
    %v1954 = vunpack.c.l.b16 %v1782
    %v1955 = vunpack.c.l.b16 %v1783
    %v1956 = vunpack.c.l.b16 %v1784
    %v1957 = vunpack.c.l.b16 %v1785
    %v1958 = vunpack.c.l.b16 %v1786
    %v1959 = vunpack.c.l.b16 %v1787
    %v1960 = vunpack.c.l.b16 %v1788
    %v1961 = vunpack.c.l.b16 %v1789
    %v1962 = vunpack.c.l.b16 %v1790
    %v1963 = vunpack.c.l.b16 %v1791
    %v1964 = vunpack.c.l.b16 %v1792
    %v1965 = vunpack.c.l.b16 %v1793
    %v1966 = vunpack.c.l.b16 %v1794
    %v1967 = vunpack.c.l.b16 %v1795
    %v1968 = vunpack.c.l.b16 %v1796
    %v1969 = vpack.c.b16 %v1954, %v1953
    %v1970 = vpack.c.b16 %v1956, %v1955
    %v1971 = vpack.c.b16 %v1958, %v1957
    %v1972 = vpack.c.b16 %v1960, %v1959
    %v1973 = vpack.c.b16 %v1962, %v1961
    %v1974 = vpack.c.b16 %v1964, %v1963
    %v1975 = vpack.c.b16 %v1966, %v1965
    %v1976 = vpack.c.b16 %v1968, %v1967
    %1985 = vmatpush.bf16.msra.mxu0 %v1976
    %1986 = vmatpush.bf16.msra.mxu0 %v1975
    %1987 = vmatpush.bf16.msra.mxu0 %v1974
    %1988 = vmatpush.bf16.msra.mxu0 %v1973
    %1989 = vmatpush.bf16.msra.mxu0 %v1972
    %1990 = vmatpush.bf16.msra.mxu0 %v1971
    %1991 = vmatpush.bf16.msra.mxu0 %v1970
    %1992 = vmatpush.bf16.msra.mxu0 %v1969
    %1993 = vmatmul.bf16.gmra.mxu0 %v1935
    %v1994 = vpop.f32.mrf.mxu0
    %v1995 = vadd.f32 0.0, %v1994
    %v1996 = vpop.f32.mrf.mxu0
    %v1997 = vadd.f32 0.0, %v1996
    %1998 = vmatmul.bf16.gmra.mxu0 %v1936
    %v1999 = vpop.f32.mrf.mxu0
    %v2000 = vadd.f32 0.0, %v1999
    %v2001 = vpop.f32.mrf.mxu0
    %v2002 = vadd.f32 0.0, %v2001
    %2003 = vdwg.mxu0
    %v2004 = vadd.f32 %v1926, %v1995
    %v2005 = vadd.f32 %v1928, %v1997
    %v2006 = vadd.f32 %v1931, %v2000
    %v2007 = vadd.f32 %v1933, %v2002
    %v2008 = vld [vmem:[%s9] sm:$0x1]
    %v2010 = vperm.slane %v2008, 0
    %v2012 = vadd.f32 %v2004, %v2010
    %v2013 = vadd.f32 %v2005, %v2010
    %v2014 = vadd.f32 %v2006, %v2010
    %v2015 = vadd.f32 %v2007, %v2010
    %v2016 = vmul.f32 %v2012, %v2012
    %v2017 = vmul.f32 %v2013, %v2013
    %v2018 = vmul.f32 %v2014, %v2014
    %v2019 = vmul.f32 %v2015, %v2015
    %v2020 = vmul.f32 %v2012, %v2016
    %v2021 = vmul.f32 %v2013, %v2017
    %v2022 = vmul.f32 %v2014, %v2018
    %v2023 = vmul.f32 %v2015, %v2019
    %v2024 = vmul.f32 %v2020, 0.044715
    %v2025 = vmul.f32 %v2021, 0.044715
    %v2026 = vmul.f32 %v2022, 0.044715
    %v2027 = vmul.f32 %v2023, 0.044715
    %v2028 = vadd.f32 %v2012, %v2024
    %v2029 = vadd.f32 %v2013, %v2025
    %v2030 = vadd.f32 %v2014, %v2026
    %v2031 = vadd.f32 %v2015, %v2027
    %v2032 = vmul.f32 %v2028, 0.7978846
    %v2033 = vmul.f32 %v2029, 0.7978846
    %v2034 = vmul.f32 %v2030, 0.7978846
    %v2035 = vmul.f32 %v2031, 0.7978846
    %v2036 = vtanh.pop %v2032
    %v2037 = vtanh.pop %v2033
    %v2038 = vtanh.pop %v2034
    %v2039 = vtanh.pop %v2035
    %v2040 = vadd.f32 %v2036, 1.0
    %v2041 = vadd.f32 %v2037, 1.0
    %v2042 = vadd.f32 %v2038, 1.0
    %v2043 = vadd.f32 %v2039, 1.0
    %v2044 = vmul.f32 %v2040, 0.5
    %v2045 = vmul.f32 %v2041, 0.5
    %v2046 = vmul.f32 %v2042, 0.5
    %v2047 = vmul.f32 %v2043, 0.5
    %v2048 = vmul.f32 %v2012, %v2044
    %v2049 = vmul.f32 %v2013, %v2045
    %v2050 = vmul.f32 %v2014, %v2046
    %v2051 = vmul.f32 %v2015, %v2047
    %2052 = vst [vmem:[%s10] sm:$0xff] %v2048
    %2053 = vst [vmem:[%s10 + $0x8] sm:$0xff] %v2049
    %2054 = vst [vmem:[%s10 + $0x10] sm:$0xff] %v2050
    %2055 = vst [vmem:[%s10 + $0x18] sm:$0xff] %v2051
    // Predicated region
    $region46: #{re2_forward.16} parent=1 // pred_check
      _
    $region47: #{re2_forward.16} parent=1 // pred_check_branch
      %2057 = sbr.rel (0) target = $region49
    $region48: #{re2_forward.16} parent=1 // pred_region
      _
    $region49: #{re2_forward.16} parent=1 // pred_fallthru
      _
    // Predicated region
    $region50: #{re2_forward.16} parent=1 // pred_check
      _
    $region51: #{re2_forward.16} parent=1 // pred_check_branch
      %2059 = sbr.rel (0) target = $region53
    $region52: #{re2_forward.16} parent=1 // pred_region
      _
    $region53: #{re2_forward.16} parent=1 // pred_fallthru
      _
    %2060 = vsyncpa [#allocation3], 1

</llo_original>
